<compile_context>
chip_gen: v7x
topology: tpu7x:2x2x1
jax: 0.10.0
libtpu: 0.0.40
codegen_flags: <defaults>
</compile_context>

<pallas_src>
import functools

import jax
import jax.numpy as jnp
import numpy as np
from jax.experimental import pallas as pl
from jax.experimental.pallas import tpu as pltpu


def _round_up(x, m):
    return (x + m - 1) // m * m


def _conv3d_maxpool_kernel(x_ref, w_ref, band_ref, o_ref, p_ref, *,
                           row_pitch, plane_pitch):
    """One batch element.

    x_ref    : (1, Cin, Sp)   zero-padded input, spatial volume flattened on the
                              lane axis (flat idx = d*plane + h*row + w), bf16
    w_ref    : (Cout, 27*Cin) conv taps, column k = (kd*9 + kh*3 + kw)*Cin + ci, bf16
    band_ref : (Cout, M)      conv bias on valid lanes, -inf on invalid lanes
                              (wrap band h>=H / w>=W and the padded tail), f32
    o_ref    : (1, Cout, M)   3x3x3 max at every stride-1 (d, h, w) centre; the
                              stride-2 h/w decimation is a fused slice in the wrapper
    p_ref    : (27*Cin, M)    im2col scratch, bf16
    """
    cin = x_ref.shape[1]
    _, m_len = p_ref.shape

    # ---- im2col: every tap is a lane-shifted copy of the flat padded input ----
    # (v5e follow-up: group taps so each store covers a full sublane tile.)
    for kd in range(3):
        for kh in range(3):
            for kw in range(3):
                t = kd * 9 + kh * 3 + kw
                off = kd * plane_pitch + kh * row_pitch + kw
                p_ref[pl.ds(t * cin, cin), :] = (
                    x_ref[0, :, pl.ds(off, m_len)].astype(p_ref.dtype))

    # ---- conv: ONE (Cout, 27*Cin) @ (27*Cin, M) bf16 MXU matmul, f32 accum ----
    conv = jnp.dot(w_ref[...], p_ref[...], preferred_element_type=jnp.float32)
    m_val = conv + band_ref[...]        # + bias on valid lanes, -inf elsewhere

    # ---- MaxPool3d(3, stride=(1,2,2), padding=1): separable max over d, h, w --
    # pltpu.roll runs on the XLU; lanes that wrap around are masked to -inf so
    # this reproduces exactly the "shift with -inf fill" semantics.
    lane = jax.lax.broadcasted_iota(jnp.int32, (1, m_len), 1)
    for s in (plane_pitch, row_pitch, 1):               # depth, height, width
        fwd = pltpu.roll(m_val, shift=m_len - s, axis=1)    # m_val[p + s]
        fwd = jnp.where(lane >= m_len - s, -jnp.inf, fwd)
        bwd = pltpu.roll(m_val, shift=s, axis=1)            # m_val[p - s]
        bwd = jnp.where(lane < s, -jnp.inf, bwd)
        m_val = jnp.maximum(m_val, jnp.maximum(fwd, bwd))

    o_ref[0] = m_val.astype(o_ref.dtype)


@jax.jit
def conv3d_maxpool(x, weight, bias):
    """x: (N, Cin, D, H, W); weight: (Cout, Cin, 3, 3, 3); bias: (Cout,).

    Returns (N, Cout, D, H//2, W//2), matching Conv3d(k=3,p=1)+MaxPool3d(3,(1,2,2),1).
    """
    N, Cin, D, H, W = x.shape
    Cout = weight.shape[0]
    assert weight.shape == (Cout, Cin, 3, 3, 3)
    assert H % 2 == 0 and W % 2 == 0, "kernel assumes even H, W"
    assert D >= 2

    row = W + 2                          # lane pitch of one padded image row
    plane = (H + 2) * row                # lane pitch of one padded depth slice
    Sp = (D + 2) * plane                 # flattened padded input volume
    max_off = 2 * plane + 2 * row + 2    # largest im2col lane shift
    M = Sp - max_off                     # valid flat conv-output lanes
    Mp = _round_up(M, 128)               # lane-dense (unmasked) working width
    Spp = _round_up(max_off + Mp, 128)   # padded-x lane extent the kernel reads

    # ---- glue (fused under jit): halo zero-pad, flatten, bf16 MXU operands ----
    x_flat = jnp.pad(x, ((0, 0), (0, 0), (1, 1), (1, 1), (1, 1)))
    x_flat = x_flat.reshape(N, Cin, Sp)
    x_flat = jnp.pad(x_flat, ((0, 0), (0, 0), (0, Spp - Sp))).astype(jnp.bfloat16)
    w_mat = jnp.transpose(weight, (0, 2, 3, 4, 1)).reshape(Cout, 27 * Cin)
    w_mat = w_mat.astype(jnp.bfloat16)

    # band: conv bias folded in on valid lanes, -inf on wrap-band lanes
    # (h >= H or w >= W) and on the padded tail (>= M).  Those lanes can never
    # win a max, so MaxPool3d's -inf padding falls out of the flat-index shifts.
    p_idx = np.arange(Mp)
    h_idx = (p_idx % plane) // row
    w_idx = p_idx % row
    valid = (h_idx < H) & (w_idx < W) & (p_idx < M)
    band = jnp.where(jnp.asarray(valid)[None, :],
                     bias.astype(jnp.float32)[:, None], -jnp.inf)   # (Cout, Mp)

    kernel = functools.partial(_conv3d_maxpool_kernel,
                               row_pitch=row, plane_pitch=plane)

    cost = pl.CostEstimate(
        flops=int(N * (2 * Cout * 27 * Cin * Mp + 20 * Cout * Mp)),
        transcendentals=0,
        bytes_accessed=int(N * Cin * Spp * 2 + Cout * 27 * Cin * 2
                           + N * Cout * Mp * 4 + N * Cout * Mp * 4),
    )

    pooled_flat = pl.pallas_call(
        kernel,
        out_shape=jax.ShapeDtypeStruct((N, Cout, Mp), jnp.float32),
        grid_spec=pltpu.PrefetchScalarGridSpec(
            num_scalar_prefetch=0,
            grid=(N,),   # follow-up: second "parallel" depth-tile axis for v7x
            in_specs=[
                pl.BlockSpec((1, Cin, Spp), lambda n: (n, 0, 0)),
                pl.BlockSpec((Cout, 27 * Cin), lambda n: (0, 0)),
                pl.BlockSpec((Cout, Mp), lambda n: (0, 0)),
            ],
            out_specs=pl.BlockSpec((1, Cout, Mp), lambda n: (n, 0, 0)),
            scratch_shapes=[pltpu.VMEM((27 * Cin, Mp), jnp.bfloat16)],
        ),
        compiler_params=pltpu.CompilerParams(
            dimension_semantics=("parallel",),
            vmem_limit_bytes=32 * 1024 * 1024),
        cost_estimate=cost,
    )(x_flat, w_mat, band)

    # ---- glue (fused under jit): stride-2 H/W decimation of the pooled plane ----
    # (In-kernel even/odd lane compaction is the planned follow-up for large H, W.)
    if Mp >= D * plane:
        pooled = pooled_flat[:, :, :D * plane]
    else:
        pooled = jnp.pad(pooled_flat, ((0, 0), (0, 0), (0, D * plane - Mp)))
    pooled = pooled.reshape(N, Cout, D, H + 2, W + 2)
    return pooled[:, :, :, 0:H:2, 0:W:2]          # (N, Cout, D, H//2, W//2)


def _reference(x, weight, bias):
    y = jax.lax.conv_general_dilated(
        x, weight, window_strides=(1, 1, 1),
        padding=((1, 1), (1, 1), (1, 1)),
        dimension_numbers=("NCDHW", "OIDHW", "NCDHW"),
        precision=jax.lax.Precision.HIGHEST)
    y = y + bias[None, :, None, None, None]
    y = jax.lax.reduce_window(
        y, -jnp.inf, jax.lax.max,
        window_dimensions=(1, 1, 3, 3, 3),
        window_strides=(1, 1, 1, 2, 2),
        padding=((0, 0), (0, 0), (1, 1), (1, 1), (1, 1)))
    return y


if __name__ == "__main__":
    N, Cin, Cout = 2, 4, 8
    D, H, W = 8, 16, 16

    key = jax.random.PRNGKey(0)
    kx, kw, kb = jax.random.split(key, 3)
    x = jax.random.normal(kx, (N, Cin, D, H, W), jnp.float32)
    fan_in = float(Cin * 27)
    weight = jax.random.uniform(kw, (Cout, Cin, 3, 3, 3), jnp.float32,
                                minval=-1.0, maxval=1.0) / np.sqrt(fan_in)
    bias = jax.random.uniform(kb, (Cout,), jnp.float32,
                              minval=-1.0, maxval=1.0) / np.sqrt(fan_in)

    out = jax.block_until_ready(conv3d_maxpool(x, weight, bias))
    ref = jax.block_until_ready(_reference(x, weight, bias))
    # bf16 MXU operands (f32 accumulation): tolerance loosened vs the pure-f32 run.
    np.testing.assert_allclose(np.asarray(out), np.asarray(ref),
                               rtol=2e-2, atol=2e-2)
    assert out.shape == (N, Cout, D, H // 2, W // 2)
    print("KERNEL_OK")
</pallas_src>

<mosaic_0001>
module attributes {stable_mosaic.version = 11 : i64} {
  func.func @_conv3d_maxpool_kernel(%arg0: i32, %arg1: memref<1x4x3328xbf16, #tpu.memory_space<vmem>>, %arg2: memref<8x108xbf16, #tpu.memory_space<vmem>>, %arg3: memref<8x2560xf32, #tpu.memory_space<vmem>>, %arg4: memref<1x8x2560xf32, #tpu.memory_space<vmem>>, %arg5: memref<108x2560xbf16, #tpu.memory_space<vmem>>) attributes {dimension_semantics = [#tpu.dimension_semantics<parallel>], iteration_bounds = array<i64: 2>, scalar_prefetch = 0 : i64, scratch_operands = 1 : i64, tpu.core_type = #tpu.core_type<tc>, window_params = [{transform_indices = @transform_0, window_bounds = array<i64: 1, 4, 3328>}, {pipeline_mode = #tpu.pipeline_mode<synchronous>, transform_indices = @transform_1, window_bounds = array<i64: 8, 108>}, {pipeline_mode = #tpu.pipeline_mode<synchronous>, transform_indices = @transform_2, window_bounds = array<i64: 8, 2560>}, {transform_indices = @transform_3, window_bounds = array<i64: 1, 8, 2560>}]} {
    %c0 = arith.constant 0 : index
    %c0_0 = arith.constant 0 : index
    %c0_1 = arith.constant 0 : index
    %0 = vector.load %arg1[%c0, %c0_0, %c0_1] : memref<1x4x3328xbf16, #tpu.memory_space<vmem>>, vector<1x4x2560xbf16>
    %1 = vector.shape_cast %0 : vector<1x4x2560xbf16> to vector<4x2560xbf16>
    %c0_2 = arith.constant 0 : index
    %c0_3 = arith.constant 0 : index
    %2 = vector.load %arg5[%c0_2, %c0_3] : memref<108x2560xbf16, #tpu.memory_space<vmem>>, vector<4x2560xbf16>
    tpu.vector_store %arg5[%c0_2, %c0_3], %1 {strides = array<i32>} : memref<108x2560xbf16, #tpu.memory_space<vmem>>, vector<4x2560xbf16>,
    %c0_4 = arith.constant 0 : index
    %c0_5 = arith.constant 0 : index
    %c1 = arith.constant 1 : index
    %3 = vector.load %arg1[%c0_4, %c0_5, %c1] : memref<1x4x3328xbf16, #tpu.memory_space<vmem>>, vector<1x4x2560xbf16>
    %4 = vector.shape_cast %3 : vector<1x4x2560xbf16> to vector<4x2560xbf16>
    %c4 = arith.constant 4 : index
    %c0_6 = arith.constant 0 : index
    %5 = vector.load %arg5[%c4, %c0_6] : memref<108x2560xbf16, #tpu.memory_space<vmem>>, vector<4x2560xbf16>
    tpu.vector_store %arg5[%c4, %c0_6], %4 {strides = array<i32>} : memref<108x2560xbf16, #tpu.memory_space<vmem>>, vector<4x2560xbf16>,
    %c0_7 = arith.constant 0 : index
    %c0_8 = arith.constant 0 : index
    %c2 = arith.constant 2 : index
    %6 = vector.load %arg1[%c0_7, %c0_8, %c2] : memref<1x4x3328xbf16, #tpu.memory_space<vmem>>, vector<1x4x2560xbf16>
    %7 = vector.shape_cast %6 : vector<1x4x2560xbf16> to vector<4x2560xbf16>
    %c8 = arith.constant 8 : index
    %c0_9 = arith.constant 0 : index
    %8 = vector.load %arg5[%c8, %c0_9] : memref<108x2560xbf16, #tpu.memory_space<vmem>>, vector<4x2560xbf16>
    tpu.vector_store %arg5[%c8, %c0_9], %7 {strides = array<i32>} : memref<108x2560xbf16, #tpu.memory_space<vmem>>, vector<4x2560xbf16>,
    %c0_10 = arith.constant 0 : index
    %c0_11 = arith.constant 0 : index
    %c18 = arith.constant 18 : index
    %9 = vector.load %arg1[%c0_10, %c0_11, %c18] : memref<1x4x3328xbf16, #tpu.memory_space<vmem>>, vector<1x4x2560xbf16>
    %10 = vector.shape_cast %9 : vector<1x4x2560xbf16> to vector<4x2560xbf16>
    %c12 = arith.constant 12 : index
    %c0_12 = arith.constant 0 : index
    %11 = vector.load %arg5[%c12, %c0_12] : memref<108x2560xbf16, #tpu.memory_space<vmem>>, vector<4x2560xbf16>
    tpu.vector_store %arg5[%c12, %c0_12], %10 {strides = array<i32>} : memref<108x2560xbf16, #tpu.memory_space<vmem>>, vector<4x2560xbf16>,
    %c0_13 = arith.constant 0 : index
    %c0_14 = arith.constant 0 : index
    %c19 = arith.constant 19 : index
    %12 = vector.load %arg1[%c0_13, %c0_14, %c19] : memref<1x4x3328xbf16, #tpu.memory_space<vmem>>, vector<1x4x2560xbf16>
    %13 = vector.shape_cast %12 : vector<1x4x2560xbf16> to vector<4x2560xbf16>
    %c16 = arith.constant 16 : index
    %c0_15 = arith.constant 0 : index
    %14 = vector.load %arg5[%c16, %c0_15] : memref<108x2560xbf16, #tpu.memory_space<vmem>>, vector<4x2560xbf16>
    tpu.vector_store %arg5[%c16, %c0_15], %13 {strides = array<i32>} : memref<108x2560xbf16, #tpu.memory_space<vmem>>, vector<4x2560xbf16>,
    %c0_16 = arith.constant 0 : index
    %c0_17 = arith.constant 0 : index
    %c20 = arith.constant 20 : index
    %15 = vector.load %arg1[%c0_16, %c0_17, %c20] : memref<1x4x3328xbf16, #tpu.memory_space<vmem>>, vector<1x4x2560xbf16>
    %16 = vector.shape_cast %15 : vector<1x4x2560xbf16> to vector<4x2560xbf16>
    %c20_18 = arith.constant 20 : index
    %c0_19 = arith.constant 0 : index
    %17 = vector.load %arg5[%c20_18, %c0_19] : memref<108x2560xbf16, #tpu.memory_space<vmem>>, vector<4x2560xbf16>
    tpu.vector_store %arg5[%c20_18, %c0_19], %16 {strides = array<i32>} : memref<108x2560xbf16, #tpu.memory_space<vmem>>, vector<4x2560xbf16>,
    %c0_20 = arith.constant 0 : index
    %c0_21 = arith.constant 0 : index
    %c36 = arith.constant 36 : index
    %18 = vector.load %arg1[%c0_20, %c0_21, %c36] : memref<1x4x3328xbf16, #tpu.memory_space<vmem>>, vector<1x4x2560xbf16>
    %19 = vector.shape_cast %18 : vector<1x4x2560xbf16> to vector<4x2560xbf16>
    %c24 = arith.constant 24 : index
    %c0_22 = arith.constant 0 : index
    %20 = vector.load %arg5[%c24, %c0_22] : memref<108x2560xbf16, #tpu.memory_space<vmem>>, vector<4x2560xbf16>
    tpu.vector_store %arg5[%c24, %c0_22], %19 {strides = array<i32>} : memref<108x2560xbf16, #tpu.memory_space<vmem>>, vector<4x2560xbf16>,
    %c0_23 = arith.constant 0 : index
    %c0_24 = arith.constant 0 : index
    %c37 = arith.constant 37 : index
    %21 = vector.load %arg1[%c0_23, %c0_24, %c37] : memref<1x4x3328xbf16, #tpu.memory_space<vmem>>, vector<1x4x2560xbf16>
    %22 = vector.shape_cast %21 : vector<1x4x2560xbf16> to vector<4x2560xbf16>
    %c28 = arith.constant 28 : index
    %c0_25 = arith.constant 0 : index
    %23 = vector.load %arg5[%c28, %c0_25] : memref<108x2560xbf16, #tpu.memory_space<vmem>>, vector<4x2560xbf16>
    tpu.vector_store %arg5[%c28, %c0_25], %22 {strides = array<i32>} : memref<108x2560xbf16, #tpu.memory_space<vmem>>, vector<4x2560xbf16>,
    %c0_26 = arith.constant 0 : index
    %c0_27 = arith.constant 0 : index
    %c38 = arith.constant 38 : index
    %24 = vector.load %arg1[%c0_26, %c0_27, %c38] : memref<1x4x3328xbf16, #tpu.memory_space<vmem>>, vector<1x4x2560xbf16>
    %25 = vector.shape_cast %24 : vector<1x4x2560xbf16> to vector<4x2560xbf16>
    %c32 = arith.constant 32 : index
    %c0_28 = arith.constant 0 : index
    %26 = vector.load %arg5[%c32, %c0_28] : memref<108x2560xbf16, #tpu.memory_space<vmem>>, vector<4x2560xbf16>
    tpu.vector_store %arg5[%c32, %c0_28], %25 {strides = array<i32>} : memref<108x2560xbf16, #tpu.memory_space<vmem>>, vector<4x2560xbf16>,
    %c0_29 = arith.constant 0 : index
    %c0_30 = arith.constant 0 : index
    %c324 = arith.constant 324 : index
    %27 = vector.load %arg1[%c0_29, %c0_30, %c324] : memref<1x4x3328xbf16, #tpu.memory_space<vmem>>, vector<1x4x2560xbf16>
    %28 = vector.shape_cast %27 : vector<1x4x2560xbf16> to vector<4x2560xbf16>
    %c36_31 = arith.constant 36 : index
    %c0_32 = arith.constant 0 : index
    %29 = vector.load %arg5[%c36_31, %c0_32] : memref<108x2560xbf16, #tpu.memory_space<vmem>>, vector<4x2560xbf16>
    tpu.vector_store %arg5[%c36_31, %c0_32], %28 {strides = array<i32>} : memref<108x2560xbf16, #tpu.memory_space<vmem>>, vector<4x2560xbf16>,
    %c0_33 = arith.constant 0 : index
    %c0_34 = arith.constant 0 : index
    %c325 = arith.constant 325 : index
    %30 = vector.load %arg1[%c0_33, %c0_34, %c325] : memref<1x4x3328xbf16, #tpu.memory_space<vmem>>, vector<1x4x2560xbf16>
    %31 = vector.shape_cast %30 : vector<1x4x2560xbf16> to vector<4x2560xbf16>
    %c40 = arith.constant 40 : index
    %c0_35 = arith.constant 0 : index
    %32 = vector.load %arg5[%c40, %c0_35] : memref<108x2560xbf16, #tpu.memory_space<vmem>>, vector<4x2560xbf16>
    tpu.vector_store %arg5[%c40, %c0_35], %31 {strides = array<i32>} : memref<108x2560xbf16, #tpu.memory_space<vmem>>, vector<4x2560xbf16>,
    %c0_36 = arith.constant 0 : index
    %c0_37 = arith.constant 0 : index
    %c326 = arith.constant 326 : index
    %33 = vector.load %arg1[%c0_36, %c0_37, %c326] : memref<1x4x3328xbf16, #tpu.memory_space<vmem>>, vector<1x4x2560xbf16>
    %34 = vector.shape_cast %33 : vector<1x4x2560xbf16> to vector<4x2560xbf16>
    %c44 = arith.constant 44 : index
    %c0_38 = arith.constant 0 : index
    %35 = vector.load %arg5[%c44, %c0_38] : memref<108x2560xbf16, #tpu.memory_space<vmem>>, vector<4x2560xbf16>
    tpu.vector_store %arg5[%c44, %c0_38], %34 {strides = array<i32>} : memref<108x2560xbf16, #tpu.memory_space<vmem>>, vector<4x2560xbf16>,
    %c0_39 = arith.constant 0 : index
    %c0_40 = arith.constant 0 : index
    %c342 = arith.constant 342 : index
    %36 = vector.load %arg1[%c0_39, %c0_40, %c342] : memref<1x4x3328xbf16, #tpu.memory_space<vmem>>, vector<1x4x2560xbf16>
    %37 = vector.shape_cast %36 : vector<1x4x2560xbf16> to vector<4x2560xbf16>
    %c48 = arith.constant 48 : index
    %c0_41 = arith.constant 0 : index
    %38 = vector.load %arg5[%c48, %c0_41] : memref<108x2560xbf16, #tpu.memory_space<vmem>>, vector<4x2560xbf16>
    tpu.vector_store %arg5[%c48, %c0_41], %37 {strides = array<i32>} : memref<108x2560xbf16, #tpu.memory_space<vmem>>, vector<4x2560xbf16>,
    %c0_42 = arith.constant 0 : index
    %c0_43 = arith.constant 0 : index
    %c343 = arith.constant 343 : index
    %39 = vector.load %arg1[%c0_42, %c0_43, %c343] : memref<1x4x3328xbf16, #tpu.memory_space<vmem>>, vector<1x4x2560xbf16>
    %40 = vector.shape_cast %39 : vector<1x4x2560xbf16> to vector<4x2560xbf16>
    %c52 = arith.constant 52 : index
    %c0_44 = arith.constant 0 : index
    %41 = vector.load %arg5[%c52, %c0_44] : memref<108x2560xbf16, #tpu.memory_space<vmem>>, vector<4x2560xbf16>
    tpu.vector_store %arg5[%c52, %c0_44], %40 {strides = array<i32>} : memref<108x2560xbf16, #tpu.memory_space<vmem>>, vector<4x2560xbf16>,
    %c0_45 = arith.constant 0 : index
    %c0_46 = arith.constant 0 : index
    %c344 = arith.constant 344 : index
    %42 = vector.load %arg1[%c0_45, %c0_46, %c344] : memref<1x4x3328xbf16, #tpu.memory_space<vmem>>, vector<1x4x2560xbf16>
    %43 = vector.shape_cast %42 : vector<1x4x2560xbf16> to vector<4x2560xbf16>
    %c56 = arith.constant 56 : index
    %c0_47 = arith.constant 0 : index
    %44 = vector.load %arg5[%c56, %c0_47] : memref<108x2560xbf16, #tpu.memory_space<vmem>>, vector<4x2560xbf16>
    tpu.vector_store %arg5[%c56, %c0_47], %43 {strides = array<i32>} : memref<108x2560xbf16, #tpu.memory_space<vmem>>, vector<4x2560xbf16>,
    %c0_48 = arith.constant 0 : index
    %c0_49 = arith.constant 0 : index
    %c360 = arith.constant 360 : index
    %45 = vector.load %arg1[%c0_48, %c0_49, %c360] : memref<1x4x3328xbf16, #tpu.memory_space<vmem>>, vector<1x4x2560xbf16>
    %46 = vector.shape_cast %45 : vector<1x4x2560xbf16> to vector<4x2560xbf16>
    %c60 = arith.constant 60 : index
    %c0_50 = arith.constant 0 : index
    %47 = vector.load %arg5[%c60, %c0_50] : memref<108x2560xbf16, #tpu.memory_space<vmem>>, vector<4x2560xbf16>
    tpu.vector_store %arg5[%c60, %c0_50], %46 {strides = array<i32>} : memref<108x2560xbf16, #tpu.memory_space<vmem>>, vector<4x2560xbf16>,
    %c0_51 = arith.constant 0 : index
    %c0_52 = arith.constant 0 : index
    %c361 = arith.constant 361 : index
    %48 = vector.load %arg1[%c0_51, %c0_52, %c361] : memref<1x4x3328xbf16, #tpu.memory_space<vmem>>, vector<1x4x2560xbf16>
    %49 = vector.shape_cast %48 : vector<1x4x2560xbf16> to vector<4x2560xbf16>
    %c64 = arith.constant 64 : index
    %c0_53 = arith.constant 0 : index
    %50 = vector.load %arg5[%c64, %c0_53] : memref<108x2560xbf16, #tpu.memory_space<vmem>>, vector<4x2560xbf16>
    tpu.vector_store %arg5[%c64, %c0_53], %49 {strides = array<i32>} : memref<108x2560xbf16, #tpu.memory_space<vmem>>, vector<4x2560xbf16>,
    %c0_54 = arith.constant 0 : index
    %c0_55 = arith.constant 0 : index
    %c362 = arith.constant 362 : index
    %51 = vector.load %arg1[%c0_54, %c0_55, %c362] : memref<1x4x3328xbf16, #tpu.memory_space<vmem>>, vector<1x4x2560xbf16>
    %52 = vector.shape_cast %51 : vector<1x4x2560xbf16> to vector<4x2560xbf16>
    %c68 = arith.constant 68 : index
    %c0_56 = arith.constant 0 : index
    %53 = vector.load %arg5[%c68, %c0_56] : memref<108x2560xbf16, #tpu.memory_space<vmem>>, vector<4x2560xbf16>
    tpu.vector_store %arg5[%c68, %c0_56], %52 {strides = array<i32>} : memref<108x2560xbf16, #tpu.memory_space<vmem>>, vector<4x2560xbf16>,
    %c0_57 = arith.constant 0 : index
    %c0_58 = arith.constant 0 : index
    %c648 = arith.constant 648 : index
    %54 = vector.load %arg1[%c0_57, %c0_58, %c648] : memref<1x4x3328xbf16, #tpu.memory_space<vmem>>, vector<1x4x2560xbf16>
    %55 = vector.shape_cast %54 : vector<1x4x2560xbf16> to vector<4x2560xbf16>
    %c72 = arith.constant 72 : index
    %c0_59 = arith.constant 0 : index
    %56 = vector.load %arg5[%c72, %c0_59] : memref<108x2560xbf16, #tpu.memory_space<vmem>>, vector<4x2560xbf16>
    tpu.vector_store %arg5[%c72, %c0_59], %55 {strides = array<i32>} : memref<108x2560xbf16, #tpu.memory_space<vmem>>, vector<4x2560xbf16>,
    %c0_60 = arith.constant 0 : index
    %c0_61 = arith.constant 0 : index
    %c649 = arith.constant 649 : index
    %57 = vector.load %arg1[%c0_60, %c0_61, %c649] : memref<1x4x3328xbf16, #tpu.memory_space<vmem>>, vector<1x4x2560xbf16>
    %58 = vector.shape_cast %57 : vector<1x4x2560xbf16> to vector<4x2560xbf16>
    %c76 = arith.constant 76 : index
    %c0_62 = arith.constant 0 : index
    %59 = vector.load %arg5[%c76, %c0_62] : memref<108x2560xbf16, #tpu.memory_space<vmem>>, vector<4x2560xbf16>
    tpu.vector_store %arg5[%c76, %c0_62], %58 {strides = array<i32>} : memref<108x2560xbf16, #tpu.memory_space<vmem>>, vector<4x2560xbf16>,
    %c0_63 = arith.constant 0 : index
    %c0_64 = arith.constant 0 : index
    %c650 = arith.constant 650 : index
    %60 = vector.load %arg1[%c0_63, %c0_64, %c650] : memref<1x4x3328xbf16, #tpu.memory_space<vmem>>, vector<1x4x2560xbf16>
    %61 = vector.shape_cast %60 : vector<1x4x2560xbf16> to vector<4x2560xbf16>
    %c80 = arith.constant 80 : index
    %c0_65 = arith.constant 0 : index
    %62 = vector.load %arg5[%c80, %c0_65] : memref<108x2560xbf16, #tpu.memory_space<vmem>>, vector<4x2560xbf16>
    tpu.vector_store %arg5[%c80, %c0_65], %61 {strides = array<i32>} : memref<108x2560xbf16, #tpu.memory_space<vmem>>, vector<4x2560xbf16>,
    %c0_66 = arith.constant 0 : index
    %c0_67 = arith.constant 0 : index
    %c666 = arith.constant 666 : index
    %63 = vector.load %arg1[%c0_66, %c0_67, %c666] : memref<1x4x3328xbf16, #tpu.memory_space<vmem>>, vector<1x4x2560xbf16>
    %64 = vector.shape_cast %63 : vector<1x4x2560xbf16> to vector<4x2560xbf16>
    %c84 = arith.constant 84 : index
    %c0_68 = arith.constant 0 : index
    %65 = vector.load %arg5[%c84, %c0_68] : memref<108x2560xbf16, #tpu.memory_space<vmem>>, vector<4x2560xbf16>
    tpu.vector_store %arg5[%c84, %c0_68], %64 {strides = array<i32>} : memref<108x2560xbf16, #tpu.memory_space<vmem>>, vector<4x2560xbf16>,
    %c0_69 = arith.constant 0 : index
    %c0_70 = arith.constant 0 : index
    %c667 = arith.constant 667 : index
    %66 = vector.load %arg1[%c0_69, %c0_70, %c667] : memref<1x4x3328xbf16, #tpu.memory_space<vmem>>, vector<1x4x2560xbf16>
    %67 = vector.shape_cast %66 : vector<1x4x2560xbf16> to vector<4x2560xbf16>
    %c88 = arith.constant 88 : index
    %c0_71 = arith.constant 0 : index
    %68 = vector.load %arg5[%c88, %c0_71] : memref<108x2560xbf16, #tpu.memory_space<vmem>>, vector<4x2560xbf16>
    tpu.vector_store %arg5[%c88, %c0_71], %67 {strides = array<i32>} : memref<108x2560xbf16, #tpu.memory_space<vmem>>, vector<4x2560xbf16>,
    %c0_72 = arith.constant 0 : index
    %c0_73 = arith.constant 0 : index
    %c668 = arith.constant 668 : index
    %69 = vector.load %arg1[%c0_72, %c0_73, %c668] : memref<1x4x3328xbf16, #tpu.memory_space<vmem>>, vector<1x4x2560xbf16>
    %70 = vector.shape_cast %69 : vector<1x4x2560xbf16> to vector<4x2560xbf16>
    %c92 = arith.constant 92 : index
    %c0_74 = arith.constant 0 : index
    %71 = vector.load %arg5[%c92, %c0_74] : memref<108x2560xbf16, #tpu.memory_space<vmem>>, vector<4x2560xbf16>
    tpu.vector_store %arg5[%c92, %c0_74], %70 {strides = array<i32>} : memref<108x2560xbf16, #tpu.memory_space<vmem>>, vector<4x2560xbf16>,
    %c0_75 = arith.constant 0 : index
    %c0_76 = arith.constant 0 : index
    %c684 = arith.constant 684 : index
    %72 = vector.load %arg1[%c0_75, %c0_76, %c684] : memref<1x4x3328xbf16, #tpu.memory_space<vmem>>, vector<1x4x2560xbf16>
    %73 = vector.shape_cast %72 : vector<1x4x2560xbf16> to vector<4x2560xbf16>
    %c96 = arith.constant 96 : index
    %c0_77 = arith.constant 0 : index
    %74 = vector.load %arg5[%c96, %c0_77] : memref<108x2560xbf16, #tpu.memory_space<vmem>>, vector<4x2560xbf16>
    tpu.vector_store %arg5[%c96, %c0_77], %73 {strides = array<i32>} : memref<108x2560xbf16, #tpu.memory_space<vmem>>, vector<4x2560xbf16>,
    %c0_78 = arith.constant 0 : index
    %c0_79 = arith.constant 0 : index
    %c685 = arith.constant 685 : index
    %75 = vector.load %arg1[%c0_78, %c0_79, %c685] : memref<1x4x3328xbf16, #tpu.memory_space<vmem>>, vector<1x4x2560xbf16>
    %76 = vector.shape_cast %75 : vector<1x4x2560xbf16> to vector<4x2560xbf16>
    %c100 = arith.constant 100 : index
    %c0_80 = arith.constant 0 : index
    %77 = vector.load %arg5[%c100, %c0_80] : memref<108x2560xbf16, #tpu.memory_space<vmem>>, vector<4x2560xbf16>
    tpu.vector_store %arg5[%c100, %c0_80], %76 {strides = array<i32>} : memref<108x2560xbf16, #tpu.memory_space<vmem>>, vector<4x2560xbf16>,
    %c0_81 = arith.constant 0 : index
    %c0_82 = arith.constant 0 : index
    %c686 = arith.constant 686 : index
    %78 = vector.load %arg1[%c0_81, %c0_82, %c686] : memref<1x4x3328xbf16, #tpu.memory_space<vmem>>, vector<1x4x2560xbf16>
    %79 = vector.shape_cast %78 : vector<1x4x2560xbf16> to vector<4x2560xbf16>
    %c104 = arith.constant 104 : index
    %c0_83 = arith.constant 0 : index
    %80 = vector.load %arg5[%c104, %c0_83] : memref<108x2560xbf16, #tpu.memory_space<vmem>>, vector<4x2560xbf16>
    tpu.vector_store %arg5[%c104, %c0_83], %79 {strides = array<i32>} : memref<108x2560xbf16, #tpu.memory_space<vmem>>, vector<4x2560xbf16>,
    %c0_84 = arith.constant 0 : index
    %c0_85 = arith.constant 0 : index
    %81 = vector.load %arg2[%c0_84, %c0_85] : memref<8x108xbf16, #tpu.memory_space<vmem>>, vector<8x108xbf16>
    %c0_86 = arith.constant 0 : index
    %c0_87 = arith.constant 0 : index
    %82 = vector.load %arg5[%c0_86, %c0_87] : memref<108x2560xbf16, #tpu.memory_space<vmem>>, vector<108x2560xbf16>
    %cst = arith.constant dense<0.000000e+00> : vector<8x2560xf32>
    %83 = tpu.matmul %81, %82, %cst {dimension_numbers = #tpu.dot_dimension_numbers<[1], [0], [0], [1], [0, 0, 1, 1], [], []>} : vector<8x108xbf16>, vector<108x2560xbf16>, vector<8x2560xf32> -> vector<8x2560xf32>
    %c0_88 = arith.constant 0 : index
    %c0_89 = arith.constant 0 : index
    %84 = vector.load %arg3[%c0_88, %c0_89] : memref<8x2560xf32, #tpu.memory_space<vmem>>, vector<8x2560xf32>
    %85 = arith.addf %83, %84 : vector<8x2560xf32>
    %86 = tpu.iota {dimensions = array<i32: 1>} : vector<1x2560xi32>
    %c2236_i32 = arith.constant 2236 : i32
    %87 = tpu.dynamic_rotate %85 by %c2236_i32 dim 1 : vector<8x2560xf32>, i32 -> vector<8x2560xf32>
    %c2236_i32_90 = arith.constant 2236 : i32
    %88 = vector.broadcast %c2236_i32_90 : i32 to vector<1x2560xi32>
    %89 = arith.cmpi sge, %86, %88 : vector<1x2560xi32>
    %cst_91 = arith.constant 0xFF800000 : f32
    %90 = vector.shape_cast %89 : vector<1x2560xi1> to vector<1x2560xi1>
    %91 = vector.broadcast %90 : vector<1x2560xi1> to vector<8x2560xi1>
    %92 = vector.broadcast %cst_91 : f32 to vector<8x2560xf32>
    %93 = arith.select %91, %92, %87 : vector<8x2560xi1>, vector<8x2560xf32>
    %c324_i32 = arith.constant 324 : i32
    %94 = tpu.dynamic_rotate %85 by %c324_i32 dim 1 : vector<8x2560xf32>, i32 -> vector<8x2560xf32>
    %c324_i32_92 = arith.constant 324 : i32
    %95 = vector.broadcast %c324_i32_92 : i32 to vector<1x2560xi32>
    %96 = arith.cmpi slt, %86, %95 : vector<1x2560xi32>
    %cst_93 = arith.constant 0xFF800000 : f32
    %97 = vector.shape_cast %96 : vector<1x2560xi1> to vector<1x2560xi1>
    %98 = vector.broadcast %97 : vector<1x2560xi1> to vector<8x2560xi1>
    %99 = vector.broadcast %cst_93 : f32 to vector<8x2560xf32>
    %100 = arith.select %98, %99, %94 : vector<8x2560xi1>, vector<8x2560xf32>
    %101 = arith.maximumf %93, %100 : vector<8x2560xf32>
    %102 = arith.maximumf %85, %101 : vector<8x2560xf32>
    %c2542_i32 = arith.constant 2542 : i32
    %103 = tpu.dynamic_rotate %102 by %c2542_i32 dim 1 : vector<8x2560xf32>, i32 -> vector<8x2560xf32>
    %c2542_i32_94 = arith.constant 2542 : i32
    %104 = vector.broadcast %c2542_i32_94 : i32 to vector<1x2560xi32>
    %105 = arith.cmpi sge, %86, %104 : vector<1x2560xi32>
    %cst_95 = arith.constant 0xFF800000 : f32
    %106 = vector.shape_cast %105 : vector<1x2560xi1> to vector<1x2560xi1>
    %107 = vector.broadcast %106 : vector<1x2560xi1> to vector<8x2560xi1>
    %108 = vector.broadcast %cst_95 : f32 to vector<8x2560xf32>
    %109 = arith.select %107, %108, %103 : vector<8x2560xi1>, vector<8x2560xf32>
    %c18_i32 = arith.constant 18 : i32
    %110 = tpu.dynamic_rotate %102 by %c18_i32 dim 1 : vector<8x2560xf32>, i32 -> vector<8x2560xf32>
    %c18_i32_96 = arith.constant 18 : i32
    %111 = vector.broadcast %c18_i32_96 : i32 to vector<1x2560xi32>
    %112 = arith.cmpi slt, %86, %111 : vector<1x2560xi32>
    %cst_97 = arith.constant 0xFF800000 : f32
    %113 = vector.shape_cast %112 : vector<1x2560xi1> to vector<1x2560xi1>
    %114 = vector.broadcast %113 : vector<1x2560xi1> to vector<8x2560xi1>
    %115 = vector.broadcast %cst_97 : f32 to vector<8x2560xf32>
    %116 = arith.select %114, %115, %110 : vector<8x2560xi1>, vector<8x2560xf32>
    %117 = arith.maximumf %109, %116 : vector<8x2560xf32>
    %118 = arith.maximumf %102, %117 : vector<8x2560xf32>
    %c2559_i32 = arith.constant 2559 : i32
    %119 = tpu.dynamic_rotate %118 by %c2559_i32 dim 1 : vector<8x2560xf32>, i32 -> vector<8x2560xf32>
    %c2559_i32_98 = arith.constant 2559 : i32
    %120 = vector.broadcast %c2559_i32_98 : i32 to vector<1x2560xi32>
    %121 = arith.cmpi sge, %86, %120 : vector<1x2560xi32>
    %cst_99 = arith.constant 0xFF800000 : f32
    %122 = vector.shape_cast %121 : vector<1x2560xi1> to vector<1x2560xi1>
    %123 = vector.broadcast %122 : vector<1x2560xi1> to vector<8x2560xi1>
    %124 = vector.broadcast %cst_99 : f32 to vector<8x2560xf32>
    %125 = arith.select %123, %124, %119 : vector<8x2560xi1>, vector<8x2560xf32>
    %c1_i32 = arith.constant 1 : i32
    %126 = tpu.dynamic_rotate %118 by %c1_i32 dim 1 : vector<8x2560xf32>, i32 -> vector<8x2560xf32>
    %c1_i32_100 = arith.constant 1 : i32
    %127 = vector.broadcast %c1_i32_100 : i32 to vector<1x2560xi32>
    %128 = arith.cmpi slt, %86, %127 : vector<1x2560xi32>
    %cst_101 = arith.constant 0xFF800000 : f32
    %129 = vector.shape_cast %128 : vector<1x2560xi1> to vector<1x2560xi1>
    %130 = vector.broadcast %129 : vector<1x2560xi1> to vector<8x2560xi1>
    %131 = vector.broadcast %cst_101 : f32 to vector<8x2560xf32>
    %132 = arith.select %130, %131, %126 : vector<8x2560xi1>, vector<8x2560xf32>
    %133 = arith.maximumf %125, %132 : vector<8x2560xf32>
    %134 = arith.maximumf %118, %133 : vector<8x2560xf32>
    %c0_102 = arith.constant 0 : index
    %c0_103 = arith.constant 0 : index
    %c0_104 = arith.constant 0 : index
    %135 = vector.load %arg4[%c0_102, %c0_103, %c0_104] : memref<1x8x2560xf32, #tpu.memory_space<vmem>>, vector<1x8x2560xf32>
    %136 = vector.shape_cast %135 : vector<1x8x2560xf32> to vector<8x2560xf32>
    %137 = vector.shape_cast %134 : vector<8x2560xf32> to vector<1x8x2560xf32>
    tpu.vector_store %arg4[%c0_102, %c0_103, %c0_104], %137 {strides = array<i32>} : memref<1x8x2560xf32, #tpu.memory_space<vmem>>, vector<1x8x2560xf32>,
    return
  }
  func.func @transform_0(%arg0: i32) -> (i32, i32, i32) {
    %c0_i32 = arith.constant 0 : i32
    %c0_i32_0 = arith.constant 0 : i32
    %c0_i32_1 = arith.constant 0 : i32
    return %arg0, %c0_i32, %c0_i32_0 : i32, i32, i32
  }
  func.func @transform_1(%arg0: i32) -> (i32, i32) {
    %c0_i32 = arith.constant 0 : i32
    %c0_i32_0 = arith.constant 0 : i32
    %c0_i32_1 = arith.constant 0 : i32
    return %c0_i32, %c0_i32_0 : i32, i32
  }
  func.func @transform_2(%arg0: i32) -> (i32, i32) {
    %c0_i32 = arith.constant 0 : i32
    %c0_i32_0 = arith.constant 0 : i32
    %c0_i32_1 = arith.constant 0 : i32
    return %c0_i32, %c0_i32_0 : i32, i32
  }
  func.func @transform_3(%arg0: i32) -> (i32, i32, i32) {
    %c0_i32 = arith.constant 0 : i32
    %c0_i32_0 = arith.constant 0 : i32
    %c0_i32_1 = arith.constant 0 : i32
    return %arg0, %c0_i32, %c0_i32_0 : i32, i32, i32
  }
}

</mosaic_0001>

<llo_original>
// kernel: conv3d_maxpool.1
$region0: #{conv3d_maxpool.1}
  #allocation0 [shape = 'u32[]', space=smem, size = 0x4, offset = 0x4, fixed_abs, tag = 'smem constant byte address 0x4 - core index']
  #allocation1 [shape = 'u32[144,128]{1,0:T(1,128)}', space=vmem, size = 0x12000, scoped, tag = 'internal scratch']
  #allocation2 [shape = 'bf16[108,2560]{1,0:T(8,128)(2,1)}', space=vmem, size = 0x8c000, scoped, tag = 'scratch operand']
  %s0 = inlined_call_operand.vmem [shape: bf16[2,4,3328], index: 0, kind: input, shape index: {}]
  %s1 = inlined_call_operand.vmem [shape: bf16[8,108], index: 1, kind: input, shape index: {}]
  %s2 = inlined_call_operand.vmem [shape: f32[8,2560], index: 2, kind: input, shape index: {}]
  %s3 = inlined_call_operand.vmem [shape: f32[2,8,2560], index: 3, kind: output, shape index: {}]
  %s4 = sld [smem:[#allocation0]]
  $region45: #{conv3d_maxpool.1} parent=0
    _
  %s6 = ssub.s32 1, %s4
  %s7 = scalar_select 0, %s6, %s4
  loop: start=0, step=1, limit=4
  $region2: #{conv3d_maxpool.1} parent=0 // loop_pre_header
    _
  $region3: #{conv3d_maxpool.1} parent=0 // loop_header
    %s9 = sphi 0, %s13
    %p10 = scmp.ge.s32.totalorder %s9, 4
    %s19 = sphi 0, %s21
    %s22 = sphi 0, %s19
    %s23 = sphi 0, %s22
    %s39 = sphi 0, %s23
    %s43 = sphi 0, %s43
    %s45 = sphi 0, %s43
    %s46 = sphi 0, %s45
    %s60 = sphi 0, %s46
    %s64 = sphi 0, %s64
    %s66 = sphi 0, %s64
    %s67 = sphi 0, %s66
    %s81 = sphi 0, %s67
    %s87 = sphi 0, %s89
    %s90 = sphi 0, %s87
    %s91 = sphi 0, %s90
    %s107 = sphi 0, %s91
  $region4: #{conv3d_maxpool.1} parent=0 // loop_header_branch
    %12 = sbr.rel (%p10) target = $region8
  $region5: #{conv3d_maxpool.1} parent=0 // loop_body
    %s14 = ssub.s32 %s9, 1
    %s15 = ssub.s32 %s9, 2
    %s16 = sadd.s32 %s9, 1
    %s17 = ssub.s32 %s9, %s16
    %p18 = scmp.eq.s32.totalorder %s17, 0
    %s20 = sadd.s32 %s19, 1
    %s21 = scalar_select %p18, %s19, %s20
    %p24 = pneg %p18
    %p25 = scmp.eq.s32.totalorder %s9, 1
    %p26 = por %p24, %p25
    %p27 = scmp.ne.s32.totalorder %s19, %s22
    %p28 = scmp.eq.s32.totalorder %s9, 0
    %p29 = por %p27, %p28
    %p30 = scmp.ne.s32.totalorder %s19, %s22
    %p31 = scmp.eq.s32.totalorder %s14, 1
    %p32 = por %p30, %p31
    %p33 = scmp.ne.s32.totalorder %s22, %s23
    %p34 = scmp.eq.s32.totalorder %s14, 0
    %p35 = por %p33, %p34
    %p36 = scmp.ne.s32.totalorder %s22, %s23
    %p37 = scmp.eq.s32.totalorder %s15, 1
    %p38 = por %p36, %p37
    %p40 = scmp.ne.s32.totalorder %s23, %s39
    %p41 = scmp.eq.s32.totalorder %s15, 0
    %p42 = por %p40, %p41
    %s44 = sadd.s32 %s43, 1
    %p47 = scmp.eq.s32.totalorder %s9, 1
    %p48 = scmp.ne.s32.totalorder %s43, %s45
    %p49 = scmp.eq.s32.totalorder %s9, 0
    %p50 = por %p48, %p49
    %p51 = scmp.ne.s32.totalorder %s43, %s45
    %p52 = scmp.eq.s32.totalorder %s14, 1
    %p53 = por %p51, %p52
    %p54 = scmp.ne.s32.totalorder %s45, %s46
    %p55 = scmp.eq.s32.totalorder %s14, 0
    %p56 = por %p54, %p55
    %p57 = scmp.ne.s32.totalorder %s45, %s46
    %p58 = scmp.eq.s32.totalorder %s15, 1
    %p59 = por %p57, %p58
    %p61 = scmp.ne.s32.totalorder %s46, %s60
    %p62 = scmp.eq.s32.totalorder %s15, 0
    %p63 = por %p61, %p62
    %s65 = sadd.s32 %s64, 1
    %p68 = scmp.eq.s32.totalorder %s9, 1
    %p69 = scmp.ne.s32.totalorder %s64, %s66
    %p70 = scmp.eq.s32.totalorder %s9, 0
    %p71 = por %p69, %p70
    %p72 = scmp.ne.s32.totalorder %s64, %s66
    %p73 = scmp.eq.s32.totalorder %s14, 1
    %p74 = por %p72, %p73
    %p75 = scmp.ne.s32.totalorder %s66, %s67
    %p76 = scmp.eq.s32.totalorder %s14, 0
    %p77 = por %p75, %p76
    %p78 = scmp.ne.s32.totalorder %s66, %s67
    %p79 = scmp.eq.s32.totalorder %s15, 1
    %p80 = por %p78, %p79
    %p82 = scmp.ne.s32.totalorder %s67, %s81
    %p83 = scmp.eq.s32.totalorder %s15, 0
    %p84 = por %p82, %p83
    %s85 = ssub.s32 %s9, %s16
    %p86 = scmp.eq.s32.totalorder %s85, 0
    %s88 = sadd.s32 %s87, 1
    %s89 = scalar_select %p86, %s87, %s88
    %p92 = pneg %p86
    %p93 = scmp.eq.s32.totalorder %s9, 1
    %p94 = por %p92, %p93
    %p95 = scmp.ne.s32.totalorder %s87, %s90
    %p96 = scmp.eq.s32.totalorder %s9, 0
    %p97 = por %p95, %p96
    %p98 = scmp.ne.s32.totalorder %s87, %s90
    %p99 = scmp.eq.s32.totalorder %s14, 1
    %p100 = por %p98, %p99
    %p101 = scmp.ne.s32.totalorder %s90, %s91
    %p102 = scmp.eq.s32.totalorder %s14, 0
    %p103 = por %p101, %p102
    %p104 = scmp.ne.s32.totalorder %s90, %s91
    %p105 = scmp.eq.s32.totalorder %s15, 1
    %p106 = por %p104, %p105
    %p108 = scmp.ne.s32.totalorder %s91, %s107
    %p109 = scmp.eq.s32.totalorder %s15, 0
    %p110 = por %p108, %p109
    %p111 = scmp.le.s32.totalorder 1, %s9
    %p112 = scmp.lt.s32.totalorder %s9, 3
    %p113 = pnand %p111, %p112
    %p114 = pneg %p113
    // Predicated region
    $region9: #{conv3d_maxpool.1} parent=5 // pred_check
      _
    $region10: #{conv3d_maxpool.1} parent=5 // pred_check_branch
      %116 = sbr.rel (%p113) target = $region12
    $region11: #{conv3d_maxpool.1} parent=5 // pred_region
      %s117 = ssub.s32 %s9, 1
      // Predicated region
      $region13: #{conv3d_maxpool.1} parent=11 // pred_check
        %p118 = pneg %p56
      $region14: #{conv3d_maxpool.1} parent=11 // pred_check_branch
        %120 = sbr.rel (%p118) target = $region16
      $region15: #{conv3d_maxpool.1} parent=11 // pred_region
        _
      $region16: #{conv3d_maxpool.1} parent=11 // pred_fallthru
        _
      // Predicated region
      $region17: #{conv3d_maxpool.1} parent=11 // pred_check
        %p121 = pneg %p77
      $region18: #{conv3d_maxpool.1} parent=11 // pred_check_branch
        %123 = sbr.rel (%p121) target = $region20
      $region19: #{conv3d_maxpool.1} parent=11 // pred_region
        _
      $region20: #{conv3d_maxpool.1} parent=11 // pred_fallthru
        _
    $region12: #{conv3d_maxpool.1} parent=5 // pred_fallthru
      _
    %p124 = scmp.lt.s32.totalorder %s9, 2
    // Predicated region
    $region21: #{conv3d_maxpool.1} parent=5 // pred_check
      %p125 = pneg %p124
    $region22: #{conv3d_maxpool.1} parent=5 // pred_check_branch
      %127 = sbr.rel (%p125) target = $region24
    $region23: #{conv3d_maxpool.1} parent=5 // pred_region
      // Predicated region
      $region25: #{conv3d_maxpool.1} parent=23 // pred_check
        %p128 = pneg %p29
      $region26: #{conv3d_maxpool.1} parent=23 // pred_check_branch
        %130 = sbr.rel (%p128) target = $region28
      $region27: #{conv3d_maxpool.1} parent=23 // pred_region
        %p131 = scmp.lt.s32.totalorder %s9, 1
        %s132 = scalar_select %p131, %s9, 1
        %s133 = smul.addr %s132, 26
        %s134 = smul.addr %s133, 2
        %s135 = scalar_lea.vmem %s0, %s134
      $region28: #{conv3d_maxpool.1} parent=23 // pred_fallthru
        _
    $region24: #{conv3d_maxpool.1} parent=5 // pred_fallthru
      _
    %p136 = scmp.le.s32.totalorder 1, %s9
    %p137 = scmp.lt.s32.totalorder %s9, 3
    %p138 = pnand %p136, %p137
    %p139 = pneg %p138
    // Predicated region
    $region29: #{conv3d_maxpool.1} parent=5 // pred_check
      _
    $region30: #{conv3d_maxpool.1} parent=5 // pred_check_branch
      %141 = sbr.rel (%p138) target = $region32
    $region31: #{conv3d_maxpool.1} parent=5 // pred_region
      %s142 = ssub.s32 %s9, 1
      %p143 = scmp.lt.s32.totalorder %s14, 1
      %s144 = scalar_select %p143, %s14, 1
      %s145 = smul.addr %s144, 26
      %s146 = smul.addr %s145, 2
      %s147 = scalar_lea.vmem %s0, %s146
      %p148 = pneg %p35
      %p149 = pneg %p32
      %p150 = pneg %p56
      %p151 = pneg %p53
      %p152 = pneg %p77
      %p153 = pneg %p74
      %p154 = pneg %p103
      %p155 = pneg %p100
      %p156 = scmp.lt.s32.totalorder %s14, 1
      %s157 = scalar_select %p156, %s14, 1
      %s158 = smul.addr %s157, 20
      %s159 = smul.addr %s158, 8
      %s160 = scalar_lea.vmem %s3, %s159
      %p161 = scmp.lt.s32.totalorder %s14, 1
      %s162 = scalar_select %p161, %s14, 1
      %s163 = smul.addr %s162, 26
      %s164 = smul.addr %s163, 2
      %s165 = scalar_lea.vmem %s0, %s164
      %p166 = scmp.lt.s32.totalorder %s14, 1
      %s167 = scalar_select %p166, %s14, 1
      %s168 = smul.addr %s167, 20
      %s169 = smul.addr %s168, 8
      %s170 = scalar_lea.vmem %s3, %s169
      %v172 = vld [vmem:[%s165] sm:$0xff]
      %v173 = vld [vmem:[%s165 + $0x8] sm:$0xff]
      %v174 = vld [vmem:[%s165 + $0x10] sm:$0xff]
      %v175 = vld [vmem:[%s165 + $0x18] sm:$0xff]
      %v176 = vld [vmem:[%s165 + $0x20] sm:$0xff]
      %v182 = vcombine.high %v172, %v172
      %v184 = vunpack.c.l.s4 1983009808
      %v185 = vunpack.c.0.s8 %v184
      %v186 = vlaneseq
      %v187 = vshrl.u32 %v186, 7
      %v188 = vsub.s32 %v185, %v187
      %v189 = vrot.slane %v172, %v188
      %v191 = vunpack.c.l.s4 1983009808
      %v192 = vunpack.c.0.s8 %v191
      %v193 = vlaneseq
      %v194 = vshrl.u32 %v193, 7
      %v195 = vsub.s32 %v192, %v194
      %v196 = vrot.slane %v182, %v195
      %v197 = vcombine.high %v173, %v173
      %v199 = vunpack.c.l.s4 1983009808
      %v200 = vunpack.c.0.s8 %v199
      %v201 = vlaneseq
      %v202 = vshrl.u32 %v201, 7
      %v203 = vsub.s32 %v200, %v202
      %v204 = vrot.slane %v173, %v203
      %v206 = vunpack.c.l.s4 1983009808
      %v207 = vunpack.c.0.s8 %v206
      %v208 = vlaneseq
      %v209 = vshrl.u32 %v208, 7
      %v210 = vsub.s32 %v207, %v209
      %v211 = vrot.slane %v197, %v210
      %v212 = vcombine.high %v174, %v174
      %v214 = vunpack.c.l.s4 1983009808
      %v215 = vunpack.c.0.s8 %v214
      %v216 = vlaneseq
      %v217 = vshrl.u32 %v216, 7
      %v218 = vsub.s32 %v215, %v217
      %v219 = vrot.slane %v174, %v218
      %v221 = vunpack.c.l.s4 1983009808
      %v222 = vunpack.c.0.s8 %v221
      %v223 = vlaneseq
      %v224 = vshrl.u32 %v223, 7
      %v225 = vsub.s32 %v222, %v224
      %v226 = vrot.slane %v212, %v225
      %v227 = vcombine.high %v175, %v175
      %v229 = vunpack.c.l.s4 1983009808
      %v230 = vunpack.c.0.s8 %v229
      %v231 = vlaneseq
      %v232 = vshrl.u32 %v231, 7
      %v233 = vsub.s32 %v230, %v232
      %v234 = vrot.slane %v175, %v233
      %v236 = vunpack.c.l.s4 1983009808
      %v237 = vunpack.c.0.s8 %v236
      %v238 = vlaneseq
      %v239 = vshrl.u32 %v238, 7
      %v240 = vsub.s32 %v237, %v239
      %v241 = vrot.slane %v227, %v240
      %v242 = vcombine.high %v176, %v176
      %v244 = vunpack.c.l.s4 1983009808
      %v245 = vunpack.c.0.s8 %v244
      %v246 = vlaneseq
      %v247 = vshrl.u32 %v246, 7
      %v248 = vsub.s32 %v245, %v247
      %v249 = vrot.slane %v176, %v248
      %v251 = vunpack.c.l.s4 1983009808
      %v252 = vunpack.c.0.s8 %v251
      %v253 = vlaneseq
      %v254 = vshrl.u32 %v253, 7
      %v255 = vsub.s32 %v252, %v254
      %v256 = vrot.slane %v242, %v255
      %267 = vst [vmem:[#allocation2] sm:$0x33] %v189
      %268 = vst [vmem:[#allocation2 + $0x8] sm:$0x33] %v196
      %269 = vst [vmem:[#allocation2 + $0x10] sm:$0x33] %v204
      %270 = vst [vmem:[#allocation2 + $0x18] sm:$0x33] %v211
      %271 = vst [vmem:[#allocation2 + $0x20] sm:$0x33] %v219
      %272 = vst [vmem:[#allocation2 + $0x28] sm:$0x33] %v226
      %273 = vst [vmem:[#allocation2 + $0x30] sm:$0x33] %v234
      %274 = vst [vmem:[#allocation2 + $0x38] sm:$0x33] %v241
      %275 = vst [vmem:[#allocation2 + $0x40] sm:$0x33] %v249
      %276 = vst [vmem:[#allocation2 + $0x48] sm:$0x33] %v256
      %v277 = vld [vmem:[%s165] sm:$0xff]
      %v278 = vld [vmem:[%s165 + $0x8] sm:$0xff]
      %v279 = vld [vmem:[%s165 + $0x10] sm:$0xff]
      %v280 = vld [vmem:[%s165 + $0x18] sm:$0xff]
      %v281 = vld [vmem:[%s165 + $0x20] sm:$0xff]
      %v282 = vld [vmem:[%s165 + $0x28] sm:$0x3]
      %v289 = vcombine.low %v277, %v277
      %v291 = vunpack.c.l.s4 1983009808
      %v292 = vunpack.c.0.s8 %v291
      %v293 = vlaneseq
      %v294 = vshrl.u32 %v293, 7
      %v295 = vsub.s32 %v292, %v294
      %v296 = vrot.slane %v289, %v295
      %v298 = vunpack.c.l.s4 1983009808
      %v299 = vunpack.c.0.s8 %v298
      %v300 = vlaneseq
      %v301 = vshrl.u32 %v300, 7
      %v302 = vsub.s32 %v299, %v301
      %v303 = vrot.slane %v277, %v302
      %v304 = vcombine.low %v278, %v278
      %v306 = vunpack.c.l.s4 1983009808
      %v307 = vunpack.c.0.s8 %v306
      %v308 = vlaneseq
      %v309 = vshrl.u32 %v308, 7
      %v310 = vsub.s32 %v307, %v309
      %v311 = vrot.slane %v304, %v310
      %v313 = vunpack.c.l.s4 1983009808
      %v314 = vunpack.c.0.s8 %v313
      %v315 = vlaneseq
      %v316 = vshrl.u32 %v315, 7
      %v317 = vsub.s32 %v314, %v316
      %v318 = vrot.slane %v278, %v317
      %v319 = vcombine.low %v279, %v279
      %v321 = vunpack.c.l.s4 1983009808
      %v322 = vunpack.c.0.s8 %v321
      %v323 = vlaneseq
      %v324 = vshrl.u32 %v323, 7
      %v325 = vsub.s32 %v322, %v324
      %v326 = vrot.slane %v319, %v325
      %v328 = vunpack.c.l.s4 1983009808
      %v329 = vunpack.c.0.s8 %v328
      %v330 = vlaneseq
      %v331 = vshrl.u32 %v330, 7
      %v332 = vsub.s32 %v329, %v331
      %v333 = vrot.slane %v279, %v332
      %v334 = vcombine.low %v280, %v280
      %v336 = vunpack.c.l.s4 1983009808
      %v337 = vunpack.c.0.s8 %v336
      %v338 = vlaneseq
      %v339 = vshrl.u32 %v338, 7
      %v340 = vsub.s32 %v337, %v339
      %v341 = vrot.slane %v334, %v340
      %v343 = vunpack.c.l.s4 1983009808
      %v344 = vunpack.c.0.s8 %v343
      %v345 = vlaneseq
      %v346 = vshrl.u32 %v345, 7
      %v347 = vsub.s32 %v344, %v346
      %v348 = vrot.slane %v280, %v347
      %v349 = vcombine.low %v281, %v281
      %v351 = vunpack.c.l.s4 1983009808
      %v352 = vunpack.c.0.s8 %v351
      %v353 = vlaneseq
      %v354 = vshrl.u32 %v353, 7
      %v355 = vsub.s32 %v352, %v354
      %v356 = vrot.slane %v349, %v355
      %v358 = vunpack.c.l.s4 1983009808
      %v359 = vunpack.c.0.s8 %v358
      %v360 = vlaneseq
      %v361 = vshrl.u32 %v360, 7
      %v362 = vsub.s32 %v359, %v361
      %v363 = vrot.slane %v281, %v362
      %v364 = vcombine.low %v282, %v282
      %v366 = vunpack.c.l.s4 1983009808
      %v367 = vunpack.c.0.s8 %v366
      %v368 = vlaneseq
      %v369 = vshrl.u32 %v368, 7
      %v370 = vsub.s32 %v367, %v369
      %v371 = vrot.slane %v364, %v370
      %372 = vrot.lane.b32.xlu0 %v296, 127
      %v373 = vpop.permute.xlu0 %372
      %374 = vrot.lane.b32.xlu0 %v303, 127
      %v375 = vpop.permute.xlu0 %374
      %376 = vrot.lane.b32.xlu0 %v311, 127
      %v377 = vpop.permute.xlu0 %376
      %378 = vrot.lane.b32.xlu0 %v318, 127
      %v379 = vpop.permute.xlu0 %378
      %380 = vrot.lane.b32.xlu0 %v326, 127
      %v381 = vpop.permute.xlu0 %380
      %382 = vrot.lane.b32.xlu0 %v333, 127
      %v383 = vpop.permute.xlu0 %382
      %384 = vrot.lane.b32.xlu0 %v341, 127
      %v385 = vpop.permute.xlu0 %384
      %386 = vrot.lane.b32.xlu0 %v348, 127
      %v387 = vpop.permute.xlu0 %386
      %388 = vrot.lane.b32.xlu0 %v356, 127
      %v389 = vpop.permute.xlu0 %388
      %390 = vrot.lane.b32.xlu0 %v363, 127
      %v391 = vpop.permute.xlu0 %390
      %392 = vrot.lane.b32.xlu0 %v371, 127
      %v393 = vpop.permute.xlu0 %392
      %v394 = vrot.slane %v373, 4
      %v395 = vrot.slane %v375, 4
      %v396 = vrot.slane %v377, 4
      %v397 = vrot.slane %v379, 4
      %v398 = vrot.slane %v381, 4
      %v399 = vrot.slane %v383, 4
      %v400 = vrot.slane %v385, 4
      %v401 = vrot.slane %v387, 4
      %v402 = vrot.slane %v389, 4
      %v403 = vrot.slane %v391, 4
      %v404 = vrot.slane %v393, 4
      %vm405 = vcmask 1043456
      %v406 = vsel %vm405, %v394, %v395
      %vm407 = vcmask 1039360
      %v408 = vsel %vm407, %v373, %v406
      %v409 = vsel %vm405, %v395, %v396
      %v410 = vsel %vm407, %v375, %v409
      %v411 = vsel %vm405, %v396, %v397
      %v412 = vsel %vm407, %v377, %v411
      %v413 = vsel %vm405, %v397, %v398
      %v414 = vsel %vm407, %v379, %v413
      %v415 = vsel %vm405, %v398, %v399
      %v416 = vsel %vm407, %v381, %v415
      %v417 = vsel %vm405, %v399, %v400
      %v418 = vsel %vm407, %v383, %v417
      %v419 = vsel %vm405, %v400, %v401
      %v420 = vsel %vm407, %v385, %v419
      %v421 = vsel %vm405, %v401, %v402
      %v422 = vsel %vm407, %v387, %v421
      %v423 = vsel %vm405, %v402, %v403
      %v424 = vsel %vm407, %v389, %v423
      %v425 = vsel %vm405, %v403, %v404
      %v426 = vsel %vm407, %v391, %v425
      %437 = vst [vmem:[#allocation2] sm:$0xcc] %v408
      %438 = vst [vmem:[#allocation2 + $0x8] sm:$0xcc] %v410
      %439 = vst [vmem:[#allocation2 + $0x10] sm:$0xcc] %v412
      %440 = vst [vmem:[#allocation2 + $0x18] sm:$0xcc] %v414
      %441 = vst [vmem:[#allocation2 + $0x20] sm:$0xcc] %v416
      %442 = vst [vmem:[#allocation2 + $0x28] sm:$0xcc] %v418
      %443 = vst [vmem:[#allocation2 + $0x30] sm:$0xcc] %v420
      %444 = vst [vmem:[#allocation2 + $0x38] sm:$0xcc] %v422
      %445 = vst [vmem:[#allocation2 + $0x40] sm:$0xcc] %v424
      %446 = vst [vmem:[#allocation2 + $0x48] sm:$0xcc] %v426
      %v447 = vld [vmem:[%s165] sm:$0xff]
      %v448 = vld [vmem:[%s165 + $0x8] sm:$0xff]
      %v449 = vld [vmem:[%s165 + $0x10] sm:$0xff]
      %v450 = vld [vmem:[%s165 + $0x18] sm:$0xff]
      %v451 = vld [vmem:[%s165 + $0x20] sm:$0xff]
      %v452 = vld [vmem:[%s165 + $0x28] sm:$0x3]
      %v459 = vcombine.high %v447, %v447
      %v461 = vunpack.c.l.s4 1983009808
      %v462 = vunpack.c.0.s8 %v461
      %v463 = vlaneseq
      %v464 = vshrl.u32 %v463, 7
      %v465 = vsub.s32 %v462, %v464
      %v466 = vrot.slane %v447, %v465
      %v468 = vunpack.c.l.s4 1983009808
      %v469 = vunpack.c.0.s8 %v468
      %v470 = vlaneseq
      %v471 = vshrl.u32 %v470, 7
      %v472 = vsub.s32 %v469, %v471
      %v473 = vrot.slane %v459, %v472
      %v474 = vcombine.high %v448, %v448
      %v476 = vunpack.c.l.s4 1983009808
      %v477 = vunpack.c.0.s8 %v476
      %v478 = vlaneseq
      %v479 = vshrl.u32 %v478, 7
      %v480 = vsub.s32 %v477, %v479
      %v481 = vrot.slane %v448, %v480
      %v483 = vunpack.c.l.s4 1983009808
      %v484 = vunpack.c.0.s8 %v483
      %v485 = vlaneseq
      %v486 = vshrl.u32 %v485, 7
      %v487 = vsub.s32 %v484, %v486
      %v488 = vrot.slane %v474, %v487
      %v489 = vcombine.high %v449, %v449
      %v491 = vunpack.c.l.s4 1983009808
      %v492 = vunpack.c.0.s8 %v491
      %v493 = vlaneseq
      %v494 = vshrl.u32 %v493, 7
      %v495 = vsub.s32 %v492, %v494
      %v496 = vrot.slane %v449, %v495
      %v498 = vunpack.c.l.s4 1983009808
      %v499 = vunpack.c.0.s8 %v498
      %v500 = vlaneseq
      %v501 = vshrl.u32 %v500, 7
      %v502 = vsub.s32 %v499, %v501
      %v503 = vrot.slane %v489, %v502
      %v504 = vcombine.high %v450, %v450
      %v506 = vunpack.c.l.s4 1983009808
      %v507 = vunpack.c.0.s8 %v506
      %v508 = vlaneseq
      %v509 = vshrl.u32 %v508, 7
      %v510 = vsub.s32 %v507, %v509
      %v511 = vrot.slane %v450, %v510
      %v513 = vunpack.c.l.s4 1983009808
      %v514 = vunpack.c.0.s8 %v513
      %v515 = vlaneseq
      %v516 = vshrl.u32 %v515, 7
      %v517 = vsub.s32 %v514, %v516
      %v518 = vrot.slane %v504, %v517
      %v519 = vcombine.high %v451, %v451
      %v521 = vunpack.c.l.s4 1983009808
      %v522 = vunpack.c.0.s8 %v521
      %v523 = vlaneseq
      %v524 = vshrl.u32 %v523, 7
      %v525 = vsub.s32 %v522, %v524
      %v526 = vrot.slane %v451, %v525
      %v528 = vunpack.c.l.s4 1983009808
      %v529 = vunpack.c.0.s8 %v528
      %v530 = vlaneseq
      %v531 = vshrl.u32 %v530, 7
      %v532 = vsub.s32 %v529, %v531
      %v533 = vrot.slane %v519, %v532
      %v535 = vunpack.c.l.s4 1983009808
      %v536 = vunpack.c.0.s8 %v535
      %v537 = vlaneseq
      %v538 = vshrl.u32 %v537, 7
      %v539 = vsub.s32 %v536, %v538
      %v540 = vrot.slane %v452, %v539
      %541 = vrot.lane.b32.xlu0 %v466, 126
      %v542 = vpop.permute.xlu0 %541
      %543 = vrot.lane.b32.xlu0 %v473, 126
      %v544 = vpop.permute.xlu0 %543
      %545 = vrot.lane.b32.xlu0 %v481, 126
      %v546 = vpop.permute.xlu0 %545
      %547 = vrot.lane.b32.xlu0 %v488, 126
      %v548 = vpop.permute.xlu0 %547
      %549 = vrot.lane.b32.xlu0 %v496, 126
      %v550 = vpop.permute.xlu0 %549
      %551 = vrot.lane.b32.xlu0 %v503, 126
      %v552 = vpop.permute.xlu0 %551
      %553 = vrot.lane.b32.xlu0 %v511, 126
      %v554 = vpop.permute.xlu0 %553
      %555 = vrot.lane.b32.xlu0 %v518, 126
      %v556 = vpop.permute.xlu0 %555
      %557 = vrot.lane.b32.xlu0 %v526, 126
      %v558 = vpop.permute.xlu0 %557
      %559 = vrot.lane.b32.xlu0 %v533, 126
      %v560 = vpop.permute.xlu0 %559
      %561 = vrot.lane.b32.xlu0 %v540, 126
      %v562 = vpop.permute.xlu0 %561
      %v563 = vrot.slane %v542, 4
      %v564 = vrot.slane %v544, 4
      %v565 = vrot.slane %v546, 4
      %v566 = vrot.slane %v548, 4
      %v567 = vrot.slane %v550, 4
      %v568 = vrot.slane %v552, 4
      %v569 = vrot.slane %v554, 4
      %v570 = vrot.slane %v556, 4
      %v571 = vrot.slane %v558, 4
      %v572 = vrot.slane %v560, 4
      %v573 = vrot.slane %v562, 4
      %v574 = vsel %vm405, %v563, %v564
      %vm575 = vcmask 1031168
      %v576 = vsel %vm575, %v542, %v574
      %v577 = vsel %vm405, %v564, %v565
      %v578 = vsel %vm575, %v544, %v577
      %v579 = vsel %vm405, %v565, %v566
      %v580 = vsel %vm575, %v546, %v579
      %v581 = vsel %vm405, %v566, %v567
      %v582 = vsel %vm575, %v548, %v581
      %v583 = vsel %vm405, %v567, %v568
      %v584 = vsel %vm575, %v550, %v583
      %v585 = vsel %vm405, %v568, %v569
      %v586 = vsel %vm575, %v552, %v585
      %v587 = vsel %vm405, %v569, %v570
      %v588 = vsel %vm575, %v554, %v587
      %v589 = vsel %vm405, %v570, %v571
      %v590 = vsel %vm575, %v556, %v589
      %v591 = vsel %vm405, %v571, %v572
      %v592 = vsel %vm575, %v558, %v591
      %v593 = vsel %vm405, %v572, %v573
      %v594 = vsel %vm575, %v560, %v593
      %605 = vst [vmem:[#allocation2 + $0x50] sm:$0x33] %v576
      %606 = vst [vmem:[#allocation2 + $0x58] sm:$0x33] %v578
      %607 = vst [vmem:[#allocation2 + $0x60] sm:$0x33] %v580
      %608 = vst [vmem:[#allocation2 + $0x68] sm:$0x33] %v582
      %609 = vst [vmem:[#allocation2 + $0x70] sm:$0x33] %v584
      %610 = vst [vmem:[#allocation2 + $0x78] sm:$0x33] %v586
      %611 = vst [vmem:[#allocation2 + $0x80] sm:$0x33] %v588
      %612 = vst [vmem:[#allocation2 + $0x88] sm:$0x33] %v590
      %613 = vst [vmem:[#allocation2 + $0x90] sm:$0x33] %v592
      %614 = vst [vmem:[#allocation2 + $0x98] sm:$0x33] %v594
      %v615 = vld [vmem:[%s165] sm:$0xff]
      %v616 = vld [vmem:[%s165 + $0x8] sm:$0xff]
      %v617 = vld [vmem:[%s165 + $0x10] sm:$0xff]
      %v618 = vld [vmem:[%s165 + $0x18] sm:$0xff]
      %v619 = vld [vmem:[%s165 + $0x20] sm:$0xff]
      %v620 = vld [vmem:[%s165 + $0x28] sm:$0x3]
      %v627 = vcombine.low %v615, %v615
      %v629 = vunpack.c.l.s4 1983009808
      %v630 = vunpack.c.0.s8 %v629
      %v631 = vlaneseq
      %v632 = vshrl.u32 %v631, 7
      %v633 = vsub.s32 %v630, %v632
      %v634 = vrot.slane %v627, %v633
      %v636 = vunpack.c.l.s4 1983009808
      %v637 = vunpack.c.0.s8 %v636
      %v638 = vlaneseq
      %v639 = vshrl.u32 %v638, 7
      %v640 = vsub.s32 %v637, %v639
      %v641 = vrot.slane %v615, %v640
      %v642 = vcombine.low %v616, %v616
      %v644 = vunpack.c.l.s4 1983009808
      %v645 = vunpack.c.0.s8 %v644
      %v646 = vlaneseq
      %v647 = vshrl.u32 %v646, 7
      %v648 = vsub.s32 %v645, %v647
      %v649 = vrot.slane %v642, %v648
      %v651 = vunpack.c.l.s4 1983009808
      %v652 = vunpack.c.0.s8 %v651
      %v653 = vlaneseq
      %v654 = vshrl.u32 %v653, 7
      %v655 = vsub.s32 %v652, %v654
      %v656 = vrot.slane %v616, %v655
      %v657 = vcombine.low %v617, %v617
      %v659 = vunpack.c.l.s4 1983009808
      %v660 = vunpack.c.0.s8 %v659
      %v661 = vlaneseq
      %v662 = vshrl.u32 %v661, 7
      %v663 = vsub.s32 %v660, %v662
      %v664 = vrot.slane %v657, %v663
      %v666 = vunpack.c.l.s4 1983009808
      %v667 = vunpack.c.0.s8 %v666
      %v668 = vlaneseq
      %v669 = vshrl.u32 %v668, 7
      %v670 = vsub.s32 %v667, %v669
      %v671 = vrot.slane %v617, %v670
      %v672 = vcombine.low %v618, %v618
      %v674 = vunpack.c.l.s4 1983009808
      %v675 = vunpack.c.0.s8 %v674
      %v676 = vlaneseq
      %v677 = vshrl.u32 %v676, 7
      %v678 = vsub.s32 %v675, %v677
      %v679 = vrot.slane %v672, %v678
      %v681 = vunpack.c.l.s4 1983009808
      %v682 = vunpack.c.0.s8 %v681
      %v683 = vlaneseq
      %v684 = vshrl.u32 %v683, 7
      %v685 = vsub.s32 %v682, %v684
      %v686 = vrot.slane %v618, %v685
      %v687 = vcombine.low %v619, %v619
      %v689 = vunpack.c.l.s4 1983009808
      %v690 = vunpack.c.0.s8 %v689
      %v691 = vlaneseq
      %v692 = vshrl.u32 %v691, 7
      %v693 = vsub.s32 %v690, %v692
      %v694 = vrot.slane %v687, %v693
      %v696 = vunpack.c.l.s4 1983009808
      %v697 = vunpack.c.0.s8 %v696
      %v698 = vlaneseq
      %v699 = vshrl.u32 %v698, 7
      %v700 = vsub.s32 %v697, %v699
      %v701 = vrot.slane %v619, %v700
      %v702 = vcombine.low %v620, %v620
      %v704 = vunpack.c.l.s4 1983009808
      %v705 = vunpack.c.0.s8 %v704
      %v706 = vlaneseq
      %v707 = vshrl.u32 %v706, 7
      %v708 = vsub.s32 %v705, %v707
      %v709 = vrot.slane %v702, %v708
      %710 = vrot.lane.b32.xlu0 %v634, 110
      %v711 = vpop.permute.xlu0 %710
      %712 = vrot.lane.b32.xlu0 %v641, 110
      %v713 = vpop.permute.xlu0 %712
      %714 = vrot.lane.b32.xlu0 %v649, 110
      %v715 = vpop.permute.xlu0 %714
      %716 = vrot.lane.b32.xlu0 %v656, 110
      %v717 = vpop.permute.xlu0 %716
      %718 = vrot.lane.b32.xlu0 %v664, 110
      %v719 = vpop.permute.xlu0 %718
      %720 = vrot.lane.b32.xlu0 %v671, 110
      %v721 = vpop.permute.xlu0 %720
      %722 = vrot.lane.b32.xlu0 %v679, 110
      %v723 = vpop.permute.xlu0 %722
      %724 = vrot.lane.b32.xlu0 %v686, 110
      %v725 = vpop.permute.xlu0 %724
      %726 = vrot.lane.b32.xlu0 %v694, 110
      %v727 = vpop.permute.xlu0 %726
      %728 = vrot.lane.b32.xlu0 %v701, 110
      %v729 = vpop.permute.xlu0 %728
      %730 = vrot.lane.b32.xlu0 %v709, 110
      %v731 = vpop.permute.xlu0 %730
      %v732 = vrot.slane %v711, 4
      %v733 = vrot.slane %v713, 4
      %v734 = vrot.slane %v715, 4
      %v735 = vrot.slane %v717, 4
      %v736 = vrot.slane %v719, 4
      %v737 = vrot.slane %v721, 4
      %v738 = vrot.slane %v723, 4
      %v739 = vrot.slane %v725, 4
      %v740 = vrot.slane %v727, 4
      %v741 = vrot.slane %v729, 4
      %v742 = vrot.slane %v731, 4
      %v743 = vsel %vm405, %v732, %v733
      %vm744 = vcmask 900096
      %v745 = vsel %vm744, %v711, %v743
      %v746 = vsel %vm405, %v733, %v734
      %v747 = vsel %vm744, %v713, %v746
      %v748 = vsel %vm405, %v734, %v735
      %v749 = vsel %vm744, %v715, %v748
      %v750 = vsel %vm405, %v735, %v736
      %v751 = vsel %vm744, %v717, %v750
      %v752 = vsel %vm405, %v736, %v737
      %v753 = vsel %vm744, %v719, %v752
      %v754 = vsel %vm405, %v737, %v738
      %v755 = vsel %vm744, %v721, %v754
      %v756 = vsel %vm405, %v738, %v739
      %v757 = vsel %vm744, %v723, %v756
      %v758 = vsel %vm405, %v739, %v740
      %v759 = vsel %vm744, %v725, %v758
      %v760 = vsel %vm405, %v740, %v741
      %v761 = vsel %vm744, %v727, %v760
      %v762 = vsel %vm405, %v741, %v742
      %v763 = vsel %vm744, %v729, %v762
      %774 = vst [vmem:[#allocation2 + $0x50] sm:$0xcc] %v745
      %775 = vst [vmem:[#allocation2 + $0x58] sm:$0xcc] %v747
      %776 = vst [vmem:[#allocation2 + $0x60] sm:$0xcc] %v749
      %777 = vst [vmem:[#allocation2 + $0x68] sm:$0xcc] %v751
      %778 = vst [vmem:[#allocation2 + $0x70] sm:$0xcc] %v753
      %779 = vst [vmem:[#allocation2 + $0x78] sm:$0xcc] %v755
      %780 = vst [vmem:[#allocation2 + $0x80] sm:$0xcc] %v757
      %781 = vst [vmem:[#allocation2 + $0x88] sm:$0xcc] %v759
      %782 = vst [vmem:[#allocation2 + $0x90] sm:$0xcc] %v761
      %783 = vst [vmem:[#allocation2 + $0x98] sm:$0xcc] %v763
      %v784 = vld [vmem:[%s165] sm:$0xff]
      %v785 = vld [vmem:[%s165 + $0x8] sm:$0xff]
      %v786 = vld [vmem:[%s165 + $0x10] sm:$0xff]
      %v787 = vld [vmem:[%s165 + $0x18] sm:$0xff]
      %v788 = vld [vmem:[%s165 + $0x20] sm:$0xff]
      %v789 = vld [vmem:[%s165 + $0x28] sm:$0x3]
      %v796 = vcombine.high %v784, %v784
      %v798 = vunpack.c.l.s4 1983009808
      %v799 = vunpack.c.0.s8 %v798
      %v800 = vlaneseq
      %v801 = vshrl.u32 %v800, 7
      %v802 = vsub.s32 %v799, %v801
      %v803 = vrot.slane %v784, %v802
      %v805 = vunpack.c.l.s4 1983009808
      %v806 = vunpack.c.0.s8 %v805
      %v807 = vlaneseq
      %v808 = vshrl.u32 %v807, 7
      %v809 = vsub.s32 %v806, %v808
      %v810 = vrot.slane %v796, %v809
      %v811 = vcombine.high %v785, %v785
      %v813 = vunpack.c.l.s4 1983009808
      %v814 = vunpack.c.0.s8 %v813
      %v815 = vlaneseq
      %v816 = vshrl.u32 %v815, 7
      %v817 = vsub.s32 %v814, %v816
      %v818 = vrot.slane %v785, %v817
      %v820 = vunpack.c.l.s4 1983009808
      %v821 = vunpack.c.0.s8 %v820
      %v822 = vlaneseq
      %v823 = vshrl.u32 %v822, 7
      %v824 = vsub.s32 %v821, %v823
      %v825 = vrot.slane %v811, %v824
      %v826 = vcombine.high %v786, %v786
      %v828 = vunpack.c.l.s4 1983009808
      %v829 = vunpack.c.0.s8 %v828
      %v830 = vlaneseq
      %v831 = vshrl.u32 %v830, 7
      %v832 = vsub.s32 %v829, %v831
      %v833 = vrot.slane %v786, %v832
      %v835 = vunpack.c.l.s4 1983009808
      %v836 = vunpack.c.0.s8 %v835
      %v837 = vlaneseq
      %v838 = vshrl.u32 %v837, 7
      %v839 = vsub.s32 %v836, %v838
      %v840 = vrot.slane %v826, %v839
      %v841 = vcombine.high %v787, %v787
      %v843 = vunpack.c.l.s4 1983009808
      %v844 = vunpack.c.0.s8 %v843
      %v845 = vlaneseq
      %v846 = vshrl.u32 %v845, 7
      %v847 = vsub.s32 %v844, %v846
      %v848 = vrot.slane %v787, %v847
      %v850 = vunpack.c.l.s4 1983009808
      %v851 = vunpack.c.0.s8 %v850
      %v852 = vlaneseq
      %v853 = vshrl.u32 %v852, 7
      %v854 = vsub.s32 %v851, %v853
      %v855 = vrot.slane %v841, %v854
      %v856 = vcombine.high %v788, %v788
      %v858 = vunpack.c.l.s4 1983009808
      %v859 = vunpack.c.0.s8 %v858
      %v860 = vlaneseq
      %v861 = vshrl.u32 %v860, 7
      %v862 = vsub.s32 %v859, %v861
      %v863 = vrot.slane %v788, %v862
      %v865 = vunpack.c.l.s4 1983009808
      %v866 = vunpack.c.0.s8 %v865
      %v867 = vlaneseq
      %v868 = vshrl.u32 %v867, 7
      %v869 = vsub.s32 %v866, %v868
      %v870 = vrot.slane %v856, %v869
      %v872 = vunpack.c.l.s4 1983009808
      %v873 = vunpack.c.0.s8 %v872
      %v874 = vlaneseq
      %v875 = vshrl.u32 %v874, 7
      %v876 = vsub.s32 %v873, %v875
      %v877 = vrot.slane %v789, %v876
      %878 = vrot.lane.b32.xlu0 %v803, 109
      %v879 = vpop.permute.xlu0 %878
      %880 = vrot.lane.b32.xlu0 %v810, 109
      %v881 = vpop.permute.xlu0 %880
      %882 = vrot.lane.b32.xlu0 %v818, 109
      %v883 = vpop.permute.xlu0 %882
      %884 = vrot.lane.b32.xlu0 %v825, 109
      %v885 = vpop.permute.xlu0 %884
      %886 = vrot.lane.b32.xlu0 %v833, 109
      %v887 = vpop.permute.xlu0 %886
      %888 = vrot.lane.b32.xlu0 %v840, 109
      %v889 = vpop.permute.xlu0 %888
      %890 = vrot.lane.b32.xlu0 %v848, 109
      %v891 = vpop.permute.xlu0 %890
      %892 = vrot.lane.b32.xlu0 %v855, 109
      %v893 = vpop.permute.xlu0 %892
      %894 = vrot.lane.b32.xlu0 %v863, 109
      %v895 = vpop.permute.xlu0 %894
      %896 = vrot.lane.b32.xlu0 %v870, 109
      %v897 = vpop.permute.xlu0 %896
      %898 = vrot.lane.b32.xlu0 %v877, 109
      %v899 = vpop.permute.xlu0 %898
      %v900 = vrot.slane %v879, 4
      %v901 = vrot.slane %v881, 4
      %v902 = vrot.slane %v883, 4
      %v903 = vrot.slane %v885, 4
      %v904 = vrot.slane %v887, 4
      %v905 = vrot.slane %v889, 4
      %v906 = vrot.slane %v891, 4
      %v907 = vrot.slane %v893, 4
      %v908 = vrot.slane %v895, 4
      %v909 = vrot.slane %v897, 4
      %v910 = vrot.slane %v899, 4
      %v911 = vsel %vm405, %v900, %v901
      %vm912 = vcmask 891904
      %v913 = vsel %vm912, %v879, %v911
      %v914 = vsel %vm405, %v901, %v902
      %v915 = vsel %vm912, %v881, %v914
      %v916 = vsel %vm405, %v902, %v903
      %v917 = vsel %vm912, %v883, %v916
      %v918 = vsel %vm405, %v903, %v904
      %v919 = vsel %vm912, %v885, %v918
      %v920 = vsel %vm405, %v904, %v905
      %v921 = vsel %vm912, %v887, %v920
      %v922 = vsel %vm405, %v905, %v906
      %v923 = vsel %vm912, %v889, %v922
      %v924 = vsel %vm405, %v906, %v907
      %v925 = vsel %vm912, %v891, %v924
      %v926 = vsel %vm405, %v907, %v908
      %v927 = vsel %vm912, %v893, %v926
      %v928 = vsel %vm405, %v908, %v909
      %v929 = vsel %vm912, %v895, %v928
      %v930 = vsel %vm405, %v909, %v910
      %v931 = vsel %vm912, %v897, %v930
      %942 = vst [vmem:[#allocation2 + $0xa0] sm:$0x33] %v913
      %943 = vst [vmem:[#allocation2 + $0xa8] sm:$0x33] %v915
      %944 = vst [vmem:[#allocation2 + $0xb0] sm:$0x33] %v917
      %945 = vst [vmem:[#allocation2 + $0xb8] sm:$0x33] %v919
      %946 = vst [vmem:[#allocation2 + $0xc0] sm:$0x33] %v921
      %947 = vst [vmem:[#allocation2 + $0xc8] sm:$0x33] %v923
      %948 = vst [vmem:[#allocation2 + $0xd0] sm:$0x33] %v925
      %949 = vst [vmem:[#allocation2 + $0xd8] sm:$0x33] %v927
      %950 = vst [vmem:[#allocation2 + $0xe0] sm:$0x33] %v929
      %951 = vst [vmem:[#allocation2 + $0xe8] sm:$0x33] %v931
      %v952 = vld [vmem:[%s165] sm:$0xff]
      %v953 = vld [vmem:[%s165 + $0x8] sm:$0xff]
      %v954 = vld [vmem:[%s165 + $0x10] sm:$0xff]
      %v955 = vld [vmem:[%s165 + $0x18] sm:$0xff]
      %v956 = vld [vmem:[%s165 + $0x20] sm:$0xff]
      %v957 = vld [vmem:[%s165 + $0x28] sm:$0x3]
      %v964 = vcombine.low %v952, %v952
      %v966 = vunpack.c.l.s4 1983009808
      %v967 = vunpack.c.0.s8 %v966
      %v968 = vlaneseq
      %v969 = vshrl.u32 %v968, 7
      %v970 = vsub.s32 %v967, %v969
      %v971 = vrot.slane %v964, %v970
      %v973 = vunpack.c.l.s4 1983009808
      %v974 = vunpack.c.0.s8 %v973
      %v975 = vlaneseq
      %v976 = vshrl.u32 %v975, 7
      %v977 = vsub.s32 %v974, %v976
      %v978 = vrot.slane %v952, %v977
      %v979 = vcombine.low %v953, %v953
      %v981 = vunpack.c.l.s4 1983009808
      %v982 = vunpack.c.0.s8 %v981
      %v983 = vlaneseq
      %v984 = vshrl.u32 %v983, 7
      %v985 = vsub.s32 %v982, %v984
      %v986 = vrot.slane %v979, %v985
      %v988 = vunpack.c.l.s4 1983009808
      %v989 = vunpack.c.0.s8 %v988
      %v990 = vlaneseq
      %v991 = vshrl.u32 %v990, 7
      %v992 = vsub.s32 %v989, %v991
      %v993 = vrot.slane %v953, %v992
      %v994 = vcombine.low %v954, %v954
      %v996 = vunpack.c.l.s4 1983009808
      %v997 = vunpack.c.0.s8 %v996
      %v998 = vlaneseq
      %v999 = vshrl.u32 %v998, 7
      %v1000 = vsub.s32 %v997, %v999
      %v1001 = vrot.slane %v994, %v1000
      %v1003 = vunpack.c.l.s4 1983009808
      %v1004 = vunpack.c.0.s8 %v1003
      %v1005 = vlaneseq
      %v1006 = vshrl.u32 %v1005, 7
      %v1007 = vsub.s32 %v1004, %v1006
      %v1008 = vrot.slane %v954, %v1007
      %v1009 = vcombine.low %v955, %v955
      %v1011 = vunpack.c.l.s4 1983009808
      %v1012 = vunpack.c.0.s8 %v1011
      %v1013 = vlaneseq
      %v1014 = vshrl.u32 %v1013, 7
      %v1015 = vsub.s32 %v1012, %v1014
      %v1016 = vrot.slane %v1009, %v1015
      %v1018 = vunpack.c.l.s4 1983009808
      %v1019 = vunpack.c.0.s8 %v1018
      %v1020 = vlaneseq
      %v1021 = vshrl.u32 %v1020, 7
      %v1022 = vsub.s32 %v1019, %v1021
      %v1023 = vrot.slane %v955, %v1022
      %v1024 = vcombine.low %v956, %v956
      %v1026 = vunpack.c.l.s4 1983009808
      %v1027 = vunpack.c.0.s8 %v1026
      %v1028 = vlaneseq
      %v1029 = vshrl.u32 %v1028, 7
      %v1030 = vsub.s32 %v1027, %v1029
      %v1031 = vrot.slane %v1024, %v1030
      %v1033 = vunpack.c.l.s4 1983009808
      %v1034 = vunpack.c.0.s8 %v1033
      %v1035 = vlaneseq
      %v1036 = vshrl.u32 %v1035, 7
      %v1037 = vsub.s32 %v1034, %v1036
      %v1038 = vrot.slane %v956, %v1037
      %v1039 = vcombine.low %v957, %v957
      %v1041 = vunpack.c.l.s4 1983009808
      %v1042 = vunpack.c.0.s8 %v1041
      %v1043 = vlaneseq
      %v1044 = vshrl.u32 %v1043, 7
      %v1045 = vsub.s32 %v1042, %v1044
      %v1046 = vrot.slane %v1039, %v1045
      %1047 = vrot.lane.b32.xlu0 %v971, 108
      %v1048 = vpop.permute.xlu0 %1047
      %1049 = vrot.lane.b32.xlu0 %v978, 108
      %v1050 = vpop.permute.xlu0 %1049
      %1051 = vrot.lane.b32.xlu0 %v986, 108
      %v1052 = vpop.permute.xlu0 %1051
      %1053 = vrot.lane.b32.xlu0 %v993, 108
      %v1054 = vpop.permute.xlu0 %1053
      %1055 = vrot.lane.b32.xlu0 %v1001, 108
      %v1056 = vpop.permute.xlu0 %1055
      %1057 = vrot.lane.b32.xlu0 %v1008, 108
      %v1058 = vpop.permute.xlu0 %1057
      %1059 = vrot.lane.b32.xlu0 %v1016, 108
      %v1060 = vpop.permute.xlu0 %1059
      %1061 = vrot.lane.b32.xlu0 %v1023, 108
      %v1062 = vpop.permute.xlu0 %1061
      %1063 = vrot.lane.b32.xlu0 %v1031, 108
      %v1064 = vpop.permute.xlu0 %1063
      %1065 = vrot.lane.b32.xlu0 %v1038, 108
      %v1066 = vpop.permute.xlu0 %1065
      %1067 = vrot.lane.b32.xlu0 %v1046, 108
      %v1068 = vpop.permute.xlu0 %1067
      %v1069 = vrot.slane %v1048, 4
      %v1070 = vrot.slane %v1050, 4
      %v1071 = vrot.slane %v1052, 4
      %v1072 = vrot.slane %v1054, 4
      %v1073 = vrot.slane %v1056, 4
      %v1074 = vrot.slane %v1058, 4
      %v1075 = vrot.slane %v1060, 4
      %v1076 = vrot.slane %v1062, 4
      %v1077 = vrot.slane %v1064, 4
      %v1078 = vrot.slane %v1066, 4
      %v1079 = vrot.slane %v1068, 4
      %v1080 = vsel %vm405, %v1069, %v1070
      %vm1081 = vcmask 883712
      %v1082 = vsel %vm1081, %v1048, %v1080
      %v1083 = vsel %vm405, %v1070, %v1071
      %v1084 = vsel %vm1081, %v1050, %v1083
      %v1085 = vsel %vm405, %v1071, %v1072
      %v1086 = vsel %vm1081, %v1052, %v1085
      %v1087 = vsel %vm405, %v1072, %v1073
      %v1088 = vsel %vm1081, %v1054, %v1087
      %v1089 = vsel %vm405, %v1073, %v1074
      %v1090 = vsel %vm1081, %v1056, %v1089
      %v1091 = vsel %vm405, %v1074, %v1075
      %v1092 = vsel %vm1081, %v1058, %v1091
      %v1093 = vsel %vm405, %v1075, %v1076
      %v1094 = vsel %vm1081, %v1060, %v1093
      %v1095 = vsel %vm405, %v1076, %v1077
      %v1096 = vsel %vm1081, %v1062, %v1095
      %v1097 = vsel %vm405, %v1077, %v1078
      %v1098 = vsel %vm1081, %v1064, %v1097
      %v1099 = vsel %vm405, %v1078, %v1079
      %v1100 = vsel %vm1081, %v1066, %v1099
      %1111 = vst [vmem:[#allocation2 + $0xa0] sm:$0xcc] %v1082
      %1112 = vst [vmem:[#allocation2 + $0xa8] sm:$0xcc] %v1084
      %1113 = vst [vmem:[#allocation2 + $0xb0] sm:$0xcc] %v1086
      %1114 = vst [vmem:[#allocation2 + $0xb8] sm:$0xcc] %v1088
      %1115 = vst [vmem:[#allocation2 + $0xc0] sm:$0xcc] %v1090
      %1116 = vst [vmem:[#allocation2 + $0xc8] sm:$0xcc] %v1092
      %1117 = vst [vmem:[#allocation2 + $0xd0] sm:$0xcc] %v1094
      %1118 = vst [vmem:[#allocation2 + $0xd8] sm:$0xcc] %v1096
      %1119 = vst [vmem:[#allocation2 + $0xe0] sm:$0xcc] %v1098
      %1120 = vst [vmem:[#allocation2 + $0xe8] sm:$0xcc] %v1100
      %v1121 = vld [vmem:[%s165] sm:$0xff]
      %v1122 = vld [vmem:[%s165 + $0x8] sm:$0xff]
      %v1123 = vld [vmem:[%s165 + $0x10] sm:$0xff]
      %v1124 = vld [vmem:[%s165 + $0x18] sm:$0xff]
      %v1125 = vld [vmem:[%s165 + $0x20] sm:$0xff]
      %v1126 = vld [vmem:[%s165 + $0x28] sm:$0x3]
      %v1133 = vcombine.high %v1121, %v1121
      %v1135 = vunpack.c.l.s4 1983009808
      %v1136 = vunpack.c.0.s8 %v1135
      %v1137 = vlaneseq
      %v1138 = vshrl.u32 %v1137, 7
      %v1139 = vsub.s32 %v1136, %v1138
      %v1140 = vrot.slane %v1121, %v1139
      %v1142 = vunpack.c.l.s4 1983009808
      %v1143 = vunpack.c.0.s8 %v1142
      %v1144 = vlaneseq
      %v1145 = vshrl.u32 %v1144, 7
      %v1146 = vsub.s32 %v1143, %v1145
      %v1147 = vrot.slane %v1133, %v1146
      %v1148 = vcombine.high %v1122, %v1122
      %v1150 = vunpack.c.l.s4 1983009808
      %v1151 = vunpack.c.0.s8 %v1150
      %v1152 = vlaneseq
      %v1153 = vshrl.u32 %v1152, 7
      %v1154 = vsub.s32 %v1151, %v1153
      %v1155 = vrot.slane %v1122, %v1154
      %v1157 = vunpack.c.l.s4 1983009808
      %v1158 = vunpack.c.0.s8 %v1157
      %v1159 = vlaneseq
      %v1160 = vshrl.u32 %v1159, 7
      %v1161 = vsub.s32 %v1158, %v1160
      %v1162 = vrot.slane %v1148, %v1161
      %v1163 = vcombine.high %v1123, %v1123
      %v1165 = vunpack.c.l.s4 1983009808
      %v1166 = vunpack.c.0.s8 %v1165
      %v1167 = vlaneseq
      %v1168 = vshrl.u32 %v1167, 7
      %v1169 = vsub.s32 %v1166, %v1168
      %v1170 = vrot.slane %v1123, %v1169
      %v1172 = vunpack.c.l.s4 1983009808
      %v1173 = vunpack.c.0.s8 %v1172
      %v1174 = vlaneseq
      %v1175 = vshrl.u32 %v1174, 7
      %v1176 = vsub.s32 %v1173, %v1175
      %v1177 = vrot.slane %v1163, %v1176
      %v1178 = vcombine.high %v1124, %v1124
      %v1180 = vunpack.c.l.s4 1983009808
      %v1181 = vunpack.c.0.s8 %v1180
      %v1182 = vlaneseq
      %v1183 = vshrl.u32 %v1182, 7
      %v1184 = vsub.s32 %v1181, %v1183
      %v1185 = vrot.slane %v1124, %v1184
      %v1187 = vunpack.c.l.s4 1983009808
      %v1188 = vunpack.c.0.s8 %v1187
      %v1189 = vlaneseq
      %v1190 = vshrl.u32 %v1189, 7
      %v1191 = vsub.s32 %v1188, %v1190
      %v1192 = vrot.slane %v1178, %v1191
      %v1193 = vcombine.high %v1125, %v1125
      %v1195 = vunpack.c.l.s4 1983009808
      %v1196 = vunpack.c.0.s8 %v1195
      %v1197 = vlaneseq
      %v1198 = vshrl.u32 %v1197, 7
      %v1199 = vsub.s32 %v1196, %v1198
      %v1200 = vrot.slane %v1125, %v1199
      %v1202 = vunpack.c.l.s4 1983009808
      %v1203 = vunpack.c.0.s8 %v1202
      %v1204 = vlaneseq
      %v1205 = vshrl.u32 %v1204, 7
      %v1206 = vsub.s32 %v1203, %v1205
      %v1207 = vrot.slane %v1193, %v1206
      %v1209 = vunpack.c.l.s4 1983009808
      %v1210 = vunpack.c.0.s8 %v1209
      %v1211 = vlaneseq
      %v1212 = vshrl.u32 %v1211, 7
      %v1213 = vsub.s32 %v1210, %v1212
      %v1214 = vrot.slane %v1126, %v1213
      %1215 = vrot.lane.b32.xlu0 %v1140, 92
      %v1216 = vpop.permute.xlu0 %1215
      %1217 = vrot.lane.b32.xlu0 %v1147, 92
      %v1218 = vpop.permute.xlu0 %1217
      %1219 = vrot.lane.b32.xlu0 %v1155, 92
      %v1220 = vpop.permute.xlu0 %1219
      %1221 = vrot.lane.b32.xlu0 %v1162, 92
      %v1222 = vpop.permute.xlu0 %1221
      %1223 = vrot.lane.b32.xlu0 %v1170, 92
      %v1224 = vpop.permute.xlu0 %1223
      %1225 = vrot.lane.b32.xlu0 %v1177, 92
      %v1226 = vpop.permute.xlu0 %1225
      %1227 = vrot.lane.b32.xlu0 %v1185, 92
      %v1228 = vpop.permute.xlu0 %1227
      %1229 = vrot.lane.b32.xlu0 %v1192, 92
      %v1230 = vpop.permute.xlu0 %1229
      %1231 = vrot.lane.b32.xlu0 %v1200, 92
      %v1232 = vpop.permute.xlu0 %1231
      %1233 = vrot.lane.b32.xlu0 %v1207, 92
      %v1234 = vpop.permute.xlu0 %1233
      %1235 = vrot.lane.b32.xlu0 %v1214, 92
      %v1236 = vpop.permute.xlu0 %1235
      %v1237 = vrot.slane %v1216, 4
      %v1238 = vrot.slane %v1218, 4
      %v1239 = vrot.slane %v1220, 4
      %v1240 = vrot.slane %v1222, 4
      %v1241 = vrot.slane %v1224, 4
      %v1242 = vrot.slane %v1226, 4
      %v1243 = vrot.slane %v1228, 4
      %v1244 = vrot.slane %v1230, 4
      %v1245 = vrot.slane %v1232, 4
      %v1246 = vrot.slane %v1234, 4
      %v1247 = vrot.slane %v1236, 4
      %v1248 = vsel %vm405, %v1237, %v1238
      %vm1249 = vcmask 752640
      %v1250 = vsel %vm1249, %v1216, %v1248
      %v1251 = vsel %vm405, %v1238, %v1239
      %v1252 = vsel %vm1249, %v1218, %v1251
      %v1253 = vsel %vm405, %v1239, %v1240
      %v1254 = vsel %vm1249, %v1220, %v1253
      %v1255 = vsel %vm405, %v1240, %v1241
      %v1256 = vsel %vm1249, %v1222, %v1255
      %v1257 = vsel %vm405, %v1241, %v1242
      %v1258 = vsel %vm1249, %v1224, %v1257
      %v1259 = vsel %vm405, %v1242, %v1243
      %v1260 = vsel %vm1249, %v1226, %v1259
      %v1261 = vsel %vm405, %v1243, %v1244
      %v1262 = vsel %vm1249, %v1228, %v1261
      %v1263 = vsel %vm405, %v1244, %v1245
      %v1264 = vsel %vm1249, %v1230, %v1263
      %v1265 = vsel %vm405, %v1245, %v1246
      %v1266 = vsel %vm1249, %v1232, %v1265
      %v1267 = vsel %vm405, %v1246, %v1247
      %v1268 = vsel %vm1249, %v1234, %v1267
      %1279 = vst [vmem:[#allocation2 + $0xf0] sm:$0x33] %v1250
      %1280 = vst [vmem:[#allocation2 + $0xf8] sm:$0x33] %v1252
      %1281 = vst [vmem:[#allocation2 + $0x100] sm:$0x33] %v1254
      %1282 = vst [vmem:[#allocation2 + $0x108] sm:$0x33] %v1256
      %1283 = vst [vmem:[#allocation2 + $0x110] sm:$0x33] %v1258
      %1284 = vst [vmem:[#allocation2 + $0x118] sm:$0x33] %v1260
      %1285 = vst [vmem:[#allocation2 + $0x120] sm:$0x33] %v1262
      %1286 = vst [vmem:[#allocation2 + $0x128] sm:$0x33] %v1264
      %1287 = vst [vmem:[#allocation2 + $0x130] sm:$0x33] %v1266
      %1288 = vst [vmem:[#allocation2 + $0x138] sm:$0x33] %v1268
      %v1289 = vld [vmem:[%s165] sm:$0xff]
      %v1290 = vld [vmem:[%s165 + $0x8] sm:$0xff]
      %v1291 = vld [vmem:[%s165 + $0x10] sm:$0xff]
      %v1292 = vld [vmem:[%s165 + $0x18] sm:$0xff]
      %v1293 = vld [vmem:[%s165 + $0x20] sm:$0xff]
      %v1294 = vld [vmem:[%s165 + $0x28] sm:$0x3]
      %v1301 = vcombine.low %v1289, %v1289
      %v1303 = vunpack.c.l.s4 1983009808
      %v1304 = vunpack.c.0.s8 %v1303
      %v1305 = vlaneseq
      %v1306 = vshrl.u32 %v1305, 7
      %v1307 = vsub.s32 %v1304, %v1306
      %v1308 = vrot.slane %v1301, %v1307
      %v1310 = vunpack.c.l.s4 1983009808
      %v1311 = vunpack.c.0.s8 %v1310
      %v1312 = vlaneseq
      %v1313 = vshrl.u32 %v1312, 7
      %v1314 = vsub.s32 %v1311, %v1313
      %v1315 = vrot.slane %v1289, %v1314
      %v1316 = vcombine.low %v1290, %v1290
      %v1318 = vunpack.c.l.s4 1983009808
      %v1319 = vunpack.c.0.s8 %v1318
      %v1320 = vlaneseq
      %v1321 = vshrl.u32 %v1320, 7
      %v1322 = vsub.s32 %v1319, %v1321
      %v1323 = vrot.slane %v1316, %v1322
      %v1325 = vunpack.c.l.s4 1983009808
      %v1326 = vunpack.c.0.s8 %v1325
      %v1327 = vlaneseq
      %v1328 = vshrl.u32 %v1327, 7
      %v1329 = vsub.s32 %v1326, %v1328
      %v1330 = vrot.slane %v1290, %v1329
      %v1331 = vcombine.low %v1291, %v1291
      %v1333 = vunpack.c.l.s4 1983009808
      %v1334 = vunpack.c.0.s8 %v1333
      %v1335 = vlaneseq
      %v1336 = vshrl.u32 %v1335, 7
      %v1337 = vsub.s32 %v1334, %v1336
      %v1338 = vrot.slane %v1331, %v1337
      %v1340 = vunpack.c.l.s4 1983009808
      %v1341 = vunpack.c.0.s8 %v1340
      %v1342 = vlaneseq
      %v1343 = vshrl.u32 %v1342, 7
      %v1344 = vsub.s32 %v1341, %v1343
      %v1345 = vrot.slane %v1291, %v1344
      %v1346 = vcombine.low %v1292, %v1292
      %v1348 = vunpack.c.l.s4 1983009808
      %v1349 = vunpack.c.0.s8 %v1348
      %v1350 = vlaneseq
      %v1351 = vshrl.u32 %v1350, 7
      %v1352 = vsub.s32 %v1349, %v1351
      %v1353 = vrot.slane %v1346, %v1352
      %v1355 = vunpack.c.l.s4 1983009808
      %v1356 = vunpack.c.0.s8 %v1355
      %v1357 = vlaneseq
      %v1358 = vshrl.u32 %v1357, 7
      %v1359 = vsub.s32 %v1356, %v1358
      %v1360 = vrot.slane %v1292, %v1359
      %v1361 = vcombine.low %v1293, %v1293
      %v1363 = vunpack.c.l.s4 1983009808
      %v1364 = vunpack.c.0.s8 %v1363
      %v1365 = vlaneseq
      %v1366 = vshrl.u32 %v1365, 7
      %v1367 = vsub.s32 %v1364, %v1366
      %v1368 = vrot.slane %v1361, %v1367
      %v1370 = vunpack.c.l.s4 1983009808
      %v1371 = vunpack.c.0.s8 %v1370
      %v1372 = vlaneseq
      %v1373 = vshrl.u32 %v1372, 7
      %v1374 = vsub.s32 %v1371, %v1373
      %v1375 = vrot.slane %v1293, %v1374
      %v1376 = vcombine.low %v1294, %v1294
      %v1378 = vunpack.c.l.s4 1983009808
      %v1379 = vunpack.c.0.s8 %v1378
      %v1380 = vlaneseq
      %v1381 = vshrl.u32 %v1380, 7
      %v1382 = vsub.s32 %v1379, %v1381
      %v1383 = vrot.slane %v1376, %v1382
      %1384 = vrot.lane.b32.xlu0 %v1308, 91
      %v1385 = vpop.permute.xlu0 %1384
      %1386 = vrot.lane.b32.xlu0 %v1315, 91
      %v1387 = vpop.permute.xlu0 %1386
      %1388 = vrot.lane.b32.xlu0 %v1323, 91
      %v1389 = vpop.permute.xlu0 %1388
      %1390 = vrot.lane.b32.xlu0 %v1330, 91
      %v1391 = vpop.permute.xlu0 %1390
      %1392 = vrot.lane.b32.xlu0 %v1338, 91
      %v1393 = vpop.permute.xlu0 %1392
      %1394 = vrot.lane.b32.xlu0 %v1345, 91
      %v1395 = vpop.permute.xlu0 %1394
      %1396 = vrot.lane.b32.xlu0 %v1353, 91
      %v1397 = vpop.permute.xlu0 %1396
      %1398 = vrot.lane.b32.xlu0 %v1360, 91
      %v1399 = vpop.permute.xlu0 %1398
      %1400 = vrot.lane.b32.xlu0 %v1368, 91
      %v1401 = vpop.permute.xlu0 %1400
      %1402 = vrot.lane.b32.xlu0 %v1375, 91
      %v1403 = vpop.permute.xlu0 %1402
      %1404 = vrot.lane.b32.xlu0 %v1383, 91
      %v1405 = vpop.permute.xlu0 %1404
      %v1406 = vrot.slane %v1385, 4
      %v1407 = vrot.slane %v1387, 4
      %v1408 = vrot.slane %v1389, 4
      %v1409 = vrot.slane %v1391, 4
      %v1410 = vrot.slane %v1393, 4
      %v1411 = vrot.slane %v1395, 4
      %v1412 = vrot.slane %v1397, 4
      %v1413 = vrot.slane %v1399, 4
      %v1414 = vrot.slane %v1401, 4
      %v1415 = vrot.slane %v1403, 4
      %v1416 = vrot.slane %v1405, 4
      %v1417 = vsel %vm405, %v1406, %v1407
      %vm1418 = vcmask 744448
      %v1419 = vsel %vm1418, %v1385, %v1417
      %v1420 = vsel %vm405, %v1407, %v1408
      %v1421 = vsel %vm1418, %v1387, %v1420
      %v1422 = vsel %vm405, %v1408, %v1409
      %v1423 = vsel %vm1418, %v1389, %v1422
      %v1424 = vsel %vm405, %v1409, %v1410
      %v1425 = vsel %vm1418, %v1391, %v1424
      %v1426 = vsel %vm405, %v1410, %v1411
      %v1427 = vsel %vm1418, %v1393, %v1426
      %v1428 = vsel %vm405, %v1411, %v1412
      %v1429 = vsel %vm1418, %v1395, %v1428
      %v1430 = vsel %vm405, %v1412, %v1413
      %v1431 = vsel %vm1418, %v1397, %v1430
      %v1432 = vsel %vm405, %v1413, %v1414
      %v1433 = vsel %vm1418, %v1399, %v1432
      %v1434 = vsel %vm405, %v1414, %v1415
      %v1435 = vsel %vm1418, %v1401, %v1434
      %v1436 = vsel %vm405, %v1415, %v1416
      %v1437 = vsel %vm1418, %v1403, %v1436
      %1448 = vst [vmem:[#allocation2 + $0xf0] sm:$0xcc] %v1419
      %1449 = vst [vmem:[#allocation2 + $0xf8] sm:$0xcc] %v1421
      %1450 = vst [vmem:[#allocation2 + $0x100] sm:$0xcc] %v1423
      %1451 = vst [vmem:[#allocation2 + $0x108] sm:$0xcc] %v1425
      %1452 = vst [vmem:[#allocation2 + $0x110] sm:$0xcc] %v1427
      %1453 = vst [vmem:[#allocation2 + $0x118] sm:$0xcc] %v1429
      %1454 = vst [vmem:[#allocation2 + $0x120] sm:$0xcc] %v1431
      %1455 = vst [vmem:[#allocation2 + $0x128] sm:$0xcc] %v1433
      %1456 = vst [vmem:[#allocation2 + $0x130] sm:$0xcc] %v1435
      %1457 = vst [vmem:[#allocation2 + $0x138] sm:$0xcc] %v1437
      %v1458 = vld [vmem:[%s165] sm:$0xff]
      %v1459 = vld [vmem:[%s165 + $0x8] sm:$0xff]
      %v1460 = vld [vmem:[%s165 + $0x10] sm:$0xff]
      %v1461 = vld [vmem:[%s165 + $0x18] sm:$0xff]
      %v1462 = vld [vmem:[%s165 + $0x20] sm:$0xff]
      %v1463 = vld [vmem:[%s165 + $0x28] sm:$0x3]
      %v1470 = vcombine.high %v1458, %v1458
      %v1472 = vunpack.c.l.s4 1983009808
      %v1473 = vunpack.c.0.s8 %v1472
      %v1474 = vlaneseq
      %v1475 = vshrl.u32 %v1474, 7
      %v1476 = vsub.s32 %v1473, %v1475
      %v1477 = vrot.slane %v1458, %v1476
      %v1479 = vunpack.c.l.s4 1983009808
      %v1480 = vunpack.c.0.s8 %v1479
      %v1481 = vlaneseq
      %v1482 = vshrl.u32 %v1481, 7
      %v1483 = vsub.s32 %v1480, %v1482
      %v1484 = vrot.slane %v1470, %v1483
      %v1485 = vcombine.high %v1459, %v1459
      %v1487 = vunpack.c.l.s4 1983009808
      %v1488 = vunpack.c.0.s8 %v1487
      %v1489 = vlaneseq
      %v1490 = vshrl.u32 %v1489, 7
      %v1491 = vsub.s32 %v1488, %v1490
      %v1492 = vrot.slane %v1459, %v1491
      %v1494 = vunpack.c.l.s4 1983009808
      %v1495 = vunpack.c.0.s8 %v1494
      %v1496 = vlaneseq
      %v1497 = vshrl.u32 %v1496, 7
      %v1498 = vsub.s32 %v1495, %v1497
      %v1499 = vrot.slane %v1485, %v1498
      %v1500 = vcombine.high %v1460, %v1460
      %v1502 = vunpack.c.l.s4 1983009808
      %v1503 = vunpack.c.0.s8 %v1502
      %v1504 = vlaneseq
      %v1505 = vshrl.u32 %v1504, 7
      %v1506 = vsub.s32 %v1503, %v1505
      %v1507 = vrot.slane %v1460, %v1506
      %v1509 = vunpack.c.l.s4 1983009808
      %v1510 = vunpack.c.0.s8 %v1509
      %v1511 = vlaneseq
      %v1512 = vshrl.u32 %v1511, 7
      %v1513 = vsub.s32 %v1510, %v1512
      %v1514 = vrot.slane %v1500, %v1513
      %v1515 = vcombine.high %v1461, %v1461
      %v1517 = vunpack.c.l.s4 1983009808
      %v1518 = vunpack.c.0.s8 %v1517
      %v1519 = vlaneseq
      %v1520 = vshrl.u32 %v1519, 7
      %v1521 = vsub.s32 %v1518, %v1520
      %v1522 = vrot.slane %v1461, %v1521
      %v1524 = vunpack.c.l.s4 1983009808
      %v1525 = vunpack.c.0.s8 %v1524
      %v1526 = vlaneseq
      %v1527 = vshrl.u32 %v1526, 7
      %v1528 = vsub.s32 %v1525, %v1527
      %v1529 = vrot.slane %v1515, %v1528
      %v1530 = vcombine.high %v1462, %v1462
      %v1532 = vunpack.c.l.s4 1983009808
      %v1533 = vunpack.c.0.s8 %v1532
      %v1534 = vlaneseq
      %v1535 = vshrl.u32 %v1534, 7
      %v1536 = vsub.s32 %v1533, %v1535
      %v1537 = vrot.slane %v1462, %v1536
      %v1539 = vunpack.c.l.s4 1983009808
      %v1540 = vunpack.c.0.s8 %v1539
      %v1541 = vlaneseq
      %v1542 = vshrl.u32 %v1541, 7
      %v1543 = vsub.s32 %v1540, %v1542
      %v1544 = vrot.slane %v1530, %v1543
      %v1546 = vunpack.c.l.s4 1983009808
      %v1547 = vunpack.c.0.s8 %v1546
      %v1548 = vlaneseq
      %v1549 = vshrl.u32 %v1548, 7
      %v1550 = vsub.s32 %v1547, %v1549
      %v1551 = vrot.slane %v1463, %v1550
      %1552 = vrot.lane.b32.xlu0 %v1477, 90
      %v1553 = vpop.permute.xlu0 %1552
      %1554 = vrot.lane.b32.xlu0 %v1484, 90
      %v1555 = vpop.permute.xlu0 %1554
      %1556 = vrot.lane.b32.xlu0 %v1492, 90
      %v1557 = vpop.permute.xlu0 %1556
      %1558 = vrot.lane.b32.xlu0 %v1499, 90
      %v1559 = vpop.permute.xlu0 %1558
      %1560 = vrot.lane.b32.xlu0 %v1507, 90
      %v1561 = vpop.permute.xlu0 %1560
      %1562 = vrot.lane.b32.xlu0 %v1514, 90
      %v1563 = vpop.permute.xlu0 %1562
      %1564 = vrot.lane.b32.xlu0 %v1522, 90
      %v1565 = vpop.permute.xlu0 %1564
      %1566 = vrot.lane.b32.xlu0 %v1529, 90
      %v1567 = vpop.permute.xlu0 %1566
      %1568 = vrot.lane.b32.xlu0 %v1537, 90
      %v1569 = vpop.permute.xlu0 %1568
      %1570 = vrot.lane.b32.xlu0 %v1544, 90
      %v1571 = vpop.permute.xlu0 %1570
      %1572 = vrot.lane.b32.xlu0 %v1551, 90
      %v1573 = vpop.permute.xlu0 %1572
      %v1574 = vrot.slane %v1553, 4
      %v1575 = vrot.slane %v1555, 4
      %v1576 = vrot.slane %v1557, 4
      %v1577 = vrot.slane %v1559, 4
      %v1578 = vrot.slane %v1561, 4
      %v1579 = vrot.slane %v1563, 4
      %v1580 = vrot.slane %v1565, 4
      %v1581 = vrot.slane %v1567, 4
      %v1582 = vrot.slane %v1569, 4
      %v1583 = vrot.slane %v1571, 4
      %v1584 = vrot.slane %v1573, 4
      %v1585 = vsel %vm405, %v1574, %v1575
      %vm1586 = vcmask 736256
      %v1587 = vsel %vm1586, %v1553, %v1585
      %v1588 = vsel %vm405, %v1575, %v1576
      %v1589 = vsel %vm1586, %v1555, %v1588
      %v1590 = vsel %vm405, %v1576, %v1577
      %v1591 = vsel %vm1586, %v1557, %v1590
      %v1592 = vsel %vm405, %v1577, %v1578
      %v1593 = vsel %vm1586, %v1559, %v1592
      %v1594 = vsel %vm405, %v1578, %v1579
      %v1595 = vsel %vm1586, %v1561, %v1594
      %v1596 = vsel %vm405, %v1579, %v1580
      %v1597 = vsel %vm1586, %v1563, %v1596
      %v1598 = vsel %vm405, %v1580, %v1581
      %v1599 = vsel %vm1586, %v1565, %v1598
      %v1600 = vsel %vm405, %v1581, %v1582
      %v1601 = vsel %vm1586, %v1567, %v1600
      %v1602 = vsel %vm405, %v1582, %v1583
      %v1603 = vsel %vm1586, %v1569, %v1602
      %v1604 = vsel %vm405, %v1583, %v1584
      %v1605 = vsel %vm1586, %v1571, %v1604
      %1616 = vst [vmem:[#allocation2 + $0x140] sm:$0x33] %v1587
      %1617 = vst [vmem:[#allocation2 + $0x148] sm:$0x33] %v1589
      %1618 = vst [vmem:[#allocation2 + $0x150] sm:$0x33] %v1591
      %1619 = vst [vmem:[#allocation2 + $0x158] sm:$0x33] %v1593
      %1620 = vst [vmem:[#allocation2 + $0x160] sm:$0x33] %v1595
      %1621 = vst [vmem:[#allocation2 + $0x168] sm:$0x33] %v1597
      %1622 = vst [vmem:[#allocation2 + $0x170] sm:$0x33] %v1599
      %1623 = vst [vmem:[#allocation2 + $0x178] sm:$0x33] %v1601
      %1624 = vst [vmem:[#allocation2 + $0x180] sm:$0x33] %v1603
      %1625 = vst [vmem:[#allocation2 + $0x188] sm:$0x33] %v1605
      %v1626 = vld [vmem:[%s165 + $0x4] sm:$0xff]
      %v1627 = vld [vmem:[%s165 + $0xc] sm:$0xff]
      %v1628 = vld [vmem:[%s165 + $0x14] sm:$0xff]
      %v1629 = vld [vmem:[%s165 + $0x1c] sm:$0xff]
      %v1630 = vld [vmem:[%s165 + $0x24] sm:$0xff]
      %v1631 = vld [vmem:[%s165 + $0x2c] sm:$0x3]
      %v1638 = vcombine.low %v1626, %v1626
      %v1640 = vunpack.c.l.s4 1983009808
      %v1641 = vunpack.c.0.s8 %v1640
      %v1642 = vlaneseq
      %v1643 = vshrl.u32 %v1642, 7
      %v1644 = vsub.s32 %v1641, %v1643
      %v1645 = vrot.slane %v1638, %v1644
      %v1647 = vunpack.c.l.s4 1983009808
      %v1648 = vunpack.c.0.s8 %v1647
      %v1649 = vlaneseq
      %v1650 = vshrl.u32 %v1649, 7
      %v1651 = vsub.s32 %v1648, %v1650
      %v1652 = vrot.slane %v1626, %v1651
      %v1653 = vcombine.low %v1627, %v1627
      %v1655 = vunpack.c.l.s4 1983009808
      %v1656 = vunpack.c.0.s8 %v1655
      %v1657 = vlaneseq
      %v1658 = vshrl.u32 %v1657, 7
      %v1659 = vsub.s32 %v1656, %v1658
      %v1660 = vrot.slane %v1653, %v1659
      %v1662 = vunpack.c.l.s4 1983009808
      %v1663 = vunpack.c.0.s8 %v1662
      %v1664 = vlaneseq
      %v1665 = vshrl.u32 %v1664, 7
      %v1666 = vsub.s32 %v1663, %v1665
      %v1667 = vrot.slane %v1627, %v1666
      %v1668 = vcombine.low %v1628, %v1628
      %v1670 = vunpack.c.l.s4 1983009808
      %v1671 = vunpack.c.0.s8 %v1670
      %v1672 = vlaneseq
      %v1673 = vshrl.u32 %v1672, 7
      %v1674 = vsub.s32 %v1671, %v1673
      %v1675 = vrot.slane %v1668, %v1674
      %v1677 = vunpack.c.l.s4 1983009808
      %v1678 = vunpack.c.0.s8 %v1677
      %v1679 = vlaneseq
      %v1680 = vshrl.u32 %v1679, 7
      %v1681 = vsub.s32 %v1678, %v1680
      %v1682 = vrot.slane %v1628, %v1681
      %v1683 = vcombine.low %v1629, %v1629
      %v1685 = vunpack.c.l.s4 1983009808
      %v1686 = vunpack.c.0.s8 %v1685
      %v1687 = vlaneseq
      %v1688 = vshrl.u32 %v1687, 7
      %v1689 = vsub.s32 %v1686, %v1688
      %v1690 = vrot.slane %v1683, %v1689
      %v1692 = vunpack.c.l.s4 1983009808
      %v1693 = vunpack.c.0.s8 %v1692
      %v1694 = vlaneseq
      %v1695 = vshrl.u32 %v1694, 7
      %v1696 = vsub.s32 %v1693, %v1695
      %v1697 = vrot.slane %v1629, %v1696
      %v1698 = vcombine.low %v1630, %v1630
      %v1700 = vunpack.c.l.s4 1983009808
      %v1701 = vunpack.c.0.s8 %v1700
      %v1702 = vlaneseq
      %v1703 = vshrl.u32 %v1702, 7
      %v1704 = vsub.s32 %v1701, %v1703
      %v1705 = vrot.slane %v1698, %v1704
      %v1707 = vunpack.c.l.s4 1983009808
      %v1708 = vunpack.c.0.s8 %v1707
      %v1709 = vlaneseq
      %v1710 = vshrl.u32 %v1709, 7
      %v1711 = vsub.s32 %v1708, %v1710
      %v1712 = vrot.slane %v1630, %v1711
      %v1713 = vcombine.low %v1631, %v1631
      %v1715 = vunpack.c.l.s4 1983009808
      %v1716 = vunpack.c.0.s8 %v1715
      %v1717 = vlaneseq
      %v1718 = vshrl.u32 %v1717, 7
      %v1719 = vsub.s32 %v1716, %v1718
      %v1720 = vrot.slane %v1713, %v1719
      %1721 = vrot.lane.b32.xlu0 %v1645, 60
      %v1722 = vpop.permute.xlu0 %1721
      %1723 = vrot.lane.b32.xlu0 %v1652, 60
      %v1724 = vpop.permute.xlu0 %1723
      %1725 = vrot.lane.b32.xlu0 %v1660, 60
      %v1726 = vpop.permute.xlu0 %1725
      %1727 = vrot.lane.b32.xlu0 %v1667, 60
      %v1728 = vpop.permute.xlu0 %1727
      %1729 = vrot.lane.b32.xlu0 %v1675, 60
      %v1730 = vpop.permute.xlu0 %1729
      %1731 = vrot.lane.b32.xlu0 %v1682, 60
      %v1732 = vpop.permute.xlu0 %1731
      %1733 = vrot.lane.b32.xlu0 %v1690, 60
      %v1734 = vpop.permute.xlu0 %1733
      %1735 = vrot.lane.b32.xlu0 %v1697, 60
      %v1736 = vpop.permute.xlu0 %1735
      %1737 = vrot.lane.b32.xlu0 %v1705, 60
      %v1738 = vpop.permute.xlu0 %1737
      %1739 = vrot.lane.b32.xlu0 %v1712, 60
      %v1740 = vpop.permute.xlu0 %1739
      %1741 = vrot.lane.b32.xlu0 %v1720, 60
      %v1742 = vpop.permute.xlu0 %1741
      %v1743 = vrot.slane %v1722, 4
      %v1744 = vrot.slane %v1724, 4
      %v1745 = vrot.slane %v1726, 4
      %v1746 = vrot.slane %v1728, 4
      %v1747 = vrot.slane %v1730, 4
      %v1748 = vrot.slane %v1732, 4
      %v1749 = vrot.slane %v1734, 4
      %v1750 = vrot.slane %v1736, 4
      %v1751 = vrot.slane %v1738, 4
      %v1752 = vrot.slane %v1740, 4
      %v1753 = vrot.slane %v1742, 4
      %v1754 = vsel %vm405, %v1743, %v1744
      %vm1755 = vcmask 490496
      %v1756 = vsel %vm1755, %v1722, %v1754
      %v1757 = vsel %vm405, %v1744, %v1745
      %v1758 = vsel %vm1755, %v1724, %v1757
      %v1759 = vsel %vm405, %v1745, %v1746
      %v1760 = vsel %vm1755, %v1726, %v1759
      %v1761 = vsel %vm405, %v1746, %v1747
      %v1762 = vsel %vm1755, %v1728, %v1761
      %v1763 = vsel %vm405, %v1747, %v1748
      %v1764 = vsel %vm1755, %v1730, %v1763
      %v1765 = vsel %vm405, %v1748, %v1749
      %v1766 = vsel %vm1755, %v1732, %v1765
      %v1767 = vsel %vm405, %v1749, %v1750
      %v1768 = vsel %vm1755, %v1734, %v1767
      %v1769 = vsel %vm405, %v1750, %v1751
      %v1770 = vsel %vm1755, %v1736, %v1769
      %v1771 = vsel %vm405, %v1751, %v1752
      %v1772 = vsel %vm1755, %v1738, %v1771
      %v1773 = vsel %vm405, %v1752, %v1753
      %v1774 = vsel %vm1755, %v1740, %v1773
      %1785 = vst [vmem:[#allocation2 + $0x140] sm:$0xcc] %v1756
      %1786 = vst [vmem:[#allocation2 + $0x148] sm:$0xcc] %v1758
      %1787 = vst [vmem:[#allocation2 + $0x150] sm:$0xcc] %v1760
      %1788 = vst [vmem:[#allocation2 + $0x158] sm:$0xcc] %v1762
      %1789 = vst [vmem:[#allocation2 + $0x160] sm:$0xcc] %v1764
      %1790 = vst [vmem:[#allocation2 + $0x168] sm:$0xcc] %v1766
      %1791 = vst [vmem:[#allocation2 + $0x170] sm:$0xcc] %v1768
      %1792 = vst [vmem:[#allocation2 + $0x178] sm:$0xcc] %v1770
      %1793 = vst [vmem:[#allocation2 + $0x180] sm:$0xcc] %v1772
      %1794 = vst [vmem:[#allocation2 + $0x188] sm:$0xcc] %v1774
      %v1795 = vld [vmem:[%s165 + $0x4] sm:$0xff]
      %v1796 = vld [vmem:[%s165 + $0xc] sm:$0xff]
      %v1797 = vld [vmem:[%s165 + $0x14] sm:$0xff]
      %v1798 = vld [vmem:[%s165 + $0x1c] sm:$0xff]
      %v1799 = vld [vmem:[%s165 + $0x24] sm:$0xff]
      %v1800 = vld [vmem:[%s165 + $0x2c] sm:$0x3]
      %v1807 = vcombine.high %v1795, %v1795
      %v1809 = vunpack.c.l.s4 1983009808
      %v1810 = vunpack.c.0.s8 %v1809
      %v1811 = vlaneseq
      %v1812 = vshrl.u32 %v1811, 7
      %v1813 = vsub.s32 %v1810, %v1812
      %v1814 = vrot.slane %v1795, %v1813
      %v1816 = vunpack.c.l.s4 1983009808
      %v1817 = vunpack.c.0.s8 %v1816
      %v1818 = vlaneseq
      %v1819 = vshrl.u32 %v1818, 7
      %v1820 = vsub.s32 %v1817, %v1819
      %v1821 = vrot.slane %v1807, %v1820
      %v1822 = vcombine.high %v1796, %v1796
      %v1824 = vunpack.c.l.s4 1983009808
      %v1825 = vunpack.c.0.s8 %v1824
      %v1826 = vlaneseq
      %v1827 = vshrl.u32 %v1826, 7
      %v1828 = vsub.s32 %v1825, %v1827
      %v1829 = vrot.slane %v1796, %v1828
      %v1831 = vunpack.c.l.s4 1983009808
      %v1832 = vunpack.c.0.s8 %v1831
      %v1833 = vlaneseq
      %v1834 = vshrl.u32 %v1833, 7
      %v1835 = vsub.s32 %v1832, %v1834
      %v1836 = vrot.slane %v1822, %v1835
      %v1837 = vcombine.high %v1797, %v1797
      %v1839 = vunpack.c.l.s4 1983009808
      %v1840 = vunpack.c.0.s8 %v1839
      %v1841 = vlaneseq
      %v1842 = vshrl.u32 %v1841, 7
      %v1843 = vsub.s32 %v1840, %v1842
      %v1844 = vrot.slane %v1797, %v1843
      %v1846 = vunpack.c.l.s4 1983009808
      %v1847 = vunpack.c.0.s8 %v1846
      %v1848 = vlaneseq
      %v1849 = vshrl.u32 %v1848, 7
      %v1850 = vsub.s32 %v1847, %v1849
      %v1851 = vrot.slane %v1837, %v1850
      %v1852 = vcombine.high %v1798, %v1798
      %v1854 = vunpack.c.l.s4 1983009808
      %v1855 = vunpack.c.0.s8 %v1854
      %v1856 = vlaneseq
      %v1857 = vshrl.u32 %v1856, 7
      %v1858 = vsub.s32 %v1855, %v1857
      %v1859 = vrot.slane %v1798, %v1858
      %v1861 = vunpack.c.l.s4 1983009808
      %v1862 = vunpack.c.0.s8 %v1861
      %v1863 = vlaneseq
      %v1864 = vshrl.u32 %v1863, 7
      %v1865 = vsub.s32 %v1862, %v1864
      %v1866 = vrot.slane %v1852, %v1865
      %v1867 = vcombine.high %v1799, %v1799
      %v1869 = vunpack.c.l.s4 1983009808
      %v1870 = vunpack.c.0.s8 %v1869
      %v1871 = vlaneseq
      %v1872 = vshrl.u32 %v1871, 7
      %v1873 = vsub.s32 %v1870, %v1872
      %v1874 = vrot.slane %v1799, %v1873
      %v1876 = vunpack.c.l.s4 1983009808
      %v1877 = vunpack.c.0.s8 %v1876
      %v1878 = vlaneseq
      %v1879 = vshrl.u32 %v1878, 7
      %v1880 = vsub.s32 %v1877, %v1879
      %v1881 = vrot.slane %v1867, %v1880
      %v1883 = vunpack.c.l.s4 1983009808
      %v1884 = vunpack.c.0.s8 %v1883
      %v1885 = vlaneseq
      %v1886 = vshrl.u32 %v1885, 7
      %v1887 = vsub.s32 %v1884, %v1886
      %v1888 = vrot.slane %v1800, %v1887
      %1889 = vrot.lane.b32.xlu0 %v1814, 59
      %v1890 = vpop.permute.xlu0 %1889
      %1891 = vrot.lane.b32.xlu0 %v1821, 59
      %v1892 = vpop.permute.xlu0 %1891
      %1893 = vrot.lane.b32.xlu0 %v1829, 59
      %v1894 = vpop.permute.xlu0 %1893
      %1895 = vrot.lane.b32.xlu0 %v1836, 59
      %v1896 = vpop.permute.xlu0 %1895
      %1897 = vrot.lane.b32.xlu0 %v1844, 59
      %v1898 = vpop.permute.xlu0 %1897
      %1899 = vrot.lane.b32.xlu0 %v1851, 59
      %v1900 = vpop.permute.xlu0 %1899
      %1901 = vrot.lane.b32.xlu0 %v1859, 59
      %v1902 = vpop.permute.xlu0 %1901
      %1903 = vrot.lane.b32.xlu0 %v1866, 59
      %v1904 = vpop.permute.xlu0 %1903
      %1905 = vrot.lane.b32.xlu0 %v1874, 59
      %v1906 = vpop.permute.xlu0 %1905
      %1907 = vrot.lane.b32.xlu0 %v1881, 59
      %v1908 = vpop.permute.xlu0 %1907
      %1909 = vrot.lane.b32.xlu0 %v1888, 59
      %v1910 = vpop.permute.xlu0 %1909
      %v1911 = vrot.slane %v1890, 4
      %v1912 = vrot.slane %v1892, 4
      %v1913 = vrot.slane %v1894, 4
      %v1914 = vrot.slane %v1896, 4
      %v1915 = vrot.slane %v1898, 4
      %v1916 = vrot.slane %v1900, 4
      %v1917 = vrot.slane %v1902, 4
      %v1918 = vrot.slane %v1904, 4
      %v1919 = vrot.slane %v1906, 4
      %v1920 = vrot.slane %v1908, 4
      %v1921 = vrot.slane %v1910, 4
      %v1922 = vsel %vm405, %v1911, %v1912
      %vm1923 = vcmask 482304
      %v1924 = vsel %vm1923, %v1890, %v1922
      %v1925 = vsel %vm405, %v1912, %v1913
      %v1926 = vsel %vm1923, %v1892, %v1925
      %v1927 = vsel %vm405, %v1913, %v1914
      %v1928 = vsel %vm1923, %v1894, %v1927
      %v1929 = vsel %vm405, %v1914, %v1915
      %v1930 = vsel %vm1923, %v1896, %v1929
      %v1931 = vsel %vm405, %v1915, %v1916
      %v1932 = vsel %vm1923, %v1898, %v1931
      %v1933 = vsel %vm405, %v1916, %v1917
      %v1934 = vsel %vm1923, %v1900, %v1933
      %v1935 = vsel %vm405, %v1917, %v1918
      %v1936 = vsel %vm1923, %v1902, %v1935
      %v1937 = vsel %vm405, %v1918, %v1919
      %v1938 = vsel %vm1923, %v1904, %v1937
      %v1939 = vsel %vm405, %v1919, %v1920
      %v1940 = vsel %vm1923, %v1906, %v1939
      %v1941 = vsel %vm405, %v1920, %v1921
      %v1942 = vsel %vm1923, %v1908, %v1941
      %1953 = vst [vmem:[#allocation2 + $0x190] sm:$0x33] %v1924
      %1954 = vst [vmem:[#allocation2 + $0x198] sm:$0x33] %v1926
      %1955 = vst [vmem:[#allocation2 + $0x1a0] sm:$0x33] %v1928
      %1956 = vst [vmem:[#allocation2 + $0x1a8] sm:$0x33] %v1930
      %1957 = vst [vmem:[#allocation2 + $0x1b0] sm:$0x33] %v1932
      %1958 = vst [vmem:[#allocation2 + $0x1b8] sm:$0x33] %v1934
      %1959 = vst [vmem:[#allocation2 + $0x1c0] sm:$0x33] %v1936
      %1960 = vst [vmem:[#allocation2 + $0x1c8] sm:$0x33] %v1938
      %1961 = vst [vmem:[#allocation2 + $0x1d0] sm:$0x33] %v1940
      %1962 = vst [vmem:[#allocation2 + $0x1d8] sm:$0x33] %v1942
      %v1963 = vld [vmem:[%s165 + $0x4] sm:$0xff]
      %v1964 = vld [vmem:[%s165 + $0xc] sm:$0xff]
      %v1965 = vld [vmem:[%s165 + $0x14] sm:$0xff]
      %v1966 = vld [vmem:[%s165 + $0x1c] sm:$0xff]
      %v1967 = vld [vmem:[%s165 + $0x24] sm:$0xff]
      %v1968 = vld [vmem:[%s165 + $0x2c] sm:$0x3]
      %v1975 = vcombine.low %v1963, %v1963
      %v1977 = vunpack.c.l.s4 1983009808
      %v1978 = vunpack.c.0.s8 %v1977
      %v1979 = vlaneseq
      %v1980 = vshrl.u32 %v1979, 7
      %v1981 = vsub.s32 %v1978, %v1980
      %v1982 = vrot.slane %v1975, %v1981
      %v1984 = vunpack.c.l.s4 1983009808
      %v1985 = vunpack.c.0.s8 %v1984
      %v1986 = vlaneseq
      %v1987 = vshrl.u32 %v1986, 7
      %v1988 = vsub.s32 %v1985, %v1987
      %v1989 = vrot.slane %v1963, %v1988
      %v1990 = vcombine.low %v1964, %v1964
      %v1992 = vunpack.c.l.s4 1983009808
      %v1993 = vunpack.c.0.s8 %v1992
      %v1994 = vlaneseq
      %v1995 = vshrl.u32 %v1994, 7
      %v1996 = vsub.s32 %v1993, %v1995
      %v1997 = vrot.slane %v1990, %v1996
      %v1999 = vunpack.c.l.s4 1983009808
      %v2000 = vunpack.c.0.s8 %v1999
      %v2001 = vlaneseq
      %v2002 = vshrl.u32 %v2001, 7
      %v2003 = vsub.s32 %v2000, %v2002
      %v2004 = vrot.slane %v1964, %v2003
      %v2005 = vcombine.low %v1965, %v1965
      %v2007 = vunpack.c.l.s4 1983009808
      %v2008 = vunpack.c.0.s8 %v2007
      %v2009 = vlaneseq
      %v2010 = vshrl.u32 %v2009, 7
      %v2011 = vsub.s32 %v2008, %v2010
      %v2012 = vrot.slane %v2005, %v2011
      %v2014 = vunpack.c.l.s4 1983009808
      %v2015 = vunpack.c.0.s8 %v2014
      %v2016 = vlaneseq
      %v2017 = vshrl.u32 %v2016, 7
      %v2018 = vsub.s32 %v2015, %v2017
      %v2019 = vrot.slane %v1965, %v2018
      %v2020 = vcombine.low %v1966, %v1966
      %v2022 = vunpack.c.l.s4 1983009808
      %v2023 = vunpack.c.0.s8 %v2022
      %v2024 = vlaneseq
      %v2025 = vshrl.u32 %v2024, 7
      %v2026 = vsub.s32 %v2023, %v2025
      %v2027 = vrot.slane %v2020, %v2026
      %v2029 = vunpack.c.l.s4 1983009808
      %v2030 = vunpack.c.0.s8 %v2029
      %v2031 = vlaneseq
      %v2032 = vshrl.u32 %v2031, 7
      %v2033 = vsub.s32 %v2030, %v2032
      %v2034 = vrot.slane %v1966, %v2033
      %v2035 = vcombine.low %v1967, %v1967
      %v2037 = vunpack.c.l.s4 1983009808
      %v2038 = vunpack.c.0.s8 %v2037
      %v2039 = vlaneseq
      %v2040 = vshrl.u32 %v2039, 7
      %v2041 = vsub.s32 %v2038, %v2040
      %v2042 = vrot.slane %v2035, %v2041
      %v2044 = vunpack.c.l.s4 1983009808
      %v2045 = vunpack.c.0.s8 %v2044
      %v2046 = vlaneseq
      %v2047 = vshrl.u32 %v2046, 7
      %v2048 = vsub.s32 %v2045, %v2047
      %v2049 = vrot.slane %v1967, %v2048
      %v2050 = vcombine.low %v1968, %v1968
      %v2052 = vunpack.c.l.s4 1983009808
      %v2053 = vunpack.c.0.s8 %v2052
      %v2054 = vlaneseq
      %v2055 = vshrl.u32 %v2054, 7
      %v2056 = vsub.s32 %v2053, %v2055
      %v2057 = vrot.slane %v2050, %v2056
      %2058 = vrot.lane.b32.xlu0 %v1982, 58
      %v2059 = vpop.permute.xlu0 %2058
      %2060 = vrot.lane.b32.xlu0 %v1989, 58
      %v2061 = vpop.permute.xlu0 %2060
      %2062 = vrot.lane.b32.xlu0 %v1997, 58
      %v2063 = vpop.permute.xlu0 %2062
      %2064 = vrot.lane.b32.xlu0 %v2004, 58
      %v2065 = vpop.permute.xlu0 %2064
      %2066 = vrot.lane.b32.xlu0 %v2012, 58
      %v2067 = vpop.permute.xlu0 %2066
      %2068 = vrot.lane.b32.xlu0 %v2019, 58
      %v2069 = vpop.permute.xlu0 %2068
      %2070 = vrot.lane.b32.xlu0 %v2027, 58
      %v2071 = vpop.permute.xlu0 %2070
      %2072 = vrot.lane.b32.xlu0 %v2034, 58
      %v2073 = vpop.permute.xlu0 %2072
      %2074 = vrot.lane.b32.xlu0 %v2042, 58
      %v2075 = vpop.permute.xlu0 %2074
      %2076 = vrot.lane.b32.xlu0 %v2049, 58
      %v2077 = vpop.permute.xlu0 %2076
      %2078 = vrot.lane.b32.xlu0 %v2057, 58
      %v2079 = vpop.permute.xlu0 %2078
      %v2080 = vrot.slane %v2059, 4
      %v2081 = vrot.slane %v2061, 4
      %v2082 = vrot.slane %v2063, 4
      %v2083 = vrot.slane %v2065, 4
      %v2084 = vrot.slane %v2067, 4
      %v2085 = vrot.slane %v2069, 4
      %v2086 = vrot.slane %v2071, 4
      %v2087 = vrot.slane %v2073, 4
      %v2088 = vrot.slane %v2075, 4
      %v2089 = vrot.slane %v2077, 4
      %v2090 = vrot.slane %v2079, 4
      %v2091 = vsel %vm405, %v2080, %v2081
      %vm2092 = vcmask 474112
      %v2093 = vsel %vm2092, %v2059, %v2091
      %v2094 = vsel %vm405, %v2081, %v2082
      %v2095 = vsel %vm2092, %v2061, %v2094
      %v2096 = vsel %vm405, %v2082, %v2083
      %v2097 = vsel %vm2092, %v2063, %v2096
      %v2098 = vsel %vm405, %v2083, %v2084
      %v2099 = vsel %vm2092, %v2065, %v2098
      %v2100 = vsel %vm405, %v2084, %v2085
      %v2101 = vsel %vm2092, %v2067, %v2100
      %v2102 = vsel %vm405, %v2085, %v2086
      %v2103 = vsel %vm2092, %v2069, %v2102
      %v2104 = vsel %vm405, %v2086, %v2087
      %v2105 = vsel %vm2092, %v2071, %v2104
      %v2106 = vsel %vm405, %v2087, %v2088
      %v2107 = vsel %vm2092, %v2073, %v2106
      %v2108 = vsel %vm405, %v2088, %v2089
      %v2109 = vsel %vm2092, %v2075, %v2108
      %v2110 = vsel %vm405, %v2089, %v2090
      %v2111 = vsel %vm2092, %v2077, %v2110
      %2122 = vst [vmem:[#allocation2 + $0x190] sm:$0xcc] %v2093
      %2123 = vst [vmem:[#allocation2 + $0x198] sm:$0xcc] %v2095
      %2124 = vst [vmem:[#allocation2 + $0x1a0] sm:$0xcc] %v2097
      %2125 = vst [vmem:[#allocation2 + $0x1a8] sm:$0xcc] %v2099
      %2126 = vst [vmem:[#allocation2 + $0x1b0] sm:$0xcc] %v2101
      %2127 = vst [vmem:[#allocation2 + $0x1b8] sm:$0xcc] %v2103
      %2128 = vst [vmem:[#allocation2 + $0x1c0] sm:$0xcc] %v2105
      %2129 = vst [vmem:[#allocation2 + $0x1c8] sm:$0xcc] %v2107
      %2130 = vst [vmem:[#allocation2 + $0x1d0] sm:$0xcc] %v2109
      %2131 = vst [vmem:[#allocation2 + $0x1d8] sm:$0xcc] %v2111
      %v2132 = vld [vmem:[%s165 + $0x4] sm:$0xff]
      %v2133 = vld [vmem:[%s165 + $0xc] sm:$0xff]
      %v2134 = vld [vmem:[%s165 + $0x14] sm:$0xff]
      %v2135 = vld [vmem:[%s165 + $0x1c] sm:$0xff]
      %v2136 = vld [vmem:[%s165 + $0x24] sm:$0xff]
      %v2137 = vld [vmem:[%s165 + $0x2c] sm:$0x3]
      %v2144 = vcombine.high %v2132, %v2132
      %v2146 = vunpack.c.l.s4 1983009808
      %v2147 = vunpack.c.0.s8 %v2146
      %v2148 = vlaneseq
      %v2149 = vshrl.u32 %v2148, 7
      %v2150 = vsub.s32 %v2147, %v2149
      %v2151 = vrot.slane %v2132, %v2150
      %v2153 = vunpack.c.l.s4 1983009808
      %v2154 = vunpack.c.0.s8 %v2153
      %v2155 = vlaneseq
      %v2156 = vshrl.u32 %v2155, 7
      %v2157 = vsub.s32 %v2154, %v2156
      %v2158 = vrot.slane %v2144, %v2157
      %v2159 = vcombine.high %v2133, %v2133
      %v2161 = vunpack.c.l.s4 1983009808
      %v2162 = vunpack.c.0.s8 %v2161
      %v2163 = vlaneseq
      %v2164 = vshrl.u32 %v2163, 7
      %v2165 = vsub.s32 %v2162, %v2164
      %v2166 = vrot.slane %v2133, %v2165
      %v2168 = vunpack.c.l.s4 1983009808
      %v2169 = vunpack.c.0.s8 %v2168
      %v2170 = vlaneseq
      %v2171 = vshrl.u32 %v2170, 7
      %v2172 = vsub.s32 %v2169, %v2171
      %v2173 = vrot.slane %v2159, %v2172
      %v2174 = vcombine.high %v2134, %v2134
      %v2176 = vunpack.c.l.s4 1983009808
      %v2177 = vunpack.c.0.s8 %v2176
      %v2178 = vlaneseq
      %v2179 = vshrl.u32 %v2178, 7
      %v2180 = vsub.s32 %v2177, %v2179
      %v2181 = vrot.slane %v2134, %v2180
      %v2183 = vunpack.c.l.s4 1983009808
      %v2184 = vunpack.c.0.s8 %v2183
      %v2185 = vlaneseq
      %v2186 = vshrl.u32 %v2185, 7
      %v2187 = vsub.s32 %v2184, %v2186
      %v2188 = vrot.slane %v2174, %v2187
      %v2189 = vcombine.high %v2135, %v2135
      %v2191 = vunpack.c.l.s4 1983009808
      %v2192 = vunpack.c.0.s8 %v2191
      %v2193 = vlaneseq
      %v2194 = vshrl.u32 %v2193, 7
      %v2195 = vsub.s32 %v2192, %v2194
      %v2196 = vrot.slane %v2135, %v2195
      %v2198 = vunpack.c.l.s4 1983009808
      %v2199 = vunpack.c.0.s8 %v2198
      %v2200 = vlaneseq
      %v2201 = vshrl.u32 %v2200, 7
      %v2202 = vsub.s32 %v2199, %v2201
      %v2203 = vrot.slane %v2189, %v2202
      %v2204 = vcombine.high %v2136, %v2136
      %v2206 = vunpack.c.l.s4 1983009808
      %v2207 = vunpack.c.0.s8 %v2206
      %v2208 = vlaneseq
      %v2209 = vshrl.u32 %v2208, 7
      %v2210 = vsub.s32 %v2207, %v2209
      %v2211 = vrot.slane %v2136, %v2210
      %v2213 = vunpack.c.l.s4 1983009808
      %v2214 = vunpack.c.0.s8 %v2213
      %v2215 = vlaneseq
      %v2216 = vshrl.u32 %v2215, 7
      %v2217 = vsub.s32 %v2214, %v2216
      %v2218 = vrot.slane %v2204, %v2217
      %v2220 = vunpack.c.l.s4 1983009808
      %v2221 = vunpack.c.0.s8 %v2220
      %v2222 = vlaneseq
      %v2223 = vshrl.u32 %v2222, 7
      %v2224 = vsub.s32 %v2221, %v2223
      %v2225 = vrot.slane %v2137, %v2224
      %2226 = vrot.lane.b32.xlu0 %v2151, 42
      %v2227 = vpop.permute.xlu0 %2226
      %2228 = vrot.lane.b32.xlu0 %v2158, 42
      %v2229 = vpop.permute.xlu0 %2228
      %2230 = vrot.lane.b32.xlu0 %v2166, 42
      %v2231 = vpop.permute.xlu0 %2230
      %2232 = vrot.lane.b32.xlu0 %v2173, 42
      %v2233 = vpop.permute.xlu0 %2232
      %2234 = vrot.lane.b32.xlu0 %v2181, 42
      %v2235 = vpop.permute.xlu0 %2234
      %2236 = vrot.lane.b32.xlu0 %v2188, 42
      %v2237 = vpop.permute.xlu0 %2236
      %2238 = vrot.lane.b32.xlu0 %v2196, 42
      %v2239 = vpop.permute.xlu0 %2238
      %2240 = vrot.lane.b32.xlu0 %v2203, 42
      %v2241 = vpop.permute.xlu0 %2240
      %2242 = vrot.lane.b32.xlu0 %v2211, 42
      %v2243 = vpop.permute.xlu0 %2242
      %2244 = vrot.lane.b32.xlu0 %v2218, 42
      %v2245 = vpop.permute.xlu0 %2244
      %2246 = vrot.lane.b32.xlu0 %v2225, 42
      %v2247 = vpop.permute.xlu0 %2246
      %v2248 = vrot.slane %v2227, 4
      %v2249 = vrot.slane %v2229, 4
      %v2250 = vrot.slane %v2231, 4
      %v2251 = vrot.slane %v2233, 4
      %v2252 = vrot.slane %v2235, 4
      %v2253 = vrot.slane %v2237, 4
      %v2254 = vrot.slane %v2239, 4
      %v2255 = vrot.slane %v2241, 4
      %v2256 = vrot.slane %v2243, 4
      %v2257 = vrot.slane %v2245, 4
      %v2258 = vrot.slane %v2247, 4
      %v2259 = vsel %vm405, %v2248, %v2249
      %vm2260 = vcmask 343040
      %v2261 = vsel %vm2260, %v2227, %v2259
      %v2262 = vsel %vm405, %v2249, %v2250
      %v2263 = vsel %vm2260, %v2229, %v2262
      %v2264 = vsel %vm405, %v2250, %v2251
      %v2265 = vsel %vm2260, %v2231, %v2264
      %v2266 = vsel %vm405, %v2251, %v2252
      %v2267 = vsel %vm2260, %v2233, %v2266
      %v2268 = vsel %vm405, %v2252, %v2253
      %v2269 = vsel %vm2260, %v2235, %v2268
      %v2270 = vsel %vm405, %v2253, %v2254
      %v2271 = vsel %vm2260, %v2237, %v2270
      %v2272 = vsel %vm405, %v2254, %v2255
      %v2273 = vsel %vm2260, %v2239, %v2272
      %v2274 = vsel %vm405, %v2255, %v2256
      %v2275 = vsel %vm2260, %v2241, %v2274
      %v2276 = vsel %vm405, %v2256, %v2257
      %v2277 = vsel %vm2260, %v2243, %v2276
      %v2278 = vsel %vm405, %v2257, %v2258
      %v2279 = vsel %vm2260, %v2245, %v2278
      %2290 = vst [vmem:[#allocation2 + $0x1e0] sm:$0x33] %v2261
      %2291 = vst [vmem:[#allocation2 + $0x1e8] sm:$0x33] %v2263
      %2292 = vst [vmem:[#allocation2 + $0x1f0] sm:$0x33] %v2265
      %2293 = vst [vmem:[#allocation2 + $0x1f8] sm:$0x33] %v2267
      %2294 = vst [vmem:[#allocation2 + $0x200] sm:$0x33] %v2269
      %2295 = vst [vmem:[#allocation2 + $0x208] sm:$0x33] %v2271
      %2296 = vst [vmem:[#allocation2 + $0x210] sm:$0x33] %v2273
      %2297 = vst [vmem:[#allocation2 + $0x218] sm:$0x33] %v2275
      %2298 = vst [vmem:[#allocation2 + $0x220] sm:$0x33] %v2277
      %2299 = vst [vmem:[#allocation2 + $0x228] sm:$0x33] %v2279
      %v2300 = vld [vmem:[%s165 + $0x4] sm:$0xff]
      %v2301 = vld [vmem:[%s165 + $0xc] sm:$0xff]
      %v2302 = vld [vmem:[%s165 + $0x14] sm:$0xff]
      %v2303 = vld [vmem:[%s165 + $0x1c] sm:$0xff]
      %v2304 = vld [vmem:[%s165 + $0x24] sm:$0xff]
      %v2305 = vld [vmem:[%s165 + $0x2c] sm:$0x3]
      %v2312 = vcombine.low %v2300, %v2300
      %v2314 = vunpack.c.l.s4 1983009808
      %v2315 = vunpack.c.0.s8 %v2314
      %v2316 = vlaneseq
      %v2317 = vshrl.u32 %v2316, 7
      %v2318 = vsub.s32 %v2315, %v2317
      %v2319 = vrot.slane %v2312, %v2318
      %v2321 = vunpack.c.l.s4 1983009808
      %v2322 = vunpack.c.0.s8 %v2321
      %v2323 = vlaneseq
      %v2324 = vshrl.u32 %v2323, 7
      %v2325 = vsub.s32 %v2322, %v2324
      %v2326 = vrot.slane %v2300, %v2325
      %v2327 = vcombine.low %v2301, %v2301
      %v2329 = vunpack.c.l.s4 1983009808
      %v2330 = vunpack.c.0.s8 %v2329
      %v2331 = vlaneseq
      %v2332 = vshrl.u32 %v2331, 7
      %v2333 = vsub.s32 %v2330, %v2332
      %v2334 = vrot.slane %v2327, %v2333
      %v2336 = vunpack.c.l.s4 1983009808
      %v2337 = vunpack.c.0.s8 %v2336
      %v2338 = vlaneseq
      %v2339 = vshrl.u32 %v2338, 7
      %v2340 = vsub.s32 %v2337, %v2339
      %v2341 = vrot.slane %v2301, %v2340
      %v2342 = vcombine.low %v2302, %v2302
      %v2344 = vunpack.c.l.s4 1983009808
      %v2345 = vunpack.c.0.s8 %v2344
      %v2346 = vlaneseq
      %v2347 = vshrl.u32 %v2346, 7
      %v2348 = vsub.s32 %v2345, %v2347
      %v2349 = vrot.slane %v2342, %v2348
      %v2351 = vunpack.c.l.s4 1983009808
      %v2352 = vunpack.c.0.s8 %v2351
      %v2353 = vlaneseq
      %v2354 = vshrl.u32 %v2353, 7
      %v2355 = vsub.s32 %v2352, %v2354
      %v2356 = vrot.slane %v2302, %v2355
      %v2357 = vcombine.low %v2303, %v2303
      %v2359 = vunpack.c.l.s4 1983009808
      %v2360 = vunpack.c.0.s8 %v2359
      %v2361 = vlaneseq
      %v2362 = vshrl.u32 %v2361, 7
      %v2363 = vsub.s32 %v2360, %v2362
      %v2364 = vrot.slane %v2357, %v2363
      %v2366 = vunpack.c.l.s4 1983009808
      %v2367 = vunpack.c.0.s8 %v2366
      %v2368 = vlaneseq
      %v2369 = vshrl.u32 %v2368, 7
      %v2370 = vsub.s32 %v2367, %v2369
      %v2371 = vrot.slane %v2303, %v2370
      %v2372 = vcombine.low %v2304, %v2304
      %v2374 = vunpack.c.l.s4 1983009808
      %v2375 = vunpack.c.0.s8 %v2374
      %v2376 = vlaneseq
      %v2377 = vshrl.u32 %v2376, 7
      %v2378 = vsub.s32 %v2375, %v2377
      %v2379 = vrot.slane %v2372, %v2378
      %v2381 = vunpack.c.l.s4 1983009808
      %v2382 = vunpack.c.0.s8 %v2381
      %v2383 = vlaneseq
      %v2384 = vshrl.u32 %v2383, 7
      %v2385 = vsub.s32 %v2382, %v2384
      %v2386 = vrot.slane %v2304, %v2385
      %v2387 = vcombine.low %v2305, %v2305
      %v2389 = vunpack.c.l.s4 1983009808
      %v2390 = vunpack.c.0.s8 %v2389
      %v2391 = vlaneseq
      %v2392 = vshrl.u32 %v2391, 7
      %v2393 = vsub.s32 %v2390, %v2392
      %v2394 = vrot.slane %v2387, %v2393
      %2395 = vrot.lane.b32.xlu0 %v2319, 41
      %v2396 = vpop.permute.xlu0 %2395
      %2397 = vrot.lane.b32.xlu0 %v2326, 41
      %v2398 = vpop.permute.xlu0 %2397
      %2399 = vrot.lane.b32.xlu0 %v2334, 41
      %v2400 = vpop.permute.xlu0 %2399
      %2401 = vrot.lane.b32.xlu0 %v2341, 41
      %v2402 = vpop.permute.xlu0 %2401
      %2403 = vrot.lane.b32.xlu0 %v2349, 41
      %v2404 = vpop.permute.xlu0 %2403
      %2405 = vrot.lane.b32.xlu0 %v2356, 41
      %v2406 = vpop.permute.xlu0 %2405
      %2407 = vrot.lane.b32.xlu0 %v2364, 41
      %v2408 = vpop.permute.xlu0 %2407
      %2409 = vrot.lane.b32.xlu0 %v2371, 41
      %v2410 = vpop.permute.xlu0 %2409
      %2411 = vrot.lane.b32.xlu0 %v2379, 41
      %v2412 = vpop.permute.xlu0 %2411
      %2413 = vrot.lane.b32.xlu0 %v2386, 41
      %v2414 = vpop.permute.xlu0 %2413
      %2415 = vrot.lane.b32.xlu0 %v2394, 41
      %v2416 = vpop.permute.xlu0 %2415
      %v2417 = vrot.slane %v2396, 4
      %v2418 = vrot.slane %v2398, 4
      %v2419 = vrot.slane %v2400, 4
      %v2420 = vrot.slane %v2402, 4
      %v2421 = vrot.slane %v2404, 4
      %v2422 = vrot.slane %v2406, 4
      %v2423 = vrot.slane %v2408, 4
      %v2424 = vrot.slane %v2410, 4
      %v2425 = vrot.slane %v2412, 4
      %v2426 = vrot.slane %v2414, 4
      %v2427 = vrot.slane %v2416, 4
      %v2428 = vsel %vm405, %v2417, %v2418
      %vm2429 = vcmask 334848
      %v2430 = vsel %vm2429, %v2396, %v2428
      %v2431 = vsel %vm405, %v2418, %v2419
      %v2432 = vsel %vm2429, %v2398, %v2431
      %v2433 = vsel %vm405, %v2419, %v2420
      %v2434 = vsel %vm2429, %v2400, %v2433
      %v2435 = vsel %vm405, %v2420, %v2421
      %v2436 = vsel %vm2429, %v2402, %v2435
      %v2437 = vsel %vm405, %v2421, %v2422
      %v2438 = vsel %vm2429, %v2404, %v2437
      %v2439 = vsel %vm405, %v2422, %v2423
      %v2440 = vsel %vm2429, %v2406, %v2439
      %v2441 = vsel %vm405, %v2423, %v2424
      %v2442 = vsel %vm2429, %v2408, %v2441
      %v2443 = vsel %vm405, %v2424, %v2425
      %v2444 = vsel %vm2429, %v2410, %v2443
      %v2445 = vsel %vm405, %v2425, %v2426
      %v2446 = vsel %vm2429, %v2412, %v2445
      %v2447 = vsel %vm405, %v2426, %v2427
      %v2448 = vsel %vm2429, %v2414, %v2447
      %2459 = vst [vmem:[#allocation2 + $0x1e0] sm:$0xcc] %v2430
      %2460 = vst [vmem:[#allocation2 + $0x1e8] sm:$0xcc] %v2432
      %2461 = vst [vmem:[#allocation2 + $0x1f0] sm:$0xcc] %v2434
      %2462 = vst [vmem:[#allocation2 + $0x1f8] sm:$0xcc] %v2436
      %2463 = vst [vmem:[#allocation2 + $0x200] sm:$0xcc] %v2438
      %2464 = vst [vmem:[#allocation2 + $0x208] sm:$0xcc] %v2440
      %2465 = vst [vmem:[#allocation2 + $0x210] sm:$0xcc] %v2442
      %2466 = vst [vmem:[#allocation2 + $0x218] sm:$0xcc] %v2444
      %2467 = vst [vmem:[#allocation2 + $0x220] sm:$0xcc] %v2446
      %2468 = vst [vmem:[#allocation2 + $0x228] sm:$0xcc] %v2448
      %v2469 = vld [vmem:[%s165 + $0x4] sm:$0xff]
      %v2470 = vld [vmem:[%s165 + $0xc] sm:$0xff]
      %v2471 = vld [vmem:[%s165 + $0x14] sm:$0xff]
      %v2472 = vld [vmem:[%s165 + $0x1c] sm:$0xff]
      %v2473 = vld [vmem:[%s165 + $0x24] sm:$0xff]
      %v2474 = vld [vmem:[%s165 + $0x2c] sm:$0x3]
      %v2481 = vcombine.high %v2469, %v2469
      %v2483 = vunpack.c.l.s4 1983009808
      %v2484 = vunpack.c.0.s8 %v2483
      %v2485 = vlaneseq
      %v2486 = vshrl.u32 %v2485, 7
      %v2487 = vsub.s32 %v2484, %v2486
      %v2488 = vrot.slane %v2469, %v2487
      %v2490 = vunpack.c.l.s4 1983009808
      %v2491 = vunpack.c.0.s8 %v2490
      %v2492 = vlaneseq
      %v2493 = vshrl.u32 %v2492, 7
      %v2494 = vsub.s32 %v2491, %v2493
      %v2495 = vrot.slane %v2481, %v2494
      %v2496 = vcombine.high %v2470, %v2470
      %v2498 = vunpack.c.l.s4 1983009808
      %v2499 = vunpack.c.0.s8 %v2498
      %v2500 = vlaneseq
      %v2501 = vshrl.u32 %v2500, 7
      %v2502 = vsub.s32 %v2499, %v2501
      %v2503 = vrot.slane %v2470, %v2502
      %v2505 = vunpack.c.l.s4 1983009808
      %v2506 = vunpack.c.0.s8 %v2505
      %v2507 = vlaneseq
      %v2508 = vshrl.u32 %v2507, 7
      %v2509 = vsub.s32 %v2506, %v2508
      %v2510 = vrot.slane %v2496, %v2509
      %v2511 = vcombine.high %v2471, %v2471
      %v2513 = vunpack.c.l.s4 1983009808
      %v2514 = vunpack.c.0.s8 %v2513
      %v2515 = vlaneseq
      %v2516 = vshrl.u32 %v2515, 7
      %v2517 = vsub.s32 %v2514, %v2516
      %v2518 = vrot.slane %v2471, %v2517
      %v2520 = vunpack.c.l.s4 1983009808
      %v2521 = vunpack.c.0.s8 %v2520
      %v2522 = vlaneseq
      %v2523 = vshrl.u32 %v2522, 7
      %v2524 = vsub.s32 %v2521, %v2523
      %v2525 = vrot.slane %v2511, %v2524
      %v2526 = vcombine.high %v2472, %v2472
      %v2528 = vunpack.c.l.s4 1983009808
      %v2529 = vunpack.c.0.s8 %v2528
      %v2530 = vlaneseq
      %v2531 = vshrl.u32 %v2530, 7
      %v2532 = vsub.s32 %v2529, %v2531
      %v2533 = vrot.slane %v2472, %v2532
      %v2535 = vunpack.c.l.s4 1983009808
      %v2536 = vunpack.c.0.s8 %v2535
      %v2537 = vlaneseq
      %v2538 = vshrl.u32 %v2537, 7
      %v2539 = vsub.s32 %v2536, %v2538
      %v2540 = vrot.slane %v2526, %v2539
      %v2541 = vcombine.high %v2473, %v2473
      %v2543 = vunpack.c.l.s4 1983009808
      %v2544 = vunpack.c.0.s8 %v2543
      %v2545 = vlaneseq
      %v2546 = vshrl.u32 %v2545, 7
      %v2547 = vsub.s32 %v2544, %v2546
      %v2548 = vrot.slane %v2473, %v2547
      %v2550 = vunpack.c.l.s4 1983009808
      %v2551 = vunpack.c.0.s8 %v2550
      %v2552 = vlaneseq
      %v2553 = vshrl.u32 %v2552, 7
      %v2554 = vsub.s32 %v2551, %v2553
      %v2555 = vrot.slane %v2541, %v2554
      %v2557 = vunpack.c.l.s4 1983009808
      %v2558 = vunpack.c.0.s8 %v2557
      %v2559 = vlaneseq
      %v2560 = vshrl.u32 %v2559, 7
      %v2561 = vsub.s32 %v2558, %v2560
      %v2562 = vrot.slane %v2474, %v2561
      %2563 = vrot.lane.b32.xlu0 %v2488, 40
      %v2564 = vpop.permute.xlu0 %2563
      %2565 = vrot.lane.b32.xlu0 %v2495, 40
      %v2566 = vpop.permute.xlu0 %2565
      %2567 = vrot.lane.b32.xlu0 %v2503, 40
      %v2568 = vpop.permute.xlu0 %2567
      %2569 = vrot.lane.b32.xlu0 %v2510, 40
      %v2570 = vpop.permute.xlu0 %2569
      %2571 = vrot.lane.b32.xlu0 %v2518, 40
      %v2572 = vpop.permute.xlu0 %2571
      %2573 = vrot.lane.b32.xlu0 %v2525, 40
      %v2574 = vpop.permute.xlu0 %2573
      %2575 = vrot.lane.b32.xlu0 %v2533, 40
      %v2576 = vpop.permute.xlu0 %2575
      %2577 = vrot.lane.b32.xlu0 %v2540, 40
      %v2578 = vpop.permute.xlu0 %2577
      %2579 = vrot.lane.b32.xlu0 %v2548, 40
      %v2580 = vpop.permute.xlu0 %2579
      %2581 = vrot.lane.b32.xlu0 %v2555, 40
      %v2582 = vpop.permute.xlu0 %2581
      %2583 = vrot.lane.b32.xlu0 %v2562, 40
      %v2584 = vpop.permute.xlu0 %2583
      %v2585 = vrot.slane %v2564, 4
      %v2586 = vrot.slane %v2566, 4
      %v2587 = vrot.slane %v2568, 4
      %v2588 = vrot.slane %v2570, 4
      %v2589 = vrot.slane %v2572, 4
      %v2590 = vrot.slane %v2574, 4
      %v2591 = vrot.slane %v2576, 4
      %v2592 = vrot.slane %v2578, 4
      %v2593 = vrot.slane %v2580, 4
      %v2594 = vrot.slane %v2582, 4
      %v2595 = vrot.slane %v2584, 4
      %v2596 = vsel %vm405, %v2585, %v2586
      %vm2597 = vcmask 326656
      %v2598 = vsel %vm2597, %v2564, %v2596
      %v2599 = vsel %vm405, %v2586, %v2587
      %v2600 = vsel %vm2597, %v2566, %v2599
      %v2601 = vsel %vm405, %v2587, %v2588
      %v2602 = vsel %vm2597, %v2568, %v2601
      %v2603 = vsel %vm405, %v2588, %v2589
      %v2604 = vsel %vm2597, %v2570, %v2603
      %v2605 = vsel %vm405, %v2589, %v2590
      %v2606 = vsel %vm2597, %v2572, %v2605
      %v2607 = vsel %vm405, %v2590, %v2591
      %v2608 = vsel %vm2597, %v2574, %v2607
      %v2609 = vsel %vm405, %v2591, %v2592
      %v2610 = vsel %vm2597, %v2576, %v2609
      %v2611 = vsel %vm405, %v2592, %v2593
      %v2612 = vsel %vm2597, %v2578, %v2611
      %v2613 = vsel %vm405, %v2593, %v2594
      %v2614 = vsel %vm2597, %v2580, %v2613
      %v2615 = vsel %vm405, %v2594, %v2595
      %v2616 = vsel %vm2597, %v2582, %v2615
      %2627 = vst [vmem:[#allocation2 + $0x230] sm:$0x33] %v2598
      %2628 = vst [vmem:[#allocation2 + $0x238] sm:$0x33] %v2600
      %2629 = vst [vmem:[#allocation2 + $0x240] sm:$0x33] %v2602
      %2630 = vst [vmem:[#allocation2 + $0x248] sm:$0x33] %v2604
      %2631 = vst [vmem:[#allocation2 + $0x250] sm:$0x33] %v2606
      %2632 = vst [vmem:[#allocation2 + $0x258] sm:$0x33] %v2608
      %2633 = vst [vmem:[#allocation2 + $0x260] sm:$0x33] %v2610
      %2634 = vst [vmem:[#allocation2 + $0x268] sm:$0x33] %v2612
      %2635 = vst [vmem:[#allocation2 + $0x270] sm:$0x33] %v2614
      %2636 = vst [vmem:[#allocation2 + $0x278] sm:$0x33] %v2616
      %v2637 = vld [vmem:[%s165 + $0x4] sm:$0xff]
      %v2638 = vld [vmem:[%s165 + $0xc] sm:$0xff]
      %v2639 = vld [vmem:[%s165 + $0x14] sm:$0xff]
      %v2640 = vld [vmem:[%s165 + $0x1c] sm:$0xff]
      %v2641 = vld [vmem:[%s165 + $0x24] sm:$0xff]
      %v2642 = vld [vmem:[%s165 + $0x2c] sm:$0x3]
      %v2649 = vcombine.low %v2637, %v2637
      %v2651 = vunpack.c.l.s4 1983009808
      %v2652 = vunpack.c.0.s8 %v2651
      %v2653 = vlaneseq
      %v2654 = vshrl.u32 %v2653, 7
      %v2655 = vsub.s32 %v2652, %v2654
      %v2656 = vrot.slane %v2649, %v2655
      %v2658 = vunpack.c.l.s4 1983009808
      %v2659 = vunpack.c.0.s8 %v2658
      %v2660 = vlaneseq
      %v2661 = vshrl.u32 %v2660, 7
      %v2662 = vsub.s32 %v2659, %v2661
      %v2663 = vrot.slane %v2637, %v2662
      %v2664 = vcombine.low %v2638, %v2638
      %v2666 = vunpack.c.l.s4 1983009808
      %v2667 = vunpack.c.0.s8 %v2666
      %v2668 = vlaneseq
      %v2669 = vshrl.u32 %v2668, 7
      %v2670 = vsub.s32 %v2667, %v2669
      %v2671 = vrot.slane %v2664, %v2670
      %v2673 = vunpack.c.l.s4 1983009808
      %v2674 = vunpack.c.0.s8 %v2673
      %v2675 = vlaneseq
      %v2676 = vshrl.u32 %v2675, 7
      %v2677 = vsub.s32 %v2674, %v2676
      %v2678 = vrot.slane %v2638, %v2677
      %v2679 = vcombine.low %v2639, %v2639
      %v2681 = vunpack.c.l.s4 1983009808
      %v2682 = vunpack.c.0.s8 %v2681
      %v2683 = vlaneseq
      %v2684 = vshrl.u32 %v2683, 7
      %v2685 = vsub.s32 %v2682, %v2684
      %v2686 = vrot.slane %v2679, %v2685
      %v2688 = vunpack.c.l.s4 1983009808
      %v2689 = vunpack.c.0.s8 %v2688
      %v2690 = vlaneseq
      %v2691 = vshrl.u32 %v2690, 7
      %v2692 = vsub.s32 %v2689, %v2691
      %v2693 = vrot.slane %v2639, %v2692
      %v2694 = vcombine.low %v2640, %v2640
      %v2696 = vunpack.c.l.s4 1983009808
      %v2697 = vunpack.c.0.s8 %v2696
      %v2698 = vlaneseq
      %v2699 = vshrl.u32 %v2698, 7
      %v2700 = vsub.s32 %v2697, %v2699
      %v2701 = vrot.slane %v2694, %v2700
      %v2703 = vunpack.c.l.s4 1983009808
      %v2704 = vunpack.c.0.s8 %v2703
      %v2705 = vlaneseq
      %v2706 = vshrl.u32 %v2705, 7
      %v2707 = vsub.s32 %v2704, %v2706
      %v2708 = vrot.slane %v2640, %v2707
      %v2709 = vcombine.low %v2641, %v2641
      %v2711 = vunpack.c.l.s4 1983009808
      %v2712 = vunpack.c.0.s8 %v2711
      %v2713 = vlaneseq
      %v2714 = vshrl.u32 %v2713, 7
      %v2715 = vsub.s32 %v2712, %v2714
      %v2716 = vrot.slane %v2709, %v2715
      %v2718 = vunpack.c.l.s4 1983009808
      %v2719 = vunpack.c.0.s8 %v2718
      %v2720 = vlaneseq
      %v2721 = vshrl.u32 %v2720, 7
      %v2722 = vsub.s32 %v2719, %v2721
      %v2723 = vrot.slane %v2641, %v2722
      %v2724 = vcombine.low %v2642, %v2642
      %v2726 = vunpack.c.l.s4 1983009808
      %v2727 = vunpack.c.0.s8 %v2726
      %v2728 = vlaneseq
      %v2729 = vshrl.u32 %v2728, 7
      %v2730 = vsub.s32 %v2727, %v2729
      %v2731 = vrot.slane %v2724, %v2730
      %2732 = vrot.lane.b32.xlu0 %v2656, 24
      %v2733 = vpop.permute.xlu0 %2732
      %2734 = vrot.lane.b32.xlu0 %v2663, 24
      %v2735 = vpop.permute.xlu0 %2734
      %2736 = vrot.lane.b32.xlu0 %v2671, 24
      %v2737 = vpop.permute.xlu0 %2736
      %2738 = vrot.lane.b32.xlu0 %v2678, 24
      %v2739 = vpop.permute.xlu0 %2738
      %2740 = vrot.lane.b32.xlu0 %v2686, 24
      %v2741 = vpop.permute.xlu0 %2740
      %2742 = vrot.lane.b32.xlu0 %v2693, 24
      %v2743 = vpop.permute.xlu0 %2742
      %2744 = vrot.lane.b32.xlu0 %v2701, 24
      %v2745 = vpop.permute.xlu0 %2744
      %2746 = vrot.lane.b32.xlu0 %v2708, 24
      %v2747 = vpop.permute.xlu0 %2746
      %2748 = vrot.lane.b32.xlu0 %v2716, 24
      %v2749 = vpop.permute.xlu0 %2748
      %2750 = vrot.lane.b32.xlu0 %v2723, 24
      %v2751 = vpop.permute.xlu0 %2750
      %2752 = vrot.lane.b32.xlu0 %v2731, 24
      %v2753 = vpop.permute.xlu0 %2752
      %v2754 = vrot.slane %v2733, 4
      %v2755 = vrot.slane %v2735, 4
      %v2756 = vrot.slane %v2737, 4
      %v2757 = vrot.slane %v2739, 4
      %v2758 = vrot.slane %v2741, 4
      %v2759 = vrot.slane %v2743, 4
      %v2760 = vrot.slane %v2745, 4
      %v2761 = vrot.slane %v2747, 4
      %v2762 = vrot.slane %v2749, 4
      %v2763 = vrot.slane %v2751, 4
      %v2764 = vrot.slane %v2753, 4
      %v2765 = vsel %vm405, %v2754, %v2755
      %vm2766 = vcmask 195584
      %v2767 = vsel %vm2766, %v2733, %v2765
      %v2768 = vsel %vm405, %v2755, %v2756
      %v2769 = vsel %vm2766, %v2735, %v2768
      %v2770 = vsel %vm405, %v2756, %v2757
      %v2771 = vsel %vm2766, %v2737, %v2770
      %v2772 = vsel %vm405, %v2757, %v2758
      %v2773 = vsel %vm2766, %v2739, %v2772
      %v2774 = vsel %vm405, %v2758, %v2759
      %v2775 = vsel %vm2766, %v2741, %v2774
      %v2776 = vsel %vm405, %v2759, %v2760
      %v2777 = vsel %vm2766, %v2743, %v2776
      %v2778 = vsel %vm405, %v2760, %v2761
      %v2779 = vsel %vm2766, %v2745, %v2778
      %v2780 = vsel %vm405, %v2761, %v2762
      %v2781 = vsel %vm2766, %v2747, %v2780
      %v2782 = vsel %vm405, %v2762, %v2763
      %v2783 = vsel %vm2766, %v2749, %v2782
      %v2784 = vsel %vm405, %v2763, %v2764
      %v2785 = vsel %vm2766, %v2751, %v2784
      %2796 = vst [vmem:[#allocation2 + $0x230] sm:$0xcc] %v2767
      %2797 = vst [vmem:[#allocation2 + $0x238] sm:$0xcc] %v2769
      %2798 = vst [vmem:[#allocation2 + $0x240] sm:$0xcc] %v2771
      %2799 = vst [vmem:[#allocation2 + $0x248] sm:$0xcc] %v2773
      %2800 = vst [vmem:[#allocation2 + $0x250] sm:$0xcc] %v2775
      %2801 = vst [vmem:[#allocation2 + $0x258] sm:$0xcc] %v2777
      %2802 = vst [vmem:[#allocation2 + $0x260] sm:$0xcc] %v2779
      %2803 = vst [vmem:[#allocation2 + $0x268] sm:$0xcc] %v2781
      %2804 = vst [vmem:[#allocation2 + $0x270] sm:$0xcc] %v2783
      %2805 = vst [vmem:[#allocation2 + $0x278] sm:$0xcc] %v2785
      %v2806 = vld [vmem:[%s165 + $0x4] sm:$0xff]
      %v2807 = vld [vmem:[%s165 + $0xc] sm:$0xff]
      %v2808 = vld [vmem:[%s165 + $0x14] sm:$0xff]
      %v2809 = vld [vmem:[%s165 + $0x1c] sm:$0xff]
      %v2810 = vld [vmem:[%s165 + $0x24] sm:$0xff]
      %v2811 = vld [vmem:[%s165 + $0x2c] sm:$0x3]
      %v2818 = vcombine.high %v2806, %v2806
      %v2820 = vunpack.c.l.s4 1983009808
      %v2821 = vunpack.c.0.s8 %v2820
      %v2822 = vlaneseq
      %v2823 = vshrl.u32 %v2822, 7
      %v2824 = vsub.s32 %v2821, %v2823
      %v2825 = vrot.slane %v2806, %v2824
      %v2827 = vunpack.c.l.s4 1983009808
      %v2828 = vunpack.c.0.s8 %v2827
      %v2829 = vlaneseq
      %v2830 = vshrl.u32 %v2829, 7
      %v2831 = vsub.s32 %v2828, %v2830
      %v2832 = vrot.slane %v2818, %v2831
      %v2833 = vcombine.high %v2807, %v2807
      %v2835 = vunpack.c.l.s4 1983009808
      %v2836 = vunpack.c.0.s8 %v2835
      %v2837 = vlaneseq
      %v2838 = vshrl.u32 %v2837, 7
      %v2839 = vsub.s32 %v2836, %v2838
      %v2840 = vrot.slane %v2807, %v2839
      %v2842 = vunpack.c.l.s4 1983009808
      %v2843 = vunpack.c.0.s8 %v2842
      %v2844 = vlaneseq
      %v2845 = vshrl.u32 %v2844, 7
      %v2846 = vsub.s32 %v2843, %v2845
      %v2847 = vrot.slane %v2833, %v2846
      %v2848 = vcombine.high %v2808, %v2808
      %v2850 = vunpack.c.l.s4 1983009808
      %v2851 = vunpack.c.0.s8 %v2850
      %v2852 = vlaneseq
      %v2853 = vshrl.u32 %v2852, 7
      %v2854 = vsub.s32 %v2851, %v2853
      %v2855 = vrot.slane %v2808, %v2854
      %v2857 = vunpack.c.l.s4 1983009808
      %v2858 = vunpack.c.0.s8 %v2857
      %v2859 = vlaneseq
      %v2860 = vshrl.u32 %v2859, 7
      %v2861 = vsub.s32 %v2858, %v2860
      %v2862 = vrot.slane %v2848, %v2861
      %v2863 = vcombine.high %v2809, %v2809
      %v2865 = vunpack.c.l.s4 1983009808
      %v2866 = vunpack.c.0.s8 %v2865
      %v2867 = vlaneseq
      %v2868 = vshrl.u32 %v2867, 7
      %v2869 = vsub.s32 %v2866, %v2868
      %v2870 = vrot.slane %v2809, %v2869
      %v2872 = vunpack.c.l.s4 1983009808
      %v2873 = vunpack.c.0.s8 %v2872
      %v2874 = vlaneseq
      %v2875 = vshrl.u32 %v2874, 7
      %v2876 = vsub.s32 %v2873, %v2875
      %v2877 = vrot.slane %v2863, %v2876
      %v2878 = vcombine.high %v2810, %v2810
      %v2880 = vunpack.c.l.s4 1983009808
      %v2881 = vunpack.c.0.s8 %v2880
      %v2882 = vlaneseq
      %v2883 = vshrl.u32 %v2882, 7
      %v2884 = vsub.s32 %v2881, %v2883
      %v2885 = vrot.slane %v2810, %v2884
      %v2887 = vunpack.c.l.s4 1983009808
      %v2888 = vunpack.c.0.s8 %v2887
      %v2889 = vlaneseq
      %v2890 = vshrl.u32 %v2889, 7
      %v2891 = vsub.s32 %v2888, %v2890
      %v2892 = vrot.slane %v2878, %v2891
      %v2894 = vunpack.c.l.s4 1983009808
      %v2895 = vunpack.c.0.s8 %v2894
      %v2896 = vlaneseq
      %v2897 = vshrl.u32 %v2896, 7
      %v2898 = vsub.s32 %v2895, %v2897
      %v2899 = vrot.slane %v2811, %v2898
      %2900 = vrot.lane.b32.xlu0 %v2825, 23
      %v2901 = vpop.permute.xlu0 %2900
      %2902 = vrot.lane.b32.xlu0 %v2832, 23
      %v2903 = vpop.permute.xlu0 %2902
      %2904 = vrot.lane.b32.xlu0 %v2840, 23
      %v2905 = vpop.permute.xlu0 %2904
      %2906 = vrot.lane.b32.xlu0 %v2847, 23
      %v2907 = vpop.permute.xlu0 %2906
      %2908 = vrot.lane.b32.xlu0 %v2855, 23
      %v2909 = vpop.permute.xlu0 %2908
      %2910 = vrot.lane.b32.xlu0 %v2862, 23
      %v2911 = vpop.permute.xlu0 %2910
      %2912 = vrot.lane.b32.xlu0 %v2870, 23
      %v2913 = vpop.permute.xlu0 %2912
      %2914 = vrot.lane.b32.xlu0 %v2877, 23
      %v2915 = vpop.permute.xlu0 %2914
      %2916 = vrot.lane.b32.xlu0 %v2885, 23
      %v2917 = vpop.permute.xlu0 %2916
      %2918 = vrot.lane.b32.xlu0 %v2892, 23
      %v2919 = vpop.permute.xlu0 %2918
      %2920 = vrot.lane.b32.xlu0 %v2899, 23
      %v2921 = vpop.permute.xlu0 %2920
      %v2922 = vrot.slane %v2901, 4
      %v2923 = vrot.slane %v2903, 4
      %v2924 = vrot.slane %v2905, 4
      %v2925 = vrot.slane %v2907, 4
      %v2926 = vrot.slane %v2909, 4
      %v2927 = vrot.slane %v2911, 4
      %v2928 = vrot.slane %v2913, 4
      %v2929 = vrot.slane %v2915, 4
      %v2930 = vrot.slane %v2917, 4
      %v2931 = vrot.slane %v2919, 4
      %v2932 = vrot.slane %v2921, 4
      %v2933 = vsel %vm405, %v2922, %v2923
      %vm2934 = vcmask 187392
      %v2935 = vsel %vm2934, %v2901, %v2933
      %v2936 = vsel %vm405, %v2923, %v2924
      %v2937 = vsel %vm2934, %v2903, %v2936
      %v2938 = vsel %vm405, %v2924, %v2925
      %v2939 = vsel %vm2934, %v2905, %v2938
      %v2940 = vsel %vm405, %v2925, %v2926
      %v2941 = vsel %vm2934, %v2907, %v2940
      %v2942 = vsel %vm405, %v2926, %v2927
      %v2943 = vsel %vm2934, %v2909, %v2942
      %v2944 = vsel %vm405, %v2927, %v2928
      %v2945 = vsel %vm2934, %v2911, %v2944
      %v2946 = vsel %vm405, %v2928, %v2929
      %v2947 = vsel %vm2934, %v2913, %v2946
      %v2948 = vsel %vm405, %v2929, %v2930
      %v2949 = vsel %vm2934, %v2915, %v2948
      %v2950 = vsel %vm405, %v2930, %v2931
      %v2951 = vsel %vm2934, %v2917, %v2950
      %v2952 = vsel %vm405, %v2931, %v2932
      %v2953 = vsel %vm2934, %v2919, %v2952
      %2964 = vst [vmem:[#allocation2 + $0x280] sm:$0x33] %v2935
      %2965 = vst [vmem:[#allocation2 + $0x288] sm:$0x33] %v2937
      %2966 = vst [vmem:[#allocation2 + $0x290] sm:$0x33] %v2939
      %2967 = vst [vmem:[#allocation2 + $0x298] sm:$0x33] %v2941
      %2968 = vst [vmem:[#allocation2 + $0x2a0] sm:$0x33] %v2943
      %2969 = vst [vmem:[#allocation2 + $0x2a8] sm:$0x33] %v2945
      %2970 = vst [vmem:[#allocation2 + $0x2b0] sm:$0x33] %v2947
      %2971 = vst [vmem:[#allocation2 + $0x2b8] sm:$0x33] %v2949
      %2972 = vst [vmem:[#allocation2 + $0x2c0] sm:$0x33] %v2951
      %2973 = vst [vmem:[#allocation2 + $0x2c8] sm:$0x33] %v2953
      %v2974 = vld [vmem:[%s165 + $0x4] sm:$0xff]
      %v2975 = vld [vmem:[%s165 + $0xc] sm:$0xff]
      %v2976 = vld [vmem:[%s165 + $0x14] sm:$0xff]
      %v2977 = vld [vmem:[%s165 + $0x1c] sm:$0xff]
      %v2978 = vld [vmem:[%s165 + $0x24] sm:$0xff]
      %v2979 = vld [vmem:[%s165 + $0x2c] sm:$0x3]
      %v2986 = vcombine.low %v2974, %v2974
      %v2988 = vunpack.c.l.s4 1983009808
      %v2989 = vunpack.c.0.s8 %v2988
      %v2990 = vlaneseq
      %v2991 = vshrl.u32 %v2990, 7
      %v2992 = vsub.s32 %v2989, %v2991
      %v2993 = vrot.slane %v2986, %v2992
      %v2995 = vunpack.c.l.s4 1983009808
      %v2996 = vunpack.c.0.s8 %v2995
      %v2997 = vlaneseq
      %v2998 = vshrl.u32 %v2997, 7
      %v2999 = vsub.s32 %v2996, %v2998
      %v3000 = vrot.slane %v2974, %v2999
      %v3001 = vcombine.low %v2975, %v2975
      %v3003 = vunpack.c.l.s4 1983009808
      %v3004 = vunpack.c.0.s8 %v3003
      %v3005 = vlaneseq
      %v3006 = vshrl.u32 %v3005, 7
      %v3007 = vsub.s32 %v3004, %v3006
      %v3008 = vrot.slane %v3001, %v3007
      %v3010 = vunpack.c.l.s4 1983009808
      %v3011 = vunpack.c.0.s8 %v3010
      %v3012 = vlaneseq
      %v3013 = vshrl.u32 %v3012, 7
      %v3014 = vsub.s32 %v3011, %v3013
      %v3015 = vrot.slane %v2975, %v3014
      %v3016 = vcombine.low %v2976, %v2976
      %v3018 = vunpack.c.l.s4 1983009808
      %v3019 = vunpack.c.0.s8 %v3018
      %v3020 = vlaneseq
      %v3021 = vshrl.u32 %v3020, 7
      %v3022 = vsub.s32 %v3019, %v3021
      %v3023 = vrot.slane %v3016, %v3022
      %v3025 = vunpack.c.l.s4 1983009808
      %v3026 = vunpack.c.0.s8 %v3025
      %v3027 = vlaneseq
      %v3028 = vshrl.u32 %v3027, 7
      %v3029 = vsub.s32 %v3026, %v3028
      %v3030 = vrot.slane %v2976, %v3029
      %v3031 = vcombine.low %v2977, %v2977
      %v3033 = vunpack.c.l.s4 1983009808
      %v3034 = vunpack.c.0.s8 %v3033
      %v3035 = vlaneseq
      %v3036 = vshrl.u32 %v3035, 7
      %v3037 = vsub.s32 %v3034, %v3036
      %v3038 = vrot.slane %v3031, %v3037
      %v3040 = vunpack.c.l.s4 1983009808
      %v3041 = vunpack.c.0.s8 %v3040
      %v3042 = vlaneseq
      %v3043 = vshrl.u32 %v3042, 7
      %v3044 = vsub.s32 %v3041, %v3043
      %v3045 = vrot.slane %v2977, %v3044
      %v3046 = vcombine.low %v2978, %v2978
      %v3048 = vunpack.c.l.s4 1983009808
      %v3049 = vunpack.c.0.s8 %v3048
      %v3050 = vlaneseq
      %v3051 = vshrl.u32 %v3050, 7
      %v3052 = vsub.s32 %v3049, %v3051
      %v3053 = vrot.slane %v3046, %v3052
      %v3055 = vunpack.c.l.s4 1983009808
      %v3056 = vunpack.c.0.s8 %v3055
      %v3057 = vlaneseq
      %v3058 = vshrl.u32 %v3057, 7
      %v3059 = vsub.s32 %v3056, %v3058
      %v3060 = vrot.slane %v2978, %v3059
      %v3061 = vcombine.low %v2979, %v2979
      %v3063 = vunpack.c.l.s4 1983009808
      %v3064 = vunpack.c.0.s8 %v3063
      %v3065 = vlaneseq
      %v3066 = vshrl.u32 %v3065, 7
      %v3067 = vsub.s32 %v3064, %v3066
      %v3068 = vrot.slane %v3061, %v3067
      %3069 = vrot.lane.b32.xlu0 %v2993, 22
      %v3070 = vpop.permute.xlu0 %3069
      %3071 = vrot.lane.b32.xlu0 %v3000, 22
      %v3072 = vpop.permute.xlu0 %3071
      %3073 = vrot.lane.b32.xlu0 %v3008, 22
      %v3074 = vpop.permute.xlu0 %3073
      %3075 = vrot.lane.b32.xlu0 %v3015, 22
      %v3076 = vpop.permute.xlu0 %3075
      %3077 = vrot.lane.b32.xlu0 %v3023, 22
      %v3078 = vpop.permute.xlu0 %3077
      %3079 = vrot.lane.b32.xlu0 %v3030, 22
      %v3080 = vpop.permute.xlu0 %3079
      %3081 = vrot.lane.b32.xlu0 %v3038, 22
      %v3082 = vpop.permute.xlu0 %3081
      %3083 = vrot.lane.b32.xlu0 %v3045, 22
      %v3084 = vpop.permute.xlu0 %3083
      %3085 = vrot.lane.b32.xlu0 %v3053, 22
      %v3086 = vpop.permute.xlu0 %3085
      %3087 = vrot.lane.b32.xlu0 %v3060, 22
      %v3088 = vpop.permute.xlu0 %3087
      %3089 = vrot.lane.b32.xlu0 %v3068, 22
      %v3090 = vpop.permute.xlu0 %3089
      %v3091 = vrot.slane %v3070, 4
      %v3092 = vrot.slane %v3072, 4
      %v3093 = vrot.slane %v3074, 4
      %v3094 = vrot.slane %v3076, 4
      %v3095 = vrot.slane %v3078, 4
      %v3096 = vrot.slane %v3080, 4
      %v3097 = vrot.slane %v3082, 4
      %v3098 = vrot.slane %v3084, 4
      %v3099 = vrot.slane %v3086, 4
      %v3100 = vrot.slane %v3088, 4
      %v3101 = vrot.slane %v3090, 4
      %v3102 = vsel %vm405, %v3091, %v3092
      %vm3103 = vcmask 179200
      %v3104 = vsel %vm3103, %v3070, %v3102
      %v3105 = vsel %vm405, %v3092, %v3093
      %v3106 = vsel %vm3103, %v3072, %v3105
      %v3107 = vsel %vm405, %v3093, %v3094
      %v3108 = vsel %vm3103, %v3074, %v3107
      %v3109 = vsel %vm405, %v3094, %v3095
      %v3110 = vsel %vm3103, %v3076, %v3109
      %v3111 = vsel %vm405, %v3095, %v3096
      %v3112 = vsel %vm3103, %v3078, %v3111
      %v3113 = vsel %vm405, %v3096, %v3097
      %v3114 = vsel %vm3103, %v3080, %v3113
      %v3115 = vsel %vm405, %v3097, %v3098
      %v3116 = vsel %vm3103, %v3082, %v3115
      %v3117 = vsel %vm405, %v3098, %v3099
      %v3118 = vsel %vm3103, %v3084, %v3117
      %v3119 = vsel %vm405, %v3099, %v3100
      %v3120 = vsel %vm3103, %v3086, %v3119
      %v3121 = vsel %vm405, %v3100, %v3101
      %v3122 = vsel %vm3103, %v3088, %v3121
      %3133 = vst [vmem:[#allocation2 + $0x280] sm:$0xcc] %v3104
      %3134 = vst [vmem:[#allocation2 + $0x288] sm:$0xcc] %v3106
      %3135 = vst [vmem:[#allocation2 + $0x290] sm:$0xcc] %v3108
      %3136 = vst [vmem:[#allocation2 + $0x298] sm:$0xcc] %v3110
      %3137 = vst [vmem:[#allocation2 + $0x2a0] sm:$0xcc] %v3112
      %3138 = vst [vmem:[#allocation2 + $0x2a8] sm:$0xcc] %v3114
      %3139 = vst [vmem:[#allocation2 + $0x2b0] sm:$0xcc] %v3116
      %3140 = vst [vmem:[#allocation2 + $0x2b8] sm:$0xcc] %v3118
      %3141 = vst [vmem:[#allocation2 + $0x2c0] sm:$0xcc] %v3120
      %3142 = vst [vmem:[#allocation2 + $0x2c8] sm:$0xcc] %v3122
      %v3143 = vld [vmem:[%s165 + $0xa] sm:$0xff]
      %v3144 = vld [vmem:[%s165 + $0x12] sm:$0xff]
      %v3145 = vld [vmem:[%s165 + $0x1a] sm:$0xff]
      %v3146 = vld [vmem:[%s165 + $0x22] sm:$0xff]
      %v3147 = vld [vmem:[%s165 + $0x2a] sm:$0xff]
      %v3148 = vld [vmem:[%s165 + $0x32] sm:$0x3]
      %v3155 = vcombine.high %v3143, %v3143
      %v3157 = vunpack.c.l.s4 1983009808
      %v3158 = vunpack.c.0.s8 %v3157
      %v3159 = vlaneseq
      %v3160 = vshrl.u32 %v3159, 7
      %v3161 = vsub.s32 %v3158, %v3160
      %v3162 = vrot.slane %v3143, %v3161
      %v3164 = vunpack.c.l.s4 1983009808
      %v3165 = vunpack.c.0.s8 %v3164
      %v3166 = vlaneseq
      %v3167 = vshrl.u32 %v3166, 7
      %v3168 = vsub.s32 %v3165, %v3167
      %v3169 = vrot.slane %v3155, %v3168
      %v3170 = vcombine.high %v3144, %v3144
      %v3172 = vunpack.c.l.s4 1983009808
      %v3173 = vunpack.c.0.s8 %v3172
      %v3174 = vlaneseq
      %v3175 = vshrl.u32 %v3174, 7
      %v3176 = vsub.s32 %v3173, %v3175
      %v3177 = vrot.slane %v3144, %v3176
      %v3179 = vunpack.c.l.s4 1983009808
      %v3180 = vunpack.c.0.s8 %v3179
      %v3181 = vlaneseq
      %v3182 = vshrl.u32 %v3181, 7
      %v3183 = vsub.s32 %v3180, %v3182
      %v3184 = vrot.slane %v3170, %v3183
      %v3185 = vcombine.high %v3145, %v3145
      %v3187 = vunpack.c.l.s4 1983009808
      %v3188 = vunpack.c.0.s8 %v3187
      %v3189 = vlaneseq
      %v3190 = vshrl.u32 %v3189, 7
      %v3191 = vsub.s32 %v3188, %v3190
      %v3192 = vrot.slane %v3145, %v3191
      %v3194 = vunpack.c.l.s4 1983009808
      %v3195 = vunpack.c.0.s8 %v3194
      %v3196 = vlaneseq
      %v3197 = vshrl.u32 %v3196, 7
      %v3198 = vsub.s32 %v3195, %v3197
      %v3199 = vrot.slane %v3185, %v3198
      %v3200 = vcombine.high %v3146, %v3146
      %v3202 = vunpack.c.l.s4 1983009808
      %v3203 = vunpack.c.0.s8 %v3202
      %v3204 = vlaneseq
      %v3205 = vshrl.u32 %v3204, 7
      %v3206 = vsub.s32 %v3203, %v3205
      %v3207 = vrot.slane %v3146, %v3206
      %v3209 = vunpack.c.l.s4 1983009808
      %v3210 = vunpack.c.0.s8 %v3209
      %v3211 = vlaneseq
      %v3212 = vshrl.u32 %v3211, 7
      %v3213 = vsub.s32 %v3210, %v3212
      %v3214 = vrot.slane %v3200, %v3213
      %v3215 = vcombine.high %v3147, %v3147
      %v3217 = vunpack.c.l.s4 1983009808
      %v3218 = vunpack.c.0.s8 %v3217
      %v3219 = vlaneseq
      %v3220 = vshrl.u32 %v3219, 7
      %v3221 = vsub.s32 %v3218, %v3220
      %v3222 = vrot.slane %v3147, %v3221
      %v3224 = vunpack.c.l.s4 1983009808
      %v3225 = vunpack.c.0.s8 %v3224
      %v3226 = vlaneseq
      %v3227 = vshrl.u32 %v3226, 7
      %v3228 = vsub.s32 %v3225, %v3227
      %v3229 = vrot.slane %v3215, %v3228
      %v3231 = vunpack.c.l.s4 1983009808
      %v3232 = vunpack.c.0.s8 %v3231
      %v3233 = vlaneseq
      %v3234 = vshrl.u32 %v3233, 7
      %v3235 = vsub.s32 %v3232, %v3234
      %v3236 = vrot.slane %v3148, %v3235
      %3237 = vrot.lane.b32.xlu0 %v3162, 120
      %v3238 = vpop.permute.xlu0 %3237
      %3239 = vrot.lane.b32.xlu0 %v3169, 120
      %v3240 = vpop.permute.xlu0 %3239
      %3241 = vrot.lane.b32.xlu0 %v3177, 120
      %v3242 = vpop.permute.xlu0 %3241
      %3243 = vrot.lane.b32.xlu0 %v3184, 120
      %v3244 = vpop.permute.xlu0 %3243
      %3245 = vrot.lane.b32.xlu0 %v3192, 120
      %v3246 = vpop.permute.xlu0 %3245
      %3247 = vrot.lane.b32.xlu0 %v3199, 120
      %v3248 = vpop.permute.xlu0 %3247
      %3249 = vrot.lane.b32.xlu0 %v3207, 120
      %v3250 = vpop.permute.xlu0 %3249
      %3251 = vrot.lane.b32.xlu0 %v3214, 120
      %v3252 = vpop.permute.xlu0 %3251
      %3253 = vrot.lane.b32.xlu0 %v3222, 120
      %v3254 = vpop.permute.xlu0 %3253
      %3255 = vrot.lane.b32.xlu0 %v3229, 120
      %v3256 = vpop.permute.xlu0 %3255
      %3257 = vrot.lane.b32.xlu0 %v3236, 120
      %v3258 = vpop.permute.xlu0 %3257
      %v3259 = vrot.slane %v3238, 4
      %v3260 = vrot.slane %v3240, 4
      %v3261 = vrot.slane %v3242, 4
      %v3262 = vrot.slane %v3244, 4
      %v3263 = vrot.slane %v3246, 4
      %v3264 = vrot.slane %v3248, 4
      %v3265 = vrot.slane %v3250, 4
      %v3266 = vrot.slane %v3252, 4
      %v3267 = vrot.slane %v3254, 4
      %v3268 = vrot.slane %v3256, 4
      %v3269 = vrot.slane %v3258, 4
      %v3270 = vsel %vm405, %v3259, %v3260
      %vm3271 = vcmask 982016
      %v3272 = vsel %vm3271, %v3238, %v3270
      %v3273 = vsel %vm405, %v3260, %v3261
      %v3274 = vsel %vm3271, %v3240, %v3273
      %v3275 = vsel %vm405, %v3261, %v3262
      %v3276 = vsel %vm3271, %v3242, %v3275
      %v3277 = vsel %vm405, %v3262, %v3263
      %v3278 = vsel %vm3271, %v3244, %v3277
      %v3279 = vsel %vm405, %v3263, %v3264
      %v3280 = vsel %vm3271, %v3246, %v3279
      %v3281 = vsel %vm405, %v3264, %v3265
      %v3282 = vsel %vm3271, %v3248, %v3281
      %v3283 = vsel %vm405, %v3265, %v3266
      %v3284 = vsel %vm3271, %v3250, %v3283
      %v3285 = vsel %vm405, %v3266, %v3267
      %v3286 = vsel %vm3271, %v3252, %v3285
      %v3287 = vsel %vm405, %v3267, %v3268
      %v3288 = vsel %vm3271, %v3254, %v3287
      %v3289 = vsel %vm405, %v3268, %v3269
      %v3290 = vsel %vm3271, %v3256, %v3289
      %3301 = vst [vmem:[#allocation2 + $0x2d0] sm:$0x33] %v3272
      %3302 = vst [vmem:[#allocation2 + $0x2d8] sm:$0x33] %v3274
      %3303 = vst [vmem:[#allocation2 + $0x2e0] sm:$0x33] %v3276
      %3304 = vst [vmem:[#allocation2 + $0x2e8] sm:$0x33] %v3278
      %3305 = vst [vmem:[#allocation2 + $0x2f0] sm:$0x33] %v3280
      %3306 = vst [vmem:[#allocation2 + $0x2f8] sm:$0x33] %v3282
      %3307 = vst [vmem:[#allocation2 + $0x300] sm:$0x33] %v3284
      %3308 = vst [vmem:[#allocation2 + $0x308] sm:$0x33] %v3286
      %3309 = vst [vmem:[#allocation2 + $0x310] sm:$0x33] %v3288
      %3310 = vst [vmem:[#allocation2 + $0x318] sm:$0x33] %v3290
      %v3311 = vld [vmem:[%s165 + $0xa] sm:$0xff]
      %v3312 = vld [vmem:[%s165 + $0x12] sm:$0xff]
      %v3313 = vld [vmem:[%s165 + $0x1a] sm:$0xff]
      %v3314 = vld [vmem:[%s165 + $0x22] sm:$0xff]
      %v3315 = vld [vmem:[%s165 + $0x2a] sm:$0xff]
      %v3316 = vld [vmem:[%s165 + $0x32] sm:$0x3]
      %v3323 = vcombine.low %v3311, %v3311
      %v3325 = vunpack.c.l.s4 1983009808
      %v3326 = vunpack.c.0.s8 %v3325
      %v3327 = vlaneseq
      %v3328 = vshrl.u32 %v3327, 7
      %v3329 = vsub.s32 %v3326, %v3328
      %v3330 = vrot.slane %v3323, %v3329
      %v3332 = vunpack.c.l.s4 1983009808
      %v3333 = vunpack.c.0.s8 %v3332
      %v3334 = vlaneseq
      %v3335 = vshrl.u32 %v3334, 7
      %v3336 = vsub.s32 %v3333, %v3335
      %v3337 = vrot.slane %v3311, %v3336
      %v3338 = vcombine.low %v3312, %v3312
      %v3340 = vunpack.c.l.s4 1983009808
      %v3341 = vunpack.c.0.s8 %v3340
      %v3342 = vlaneseq
      %v3343 = vshrl.u32 %v3342, 7
      %v3344 = vsub.s32 %v3341, %v3343
      %v3345 = vrot.slane %v3338, %v3344
      %v3347 = vunpack.c.l.s4 1983009808
      %v3348 = vunpack.c.0.s8 %v3347
      %v3349 = vlaneseq
      %v3350 = vshrl.u32 %v3349, 7
      %v3351 = vsub.s32 %v3348, %v3350
      %v3352 = vrot.slane %v3312, %v3351
      %v3353 = vcombine.low %v3313, %v3313
      %v3355 = vunpack.c.l.s4 1983009808
      %v3356 = vunpack.c.0.s8 %v3355
      %v3357 = vlaneseq
      %v3358 = vshrl.u32 %v3357, 7
      %v3359 = vsub.s32 %v3356, %v3358
      %v3360 = vrot.slane %v3353, %v3359
      %v3362 = vunpack.c.l.s4 1983009808
      %v3363 = vunpack.c.0.s8 %v3362
      %v3364 = vlaneseq
      %v3365 = vshrl.u32 %v3364, 7
      %v3366 = vsub.s32 %v3363, %v3365
      %v3367 = vrot.slane %v3313, %v3366
      %v3368 = vcombine.low %v3314, %v3314
      %v3370 = vunpack.c.l.s4 1983009808
      %v3371 = vunpack.c.0.s8 %v3370
      %v3372 = vlaneseq
      %v3373 = vshrl.u32 %v3372, 7
      %v3374 = vsub.s32 %v3371, %v3373
      %v3375 = vrot.slane %v3368, %v3374
      %v3377 = vunpack.c.l.s4 1983009808
      %v3378 = vunpack.c.0.s8 %v3377
      %v3379 = vlaneseq
      %v3380 = vshrl.u32 %v3379, 7
      %v3381 = vsub.s32 %v3378, %v3380
      %v3382 = vrot.slane %v3314, %v3381
      %v3383 = vcombine.low %v3315, %v3315
      %v3385 = vunpack.c.l.s4 1983009808
      %v3386 = vunpack.c.0.s8 %v3385
      %v3387 = vlaneseq
      %v3388 = vshrl.u32 %v3387, 7
      %v3389 = vsub.s32 %v3386, %v3388
      %v3390 = vrot.slane %v3383, %v3389
      %v3392 = vunpack.c.l.s4 1983009808
      %v3393 = vunpack.c.0.s8 %v3392
      %v3394 = vlaneseq
      %v3395 = vshrl.u32 %v3394, 7
      %v3396 = vsub.s32 %v3393, %v3395
      %v3397 = vrot.slane %v3315, %v3396
      %v3398 = vcombine.low %v3316, %v3316
      %v3400 = vunpack.c.l.s4 1983009808
      %v3401 = vunpack.c.0.s8 %v3400
      %v3402 = vlaneseq
      %v3403 = vshrl.u32 %v3402, 7
      %v3404 = vsub.s32 %v3401, %v3403
      %v3405 = vrot.slane %v3398, %v3404
      %3406 = vrot.lane.b32.xlu0 %v3330, 119
      %v3407 = vpop.permute.xlu0 %3406
      %3408 = vrot.lane.b32.xlu0 %v3337, 119
      %v3409 = vpop.permute.xlu0 %3408
      %3410 = vrot.lane.b32.xlu0 %v3345, 119
      %v3411 = vpop.permute.xlu0 %3410
      %3412 = vrot.lane.b32.xlu0 %v3352, 119
      %v3413 = vpop.permute.xlu0 %3412
      %3414 = vrot.lane.b32.xlu0 %v3360, 119
      %v3415 = vpop.permute.xlu0 %3414
      %3416 = vrot.lane.b32.xlu0 %v3367, 119
      %v3417 = vpop.permute.xlu0 %3416
      %3418 = vrot.lane.b32.xlu0 %v3375, 119
      %v3419 = vpop.permute.xlu0 %3418
      %3420 = vrot.lane.b32.xlu0 %v3382, 119
      %v3421 = vpop.permute.xlu0 %3420
      %3422 = vrot.lane.b32.xlu0 %v3390, 119
      %v3423 = vpop.permute.xlu0 %3422
      %3424 = vrot.lane.b32.xlu0 %v3397, 119
      %v3425 = vpop.permute.xlu0 %3424
      %3426 = vrot.lane.b32.xlu0 %v3405, 119
      %v3427 = vpop.permute.xlu0 %3426
      %v3428 = vrot.slane %v3407, 4
      %v3429 = vrot.slane %v3409, 4
      %v3430 = vrot.slane %v3411, 4
      %v3431 = vrot.slane %v3413, 4
      %v3432 = vrot.slane %v3415, 4
      %v3433 = vrot.slane %v3417, 4
      %v3434 = vrot.slane %v3419, 4
      %v3435 = vrot.slane %v3421, 4
      %v3436 = vrot.slane %v3423, 4
      %v3437 = vrot.slane %v3425, 4
      %v3438 = vrot.slane %v3427, 4
      %v3439 = vsel %vm405, %v3428, %v3429
      %vm3440 = vcmask 973824
      %v3441 = vsel %vm3440, %v3407, %v3439
      %v3442 = vsel %vm405, %v3429, %v3430
      %v3443 = vsel %vm3440, %v3409, %v3442
      %v3444 = vsel %vm405, %v3430, %v3431
      %v3445 = vsel %vm3440, %v3411, %v3444
      %v3446 = vsel %vm405, %v3431, %v3432
      %v3447 = vsel %vm3440, %v3413, %v3446
      %v3448 = vsel %vm405, %v3432, %v3433
      %v3449 = vsel %vm3440, %v3415, %v3448
      %v3450 = vsel %vm405, %v3433, %v3434
      %v3451 = vsel %vm3440, %v3417, %v3450
      %v3452 = vsel %vm405, %v3434, %v3435
      %v3453 = vsel %vm3440, %v3419, %v3452
      %v3454 = vsel %vm405, %v3435, %v3436
      %v3455 = vsel %vm3440, %v3421, %v3454
      %v3456 = vsel %vm405, %v3436, %v3437
      %v3457 = vsel %vm3440, %v3423, %v3456
      %v3458 = vsel %vm405, %v3437, %v3438
      %v3459 = vsel %vm3440, %v3425, %v3458
      %3470 = vst [vmem:[#allocation2 + $0x2d0] sm:$0xcc] %v3441
      %3471 = vst [vmem:[#allocation2 + $0x2d8] sm:$0xcc] %v3443
      %3472 = vst [vmem:[#allocation2 + $0x2e0] sm:$0xcc] %v3445
      %3473 = vst [vmem:[#allocation2 + $0x2e8] sm:$0xcc] %v3447
      %3474 = vst [vmem:[#allocation2 + $0x2f0] sm:$0xcc] %v3449
      %3475 = vst [vmem:[#allocation2 + $0x2f8] sm:$0xcc] %v3451
      %3476 = vst [vmem:[#allocation2 + $0x300] sm:$0xcc] %v3453
      %3477 = vst [vmem:[#allocation2 + $0x308] sm:$0xcc] %v3455
      %3478 = vst [vmem:[#allocation2 + $0x310] sm:$0xcc] %v3457
      %3479 = vst [vmem:[#allocation2 + $0x318] sm:$0xcc] %v3459
      %v3480 = vld [vmem:[%s165 + $0xa] sm:$0xff]
      %v3481 = vld [vmem:[%s165 + $0x12] sm:$0xff]
      %v3482 = vld [vmem:[%s165 + $0x1a] sm:$0xff]
      %v3483 = vld [vmem:[%s165 + $0x22] sm:$0xff]
      %v3484 = vld [vmem:[%s165 + $0x2a] sm:$0xff]
      %v3485 = vld [vmem:[%s165 + $0x32] sm:$0x3]
      %v3492 = vcombine.high %v3480, %v3480
      %v3494 = vunpack.c.l.s4 1983009808
      %v3495 = vunpack.c.0.s8 %v3494
      %v3496 = vlaneseq
      %v3497 = vshrl.u32 %v3496, 7
      %v3498 = vsub.s32 %v3495, %v3497
      %v3499 = vrot.slane %v3480, %v3498
      %v3501 = vunpack.c.l.s4 1983009808
      %v3502 = vunpack.c.0.s8 %v3501
      %v3503 = vlaneseq
      %v3504 = vshrl.u32 %v3503, 7
      %v3505 = vsub.s32 %v3502, %v3504
      %v3506 = vrot.slane %v3492, %v3505
      %v3507 = vcombine.high %v3481, %v3481
      %v3509 = vunpack.c.l.s4 1983009808
      %v3510 = vunpack.c.0.s8 %v3509
      %v3511 = vlaneseq
      %v3512 = vshrl.u32 %v3511, 7
      %v3513 = vsub.s32 %v3510, %v3512
      %v3514 = vrot.slane %v3481, %v3513
      %v3516 = vunpack.c.l.s4 1983009808
      %v3517 = vunpack.c.0.s8 %v3516
      %v3518 = vlaneseq
      %v3519 = vshrl.u32 %v3518, 7
      %v3520 = vsub.s32 %v3517, %v3519
      %v3521 = vrot.slane %v3507, %v3520
      %v3522 = vcombine.high %v3482, %v3482
      %v3524 = vunpack.c.l.s4 1983009808
      %v3525 = vunpack.c.0.s8 %v3524
      %v3526 = vlaneseq
      %v3527 = vshrl.u32 %v3526, 7
      %v3528 = vsub.s32 %v3525, %v3527
      %v3529 = vrot.slane %v3482, %v3528
      %v3531 = vunpack.c.l.s4 1983009808
      %v3532 = vunpack.c.0.s8 %v3531
      %v3533 = vlaneseq
      %v3534 = vshrl.u32 %v3533, 7
      %v3535 = vsub.s32 %v3532, %v3534
      %v3536 = vrot.slane %v3522, %v3535
      %v3537 = vcombine.high %v3483, %v3483
      %v3539 = vunpack.c.l.s4 1983009808
      %v3540 = vunpack.c.0.s8 %v3539
      %v3541 = vlaneseq
      %v3542 = vshrl.u32 %v3541, 7
      %v3543 = vsub.s32 %v3540, %v3542
      %v3544 = vrot.slane %v3483, %v3543
      %v3546 = vunpack.c.l.s4 1983009808
      %v3547 = vunpack.c.0.s8 %v3546
      %v3548 = vlaneseq
      %v3549 = vshrl.u32 %v3548, 7
      %v3550 = vsub.s32 %v3547, %v3549
      %v3551 = vrot.slane %v3537, %v3550
      %v3552 = vcombine.high %v3484, %v3484
      %v3554 = vunpack.c.l.s4 1983009808
      %v3555 = vunpack.c.0.s8 %v3554
      %v3556 = vlaneseq
      %v3557 = vshrl.u32 %v3556, 7
      %v3558 = vsub.s32 %v3555, %v3557
      %v3559 = vrot.slane %v3484, %v3558
      %v3561 = vunpack.c.l.s4 1983009808
      %v3562 = vunpack.c.0.s8 %v3561
      %v3563 = vlaneseq
      %v3564 = vshrl.u32 %v3563, 7
      %v3565 = vsub.s32 %v3562, %v3564
      %v3566 = vrot.slane %v3552, %v3565
      %v3568 = vunpack.c.l.s4 1983009808
      %v3569 = vunpack.c.0.s8 %v3568
      %v3570 = vlaneseq
      %v3571 = vshrl.u32 %v3570, 7
      %v3572 = vsub.s32 %v3569, %v3571
      %v3573 = vrot.slane %v3485, %v3572
      %3574 = vrot.lane.b32.xlu0 %v3499, 118
      %v3575 = vpop.permute.xlu0 %3574
      %3576 = vrot.lane.b32.xlu0 %v3506, 118
      %v3577 = vpop.permute.xlu0 %3576
      %3578 = vrot.lane.b32.xlu0 %v3514, 118
      %v3579 = vpop.permute.xlu0 %3578
      %3580 = vrot.lane.b32.xlu0 %v3521, 118
      %v3581 = vpop.permute.xlu0 %3580
      %3582 = vrot.lane.b32.xlu0 %v3529, 118
      %v3583 = vpop.permute.xlu0 %3582
      %3584 = vrot.lane.b32.xlu0 %v3536, 118
      %v3585 = vpop.permute.xlu0 %3584
      %3586 = vrot.lane.b32.xlu0 %v3544, 118
      %v3587 = vpop.permute.xlu0 %3586
      %3588 = vrot.lane.b32.xlu0 %v3551, 118
      %v3589 = vpop.permute.xlu0 %3588
      %3590 = vrot.lane.b32.xlu0 %v3559, 118
      %v3591 = vpop.permute.xlu0 %3590
      %3592 = vrot.lane.b32.xlu0 %v3566, 118
      %v3593 = vpop.permute.xlu0 %3592
      %3594 = vrot.lane.b32.xlu0 %v3573, 118
      %v3595 = vpop.permute.xlu0 %3594
      %v3596 = vrot.slane %v3575, 4
      %v3597 = vrot.slane %v3577, 4
      %v3598 = vrot.slane %v3579, 4
      %v3599 = vrot.slane %v3581, 4
      %v3600 = vrot.slane %v3583, 4
      %v3601 = vrot.slane %v3585, 4
      %v3602 = vrot.slane %v3587, 4
      %v3603 = vrot.slane %v3589, 4
      %v3604 = vrot.slane %v3591, 4
      %v3605 = vrot.slane %v3593, 4
      %v3606 = vrot.slane %v3595, 4
      %v3607 = vsel %vm405, %v3596, %v3597
      %vm3608 = vcmask 965632
      %v3609 = vsel %vm3608, %v3575, %v3607
      %v3610 = vsel %vm405, %v3597, %v3598
      %v3611 = vsel %vm3608, %v3577, %v3610
      %v3612 = vsel %vm405, %v3598, %v3599
      %v3613 = vsel %vm3608, %v3579, %v3612
      %v3614 = vsel %vm405, %v3599, %v3600
      %v3615 = vsel %vm3608, %v3581, %v3614
      %v3616 = vsel %vm405, %v3600, %v3601
      %v3617 = vsel %vm3608, %v3583, %v3616
      %v3618 = vsel %vm405, %v3601, %v3602
      %v3619 = vsel %vm3608, %v3585, %v3618
      %v3620 = vsel %vm405, %v3602, %v3603
      %v3621 = vsel %vm3608, %v3587, %v3620
      %v3622 = vsel %vm405, %v3603, %v3604
      %v3623 = vsel %vm3608, %v3589, %v3622
      %v3624 = vsel %vm405, %v3604, %v3605
      %v3625 = vsel %vm3608, %v3591, %v3624
      %v3626 = vsel %vm405, %v3605, %v3606
      %v3627 = vsel %vm3608, %v3593, %v3626
      %3638 = vst [vmem:[#allocation2 + $0x320] sm:$0x33] %v3609
      %3639 = vst [vmem:[#allocation2 + $0x328] sm:$0x33] %v3611
      %3640 = vst [vmem:[#allocation2 + $0x330] sm:$0x33] %v3613
      %3641 = vst [vmem:[#allocation2 + $0x338] sm:$0x33] %v3615
      %3642 = vst [vmem:[#allocation2 + $0x340] sm:$0x33] %v3617
      %3643 = vst [vmem:[#allocation2 + $0x348] sm:$0x33] %v3619
      %3644 = vst [vmem:[#allocation2 + $0x350] sm:$0x33] %v3621
      %3645 = vst [vmem:[#allocation2 + $0x358] sm:$0x33] %v3623
      %3646 = vst [vmem:[#allocation2 + $0x360] sm:$0x33] %v3625
      %3647 = vst [vmem:[#allocation2 + $0x368] sm:$0x33] %v3627
      %v3648 = vld [vmem:[%s165 + $0xa] sm:$0xff]
      %v3649 = vld [vmem:[%s165 + $0x12] sm:$0xff]
      %v3650 = vld [vmem:[%s165 + $0x1a] sm:$0xff]
      %v3651 = vld [vmem:[%s165 + $0x22] sm:$0xff]
      %v3652 = vld [vmem:[%s165 + $0x2a] sm:$0xff]
      %v3653 = vld [vmem:[%s165 + $0x32] sm:$0x3]
      %v3660 = vcombine.low %v3648, %v3648
      %v3662 = vunpack.c.l.s4 1983009808
      %v3663 = vunpack.c.0.s8 %v3662
      %v3664 = vlaneseq
      %v3665 = vshrl.u32 %v3664, 7
      %v3666 = vsub.s32 %v3663, %v3665
      %v3667 = vrot.slane %v3660, %v3666
      %v3669 = vunpack.c.l.s4 1983009808
      %v3670 = vunpack.c.0.s8 %v3669
      %v3671 = vlaneseq
      %v3672 = vshrl.u32 %v3671, 7
      %v3673 = vsub.s32 %v3670, %v3672
      %v3674 = vrot.slane %v3648, %v3673
      %v3675 = vcombine.low %v3649, %v3649
      %v3677 = vunpack.c.l.s4 1983009808
      %v3678 = vunpack.c.0.s8 %v3677
      %v3679 = vlaneseq
      %v3680 = vshrl.u32 %v3679, 7
      %v3681 = vsub.s32 %v3678, %v3680
      %v3682 = vrot.slane %v3675, %v3681
      %v3684 = vunpack.c.l.s4 1983009808
      %v3685 = vunpack.c.0.s8 %v3684
      %v3686 = vlaneseq
      %v3687 = vshrl.u32 %v3686, 7
      %v3688 = vsub.s32 %v3685, %v3687
      %v3689 = vrot.slane %v3649, %v3688
      %v3690 = vcombine.low %v3650, %v3650
      %v3692 = vunpack.c.l.s4 1983009808
      %v3693 = vunpack.c.0.s8 %v3692
      %v3694 = vlaneseq
      %v3695 = vshrl.u32 %v3694, 7
      %v3696 = vsub.s32 %v3693, %v3695
      %v3697 = vrot.slane %v3690, %v3696
      %v3699 = vunpack.c.l.s4 1983009808
      %v3700 = vunpack.c.0.s8 %v3699
      %v3701 = vlaneseq
      %v3702 = vshrl.u32 %v3701, 7
      %v3703 = vsub.s32 %v3700, %v3702
      %v3704 = vrot.slane %v3650, %v3703
      %v3705 = vcombine.low %v3651, %v3651
      %v3707 = vunpack.c.l.s4 1983009808
      %v3708 = vunpack.c.0.s8 %v3707
      %v3709 = vlaneseq
      %v3710 = vshrl.u32 %v3709, 7
      %v3711 = vsub.s32 %v3708, %v3710
      %v3712 = vrot.slane %v3705, %v3711
      %v3714 = vunpack.c.l.s4 1983009808
      %v3715 = vunpack.c.0.s8 %v3714
      %v3716 = vlaneseq
      %v3717 = vshrl.u32 %v3716, 7
      %v3718 = vsub.s32 %v3715, %v3717
      %v3719 = vrot.slane %v3651, %v3718
      %v3720 = vcombine.low %v3652, %v3652
      %v3722 = vunpack.c.l.s4 1983009808
      %v3723 = vunpack.c.0.s8 %v3722
      %v3724 = vlaneseq
      %v3725 = vshrl.u32 %v3724, 7
      %v3726 = vsub.s32 %v3723, %v3725
      %v3727 = vrot.slane %v3720, %v3726
      %v3729 = vunpack.c.l.s4 1983009808
      %v3730 = vunpack.c.0.s8 %v3729
      %v3731 = vlaneseq
      %v3732 = vshrl.u32 %v3731, 7
      %v3733 = vsub.s32 %v3730, %v3732
      %v3734 = vrot.slane %v3652, %v3733
      %v3735 = vcombine.low %v3653, %v3653
      %v3737 = vunpack.c.l.s4 1983009808
      %v3738 = vunpack.c.0.s8 %v3737
      %v3739 = vlaneseq
      %v3740 = vshrl.u32 %v3739, 7
      %v3741 = vsub.s32 %v3738, %v3740
      %v3742 = vrot.slane %v3735, %v3741
      %3743 = vrot.lane.b32.xlu0 %v3667, 102
      %v3744 = vpop.permute.xlu0 %3743
      %3745 = vrot.lane.b32.xlu0 %v3674, 102
      %v3746 = vpop.permute.xlu0 %3745
      %3747 = vrot.lane.b32.xlu0 %v3682, 102
      %v3748 = vpop.permute.xlu0 %3747
      %3749 = vrot.lane.b32.xlu0 %v3689, 102
      %v3750 = vpop.permute.xlu0 %3749
      %3751 = vrot.lane.b32.xlu0 %v3697, 102
      %v3752 = vpop.permute.xlu0 %3751
      %3753 = vrot.lane.b32.xlu0 %v3704, 102
      %v3754 = vpop.permute.xlu0 %3753
      %3755 = vrot.lane.b32.xlu0 %v3712, 102
      %v3756 = vpop.permute.xlu0 %3755
      %3757 = vrot.lane.b32.xlu0 %v3719, 102
      %v3758 = vpop.permute.xlu0 %3757
      %3759 = vrot.lane.b32.xlu0 %v3727, 102
      %v3760 = vpop.permute.xlu0 %3759
      %3761 = vrot.lane.b32.xlu0 %v3734, 102
      %v3762 = vpop.permute.xlu0 %3761
      %3763 = vrot.lane.b32.xlu0 %v3742, 102
      %v3764 = vpop.permute.xlu0 %3763
      %v3765 = vrot.slane %v3744, 4
      %v3766 = vrot.slane %v3746, 4
      %v3767 = vrot.slane %v3748, 4
      %v3768 = vrot.slane %v3750, 4
      %v3769 = vrot.slane %v3752, 4
      %v3770 = vrot.slane %v3754, 4
      %v3771 = vrot.slane %v3756, 4
      %v3772 = vrot.slane %v3758, 4
      %v3773 = vrot.slane %v3760, 4
      %v3774 = vrot.slane %v3762, 4
      %v3775 = vrot.slane %v3764, 4
      %v3776 = vsel %vm405, %v3765, %v3766
      %vm3777 = vcmask 834560
      %v3778 = vsel %vm3777, %v3744, %v3776
      %v3779 = vsel %vm405, %v3766, %v3767
      %v3780 = vsel %vm3777, %v3746, %v3779
      %v3781 = vsel %vm405, %v3767, %v3768
      %v3782 = vsel %vm3777, %v3748, %v3781
      %v3783 = vsel %vm405, %v3768, %v3769
      %v3784 = vsel %vm3777, %v3750, %v3783
      %v3785 = vsel %vm405, %v3769, %v3770
      %v3786 = vsel %vm3777, %v3752, %v3785
      %v3787 = vsel %vm405, %v3770, %v3771
      %v3788 = vsel %vm3777, %v3754, %v3787
      %v3789 = vsel %vm405, %v3771, %v3772
      %v3790 = vsel %vm3777, %v3756, %v3789
      %v3791 = vsel %vm405, %v3772, %v3773
      %v3792 = vsel %vm3777, %v3758, %v3791
      %v3793 = vsel %vm405, %v3773, %v3774
      %v3794 = vsel %vm3777, %v3760, %v3793
      %v3795 = vsel %vm405, %v3774, %v3775
      %v3796 = vsel %vm3777, %v3762, %v3795
      %3807 = vst [vmem:[#allocation2 + $0x320] sm:$0xcc] %v3778
      %3808 = vst [vmem:[#allocation2 + $0x328] sm:$0xcc] %v3780
      %3809 = vst [vmem:[#allocation2 + $0x330] sm:$0xcc] %v3782
      %3810 = vst [vmem:[#allocation2 + $0x338] sm:$0xcc] %v3784
      %3811 = vst [vmem:[#allocation2 + $0x340] sm:$0xcc] %v3786
      %3812 = vst [vmem:[#allocation2 + $0x348] sm:$0xcc] %v3788
      %3813 = vst [vmem:[#allocation2 + $0x350] sm:$0xcc] %v3790
      %3814 = vst [vmem:[#allocation2 + $0x358] sm:$0xcc] %v3792
      %3815 = vst [vmem:[#allocation2 + $0x360] sm:$0xcc] %v3794
      %3816 = vst [vmem:[#allocation2 + $0x368] sm:$0xcc] %v3796
      %v3817 = vld [vmem:[%s165 + $0xa] sm:$0xff]
      %v3818 = vld [vmem:[%s165 + $0x12] sm:$0xff]
      %v3819 = vld [vmem:[%s165 + $0x1a] sm:$0xff]
      %v3820 = vld [vmem:[%s165 + $0x22] sm:$0xff]
      %v3821 = vld [vmem:[%s165 + $0x2a] sm:$0xff]
      %v3822 = vld [vmem:[%s165 + $0x32] sm:$0x3]
      %v3829 = vcombine.high %v3817, %v3817
      %v3831 = vunpack.c.l.s4 1983009808
      %v3832 = vunpack.c.0.s8 %v3831
      %v3833 = vlaneseq
      %v3834 = vshrl.u32 %v3833, 7
      %v3835 = vsub.s32 %v3832, %v3834
      %v3836 = vrot.slane %v3817, %v3835
      %v3838 = vunpack.c.l.s4 1983009808
      %v3839 = vunpack.c.0.s8 %v3838
      %v3840 = vlaneseq
      %v3841 = vshrl.u32 %v3840, 7
      %v3842 = vsub.s32 %v3839, %v3841
      %v3843 = vrot.slane %v3829, %v3842
      %v3844 = vcombine.high %v3818, %v3818
      %v3846 = vunpack.c.l.s4 1983009808
      %v3847 = vunpack.c.0.s8 %v3846
      %v3848 = vlaneseq
      %v3849 = vshrl.u32 %v3848, 7
      %v3850 = vsub.s32 %v3847, %v3849
      %v3851 = vrot.slane %v3818, %v3850
      %v3853 = vunpack.c.l.s4 1983009808
      %v3854 = vunpack.c.0.s8 %v3853
      %v3855 = vlaneseq
      %v3856 = vshrl.u32 %v3855, 7
      %v3857 = vsub.s32 %v3854, %v3856
      %v3858 = vrot.slane %v3844, %v3857
      %v3859 = vcombine.high %v3819, %v3819
      %v3861 = vunpack.c.l.s4 1983009808
      %v3862 = vunpack.c.0.s8 %v3861
      %v3863 = vlaneseq
      %v3864 = vshrl.u32 %v3863, 7
      %v3865 = vsub.s32 %v3862, %v3864
      %v3866 = vrot.slane %v3819, %v3865
      %v3868 = vunpack.c.l.s4 1983009808
      %v3869 = vunpack.c.0.s8 %v3868
      %v3870 = vlaneseq
      %v3871 = vshrl.u32 %v3870, 7
      %v3872 = vsub.s32 %v3869, %v3871
      %v3873 = vrot.slane %v3859, %v3872
      %v3874 = vcombine.high %v3820, %v3820
      %v3876 = vunpack.c.l.s4 1983009808
      %v3877 = vunpack.c.0.s8 %v3876
      %v3878 = vlaneseq
      %v3879 = vshrl.u32 %v3878, 7
      %v3880 = vsub.s32 %v3877, %v3879
      %v3881 = vrot.slane %v3820, %v3880
      %v3883 = vunpack.c.l.s4 1983009808
      %v3884 = vunpack.c.0.s8 %v3883
      %v3885 = vlaneseq
      %v3886 = vshrl.u32 %v3885, 7
      %v3887 = vsub.s32 %v3884, %v3886
      %v3888 = vrot.slane %v3874, %v3887
      %v3889 = vcombine.high %v3821, %v3821
      %v3891 = vunpack.c.l.s4 1983009808
      %v3892 = vunpack.c.0.s8 %v3891
      %v3893 = vlaneseq
      %v3894 = vshrl.u32 %v3893, 7
      %v3895 = vsub.s32 %v3892, %v3894
      %v3896 = vrot.slane %v3821, %v3895
      %v3898 = vunpack.c.l.s4 1983009808
      %v3899 = vunpack.c.0.s8 %v3898
      %v3900 = vlaneseq
      %v3901 = vshrl.u32 %v3900, 7
      %v3902 = vsub.s32 %v3899, %v3901
      %v3903 = vrot.slane %v3889, %v3902
      %v3905 = vunpack.c.l.s4 1983009808
      %v3906 = vunpack.c.0.s8 %v3905
      %v3907 = vlaneseq
      %v3908 = vshrl.u32 %v3907, 7
      %v3909 = vsub.s32 %v3906, %v3908
      %v3910 = vrot.slane %v3822, %v3909
      %3911 = vrot.lane.b32.xlu0 %v3836, 101
      %v3912 = vpop.permute.xlu0 %3911
      %3913 = vrot.lane.b32.xlu0 %v3843, 101
      %v3914 = vpop.permute.xlu0 %3913
      %3915 = vrot.lane.b32.xlu0 %v3851, 101
      %v3916 = vpop.permute.xlu0 %3915
      %3917 = vrot.lane.b32.xlu0 %v3858, 101
      %v3918 = vpop.permute.xlu0 %3917
      %3919 = vrot.lane.b32.xlu0 %v3866, 101
      %v3920 = vpop.permute.xlu0 %3919
      %3921 = vrot.lane.b32.xlu0 %v3873, 101
      %v3922 = vpop.permute.xlu0 %3921
      %3923 = vrot.lane.b32.xlu0 %v3881, 101
      %v3924 = vpop.permute.xlu0 %3923
      %3925 = vrot.lane.b32.xlu0 %v3888, 101
      %v3926 = vpop.permute.xlu0 %3925
      %3927 = vrot.lane.b32.xlu0 %v3896, 101
      %v3928 = vpop.permute.xlu0 %3927
      %3929 = vrot.lane.b32.xlu0 %v3903, 101
      %v3930 = vpop.permute.xlu0 %3929
      %3931 = vrot.lane.b32.xlu0 %v3910, 101
      %v3932 = vpop.permute.xlu0 %3931
      %v3933 = vrot.slane %v3912, 4
      %v3934 = vrot.slane %v3914, 4
      %v3935 = vrot.slane %v3916, 4
      %v3936 = vrot.slane %v3918, 4
      %v3937 = vrot.slane %v3920, 4
      %v3938 = vrot.slane %v3922, 4
      %v3939 = vrot.slane %v3924, 4
      %v3940 = vrot.slane %v3926, 4
      %v3941 = vrot.slane %v3928, 4
      %v3942 = vrot.slane %v3930, 4
      %v3943 = vrot.slane %v3932, 4
      %v3944 = vsel %vm405, %v3933, %v3934
      %vm3945 = vcmask 826368
      %v3946 = vsel %vm3945, %v3912, %v3944
      %v3947 = vsel %vm405, %v3934, %v3935
      %v3948 = vsel %vm3945, %v3914, %v3947
      %v3949 = vsel %vm405, %v3935, %v3936
      %v3950 = vsel %vm3945, %v3916, %v3949
      %v3951 = vsel %vm405, %v3936, %v3937
      %v3952 = vsel %vm3945, %v3918, %v3951
      %v3953 = vsel %vm405, %v3937, %v3938
      %v3954 = vsel %vm3945, %v3920, %v3953
      %v3955 = vsel %vm405, %v3938, %v3939
      %v3956 = vsel %vm3945, %v3922, %v3955
      %v3957 = vsel %vm405, %v3939, %v3940
      %v3958 = vsel %vm3945, %v3924, %v3957
      %v3959 = vsel %vm405, %v3940, %v3941
      %v3960 = vsel %vm3945, %v3926, %v3959
      %v3961 = vsel %vm405, %v3941, %v3942
      %v3962 = vsel %vm3945, %v3928, %v3961
      %v3963 = vsel %vm405, %v3942, %v3943
      %v3964 = vsel %vm3945, %v3930, %v3963
      %3975 = vst [vmem:[#allocation2 + $0x370] sm:$0x33] %v3946
      %3976 = vst [vmem:[#allocation2 + $0x378] sm:$0x33] %v3948
      %3977 = vst [vmem:[#allocation2 + $0x380] sm:$0x33] %v3950
      %3978 = vst [vmem:[#allocation2 + $0x388] sm:$0x33] %v3952
      %3979 = vst [vmem:[#allocation2 + $0x390] sm:$0x33] %v3954
      %3980 = vst [vmem:[#allocation2 + $0x398] sm:$0x33] %v3956
      %3981 = vst [vmem:[#allocation2 + $0x3a0] sm:$0x33] %v3958
      %3982 = vst [vmem:[#allocation2 + $0x3a8] sm:$0x33] %v3960
      %3983 = vst [vmem:[#allocation2 + $0x3b0] sm:$0x33] %v3962
      %3984 = vst [vmem:[#allocation2 + $0x3b8] sm:$0x33] %v3964
      %v3985 = vld [vmem:[%s165 + $0xa] sm:$0xff]
      %v3986 = vld [vmem:[%s165 + $0x12] sm:$0xff]
      %v3987 = vld [vmem:[%s165 + $0x1a] sm:$0xff]
      %v3988 = vld [vmem:[%s165 + $0x22] sm:$0xff]
      %v3989 = vld [vmem:[%s165 + $0x2a] sm:$0xff]
      %v3990 = vld [vmem:[%s165 + $0x32] sm:$0x3]
      %v3997 = vcombine.low %v3985, %v3985
      %v3999 = vunpack.c.l.s4 1983009808
      %v4000 = vunpack.c.0.s8 %v3999
      %v4001 = vlaneseq
      %v4002 = vshrl.u32 %v4001, 7
      %v4003 = vsub.s32 %v4000, %v4002
      %v4004 = vrot.slane %v3997, %v4003
      %v4006 = vunpack.c.l.s4 1983009808
      %v4007 = vunpack.c.0.s8 %v4006
      %v4008 = vlaneseq
      %v4009 = vshrl.u32 %v4008, 7
      %v4010 = vsub.s32 %v4007, %v4009
      %v4011 = vrot.slane %v3985, %v4010
      %v4012 = vcombine.low %v3986, %v3986
      %v4014 = vunpack.c.l.s4 1983009808
      %v4015 = vunpack.c.0.s8 %v4014
      %v4016 = vlaneseq
      %v4017 = vshrl.u32 %v4016, 7
      %v4018 = vsub.s32 %v4015, %v4017
      %v4019 = vrot.slane %v4012, %v4018
      %v4021 = vunpack.c.l.s4 1983009808
      %v4022 = vunpack.c.0.s8 %v4021
      %v4023 = vlaneseq
      %v4024 = vshrl.u32 %v4023, 7
      %v4025 = vsub.s32 %v4022, %v4024
      %v4026 = vrot.slane %v3986, %v4025
      %v4027 = vcombine.low %v3987, %v3987
      %v4029 = vunpack.c.l.s4 1983009808
      %v4030 = vunpack.c.0.s8 %v4029
      %v4031 = vlaneseq
      %v4032 = vshrl.u32 %v4031, 7
      %v4033 = vsub.s32 %v4030, %v4032
      %v4034 = vrot.slane %v4027, %v4033
      %v4036 = vunpack.c.l.s4 1983009808
      %v4037 = vunpack.c.0.s8 %v4036
      %v4038 = vlaneseq
      %v4039 = vshrl.u32 %v4038, 7
      %v4040 = vsub.s32 %v4037, %v4039
      %v4041 = vrot.slane %v3987, %v4040
      %v4042 = vcombine.low %v3988, %v3988
      %v4044 = vunpack.c.l.s4 1983009808
      %v4045 = vunpack.c.0.s8 %v4044
      %v4046 = vlaneseq
      %v4047 = vshrl.u32 %v4046, 7
      %v4048 = vsub.s32 %v4045, %v4047
      %v4049 = vrot.slane %v4042, %v4048
      %v4051 = vunpack.c.l.s4 1983009808
      %v4052 = vunpack.c.0.s8 %v4051
      %v4053 = vlaneseq
      %v4054 = vshrl.u32 %v4053, 7
      %v4055 = vsub.s32 %v4052, %v4054
      %v4056 = vrot.slane %v3988, %v4055
      %v4057 = vcombine.low %v3989, %v3989
      %v4059 = vunpack.c.l.s4 1983009808
      %v4060 = vunpack.c.0.s8 %v4059
      %v4061 = vlaneseq
      %v4062 = vshrl.u32 %v4061, 7
      %v4063 = vsub.s32 %v4060, %v4062
      %v4064 = vrot.slane %v4057, %v4063
      %v4066 = vunpack.c.l.s4 1983009808
      %v4067 = vunpack.c.0.s8 %v4066
      %v4068 = vlaneseq
      %v4069 = vshrl.u32 %v4068, 7
      %v4070 = vsub.s32 %v4067, %v4069
      %v4071 = vrot.slane %v3989, %v4070
      %v4072 = vcombine.low %v3990, %v3990
      %v4074 = vunpack.c.l.s4 1983009808
      %v4075 = vunpack.c.0.s8 %v4074
      %v4076 = vlaneseq
      %v4077 = vshrl.u32 %v4076, 7
      %v4078 = vsub.s32 %v4075, %v4077
      %v4079 = vrot.slane %v4072, %v4078
      %4080 = vrot.lane.b32.xlu0 %v4004, 100
      %v4081 = vpop.permute.xlu0 %4080
      %4082 = vrot.lane.b32.xlu0 %v4011, 100
      %v4083 = vpop.permute.xlu0 %4082
      %4084 = vrot.lane.b32.xlu0 %v4019, 100
      %v4085 = vpop.permute.xlu0 %4084
      %4086 = vrot.lane.b32.xlu0 %v4026, 100
      %v4087 = vpop.permute.xlu0 %4086
      %4088 = vrot.lane.b32.xlu0 %v4034, 100
      %v4089 = vpop.permute.xlu0 %4088
      %4090 = vrot.lane.b32.xlu0 %v4041, 100
      %v4091 = vpop.permute.xlu0 %4090
      %4092 = vrot.lane.b32.xlu0 %v4049, 100
      %v4093 = vpop.permute.xlu0 %4092
      %4094 = vrot.lane.b32.xlu0 %v4056, 100
      %v4095 = vpop.permute.xlu0 %4094
      %4096 = vrot.lane.b32.xlu0 %v4064, 100
      %v4097 = vpop.permute.xlu0 %4096
      %4098 = vrot.lane.b32.xlu0 %v4071, 100
      %v4099 = vpop.permute.xlu0 %4098
      %4100 = vrot.lane.b32.xlu0 %v4079, 100
      %v4101 = vpop.permute.xlu0 %4100
      %v4102 = vrot.slane %v4081, 4
      %v4103 = vrot.slane %v4083, 4
      %v4104 = vrot.slane %v4085, 4
      %v4105 = vrot.slane %v4087, 4
      %v4106 = vrot.slane %v4089, 4
      %v4107 = vrot.slane %v4091, 4
      %v4108 = vrot.slane %v4093, 4
      %v4109 = vrot.slane %v4095, 4
      %v4110 = vrot.slane %v4097, 4
      %v4111 = vrot.slane %v4099, 4
      %v4112 = vrot.slane %v4101, 4
      %v4113 = vsel %vm405, %v4102, %v4103
      %vm4114 = vcmask 818176
      %v4115 = vsel %vm4114, %v4081, %v4113
      %v4116 = vsel %vm405, %v4103, %v4104
      %v4117 = vsel %vm4114, %v4083, %v4116
      %v4118 = vsel %vm405, %v4104, %v4105
      %v4119 = vsel %vm4114, %v4085, %v4118
      %v4120 = vsel %vm405, %v4105, %v4106
      %v4121 = vsel %vm4114, %v4087, %v4120
      %v4122 = vsel %vm405, %v4106, %v4107
      %v4123 = vsel %vm4114, %v4089, %v4122
      %v4124 = vsel %vm405, %v4107, %v4108
      %v4125 = vsel %vm4114, %v4091, %v4124
      %v4126 = vsel %vm405, %v4108, %v4109
      %v4127 = vsel %vm4114, %v4093, %v4126
      %v4128 = vsel %vm405, %v4109, %v4110
      %v4129 = vsel %vm4114, %v4095, %v4128
      %v4130 = vsel %vm405, %v4110, %v4111
      %v4131 = vsel %vm4114, %v4097, %v4130
      %v4132 = vsel %vm405, %v4111, %v4112
      %v4133 = vsel %vm4114, %v4099, %v4132
      %4144 = vst [vmem:[#allocation2 + $0x370] sm:$0xcc] %v4115
      %4145 = vst [vmem:[#allocation2 + $0x378] sm:$0xcc] %v4117
      %4146 = vst [vmem:[#allocation2 + $0x380] sm:$0xcc] %v4119
      %4147 = vst [vmem:[#allocation2 + $0x388] sm:$0xcc] %v4121
      %4148 = vst [vmem:[#allocation2 + $0x390] sm:$0xcc] %v4123
      %4149 = vst [vmem:[#allocation2 + $0x398] sm:$0xcc] %v4125
      %4150 = vst [vmem:[#allocation2 + $0x3a0] sm:$0xcc] %v4127
      %4151 = vst [vmem:[#allocation2 + $0x3a8] sm:$0xcc] %v4129
      %4152 = vst [vmem:[#allocation2 + $0x3b0] sm:$0xcc] %v4131
      %4153 = vst [vmem:[#allocation2 + $0x3b8] sm:$0xcc] %v4133
      %v4154 = vld [vmem:[%s165 + $0xa] sm:$0xff]
      %v4155 = vld [vmem:[%s165 + $0x12] sm:$0xff]
      %v4156 = vld [vmem:[%s165 + $0x1a] sm:$0xff]
      %v4157 = vld [vmem:[%s165 + $0x22] sm:$0xff]
      %v4158 = vld [vmem:[%s165 + $0x2a] sm:$0xff]
      %v4159 = vld [vmem:[%s165 + $0x32] sm:$0x3]
      %v4166 = vcombine.high %v4154, %v4154
      %v4168 = vunpack.c.l.s4 1983009808
      %v4169 = vunpack.c.0.s8 %v4168
      %v4170 = vlaneseq
      %v4171 = vshrl.u32 %v4170, 7
      %v4172 = vsub.s32 %v4169, %v4171
      %v4173 = vrot.slane %v4154, %v4172
      %v4175 = vunpack.c.l.s4 1983009808
      %v4176 = vunpack.c.0.s8 %v4175
      %v4177 = vlaneseq
      %v4178 = vshrl.u32 %v4177, 7
      %v4179 = vsub.s32 %v4176, %v4178
      %v4180 = vrot.slane %v4166, %v4179
      %v4181 = vcombine.high %v4155, %v4155
      %v4183 = vunpack.c.l.s4 1983009808
      %v4184 = vunpack.c.0.s8 %v4183
      %v4185 = vlaneseq
      %v4186 = vshrl.u32 %v4185, 7
      %v4187 = vsub.s32 %v4184, %v4186
      %v4188 = vrot.slane %v4155, %v4187
      %v4190 = vunpack.c.l.s4 1983009808
      %v4191 = vunpack.c.0.s8 %v4190
      %v4192 = vlaneseq
      %v4193 = vshrl.u32 %v4192, 7
      %v4194 = vsub.s32 %v4191, %v4193
      %v4195 = vrot.slane %v4181, %v4194
      %v4196 = vcombine.high %v4156, %v4156
      %v4198 = vunpack.c.l.s4 1983009808
      %v4199 = vunpack.c.0.s8 %v4198
      %v4200 = vlaneseq
      %v4201 = vshrl.u32 %v4200, 7
      %v4202 = vsub.s32 %v4199, %v4201
      %v4203 = vrot.slane %v4156, %v4202
      %v4205 = vunpack.c.l.s4 1983009808
      %v4206 = vunpack.c.0.s8 %v4205
      %v4207 = vlaneseq
      %v4208 = vshrl.u32 %v4207, 7
      %v4209 = vsub.s32 %v4206, %v4208
      %v4210 = vrot.slane %v4196, %v4209
      %v4211 = vcombine.high %v4157, %v4157
      %v4213 = vunpack.c.l.s4 1983009808
      %v4214 = vunpack.c.0.s8 %v4213
      %v4215 = vlaneseq
      %v4216 = vshrl.u32 %v4215, 7
      %v4217 = vsub.s32 %v4214, %v4216
      %v4218 = vrot.slane %v4157, %v4217
      %v4220 = vunpack.c.l.s4 1983009808
      %v4221 = vunpack.c.0.s8 %v4220
      %v4222 = vlaneseq
      %v4223 = vshrl.u32 %v4222, 7
      %v4224 = vsub.s32 %v4221, %v4223
      %v4225 = vrot.slane %v4211, %v4224
      %v4226 = vcombine.high %v4158, %v4158
      %v4228 = vunpack.c.l.s4 1983009808
      %v4229 = vunpack.c.0.s8 %v4228
      %v4230 = vlaneseq
      %v4231 = vshrl.u32 %v4230, 7
      %v4232 = vsub.s32 %v4229, %v4231
      %v4233 = vrot.slane %v4158, %v4232
      %v4235 = vunpack.c.l.s4 1983009808
      %v4236 = vunpack.c.0.s8 %v4235
      %v4237 = vlaneseq
      %v4238 = vshrl.u32 %v4237, 7
      %v4239 = vsub.s32 %v4236, %v4238
      %v4240 = vrot.slane %v4226, %v4239
      %v4242 = vunpack.c.l.s4 1983009808
      %v4243 = vunpack.c.0.s8 %v4242
      %v4244 = vlaneseq
      %v4245 = vshrl.u32 %v4244, 7
      %v4246 = vsub.s32 %v4243, %v4245
      %v4247 = vrot.slane %v4159, %v4246
      %4248 = vrot.lane.b32.xlu0 %v4173, 84
      %v4249 = vpop.permute.xlu0 %4248
      %4250 = vrot.lane.b32.xlu0 %v4180, 84
      %v4251 = vpop.permute.xlu0 %4250
      %4252 = vrot.lane.b32.xlu0 %v4188, 84
      %v4253 = vpop.permute.xlu0 %4252
      %4254 = vrot.lane.b32.xlu0 %v4195, 84
      %v4255 = vpop.permute.xlu0 %4254
      %4256 = vrot.lane.b32.xlu0 %v4203, 84
      %v4257 = vpop.permute.xlu0 %4256
      %4258 = vrot.lane.b32.xlu0 %v4210, 84
      %v4259 = vpop.permute.xlu0 %4258
      %4260 = vrot.lane.b32.xlu0 %v4218, 84
      %v4261 = vpop.permute.xlu0 %4260
      %4262 = vrot.lane.b32.xlu0 %v4225, 84
      %v4263 = vpop.permute.xlu0 %4262
      %4264 = vrot.lane.b32.xlu0 %v4233, 84
      %v4265 = vpop.permute.xlu0 %4264
      %4266 = vrot.lane.b32.xlu0 %v4240, 84
      %v4267 = vpop.permute.xlu0 %4266
      %4268 = vrot.lane.b32.xlu0 %v4247, 84
      %v4269 = vpop.permute.xlu0 %4268
      %v4270 = vrot.slane %v4249, 4
      %v4271 = vrot.slane %v4251, 4
      %v4272 = vrot.slane %v4253, 4
      %v4273 = vrot.slane %v4255, 4
      %v4274 = vrot.slane %v4257, 4
      %v4275 = vrot.slane %v4259, 4
      %v4276 = vrot.slane %v4261, 4
      %v4277 = vrot.slane %v4263, 4
      %v4278 = vrot.slane %v4265, 4
      %v4279 = vrot.slane %v4267, 4
      %v4280 = vrot.slane %v4269, 4
      %v4281 = vsel %vm405, %v4270, %v4271
      %vm4282 = vcmask 687104
      %v4283 = vsel %vm4282, %v4249, %v4281
      %v4284 = vsel %vm405, %v4271, %v4272
      %v4285 = vsel %vm4282, %v4251, %v4284
      %v4286 = vsel %vm405, %v4272, %v4273
      %v4287 = vsel %vm4282, %v4253, %v4286
      %v4288 = vsel %vm405, %v4273, %v4274
      %v4289 = vsel %vm4282, %v4255, %v4288
      %v4290 = vsel %vm405, %v4274, %v4275
      %v4291 = vsel %vm4282, %v4257, %v4290
      %v4292 = vsel %vm405, %v4275, %v4276
      %v4293 = vsel %vm4282, %v4259, %v4292
      %v4294 = vsel %vm405, %v4276, %v4277
      %v4295 = vsel %vm4282, %v4261, %v4294
      %v4296 = vsel %vm405, %v4277, %v4278
      %v4297 = vsel %vm4282, %v4263, %v4296
      %v4298 = vsel %vm405, %v4278, %v4279
      %v4299 = vsel %vm4282, %v4265, %v4298
      %v4300 = vsel %vm405, %v4279, %v4280
      %v4301 = vsel %vm4282, %v4267, %v4300
      %4312 = vst [vmem:[#allocation2 + $0x3c0] sm:$0x33] %v4283
      %4313 = vst [vmem:[#allocation2 + $0x3c8] sm:$0x33] %v4285
      %4314 = vst [vmem:[#allocation2 + $0x3d0] sm:$0x33] %v4287
      %4315 = vst [vmem:[#allocation2 + $0x3d8] sm:$0x33] %v4289
      %4316 = vst [vmem:[#allocation2 + $0x3e0] sm:$0x33] %v4291
      %4317 = vst [vmem:[#allocation2 + $0x3e8] sm:$0x33] %v4293
      %4318 = vst [vmem:[#allocation2 + $0x3f0] sm:$0x33] %v4295
      %4319 = vst [vmem:[#allocation2 + $0x3f8] sm:$0x33] %v4297
      %4320 = vst [vmem:[#allocation2 + $0x400] sm:$0x33] %v4299
      %4321 = vst [vmem:[#allocation2 + $0x408] sm:$0x33] %v4301
      %v4322 = vld [vmem:[%s165 + $0xa] sm:$0xff]
      %v4323 = vld [vmem:[%s165 + $0x12] sm:$0xff]
      %v4324 = vld [vmem:[%s165 + $0x1a] sm:$0xff]
      %v4325 = vld [vmem:[%s165 + $0x22] sm:$0xff]
      %v4326 = vld [vmem:[%s165 + $0x2a] sm:$0xff]
      %v4327 = vld [vmem:[%s165 + $0x32] sm:$0x3]
      %v4334 = vcombine.low %v4322, %v4322
      %v4336 = vunpack.c.l.s4 1983009808
      %v4337 = vunpack.c.0.s8 %v4336
      %v4338 = vlaneseq
      %v4339 = vshrl.u32 %v4338, 7
      %v4340 = vsub.s32 %v4337, %v4339
      %v4341 = vrot.slane %v4334, %v4340
      %v4343 = vunpack.c.l.s4 1983009808
      %v4344 = vunpack.c.0.s8 %v4343
      %v4345 = vlaneseq
      %v4346 = vshrl.u32 %v4345, 7
      %v4347 = vsub.s32 %v4344, %v4346
      %v4348 = vrot.slane %v4322, %v4347
      %v4349 = vcombine.low %v4323, %v4323
      %v4351 = vunpack.c.l.s4 1983009808
      %v4352 = vunpack.c.0.s8 %v4351
      %v4353 = vlaneseq
      %v4354 = vshrl.u32 %v4353, 7
      %v4355 = vsub.s32 %v4352, %v4354
      %v4356 = vrot.slane %v4349, %v4355
      %v4358 = vunpack.c.l.s4 1983009808
      %v4359 = vunpack.c.0.s8 %v4358
      %v4360 = vlaneseq
      %v4361 = vshrl.u32 %v4360, 7
      %v4362 = vsub.s32 %v4359, %v4361
      %v4363 = vrot.slane %v4323, %v4362
      %v4364 = vcombine.low %v4324, %v4324
      %v4366 = vunpack.c.l.s4 1983009808
      %v4367 = vunpack.c.0.s8 %v4366
      %v4368 = vlaneseq
      %v4369 = vshrl.u32 %v4368, 7
      %v4370 = vsub.s32 %v4367, %v4369
      %v4371 = vrot.slane %v4364, %v4370
      %v4373 = vunpack.c.l.s4 1983009808
      %v4374 = vunpack.c.0.s8 %v4373
      %v4375 = vlaneseq
      %v4376 = vshrl.u32 %v4375, 7
      %v4377 = vsub.s32 %v4374, %v4376
      %v4378 = vrot.slane %v4324, %v4377
      %v4379 = vcombine.low %v4325, %v4325
      %v4381 = vunpack.c.l.s4 1983009808
      %v4382 = vunpack.c.0.s8 %v4381
      %v4383 = vlaneseq
      %v4384 = vshrl.u32 %v4383, 7
      %v4385 = vsub.s32 %v4382, %v4384
      %v4386 = vrot.slane %v4379, %v4385
      %v4388 = vunpack.c.l.s4 1983009808
      %v4389 = vunpack.c.0.s8 %v4388
      %v4390 = vlaneseq
      %v4391 = vshrl.u32 %v4390, 7
      %v4392 = vsub.s32 %v4389, %v4391
      %v4393 = vrot.slane %v4325, %v4392
      %v4394 = vcombine.low %v4326, %v4326
      %v4396 = vunpack.c.l.s4 1983009808
      %v4397 = vunpack.c.0.s8 %v4396
      %v4398 = vlaneseq
      %v4399 = vshrl.u32 %v4398, 7
      %v4400 = vsub.s32 %v4397, %v4399
      %v4401 = vrot.slane %v4394, %v4400
      %v4403 = vunpack.c.l.s4 1983009808
      %v4404 = vunpack.c.0.s8 %v4403
      %v4405 = vlaneseq
      %v4406 = vshrl.u32 %v4405, 7
      %v4407 = vsub.s32 %v4404, %v4406
      %v4408 = vrot.slane %v4326, %v4407
      %v4409 = vcombine.low %v4327, %v4327
      %v4411 = vunpack.c.l.s4 1983009808
      %v4412 = vunpack.c.0.s8 %v4411
      %v4413 = vlaneseq
      %v4414 = vshrl.u32 %v4413, 7
      %v4415 = vsub.s32 %v4412, %v4414
      %v4416 = vrot.slane %v4409, %v4415
      %4417 = vrot.lane.b32.xlu0 %v4341, 83
      %v4418 = vpop.permute.xlu0 %4417
      %4419 = vrot.lane.b32.xlu0 %v4348, 83
      %v4420 = vpop.permute.xlu0 %4419
      %4421 = vrot.lane.b32.xlu0 %v4356, 83
      %v4422 = vpop.permute.xlu0 %4421
      %4423 = vrot.lane.b32.xlu0 %v4363, 83
      %v4424 = vpop.permute.xlu0 %4423
      %4425 = vrot.lane.b32.xlu0 %v4371, 83
      %v4426 = vpop.permute.xlu0 %4425
      %4427 = vrot.lane.b32.xlu0 %v4378, 83
      %v4428 = vpop.permute.xlu0 %4427
      %4429 = vrot.lane.b32.xlu0 %v4386, 83
      %v4430 = vpop.permute.xlu0 %4429
      %4431 = vrot.lane.b32.xlu0 %v4393, 83
      %v4432 = vpop.permute.xlu0 %4431
      %4433 = vrot.lane.b32.xlu0 %v4401, 83
      %v4434 = vpop.permute.xlu0 %4433
      %4435 = vrot.lane.b32.xlu0 %v4408, 83
      %v4436 = vpop.permute.xlu0 %4435
      %4437 = vrot.lane.b32.xlu0 %v4416, 83
      %v4438 = vpop.permute.xlu0 %4437
      %v4439 = vrot.slane %v4418, 4
      %v4440 = vrot.slane %v4420, 4
      %v4441 = vrot.slane %v4422, 4
      %v4442 = vrot.slane %v4424, 4
      %v4443 = vrot.slane %v4426, 4
      %v4444 = vrot.slane %v4428, 4
      %v4445 = vrot.slane %v4430, 4
      %v4446 = vrot.slane %v4432, 4
      %v4447 = vrot.slane %v4434, 4
      %v4448 = vrot.slane %v4436, 4
      %v4449 = vrot.slane %v4438, 4
      %v4450 = vsel %vm405, %v4439, %v4440
      %vm4451 = vcmask 678912
      %v4452 = vsel %vm4451, %v4418, %v4450
      %v4453 = vsel %vm405, %v4440, %v4441
      %v4454 = vsel %vm4451, %v4420, %v4453
      %v4455 = vsel %vm405, %v4441, %v4442
      %v4456 = vsel %vm4451, %v4422, %v4455
      %v4457 = vsel %vm405, %v4442, %v4443
      %v4458 = vsel %vm4451, %v4424, %v4457
      %v4459 = vsel %vm405, %v4443, %v4444
      %v4460 = vsel %vm4451, %v4426, %v4459
      %v4461 = vsel %vm405, %v4444, %v4445
      %v4462 = vsel %vm4451, %v4428, %v4461
      %v4463 = vsel %vm405, %v4445, %v4446
      %v4464 = vsel %vm4451, %v4430, %v4463
      %v4465 = vsel %vm405, %v4446, %v4447
      %v4466 = vsel %vm4451, %v4432, %v4465
      %v4467 = vsel %vm405, %v4447, %v4448
      %v4468 = vsel %vm4451, %v4434, %v4467
      %v4469 = vsel %vm405, %v4448, %v4449
      %v4470 = vsel %vm4451, %v4436, %v4469
      %4481 = vst [vmem:[#allocation2 + $0x3c0] sm:$0xcc] %v4452
      %4482 = vst [vmem:[#allocation2 + $0x3c8] sm:$0xcc] %v4454
      %4483 = vst [vmem:[#allocation2 + $0x3d0] sm:$0xcc] %v4456
      %4484 = vst [vmem:[#allocation2 + $0x3d8] sm:$0xcc] %v4458
      %4485 = vst [vmem:[#allocation2 + $0x3e0] sm:$0xcc] %v4460
      %4486 = vst [vmem:[#allocation2 + $0x3e8] sm:$0xcc] %v4462
      %4487 = vst [vmem:[#allocation2 + $0x3f0] sm:$0xcc] %v4464
      %4488 = vst [vmem:[#allocation2 + $0x3f8] sm:$0xcc] %v4466
      %4489 = vst [vmem:[#allocation2 + $0x400] sm:$0xcc] %v4468
      %4490 = vst [vmem:[#allocation2 + $0x408] sm:$0xcc] %v4470
      %v4491 = vld [vmem:[%s165 + $0xa] sm:$0xff]
      %v4492 = vld [vmem:[%s165 + $0x12] sm:$0xff]
      %v4493 = vld [vmem:[%s165 + $0x1a] sm:$0xff]
      %v4494 = vld [vmem:[%s165 + $0x22] sm:$0xff]
      %v4495 = vld [vmem:[%s165 + $0x2a] sm:$0xff]
      %v4496 = vld [vmem:[%s165 + $0x32] sm:$0x3]
      %v4503 = vcombine.high %v4491, %v4491
      %v4505 = vunpack.c.l.s4 1983009808
      %v4506 = vunpack.c.0.s8 %v4505
      %v4507 = vlaneseq
      %v4508 = vshrl.u32 %v4507, 7
      %v4509 = vsub.s32 %v4506, %v4508
      %v4510 = vrot.slane %v4491, %v4509
      %v4512 = vunpack.c.l.s4 1983009808
      %v4513 = vunpack.c.0.s8 %v4512
      %v4514 = vlaneseq
      %v4515 = vshrl.u32 %v4514, 7
      %v4516 = vsub.s32 %v4513, %v4515
      %v4517 = vrot.slane %v4503, %v4516
      %v4518 = vcombine.high %v4492, %v4492
      %v4520 = vunpack.c.l.s4 1983009808
      %v4521 = vunpack.c.0.s8 %v4520
      %v4522 = vlaneseq
      %v4523 = vshrl.u32 %v4522, 7
      %v4524 = vsub.s32 %v4521, %v4523
      %v4525 = vrot.slane %v4492, %v4524
      %v4527 = vunpack.c.l.s4 1983009808
      %v4528 = vunpack.c.0.s8 %v4527
      %v4529 = vlaneseq
      %v4530 = vshrl.u32 %v4529, 7
      %v4531 = vsub.s32 %v4528, %v4530
      %v4532 = vrot.slane %v4518, %v4531
      %v4533 = vcombine.high %v4493, %v4493
      %v4535 = vunpack.c.l.s4 1983009808
      %v4536 = vunpack.c.0.s8 %v4535
      %v4537 = vlaneseq
      %v4538 = vshrl.u32 %v4537, 7
      %v4539 = vsub.s32 %v4536, %v4538
      %v4540 = vrot.slane %v4493, %v4539
      %v4542 = vunpack.c.l.s4 1983009808
      %v4543 = vunpack.c.0.s8 %v4542
      %v4544 = vlaneseq
      %v4545 = vshrl.u32 %v4544, 7
      %v4546 = vsub.s32 %v4543, %v4545
      %v4547 = vrot.slane %v4533, %v4546
      %v4548 = vcombine.high %v4494, %v4494
      %v4550 = vunpack.c.l.s4 1983009808
      %v4551 = vunpack.c.0.s8 %v4550
      %v4552 = vlaneseq
      %v4553 = vshrl.u32 %v4552, 7
      %v4554 = vsub.s32 %v4551, %v4553
      %v4555 = vrot.slane %v4494, %v4554
      %v4557 = vunpack.c.l.s4 1983009808
      %v4558 = vunpack.c.0.s8 %v4557
      %v4559 = vlaneseq
      %v4560 = vshrl.u32 %v4559, 7
      %v4561 = vsub.s32 %v4558, %v4560
      %v4562 = vrot.slane %v4548, %v4561
      %v4563 = vcombine.high %v4495, %v4495
      %v4565 = vunpack.c.l.s4 1983009808
      %v4566 = vunpack.c.0.s8 %v4565
      %v4567 = vlaneseq
      %v4568 = vshrl.u32 %v4567, 7
      %v4569 = vsub.s32 %v4566, %v4568
      %v4570 = vrot.slane %v4495, %v4569
      %v4572 = vunpack.c.l.s4 1983009808
      %v4573 = vunpack.c.0.s8 %v4572
      %v4574 = vlaneseq
      %v4575 = vshrl.u32 %v4574, 7
      %v4576 = vsub.s32 %v4573, %v4575
      %v4577 = vrot.slane %v4563, %v4576
      %v4579 = vunpack.c.l.s4 1983009808
      %v4580 = vunpack.c.0.s8 %v4579
      %v4581 = vlaneseq
      %v4582 = vshrl.u32 %v4581, 7
      %v4583 = vsub.s32 %v4580, %v4582
      %v4584 = vrot.slane %v4496, %v4583
      %4585 = vrot.lane.b32.xlu0 %v4510, 82
      %v4586 = vpop.permute.xlu0 %4585
      %4587 = vrot.lane.b32.xlu0 %v4517, 82
      %v4588 = vpop.permute.xlu0 %4587
      %4589 = vrot.lane.b32.xlu0 %v4525, 82
      %v4590 = vpop.permute.xlu0 %4589
      %4591 = vrot.lane.b32.xlu0 %v4532, 82
      %v4592 = vpop.permute.xlu0 %4591
      %4593 = vrot.lane.b32.xlu0 %v4540, 82
      %v4594 = vpop.permute.xlu0 %4593
      %4595 = vrot.lane.b32.xlu0 %v4547, 82
      %v4596 = vpop.permute.xlu0 %4595
      %4597 = vrot.lane.b32.xlu0 %v4555, 82
      %v4598 = vpop.permute.xlu0 %4597
      %4599 = vrot.lane.b32.xlu0 %v4562, 82
      %v4600 = vpop.permute.xlu0 %4599
      %4601 = vrot.lane.b32.xlu0 %v4570, 82
      %v4602 = vpop.permute.xlu0 %4601
      %4603 = vrot.lane.b32.xlu0 %v4577, 82
      %v4604 = vpop.permute.xlu0 %4603
      %4605 = vrot.lane.b32.xlu0 %v4584, 82
      %v4606 = vpop.permute.xlu0 %4605
      %v4607 = vrot.slane %v4586, 4
      %v4608 = vrot.slane %v4588, 4
      %v4609 = vrot.slane %v4590, 4
      %v4610 = vrot.slane %v4592, 4
      %v4611 = vrot.slane %v4594, 4
      %v4612 = vrot.slane %v4596, 4
      %v4613 = vrot.slane %v4598, 4
      %v4614 = vrot.slane %v4600, 4
      %v4615 = vrot.slane %v4602, 4
      %v4616 = vrot.slane %v4604, 4
      %v4617 = vrot.slane %v4606, 4
      %v4618 = vsel %vm405, %v4607, %v4608
      %vm4619 = vcmask 670720
      %v4620 = vsel %vm4619, %v4586, %v4618
      %v4621 = vsel %vm405, %v4608, %v4609
      %v4622 = vsel %vm4619, %v4588, %v4621
      %v4623 = vsel %vm405, %v4609, %v4610
      %v4624 = vsel %vm4619, %v4590, %v4623
      %v4625 = vsel %vm405, %v4610, %v4611
      %v4626 = vsel %vm4619, %v4592, %v4625
      %v4627 = vsel %vm405, %v4611, %v4612
      %v4628 = vsel %vm4619, %v4594, %v4627
      %v4629 = vsel %vm405, %v4612, %v4613
      %v4630 = vsel %vm4619, %v4596, %v4629
      %v4631 = vsel %vm405, %v4613, %v4614
      %v4632 = vsel %vm4619, %v4598, %v4631
      %v4633 = vsel %vm405, %v4614, %v4615
      %v4634 = vsel %vm4619, %v4600, %v4633
      %v4635 = vsel %vm405, %v4615, %v4616
      %v4636 = vsel %vm4619, %v4602, %v4635
      %v4637 = vsel %vm405, %v4616, %v4617
      %v4638 = vsel %vm4619, %v4604, %v4637
      %4649 = vst [vmem:[#allocation2 + $0x410] sm:$0x33] %v4620
      %4650 = vst [vmem:[#allocation2 + $0x418] sm:$0x33] %v4622
      %4651 = vst [vmem:[#allocation2 + $0x420] sm:$0x33] %v4624
      %4652 = vst [vmem:[#allocation2 + $0x428] sm:$0x33] %v4626
      %4653 = vst [vmem:[#allocation2 + $0x430] sm:$0x33] %v4628
      %4654 = vst [vmem:[#allocation2 + $0x438] sm:$0x33] %v4630
      %4655 = vst [vmem:[#allocation2 + $0x440] sm:$0x33] %v4632
      %4656 = vst [vmem:[#allocation2 + $0x448] sm:$0x33] %v4634
      %4657 = vst [vmem:[#allocation2 + $0x450] sm:$0x33] %v4636
      %4658 = vst [vmem:[#allocation2 + $0x458] sm:$0x33] %v4638
      %v4659 = vld [vmem:[%s1] sm:$0xf]
      %v4660 = vld [vmem:[#allocation2] sm:$0xff]
      %v4661 = vld [vmem:[#allocation2 + $0x8] sm:$0xff]
      %v4662 = vld [vmem:[#allocation2 + $0x10] sm:$0xff]
      %v4663 = vld [vmem:[#allocation2 + $0x18] sm:$0xff]
      %v4664 = vld [vmem:[#allocation2 + $0x20] sm:$0xff]
      %v4665 = vld [vmem:[#allocation2 + $0x28] sm:$0xff]
      %v4666 = vld [vmem:[#allocation2 + $0x30] sm:$0xff]
      %v4667 = vld [vmem:[#allocation2 + $0x38] sm:$0xff]
      %v4668 = vld [vmem:[#allocation2 + $0x40] sm:$0xff]
      %v4669 = vld [vmem:[#allocation2 + $0x48] sm:$0xff]
      %v4670 = vld [vmem:[#allocation2 + $0x50] sm:$0xff]
      %v4671 = vld [vmem:[#allocation2 + $0x58] sm:$0xff]
      %v4672 = vld [vmem:[#allocation2 + $0x60] sm:$0xff]
      %v4673 = vld [vmem:[#allocation2 + $0x68] sm:$0xff]
      %v4674 = vld [vmem:[#allocation2 + $0x70] sm:$0xff]
      %v4675 = vld [vmem:[#allocation2 + $0x78] sm:$0xff]
      %v4676 = vld [vmem:[#allocation2 + $0x80] sm:$0xff]
      %v4677 = vld [vmem:[#allocation2 + $0x88] sm:$0xff]
      %v4678 = vld [vmem:[#allocation2 + $0x90] sm:$0xff]
      %v4679 = vld [vmem:[#allocation2 + $0x98] sm:$0xff]
      %v4680 = vld [vmem:[#allocation2 + $0xa0] sm:$0xff]
      %v4681 = vld [vmem:[#allocation2 + $0xa8] sm:$0xff]
      %v4682 = vld [vmem:[#allocation2 + $0xb0] sm:$0xff]
      %v4683 = vld [vmem:[#allocation2 + $0xb8] sm:$0xff]
      %v4684 = vld [vmem:[#allocation2 + $0xc0] sm:$0xff]
      %v4685 = vld [vmem:[#allocation2 + $0xc8] sm:$0xff]
      %v4686 = vld [vmem:[#allocation2 + $0xd0] sm:$0xff]
      %v4687 = vld [vmem:[#allocation2 + $0xd8] sm:$0xff]
      %v4688 = vld [vmem:[#allocation2 + $0xe0] sm:$0xff]
      %v4689 = vld [vmem:[#allocation2 + $0xe8] sm:$0xff]
      %v4690 = vld [vmem:[#allocation2 + $0xf0] sm:$0xff]
      %v4691 = vld [vmem:[#allocation2 + $0xf8] sm:$0xff]
      %v4692 = vld [vmem:[#allocation2 + $0x100] sm:$0xff]
      %v4693 = vld [vmem:[#allocation2 + $0x108] sm:$0xff]
      %v4694 = vld [vmem:[#allocation2 + $0x110] sm:$0xff]
      %v4695 = vld [vmem:[#allocation2 + $0x118] sm:$0xff]
      %v4696 = vld [vmem:[#allocation2 + $0x120] sm:$0xff]
      %v4697 = vld [vmem:[#allocation2 + $0x128] sm:$0xff]
      %v4698 = vld [vmem:[#allocation2 + $0x130] sm:$0xff]
      %v4699 = vld [vmem:[#allocation2 + $0x138] sm:$0xff]
      %v4700 = vld [vmem:[#allocation2 + $0x140] sm:$0xff]
      %v4701 = vld [vmem:[#allocation2 + $0x148] sm:$0xff]
      %v4702 = vld [vmem:[#allocation2 + $0x150] sm:$0xff]
      %v4703 = vld [vmem:[#allocation2 + $0x158] sm:$0xff]
      %v4704 = vld [vmem:[#allocation2 + $0x160] sm:$0xff]
      %v4705 = vld [vmem:[#allocation2 + $0x168] sm:$0xff]
      %v4706 = vld [vmem:[#allocation2 + $0x170] sm:$0xff]
      %v4707 = vld [vmem:[#allocation2 + $0x178] sm:$0xff]
      %v4708 = vld [vmem:[#allocation2 + $0x180] sm:$0xff]
      %v4709 = vld [vmem:[#allocation2 + $0x188] sm:$0xff]
      %v4710 = vld [vmem:[#allocation2 + $0x190] sm:$0xff]
      %v4711 = vld [vmem:[#allocation2 + $0x198] sm:$0xff]
      %v4712 = vld [vmem:[#allocation2 + $0x1a0] sm:$0xff]
      %v4713 = vld [vmem:[#allocation2 + $0x1a8] sm:$0xff]
      %v4714 = vld [vmem:[#allocation2 + $0x1b0] sm:$0xff]
      %v4715 = vld [vmem:[#allocation2 + $0x1b8] sm:$0xff]
      %v4716 = vld [vmem:[#allocation2 + $0x1c0] sm:$0xff]
      %v4717 = vld [vmem:[#allocation2 + $0x1c8] sm:$0xff]
      %v4718 = vld [vmem:[#allocation2 + $0x1d0] sm:$0xff]
      %v4719 = vld [vmem:[#allocation2 + $0x1d8] sm:$0xff]
      %v4720 = vld [vmem:[#allocation2 + $0x1e0] sm:$0xff]
      %v4721 = vld [vmem:[#allocation2 + $0x1e8] sm:$0xff]
      %v4722 = vld [vmem:[#allocation2 + $0x1f0] sm:$0xff]
      %v4723 = vld [vmem:[#allocation2 + $0x1f8] sm:$0xff]
      %v4724 = vld [vmem:[#allocation2 + $0x200] sm:$0xff]
      %v4725 = vld [vmem:[#allocation2 + $0x208] sm:$0xff]
      %v4726 = vld [vmem:[#allocation2 + $0x210] sm:$0xff]
      %v4727 = vld [vmem:[#allocation2 + $0x218] sm:$0xff]
      %v4728 = vld [vmem:[#allocation2 + $0x220] sm:$0xff]
      %v4729 = vld [vmem:[#allocation2 + $0x228] sm:$0xff]
      %v4730 = vld [vmem:[#allocation2 + $0x230] sm:$0xff]
      %v4731 = vld [vmem:[#allocation2 + $0x238] sm:$0xff]
      %v4732 = vld [vmem:[#allocation2 + $0x240] sm:$0xff]
      %v4733 = vld [vmem:[#allocation2 + $0x248] sm:$0xff]
      %v4734 = vld [vmem:[#allocation2 + $0x250] sm:$0xff]
      %v4735 = vld [vmem:[#allocation2 + $0x258] sm:$0xff]
      %v4736 = vld [vmem:[#allocation2 + $0x260] sm:$0xff]
      %v4737 = vld [vmem:[#allocation2 + $0x268] sm:$0xff]
      %v4738 = vld [vmem:[#allocation2 + $0x270] sm:$0xff]
      %v4739 = vld [vmem:[#allocation2 + $0x278] sm:$0xff]
      %v4740 = vld [vmem:[#allocation2 + $0x280] sm:$0xff]
      %v4741 = vld [vmem:[#allocation2 + $0x288] sm:$0xff]
      %v4742 = vld [vmem:[#allocation2 + $0x290] sm:$0xff]
      %v4743 = vld [vmem:[#allocation2 + $0x298] sm:$0xff]
      %v4744 = vld [vmem:[#allocation2 + $0x2a0] sm:$0xff]
      %v4745 = vld [vmem:[#allocation2 + $0x2a8] sm:$0xff]
      %v4746 = vld [vmem:[#allocation2 + $0x2b0] sm:$0xff]
      %v4747 = vld [vmem:[#allocation2 + $0x2b8] sm:$0xff]
      %v4748 = vld [vmem:[#allocation2 + $0x2c0] sm:$0xff]
      %v4749 = vld [vmem:[#allocation2 + $0x2c8] sm:$0xff]
      %v4750 = vld [vmem:[#allocation2 + $0x2d0] sm:$0xff]
      %v4751 = vld [vmem:[#allocation2 + $0x2d8] sm:$0xff]
      %v4752 = vld [vmem:[#allocation2 + $0x2e0] sm:$0xff]
      %v4753 = vld [vmem:[#allocation2 + $0x2e8] sm:$0xff]
      %v4754 = vld [vmem:[#allocation2 + $0x2f0] sm:$0xff]
      %v4755 = vld [vmem:[#allocation2 + $0x2f8] sm:$0xff]
      %v4756 = vld [vmem:[#allocation2 + $0x300] sm:$0xff]
      %v4757 = vld [vmem:[#allocation2 + $0x308] sm:$0xff]
      %v4758 = vld [vmem:[#allocation2 + $0x310] sm:$0xff]
      %v4759 = vld [vmem:[#allocation2 + $0x318] sm:$0xff]
      %v4760 = vld [vmem:[#allocation2 + $0x320] sm:$0xff]
      %v4761 = vld [vmem:[#allocation2 + $0x328] sm:$0xff]
      %v4762 = vld [vmem:[#allocation2 + $0x330] sm:$0xff]
      %v4763 = vld [vmem:[#allocation2 + $0x338] sm:$0xff]
      %v4764 = vld [vmem:[#allocation2 + $0x340] sm:$0xff]
      %v4765 = vld [vmem:[#allocation2 + $0x348] sm:$0xff]
      %v4766 = vld [vmem:[#allocation2 + $0x350] sm:$0xff]
      %v4767 = vld [vmem:[#allocation2 + $0x358] sm:$0xff]
      %v4768 = vld [vmem:[#allocation2 + $0x360] sm:$0xff]
      %v4769 = vld [vmem:[#allocation2 + $0x368] sm:$0xff]
      %v4770 = vld [vmem:[#allocation2 + $0x370] sm:$0xff]
      %v4771 = vld [vmem:[#allocation2 + $0x378] sm:$0xff]
      %v4772 = vld [vmem:[#allocation2 + $0x380] sm:$0xff]
      %v4773 = vld [vmem:[#allocation2 + $0x388] sm:$0xff]
      %v4774 = vld [vmem:[#allocation2 + $0x390] sm:$0xff]
      %v4775 = vld [vmem:[#allocation2 + $0x398] sm:$0xff]
      %v4776 = vld [vmem:[#allocation2 + $0x3a0] sm:$0xff]
      %v4777 = vld [vmem:[#allocation2 + $0x3a8] sm:$0xff]
      %v4778 = vld [vmem:[#allocation2 + $0x3b0] sm:$0xff]
      %v4779 = vld [vmem:[#allocation2 + $0x3b8] sm:$0xff]
      %v4780 = vld [vmem:[#allocation2 + $0x3c0] sm:$0xff]
      %v4781 = vld [vmem:[#allocation2 + $0x3c8] sm:$0xff]
      %v4782 = vld [vmem:[#allocation2 + $0x3d0] sm:$0xff]
      %v4783 = vld [vmem:[#allocation2 + $0x3d8] sm:$0xff]
      %v4784 = vld [vmem:[#allocation2 + $0x3e0] sm:$0xff]
      %v4785 = vld [vmem:[#allocation2 + $0x3e8] sm:$0xff]
      %v4786 = vld [vmem:[#allocation2 + $0x3f0] sm:$0xff]
      %v4787 = vld [vmem:[#allocation2 + $0x3f8] sm:$0xff]
      %v4788 = vld [vmem:[#allocation2 + $0x400] sm:$0xff]
      %v4789 = vld [vmem:[#allocation2 + $0x408] sm:$0xff]
      %v4790 = vld [vmem:[#allocation2 + $0x410] sm:$0x33]
      %v4791 = vld [vmem:[#allocation2 + $0x418] sm:$0x33]
      %v4792 = vld [vmem:[#allocation2 + $0x420] sm:$0x33]
      %v4793 = vld [vmem:[#allocation2 + $0x428] sm:$0x33]
      %v4794 = vld [vmem:[#allocation2 + $0x430] sm:$0x33]
      %v4795 = vld [vmem:[#allocation2 + $0x438] sm:$0x33]
      %v4796 = vld [vmem:[#allocation2 + $0x440] sm:$0x33]
      %v4797 = vld [vmem:[#allocation2 + $0x448] sm:$0x33]
      %v4798 = vld [vmem:[#allocation2 + $0x450] sm:$0x33]
      %v4799 = vld [vmem:[#allocation2 + $0x458] sm:$0x33]
      %v4800 = vld [vmem:[%s2] sm:$0xff]
      %v4801 = vld [vmem:[%s2 + $0x8] sm:$0xff]
      %v4802 = vld [vmem:[%s2 + $0x10] sm:$0xff]
      %v4803 = vld [vmem:[%s2 + $0x18] sm:$0xff]
      %v4804 = vld [vmem:[%s2 + $0x20] sm:$0xff]
      %v4805 = vld [vmem:[%s2 + $0x28] sm:$0xff]
      %v4806 = vld [vmem:[%s2 + $0x30] sm:$0xff]
      %v4807 = vld [vmem:[%s2 + $0x38] sm:$0xff]
      %v4808 = vld [vmem:[%s2 + $0x40] sm:$0xff]
      %v4809 = vld [vmem:[%s2 + $0x48] sm:$0xff]
      %v4810 = vld [vmem:[%s2 + $0x50] sm:$0xff]
      %v4811 = vld [vmem:[%s2 + $0x58] sm:$0xff]
      %v4812 = vld [vmem:[%s2 + $0x60] sm:$0xff]
      %v4813 = vld [vmem:[%s2 + $0x68] sm:$0xff]
      %v4814 = vld [vmem:[%s2 + $0x70] sm:$0xff]
      %v4815 = vld [vmem:[%s2 + $0x78] sm:$0xff]
      %v4816 = vld [vmem:[%s2 + $0x80] sm:$0xff]
      %v4817 = vld [vmem:[%s2 + $0x88] sm:$0xff]
      %v4818 = vld [vmem:[%s2 + $0x90] sm:$0xff]
      %v4819 = vld [vmem:[%s2 + $0x98] sm:$0xff]
      %v4960 = vunpack.c.l.b16 %v4660
      %v4961 = vunpack.c.h.b16 %v4660
      %v4962 = vunpack.c.l.b16 %v4661
      %v4963 = vunpack.c.h.b16 %v4661
      %v4964 = vunpack.c.l.b16 %v4662
      %v4965 = vunpack.c.h.b16 %v4662
      %v4966 = vunpack.c.l.b16 %v4663
      %v4967 = vunpack.c.h.b16 %v4663
      %v4968 = vunpack.c.l.b16 %v4664
      %v4969 = vunpack.c.h.b16 %v4664
      %v4970 = vunpack.c.l.b16 %v4665
      %v4971 = vunpack.c.h.b16 %v4665
      %v4972 = vunpack.c.l.b16 %v4666
      %v4973 = vunpack.c.h.b16 %v4666
      %v4974 = vunpack.c.l.b16 %v4667
      %v4975 = vunpack.c.h.b16 %v4667
      %v4976 = vunpack.c.l.b16 %v4668
      %v4977 = vunpack.c.h.b16 %v4668
      %v4978 = vunpack.c.l.b16 %v4669
      %v4979 = vunpack.c.h.b16 %v4669
      %v4980 = vunpack.c.l.b16 %v4670
      %v4981 = vunpack.c.h.b16 %v4670
      %v4982 = vunpack.c.l.b16 %v4671
      %v4983 = vunpack.c.h.b16 %v4671
      %v4984 = vunpack.c.l.b16 %v4672
      %v4985 = vunpack.c.h.b16 %v4672
      %v4986 = vunpack.c.l.b16 %v4673
      %v4987 = vunpack.c.h.b16 %v4673
      %v4988 = vunpack.c.l.b16 %v4674
      %v4989 = vunpack.c.h.b16 %v4674
      %v4990 = vunpack.c.l.b16 %v4675
      %v4991 = vunpack.c.h.b16 %v4675
      %v4992 = vunpack.c.l.b16 %v4676
      %v4993 = vunpack.c.h.b16 %v4676
      %v4994 = vunpack.c.l.b16 %v4677
      %v4995 = vunpack.c.h.b16 %v4677
      %v4996 = vunpack.c.l.b16 %v4678
      %v4997 = vunpack.c.h.b16 %v4678
      %v4998 = vunpack.c.l.b16 %v4679
      %v4999 = vunpack.c.h.b16 %v4679
      %v5000 = vunpack.c.l.b16 %v4680
      %v5001 = vunpack.c.h.b16 %v4680
      %v5002 = vunpack.c.l.b16 %v4681
      %v5003 = vunpack.c.h.b16 %v4681
      %v5004 = vunpack.c.l.b16 %v4682
      %v5005 = vunpack.c.h.b16 %v4682
      %v5006 = vunpack.c.l.b16 %v4683
      %v5007 = vunpack.c.h.b16 %v4683
      %v5008 = vunpack.c.l.b16 %v4684
      %v5009 = vunpack.c.h.b16 %v4684
      %v5010 = vunpack.c.l.b16 %v4685
      %v5011 = vunpack.c.h.b16 %v4685
      %v5012 = vunpack.c.l.b16 %v4686
      %v5013 = vunpack.c.h.b16 %v4686
      %v5014 = vunpack.c.l.b16 %v4687
      %v5015 = vunpack.c.h.b16 %v4687
      %v5016 = vunpack.c.l.b16 %v4688
      %v5017 = vunpack.c.h.b16 %v4688
      %v5018 = vunpack.c.l.b16 %v4689
      %v5019 = vunpack.c.h.b16 %v4689
      %v5020 = vunpack.c.l.b16 %v4690
      %v5021 = vunpack.c.h.b16 %v4690
      %v5022 = vunpack.c.l.b16 %v4691
      %v5023 = vunpack.c.h.b16 %v4691
      %v5024 = vunpack.c.l.b16 %v4692
      %v5025 = vunpack.c.h.b16 %v4692
      %v5026 = vunpack.c.l.b16 %v4693
      %v5027 = vunpack.c.h.b16 %v4693
      %v5028 = vunpack.c.l.b16 %v4694
      %v5029 = vunpack.c.h.b16 %v4694
      %v5030 = vunpack.c.l.b16 %v4695
      %v5031 = vunpack.c.h.b16 %v4695
      %v5032 = vunpack.c.l.b16 %v4696
      %v5033 = vunpack.c.h.b16 %v4696
      %v5034 = vunpack.c.l.b16 %v4697
      %v5035 = vunpack.c.h.b16 %v4697
      %v5036 = vunpack.c.l.b16 %v4698
      %v5037 = vunpack.c.h.b16 %v4698
      %v5038 = vunpack.c.l.b16 %v4699
      %v5039 = vunpack.c.h.b16 %v4699
      %v5040 = vunpack.c.l.b16 %v4700
      %v5041 = vunpack.c.h.b16 %v4700
      %v5042 = vunpack.c.l.b16 %v4701
      %v5043 = vunpack.c.h.b16 %v4701
      %v5044 = vunpack.c.l.b16 %v4702
      %v5045 = vunpack.c.h.b16 %v4702
      %v5046 = vunpack.c.l.b16 %v4703
      %v5047 = vunpack.c.h.b16 %v4703
      %v5048 = vunpack.c.l.b16 %v4704
      %v5049 = vunpack.c.h.b16 %v4704
      %v5050 = vunpack.c.l.b16 %v4705
      %v5051 = vunpack.c.h.b16 %v4705
      %v5052 = vunpack.c.l.b16 %v4706
      %v5053 = vunpack.c.h.b16 %v4706
      %v5054 = vunpack.c.l.b16 %v4707
      %v5055 = vunpack.c.h.b16 %v4707
      %v5056 = vunpack.c.l.b16 %v4708
      %v5057 = vunpack.c.h.b16 %v4708
      %v5058 = vunpack.c.l.b16 %v4709
      %v5059 = vunpack.c.h.b16 %v4709
      %v5060 = vunpack.c.l.b16 %v4710
      %v5061 = vunpack.c.h.b16 %v4710
      %v5062 = vunpack.c.l.b16 %v4711
      %v5063 = vunpack.c.h.b16 %v4711
      %v5064 = vunpack.c.l.b16 %v4712
      %v5065 = vunpack.c.h.b16 %v4712
      %v5066 = vunpack.c.l.b16 %v4713
      %v5067 = vunpack.c.h.b16 %v4713
      %v5068 = vunpack.c.l.b16 %v4714
      %v5069 = vunpack.c.h.b16 %v4714
      %v5070 = vunpack.c.l.b16 %v4715
      %v5071 = vunpack.c.h.b16 %v4715
      %v5072 = vunpack.c.l.b16 %v4716
      %v5073 = vunpack.c.h.b16 %v4716
      %v5074 = vunpack.c.l.b16 %v4717
      %v5075 = vunpack.c.h.b16 %v4717
      %v5076 = vunpack.c.l.b16 %v4718
      %v5077 = vunpack.c.h.b16 %v4718
      %v5078 = vunpack.c.l.b16 %v4719
      %v5079 = vunpack.c.h.b16 %v4719
      %v5080 = vunpack.c.l.b16 %v4720
      %v5081 = vunpack.c.h.b16 %v4720
      %v5082 = vunpack.c.l.b16 %v4721
      %v5083 = vunpack.c.h.b16 %v4721
      %v5084 = vunpack.c.l.b16 %v4722
      %v5085 = vunpack.c.h.b16 %v4722
      %v5086 = vunpack.c.l.b16 %v4723
      %v5087 = vunpack.c.h.b16 %v4723
      %v5088 = vunpack.c.l.b16 %v4724
      %v5089 = vunpack.c.h.b16 %v4724
      %v5090 = vunpack.c.l.b16 %v4725
      %v5091 = vunpack.c.h.b16 %v4725
      %v5092 = vunpack.c.l.b16 %v4726
      %v5093 = vunpack.c.h.b16 %v4726
      %v5094 = vunpack.c.l.b16 %v4727
      %v5095 = vunpack.c.h.b16 %v4727
      %v5096 = vunpack.c.l.b16 %v4728
      %v5097 = vunpack.c.h.b16 %v4728
      %v5098 = vunpack.c.l.b16 %v4729
      %v5099 = vunpack.c.h.b16 %v4729
      %v5100 = vunpack.c.l.b16 %v4730
      %v5101 = vunpack.c.h.b16 %v4730
      %v5102 = vunpack.c.l.b16 %v4731
      %v5103 = vunpack.c.h.b16 %v4731
      %v5104 = vunpack.c.l.b16 %v4732
      %v5105 = vunpack.c.h.b16 %v4732
      %v5106 = vunpack.c.l.b16 %v4733
      %v5107 = vunpack.c.h.b16 %v4733
      %v5108 = vunpack.c.l.b16 %v4734
      %v5109 = vunpack.c.h.b16 %v4734
      %v5110 = vunpack.c.l.b16 %v4735
      %v5111 = vunpack.c.h.b16 %v4735
      %v5112 = vunpack.c.l.b16 %v4736
      %v5113 = vunpack.c.h.b16 %v4736
      %v5114 = vunpack.c.l.b16 %v4737
      %v5115 = vunpack.c.h.b16 %v4737
      %v5116 = vunpack.c.l.b16 %v4738
      %v5117 = vunpack.c.h.b16 %v4738
      %v5118 = vunpack.c.l.b16 %v4739
      %v5119 = vunpack.c.h.b16 %v4739
      %v5120 = vunpack.c.l.b16 %v4740
      %v5121 = vunpack.c.h.b16 %v4740
      %v5122 = vunpack.c.l.b16 %v4741
      %v5123 = vunpack.c.h.b16 %v4741
      %v5124 = vunpack.c.l.b16 %v4742
      %v5125 = vunpack.c.h.b16 %v4742
      %v5126 = vunpack.c.l.b16 %v4743
      %v5127 = vunpack.c.h.b16 %v4743
      %v5128 = vunpack.c.l.b16 %v4744
      %v5129 = vunpack.c.h.b16 %v4744
      %v5130 = vunpack.c.l.b16 %v4745
      %v5131 = vunpack.c.h.b16 %v4745
      %v5132 = vunpack.c.l.b16 %v4746
      %v5133 = vunpack.c.h.b16 %v4746
      %v5134 = vunpack.c.l.b16 %v4747
      %v5135 = vunpack.c.h.b16 %v4747
      %v5136 = vunpack.c.l.b16 %v4748
      %v5137 = vunpack.c.h.b16 %v4748
      %v5138 = vunpack.c.l.b16 %v4749
      %v5139 = vunpack.c.h.b16 %v4749
      %v5140 = vunpack.c.l.b16 %v4750
      %v5141 = vunpack.c.h.b16 %v4750
      %v5142 = vunpack.c.l.b16 %v4751
      %v5143 = vunpack.c.h.b16 %v4751
      %v5144 = vunpack.c.l.b16 %v4752
      %v5145 = vunpack.c.h.b16 %v4752
      %v5146 = vunpack.c.l.b16 %v4753
      %v5147 = vunpack.c.h.b16 %v4753
      %v5148 = vunpack.c.l.b16 %v4754
      %v5149 = vunpack.c.h.b16 %v4754
      %v5150 = vunpack.c.l.b16 %v4755
      %v5151 = vunpack.c.h.b16 %v4755
      %v5152 = vunpack.c.l.b16 %v4756
      %v5153 = vunpack.c.h.b16 %v4756
      %v5154 = vunpack.c.l.b16 %v4757
      %v5155 = vunpack.c.h.b16 %v4757
      %v5156 = vunpack.c.l.b16 %v4758
      %v5157 = vunpack.c.h.b16 %v4758
      %v5158 = vunpack.c.l.b16 %v4759
      %v5159 = vunpack.c.h.b16 %v4759
      %v5160 = vunpack.c.l.b16 %v4760
      %v5161 = vunpack.c.h.b16 %v4760
      %v5162 = vunpack.c.l.b16 %v4761
      %v5163 = vunpack.c.h.b16 %v4761
      %v5164 = vunpack.c.l.b16 %v4762
      %v5165 = vunpack.c.h.b16 %v4762
      %v5166 = vunpack.c.l.b16 %v4763
      %v5167 = vunpack.c.h.b16 %v4763
      %v5168 = vunpack.c.l.b16 %v4764
      %v5169 = vunpack.c.h.b16 %v4764
      %v5170 = vunpack.c.l.b16 %v4765
      %v5171 = vunpack.c.h.b16 %v4765
      %v5172 = vunpack.c.l.b16 %v4766
      %v5173 = vunpack.c.h.b16 %v4766
      %v5174 = vunpack.c.l.b16 %v4767
      %v5175 = vunpack.c.h.b16 %v4767
      %v5176 = vunpack.c.l.b16 %v4768
      %v5177 = vunpack.c.h.b16 %v4768
      %v5178 = vunpack.c.l.b16 %v4769
      %v5179 = vunpack.c.h.b16 %v4769
      %v5180 = vunpack.c.l.b16 %v4770
      %v5181 = vunpack.c.h.b16 %v4770
      %v5182 = vunpack.c.l.b16 %v4771
      %v5183 = vunpack.c.h.b16 %v4771
      %v5184 = vunpack.c.l.b16 %v4772
      %v5185 = vunpack.c.h.b16 %v4772
      %v5186 = vunpack.c.l.b16 %v4773
      %v5187 = vunpack.c.h.b16 %v4773
      %v5188 = vunpack.c.l.b16 %v4774
      %v5189 = vunpack.c.h.b16 %v4774
      %v5190 = vunpack.c.l.b16 %v4775
      %v5191 = vunpack.c.h.b16 %v4775
      %v5192 = vunpack.c.l.b16 %v4776
      %v5193 = vunpack.c.h.b16 %v4776
      %v5194 = vunpack.c.l.b16 %v4777
      %v5195 = vunpack.c.h.b16 %v4777
      %v5196 = vunpack.c.l.b16 %v4778
      %v5197 = vunpack.c.h.b16 %v4778
      %v5198 = vunpack.c.l.b16 %v4779
      %v5199 = vunpack.c.h.b16 %v4779
      %v5200 = vunpack.c.l.b16 %v4780
      %v5201 = vunpack.c.h.b16 %v4780
      %v5202 = vunpack.c.l.b16 %v4781
      %v5203 = vunpack.c.h.b16 %v4781
      %v5204 = vunpack.c.l.b16 %v4782
      %v5205 = vunpack.c.h.b16 %v4782
      %v5206 = vunpack.c.l.b16 %v4783
      %v5207 = vunpack.c.h.b16 %v4783
      %v5208 = vunpack.c.l.b16 %v4784
      %v5209 = vunpack.c.h.b16 %v4784
      %v5210 = vunpack.c.l.b16 %v4785
      %v5211 = vunpack.c.h.b16 %v4785
      %v5212 = vunpack.c.l.b16 %v4786
      %v5213 = vunpack.c.h.b16 %v4786
      %v5214 = vunpack.c.l.b16 %v4787
      %v5215 = vunpack.c.h.b16 %v4787
      %v5216 = vunpack.c.l.b16 %v4788
      %v5217 = vunpack.c.h.b16 %v4788
      %v5218 = vunpack.c.l.b16 %v4789
      %v5219 = vunpack.c.h.b16 %v4789
      %v5220 = vunpack.c.l.b16 %v4790
      %v5221 = vunpack.c.h.b16 %v4790
      %v5222 = vunpack.c.l.b16 %v4791
      %v5223 = vunpack.c.h.b16 %v4791
      %v5224 = vunpack.c.l.b16 %v4792
      %v5225 = vunpack.c.h.b16 %v4792
      %v5226 = vunpack.c.l.b16 %v4793
      %v5227 = vunpack.c.h.b16 %v4793
      %v5228 = vunpack.c.l.b16 %v4794
      %v5229 = vunpack.c.h.b16 %v4794
      %v5230 = vunpack.c.l.b16 %v4795
      %v5231 = vunpack.c.h.b16 %v4795
      %v5232 = vunpack.c.l.b16 %v4796
      %v5233 = vunpack.c.h.b16 %v4796
      %v5234 = vunpack.c.l.b16 %v4797
      %v5235 = vunpack.c.h.b16 %v4797
      %v5236 = vunpack.c.l.b16 %v4798
      %v5237 = vunpack.c.h.b16 %v4798
      %v5238 = vunpack.c.l.b16 %v4799
      %v5239 = vunpack.c.h.b16 %v4799
      %v5240 = vpack.c.b16 %v4980, %v4960
      %v5241 = vpack.c.b16 %v4981, %v4961
      %v5242 = vpack.c.b16 %v4982, %v4962
      %v5243 = vpack.c.b16 %v4983, %v4963
      %v5244 = vpack.c.b16 %v4984, %v4964
      %v5245 = vpack.c.b16 %v4985, %v4965
      %v5246 = vpack.c.b16 %v4986, %v4966
      %v5247 = vpack.c.b16 %v4987, %v4967
      %v5248 = vpack.c.b16 %v4988, %v4968
      %v5249 = vpack.c.b16 %v4989, %v4969
      %v5250 = vpack.c.b16 %v4990, %v4970
      %v5251 = vpack.c.b16 %v4991, %v4971
      %v5252 = vpack.c.b16 %v4992, %v4972
      %v5253 = vpack.c.b16 %v4993, %v4973
      %v5254 = vpack.c.b16 %v4994, %v4974
      %v5255 = vpack.c.b16 %v4995, %v4975
      %v5256 = vpack.c.b16 %v4996, %v4976
      %v5257 = vpack.c.b16 %v4997, %v4977
      %v5258 = vpack.c.b16 %v4998, %v4978
      %v5259 = vpack.c.b16 %v4999, %v4979
      %v5260 = vpack.c.b16 %v5020, %v5000
      %v5261 = vpack.c.b16 %v5021, %v5001
      %v5262 = vpack.c.b16 %v5022, %v5002
      %v5263 = vpack.c.b16 %v5023, %v5003
      %v5264 = vpack.c.b16 %v5024, %v5004
      %v5265 = vpack.c.b16 %v5025, %v5005
      %v5266 = vpack.c.b16 %v5026, %v5006
      %v5267 = vpack.c.b16 %v5027, %v5007
      %v5268 = vpack.c.b16 %v5028, %v5008
      %v5269 = vpack.c.b16 %v5029, %v5009
      %v5270 = vpack.c.b16 %v5030, %v5010
      %v5271 = vpack.c.b16 %v5031, %v5011
      %v5272 = vpack.c.b16 %v5032, %v5012
      %v5273 = vpack.c.b16 %v5033, %v5013
      %v5274 = vpack.c.b16 %v5034, %v5014
      %v5275 = vpack.c.b16 %v5035, %v5015
      %v5276 = vpack.c.b16 %v5036, %v5016
      %v5277 = vpack.c.b16 %v5037, %v5017
      %v5278 = vpack.c.b16 %v5038, %v5018
      %v5279 = vpack.c.b16 %v5039, %v5019
      %v5280 = vpack.c.b16 %v5060, %v5040
      %v5281 = vpack.c.b16 %v5061, %v5041
      %v5282 = vpack.c.b16 %v5062, %v5042
      %v5283 = vpack.c.b16 %v5063, %v5043
      %v5284 = vpack.c.b16 %v5064, %v5044
      %v5285 = vpack.c.b16 %v5065, %v5045
      %v5286 = vpack.c.b16 %v5066, %v5046
      %v5287 = vpack.c.b16 %v5067, %v5047
      %v5288 = vpack.c.b16 %v5068, %v5048
      %v5289 = vpack.c.b16 %v5069, %v5049
      %v5290 = vpack.c.b16 %v5070, %v5050
      %v5291 = vpack.c.b16 %v5071, %v5051
      %v5292 = vpack.c.b16 %v5072, %v5052
      %v5293 = vpack.c.b16 %v5073, %v5053
      %v5294 = vpack.c.b16 %v5074, %v5054
      %v5295 = vpack.c.b16 %v5075, %v5055
      %v5296 = vpack.c.b16 %v5076, %v5056
      %v5297 = vpack.c.b16 %v5077, %v5057
      %v5298 = vpack.c.b16 %v5078, %v5058
      %v5299 = vpack.c.b16 %v5079, %v5059
      %v5300 = vpack.c.b16 %v5100, %v5080
      %v5301 = vpack.c.b16 %v5101, %v5081
      %v5302 = vpack.c.b16 %v5102, %v5082
      %v5303 = vpack.c.b16 %v5103, %v5083
      %v5304 = vpack.c.b16 %v5104, %v5084
      %v5305 = vpack.c.b16 %v5105, %v5085
      %v5306 = vpack.c.b16 %v5106, %v5086
      %v5307 = vpack.c.b16 %v5107, %v5087
      %v5308 = vpack.c.b16 %v5108, %v5088
      %v5309 = vpack.c.b16 %v5109, %v5089
      %v5310 = vpack.c.b16 %v5110, %v5090
      %v5311 = vpack.c.b16 %v5111, %v5091
      %v5312 = vpack.c.b16 %v5112, %v5092
      %v5313 = vpack.c.b16 %v5113, %v5093
      %v5314 = vpack.c.b16 %v5114, %v5094
      %v5315 = vpack.c.b16 %v5115, %v5095
      %v5316 = vpack.c.b16 %v5116, %v5096
      %v5317 = vpack.c.b16 %v5117, %v5097
      %v5318 = vpack.c.b16 %v5118, %v5098
      %v5319 = vpack.c.b16 %v5119, %v5099
      %v5320 = vpack.c.b16 %v5140, %v5120
      %v5321 = vpack.c.b16 %v5141, %v5121
      %v5322 = vpack.c.b16 %v5142, %v5122
      %v5323 = vpack.c.b16 %v5143, %v5123
      %v5324 = vpack.c.b16 %v5144, %v5124
      %v5325 = vpack.c.b16 %v5145, %v5125
      %v5326 = vpack.c.b16 %v5146, %v5126
      %v5327 = vpack.c.b16 %v5147, %v5127
      %v5328 = vpack.c.b16 %v5148, %v5128
      %v5329 = vpack.c.b16 %v5149, %v5129
      %v5330 = vpack.c.b16 %v5150, %v5130
      %v5331 = vpack.c.b16 %v5151, %v5131
      %v5332 = vpack.c.b16 %v5152, %v5132
      %v5333 = vpack.c.b16 %v5153, %v5133
      %v5334 = vpack.c.b16 %v5154, %v5134
      %v5335 = vpack.c.b16 %v5155, %v5135
      %v5336 = vpack.c.b16 %v5156, %v5136
      %v5337 = vpack.c.b16 %v5157, %v5137
      %v5338 = vpack.c.b16 %v5158, %v5138
      %v5339 = vpack.c.b16 %v5159, %v5139
      %v5340 = vpack.c.b16 %v5180, %v5160
      %v5341 = vpack.c.b16 %v5181, %v5161
      %v5342 = vpack.c.b16 %v5182, %v5162
      %v5343 = vpack.c.b16 %v5183, %v5163
      %v5344 = vpack.c.b16 %v5184, %v5164
      %v5345 = vpack.c.b16 %v5185, %v5165
      %v5346 = vpack.c.b16 %v5186, %v5166
      %v5347 = vpack.c.b16 %v5187, %v5167
      %v5348 = vpack.c.b16 %v5188, %v5168
      %v5349 = vpack.c.b16 %v5189, %v5169
      %v5350 = vpack.c.b16 %v5190, %v5170
      %v5351 = vpack.c.b16 %v5191, %v5171
      %v5352 = vpack.c.b16 %v5192, %v5172
      %v5353 = vpack.c.b16 %v5193, %v5173
      %v5354 = vpack.c.b16 %v5194, %v5174
      %v5355 = vpack.c.b16 %v5195, %v5175
      %v5356 = vpack.c.b16 %v5196, %v5176
      %v5357 = vpack.c.b16 %v5197, %v5177
      %v5358 = vpack.c.b16 %v5198, %v5178
      %v5359 = vpack.c.b16 %v5199, %v5179
      %v5360 = vpack.c.b16 %v5220, %v5200
      %v5361 = vpack.c.b16 %v5221, %v5201
      %v5362 = vpack.c.b16 %v5222, %v5202
      %v5363 = vpack.c.b16 %v5223, %v5203
      %v5364 = vpack.c.b16 %v5224, %v5204
      %v5365 = vpack.c.b16 %v5225, %v5205
      %v5366 = vpack.c.b16 %v5226, %v5206
      %v5367 = vpack.c.b16 %v5227, %v5207
      %v5368 = vpack.c.b16 %v5228, %v5208
      %v5369 = vpack.c.b16 %v5229, %v5209
      %v5370 = vpack.c.b16 %v5230, %v5210
      %v5371 = vpack.c.b16 %v5231, %v5211
      %v5372 = vpack.c.b16 %v5232, %v5212
      %v5373 = vpack.c.b16 %v5233, %v5213
      %v5374 = vpack.c.b16 %v5234, %v5214
      %v5375 = vpack.c.b16 %v5235, %v5215
      %v5376 = vpack.c.b16 %v5236, %v5216
      %v5377 = vpack.c.b16 %v5237, %v5217
      %v5378 = vpack.c.b16 %v5238, %v5218
      %v5379 = vpack.c.b16 %v5239, %v5219
      %vm5500 = vcmask 883712
      %v5502 = vsel %vm5500, %v4659, 0
      %vm5504 = vcmask 1045504
      %v5506 = vsel %vm5504, %v5360, 0
      %v5509 = vsel %vm5504, %v5361, 0
      %v5512 = vsel %vm5504, %v5362, 0
      %v5515 = vsel %vm5504, %v5363, 0
      %v5518 = vsel %vm5504, %v5364, 0
      %v5521 = vsel %vm5504, %v5365, 0
      %v5524 = vsel %vm5504, %v5366, 0
      %v5527 = vsel %vm5504, %v5367, 0
      %v5530 = vsel %vm5504, %v5368, 0
      %v5533 = vsel %vm5504, %v5369, 0
      %v5536 = vsel %vm5504, %v5370, 0
      %v5539 = vsel %vm5504, %v5371, 0
      %v5542 = vsel %vm5504, %v5372, 0
      %v5545 = vsel %vm5504, %v5373, 0
      %v5548 = vsel %vm5504, %v5374, 0
      %v5551 = vsel %vm5504, %v5375, 0
      %v5554 = vsel %vm5504, %v5376, 0
      %v5557 = vsel %vm5504, %v5377, 0
      %v5560 = vsel %vm5504, %v5378, 0
      %v5563 = vsel %vm5504, %v5379, 0
      %5565 = vmatprep.subr.bf16.mxu0 %v5241
      %5566 = vmatpush1.bf16.msra.mxu0 %v5240
      %5567 = vmatprep.subr.bf16.mxu0 %v5261
      %5568 = vmatpush1.bf16.msra.mxu0 %v5260
      %5569 = vmatprep.subr.bf16.mxu0 %v5281
      %5570 = vmatpush1.bf16.msra.mxu0 %v5280
      %5571 = vmatprep.subr.bf16.mxu0 %v5301
      %5572 = vmatpush1.bf16.msra.mxu0 %v5300
      %5573 = vmatprep.subr.bf16.mxu0 %v5321
      %5574 = vmatpush1.bf16.msra.mxu0 %v5320
      %5575 = vmatprep.subr.bf16.mxu0 %v5341
      %5576 = vmatpush1.bf16.msra.mxu0 %v5340
      %5577 = vmatprep.subr.bf16.mxu0 %v5509
      %5578 = vmatpush1.bf16.msra.mxu0 %v5506
      %5579 = vmatprep.subr.bf16.mxu0 0
      %5580 = vmatpush1.bf16.msra.mxu0 0
      %5581 = vmatprep.subr.bf16.mxu0 0
      %5582 = vmatpush1.bf16.msra.mxu0 0
      %5583 = vmatprep.subr.bf16.mxu0 0
      %5584 = vmatpush1.bf16.msra.mxu0 0
      %5585 = vmatprep.subr.bf16.mxu0 0
      %5586 = vmatpush1.bf16.msra.mxu0 0
      %5587 = vmatprep.subr.bf16.mxu0 0
      %5588 = vmatpush1.bf16.msra.mxu0 0
      %5589 = vmatprep.subr.bf16.mxu0 0
      %5590 = vmatpush1.bf16.msra.mxu0 0
      %5591 = vmatprep.subr.bf16.mxu0 0
      %5592 = vmatpush1.bf16.msra.mxu0 0
      %5593 = vmatprep.subr.bf16.mxu0 0
      %5594 = vmatpush1.bf16.msra.mxu0 0
      %5595 = vmatprep.subr.bf16.mxu0 0
      %5596 = vmatpush1.bf16.msra.mxu0 0
      %5597 = vmatprep.mubr.bf16.mxu0 0
      %5598 = vmatmul.mubr.bf16.gmra.mrb[0].mxu0 %v5502
      %v5599 = vpop.f32.mrb[0].mxu0
      %v5600 = vadd.f32 %v4800, %v5599
      %v5601 = vpop.f32.mrb[0].mxu0
      %v5602 = vadd.f32 %v4801, %v5601
      %v5603 = vpop.f32.mrb[0].mxu0
      %v5604 = vpop.f32.mrb[0].mxu0
      %5605 = vdwg.mxu0
      %5606 = vmatprep.subr.bf16.mxu0 %v5243
      %5607 = vmatpush1.bf16.msra.mxu0 %v5242
      %5608 = vmatprep.subr.bf16.mxu0 %v5263
      %5609 = vmatpush1.bf16.msra.mxu0 %v5262
      %5610 = vmatprep.subr.bf16.mxu0 %v5283
      %5611 = vmatpush1.bf16.msra.mxu0 %v5282
      %5612 = vmatprep.subr.bf16.mxu0 %v5303
      %5613 = vmatpush1.bf16.msra.mxu0 %v5302
      %5614 = vmatprep.subr.bf16.mxu0 %v5323
      %5615 = vmatpush1.bf16.msra.mxu0 %v5322
      %5616 = vmatprep.subr.bf16.mxu0 %v5343
      %5617 = vmatpush1.bf16.msra.mxu0 %v5342
      %5618 = vmatprep.subr.bf16.mxu0 %v5515
      %5619 = vmatpush1.bf16.msra.mxu0 %v5512
      %5620 = vmatprep.subr.bf16.mxu0 0
      %5621 = vmatpush1.bf16.msra.mxu0 0
      %5622 = vmatprep.subr.bf16.mxu0 0
      %5623 = vmatpush1.bf16.msra.mxu0 0
      %5624 = vmatprep.subr.bf16.mxu0 0
      %5625 = vmatpush1.bf16.msra.mxu0 0
      %5626 = vmatprep.subr.bf16.mxu0 0
      %5627 = vmatpush1.bf16.msra.mxu0 0
      %5628 = vmatprep.subr.bf16.mxu0 0
      %5629 = vmatpush1.bf16.msra.mxu0 0
      %5630 = vmatprep.subr.bf16.mxu0 0
      %5631 = vmatpush1.bf16.msra.mxu0 0
      %5632 = vmatprep.subr.bf16.mxu0 0
      %5633 = vmatpush1.bf16.msra.mxu0 0
      %5634 = vmatprep.subr.bf16.mxu0 0
      %5635 = vmatpush1.bf16.msra.mxu0 0
      %5636 = vmatprep.subr.bf16.mxu0 0
      %5637 = vmatpush1.bf16.msra.mxu0 0
      %5638 = vmatprep.mubr.bf16.mxu0 0
      %5639 = vmatmul.mubr.bf16.gmra.mrb[0].mxu0 %v5502
      %v5640 = vpop.f32.mrb[0].mxu0
      %v5641 = vadd.f32 %v4802, %v5640
      %v5642 = vpop.f32.mrb[0].mxu0
      %v5643 = vadd.f32 %v4803, %v5642
      %v5644 = vpop.f32.mrb[0].mxu0
      %v5645 = vpop.f32.mrb[0].mxu0
      %5646 = vdwg.mxu0
      %5647 = vmatprep.subr.bf16.mxu0 %v5245
      %5648 = vmatpush1.bf16.msra.mxu0 %v5244
      %5649 = vmatprep.subr.bf16.mxu0 %v5265
      %5650 = vmatpush1.bf16.msra.mxu0 %v5264
      %5651 = vmatprep.subr.bf16.mxu0 %v5285
      %5652 = vmatpush1.bf16.msra.mxu0 %v5284
      %5653 = vmatprep.subr.bf16.mxu0 %v5305
      %5654 = vmatpush1.bf16.msra.mxu0 %v5304
      %5655 = vmatprep.subr.bf16.mxu0 %v5325
      %5656 = vmatpush1.bf16.msra.mxu0 %v5324
      %5657 = vmatprep.subr.bf16.mxu0 %v5345
      %5658 = vmatpush1.bf16.msra.mxu0 %v5344
      %5659 = vmatprep.subr.bf16.mxu0 %v5521
      %5660 = vmatpush1.bf16.msra.mxu0 %v5518
      %5661 = vmatprep.subr.bf16.mxu0 0
      %5662 = vmatpush1.bf16.msra.mxu0 0
      %5663 = vmatprep.subr.bf16.mxu0 0
      %5664 = vmatpush1.bf16.msra.mxu0 0
      %5665 = vmatprep.subr.bf16.mxu0 0
      %5666 = vmatpush1.bf16.msra.mxu0 0
      %5667 = vmatprep.subr.bf16.mxu0 0
      %5668 = vmatpush1.bf16.msra.mxu0 0
      %5669 = vmatprep.subr.bf16.mxu0 0
      %5670 = vmatpush1.bf16.msra.mxu0 0
      %5671 = vmatprep.subr.bf16.mxu0 0
      %5672 = vmatpush1.bf16.msra.mxu0 0
      %5673 = vmatprep.subr.bf16.mxu0 0
      %5674 = vmatpush1.bf16.msra.mxu0 0
      %5675 = vmatprep.subr.bf16.mxu0 0
      %5676 = vmatpush1.bf16.msra.mxu0 0
      %5677 = vmatprep.subr.bf16.mxu0 0
      %5678 = vmatpush1.bf16.msra.mxu0 0
      %5679 = vmatprep.mubr.bf16.mxu0 0
      %5680 = vmatmul.mubr.bf16.gmra.mrb[0].mxu0 %v5502
      %v5681 = vpop.f32.mrb[0].mxu0
      %v5682 = vadd.f32 %v4804, %v5681
      %v5683 = vpop.f32.mrb[0].mxu0
      %v5684 = vadd.f32 %v4805, %v5683
      %v5685 = vpop.f32.mrb[0].mxu0
      %v5686 = vpop.f32.mrb[0].mxu0
      %5687 = vdwg.mxu0
      %5688 = vmatprep.subr.bf16.mxu0 %v5247
      %5689 = vmatpush1.bf16.msra.mxu0 %v5246
      %5690 = vmatprep.subr.bf16.mxu0 %v5267
      %5691 = vmatpush1.bf16.msra.mxu0 %v5266
      %5692 = vmatprep.subr.bf16.mxu0 %v5287
      %5693 = vmatpush1.bf16.msra.mxu0 %v5286
      %5694 = vmatprep.subr.bf16.mxu0 %v5307
      %5695 = vmatpush1.bf16.msra.mxu0 %v5306
      %5696 = vmatprep.subr.bf16.mxu0 %v5327
      %5697 = vmatpush1.bf16.msra.mxu0 %v5326
      %5698 = vmatprep.subr.bf16.mxu0 %v5347
      %5699 = vmatpush1.bf16.msra.mxu0 %v5346
      %5700 = vmatprep.subr.bf16.mxu0 %v5527
      %5701 = vmatpush1.bf16.msra.mxu0 %v5524
      %5702 = vmatprep.subr.bf16.mxu0 0
      %5703 = vmatpush1.bf16.msra.mxu0 0
      %5704 = vmatprep.subr.bf16.mxu0 0
      %5705 = vmatpush1.bf16.msra.mxu0 0
      %5706 = vmatprep.subr.bf16.mxu0 0
      %5707 = vmatpush1.bf16.msra.mxu0 0
      %5708 = vmatprep.subr.bf16.mxu0 0
      %5709 = vmatpush1.bf16.msra.mxu0 0
      %5710 = vmatprep.subr.bf16.mxu0 0
      %5711 = vmatpush1.bf16.msra.mxu0 0
      %5712 = vmatprep.subr.bf16.mxu0 0
      %5713 = vmatpush1.bf16.msra.mxu0 0
      %5714 = vmatprep.subr.bf16.mxu0 0
      %5715 = vmatpush1.bf16.msra.mxu0 0
      %5716 = vmatprep.subr.bf16.mxu0 0
      %5717 = vmatpush1.bf16.msra.mxu0 0
      %5718 = vmatprep.subr.bf16.mxu0 0
      %5719 = vmatpush1.bf16.msra.mxu0 0
      %5720 = vmatprep.mubr.bf16.mxu0 0
      %5721 = vmatmul.mubr.bf16.gmra.mrb[0].mxu0 %v5502
      %v5722 = vpop.f32.mrb[0].mxu0
      %v5723 = vadd.f32 %v4806, %v5722
      %v5724 = vpop.f32.mrb[0].mxu0
      %v5725 = vadd.f32 %v4807, %v5724
      %v5726 = vpop.f32.mrb[0].mxu0
      %v5727 = vpop.f32.mrb[0].mxu0
      %5728 = vdwg.mxu0
      %5729 = vmatprep.subr.bf16.mxu0 %v5249
      %5730 = vmatpush1.bf16.msra.mxu0 %v5248
      %5731 = vmatprep.subr.bf16.mxu0 %v5269
      %5732 = vmatpush1.bf16.msra.mxu0 %v5268
      %5733 = vmatprep.subr.bf16.mxu0 %v5289
      %5734 = vmatpush1.bf16.msra.mxu0 %v5288
      %5735 = vmatprep.subr.bf16.mxu0 %v5309
      %5736 = vmatpush1.bf16.msra.mxu0 %v5308
      %5737 = vmatprep.subr.bf16.mxu0 %v5329
      %5738 = vmatpush1.bf16.msra.mxu0 %v5328
      %5739 = vmatprep.subr.bf16.mxu0 %v5349
      %5740 = vmatpush1.bf16.msra.mxu0 %v5348
      %5741 = vmatprep.subr.bf16.mxu0 %v5533
      %5742 = vmatpush1.bf16.msra.mxu0 %v5530
      %5743 = vmatprep.subr.bf16.mxu0 0
      %5744 = vmatpush1.bf16.msra.mxu0 0
      %5745 = vmatprep.subr.bf16.mxu0 0
      %5746 = vmatpush1.bf16.msra.mxu0 0
      %5747 = vmatprep.subr.bf16.mxu0 0
      %5748 = vmatpush1.bf16.msra.mxu0 0
      %5749 = vmatprep.subr.bf16.mxu0 0
      %5750 = vmatpush1.bf16.msra.mxu0 0
      %5751 = vmatprep.subr.bf16.mxu0 0
      %5752 = vmatpush1.bf16.msra.mxu0 0
      %5753 = vmatprep.subr.bf16.mxu0 0
      %5754 = vmatpush1.bf16.msra.mxu0 0
      %5755 = vmatprep.subr.bf16.mxu0 0
      %5756 = vmatpush1.bf16.msra.mxu0 0
      %5757 = vmatprep.subr.bf16.mxu0 0
      %5758 = vmatpush1.bf16.msra.mxu0 0
      %5759 = vmatprep.subr.bf16.mxu0 0
      %5760 = vmatpush1.bf16.msra.mxu0 0
      %5761 = vmatprep.mubr.bf16.mxu0 0
      %5762 = vmatmul.mubr.bf16.gmra.mrb[0].mxu0 %v5502
      %v5763 = vpop.f32.mrb[0].mxu0
      %v5764 = vadd.f32 %v4808, %v5763
      %v5765 = vpop.f32.mrb[0].mxu0
      %v5766 = vadd.f32 %v4809, %v5765
      %v5767 = vpop.f32.mrb[0].mxu0
      %v5768 = vpop.f32.mrb[0].mxu0
      %5769 = vdwg.mxu0
      %5770 = vmatprep.subr.bf16.mxu0 %v5251
      %5771 = vmatpush1.bf16.msra.mxu0 %v5250
      %5772 = vmatprep.subr.bf16.mxu0 %v5271
      %5773 = vmatpush1.bf16.msra.mxu0 %v5270
      %5774 = vmatprep.subr.bf16.mxu0 %v5291
      %5775 = vmatpush1.bf16.msra.mxu0 %v5290
      %5776 = vmatprep.subr.bf16.mxu0 %v5311
      %5777 = vmatpush1.bf16.msra.mxu0 %v5310
      %5778 = vmatprep.subr.bf16.mxu0 %v5331
      %5779 = vmatpush1.bf16.msra.mxu0 %v5330
      %5780 = vmatprep.subr.bf16.mxu0 %v5351
      %5781 = vmatpush1.bf16.msra.mxu0 %v5350
      %5782 = vmatprep.subr.bf16.mxu0 %v5539
      %5783 = vmatpush1.bf16.msra.mxu0 %v5536
      %5784 = vmatprep.subr.bf16.mxu0 0
      %5785 = vmatpush1.bf16.msra.mxu0 0
      %5786 = vmatprep.subr.bf16.mxu0 0
      %5787 = vmatpush1.bf16.msra.mxu0 0
      %5788 = vmatprep.subr.bf16.mxu0 0
      %5789 = vmatpush1.bf16.msra.mxu0 0
      %5790 = vmatprep.subr.bf16.mxu0 0
      %5791 = vmatpush1.bf16.msra.mxu0 0
      %5792 = vmatprep.subr.bf16.mxu0 0
      %5793 = vmatpush1.bf16.msra.mxu0 0
      %5794 = vmatprep.subr.bf16.mxu0 0
      %5795 = vmatpush1.bf16.msra.mxu0 0
      %5796 = vmatprep.subr.bf16.mxu0 0
      %5797 = vmatpush1.bf16.msra.mxu0 0
      %5798 = vmatprep.subr.bf16.mxu0 0
      %5799 = vmatpush1.bf16.msra.mxu0 0
      %5800 = vmatprep.subr.bf16.mxu0 0
      %5801 = vmatpush1.bf16.msra.mxu0 0
      %5802 = vmatprep.mubr.bf16.mxu0 0
      %5803 = vmatmul.mubr.bf16.gmra.mrb[0].mxu0 %v5502
      %v5804 = vpop.f32.mrb[0].mxu0
      %v5805 = vadd.f32 %v4810, %v5804
      %v5806 = vpop.f32.mrb[0].mxu0
      %v5807 = vadd.f32 %v4811, %v5806
      %v5808 = vpop.f32.mrb[0].mxu0
      %v5809 = vpop.f32.mrb[0].mxu0
      %5810 = vdwg.mxu0
      %5811 = vmatprep.subr.bf16.mxu0 %v5253
      %5812 = vmatpush1.bf16.msra.mxu0 %v5252
      %5813 = vmatprep.subr.bf16.mxu0 %v5273
      %5814 = vmatpush1.bf16.msra.mxu0 %v5272
      %5815 = vmatprep.subr.bf16.mxu0 %v5293
      %5816 = vmatpush1.bf16.msra.mxu0 %v5292
      %5817 = vmatprep.subr.bf16.mxu0 %v5313
      %5818 = vmatpush1.bf16.msra.mxu0 %v5312
      %5819 = vmatprep.subr.bf16.mxu0 %v5333
      %5820 = vmatpush1.bf16.msra.mxu0 %v5332
      %5821 = vmatprep.subr.bf16.mxu0 %v5353
      %5822 = vmatpush1.bf16.msra.mxu0 %v5352
      %5823 = vmatprep.subr.bf16.mxu0 %v5545
      %5824 = vmatpush1.bf16.msra.mxu0 %v5542
      %5825 = vmatprep.subr.bf16.mxu0 0
      %5826 = vmatpush1.bf16.msra.mxu0 0
      %5827 = vmatprep.subr.bf16.mxu0 0
      %5828 = vmatpush1.bf16.msra.mxu0 0
      %5829 = vmatprep.subr.bf16.mxu0 0
      %5830 = vmatpush1.bf16.msra.mxu0 0
      %5831 = vmatprep.subr.bf16.mxu0 0
      %5832 = vmatpush1.bf16.msra.mxu0 0
      %5833 = vmatprep.subr.bf16.mxu0 0
      %5834 = vmatpush1.bf16.msra.mxu0 0
      %5835 = vmatprep.subr.bf16.mxu0 0
      %5836 = vmatpush1.bf16.msra.mxu0 0
      %5837 = vmatprep.subr.bf16.mxu0 0
      %5838 = vmatpush1.bf16.msra.mxu0 0
      %5839 = vmatprep.subr.bf16.mxu0 0
      %5840 = vmatpush1.bf16.msra.mxu0 0
      %5841 = vmatprep.subr.bf16.mxu0 0
      %5842 = vmatpush1.bf16.msra.mxu0 0
      %5843 = vmatprep.mubr.bf16.mxu0 0
      %5844 = vmatmul.mubr.bf16.gmra.mrb[0].mxu0 %v5502
      %v5845 = vpop.f32.mrb[0].mxu0
      %v5846 = vadd.f32 %v4812, %v5845
      %v5847 = vpop.f32.mrb[0].mxu0
      %v5848 = vadd.f32 %v4813, %v5847
      %v5849 = vpop.f32.mrb[0].mxu0
      %v5850 = vpop.f32.mrb[0].mxu0
      %5851 = vdwg.mxu0
      %5852 = vmatprep.subr.bf16.mxu0 %v5255
      %5853 = vmatpush1.bf16.msra.mxu0 %v5254
      %5854 = vmatprep.subr.bf16.mxu0 %v5275
      %5855 = vmatpush1.bf16.msra.mxu0 %v5274
      %5856 = vmatprep.subr.bf16.mxu0 %v5295
      %5857 = vmatpush1.bf16.msra.mxu0 %v5294
      %5858 = vmatprep.subr.bf16.mxu0 %v5315
      %5859 = vmatpush1.bf16.msra.mxu0 %v5314
      %5860 = vmatprep.subr.bf16.mxu0 %v5335
      %5861 = vmatpush1.bf16.msra.mxu0 %v5334
      %5862 = vmatprep.subr.bf16.mxu0 %v5355
      %5863 = vmatpush1.bf16.msra.mxu0 %v5354
      %5864 = vmatprep.subr.bf16.mxu0 %v5551
      %5865 = vmatpush1.bf16.msra.mxu0 %v5548
      %5866 = vmatprep.subr.bf16.mxu0 0
      %5867 = vmatpush1.bf16.msra.mxu0 0
      %5868 = vmatprep.subr.bf16.mxu0 0
      %5869 = vmatpush1.bf16.msra.mxu0 0
      %5870 = vmatprep.subr.bf16.mxu0 0
      %5871 = vmatpush1.bf16.msra.mxu0 0
      %5872 = vmatprep.subr.bf16.mxu0 0
      %5873 = vmatpush1.bf16.msra.mxu0 0
      %5874 = vmatprep.subr.bf16.mxu0 0
      %5875 = vmatpush1.bf16.msra.mxu0 0
      %5876 = vmatprep.subr.bf16.mxu0 0
      %5877 = vmatpush1.bf16.msra.mxu0 0
      %5878 = vmatprep.subr.bf16.mxu0 0
      %5879 = vmatpush1.bf16.msra.mxu0 0
      %5880 = vmatprep.subr.bf16.mxu0 0
      %5881 = vmatpush1.bf16.msra.mxu0 0
      %5882 = vmatprep.subr.bf16.mxu0 0
      %5883 = vmatpush1.bf16.msra.mxu0 0
      %5884 = vmatprep.mubr.bf16.mxu0 0
      %5885 = vmatmul.mubr.bf16.gmra.mrb[0].mxu0 %v5502
      %v5886 = vpop.f32.mrb[0].mxu0
      %v5887 = vadd.f32 %v4814, %v5886
      %v5888 = vpop.f32.mrb[0].mxu0
      %v5889 = vadd.f32 %v4815, %v5888
      %v5890 = vpop.f32.mrb[0].mxu0
      %v5891 = vpop.f32.mrb[0].mxu0
      %5892 = vdwg.mxu0
      %5893 = vmatprep.subr.bf16.mxu0 %v5257
      %5894 = vmatpush1.bf16.msra.mxu0 %v5256
      %5895 = vmatprep.subr.bf16.mxu0 %v5277
      %5896 = vmatpush1.bf16.msra.mxu0 %v5276
      %5897 = vmatprep.subr.bf16.mxu0 %v5297
      %5898 = vmatpush1.bf16.msra.mxu0 %v5296
      %5899 = vmatprep.subr.bf16.mxu0 %v5317
      %5900 = vmatpush1.bf16.msra.mxu0 %v5316
      %5901 = vmatprep.subr.bf16.mxu0 %v5337
      %5902 = vmatpush1.bf16.msra.mxu0 %v5336
      %5903 = vmatprep.subr.bf16.mxu0 %v5357
      %5904 = vmatpush1.bf16.msra.mxu0 %v5356
      %5905 = vmatprep.subr.bf16.mxu0 %v5557
      %5906 = vmatpush1.bf16.msra.mxu0 %v5554
      %5907 = vmatprep.subr.bf16.mxu0 0
      %5908 = vmatpush1.bf16.msra.mxu0 0
      %5909 = vmatprep.subr.bf16.mxu0 0
      %5910 = vmatpush1.bf16.msra.mxu0 0
      %5911 = vmatprep.subr.bf16.mxu0 0
      %5912 = vmatpush1.bf16.msra.mxu0 0
      %5913 = vmatprep.subr.bf16.mxu0 0
      %5914 = vmatpush1.bf16.msra.mxu0 0
      %5915 = vmatprep.subr.bf16.mxu0 0
      %5916 = vmatpush1.bf16.msra.mxu0 0
      %5917 = vmatprep.subr.bf16.mxu0 0
      %5918 = vmatpush1.bf16.msra.mxu0 0
      %5919 = vmatprep.subr.bf16.mxu0 0
      %5920 = vmatpush1.bf16.msra.mxu0 0
      %5921 = vmatprep.subr.bf16.mxu0 0
      %5922 = vmatpush1.bf16.msra.mxu0 0
      %5923 = vmatprep.subr.bf16.mxu0 0
      %5924 = vmatpush1.bf16.msra.mxu0 0
      %5925 = vmatprep.mubr.bf16.mxu0 0
      %5926 = vmatmul.mubr.bf16.gmra.mrb[0].mxu0 %v5502
      %v5927 = vpop.f32.mrb[0].mxu0
      %v5928 = vadd.f32 %v4816, %v5927
      %v5929 = vpop.f32.mrb[0].mxu0
      %v5930 = vadd.f32 %v4817, %v5929
      %v5931 = vpop.f32.mrb[0].mxu0
      %v5932 = vpop.f32.mrb[0].mxu0
      %5933 = vdwg.mxu0
      %5934 = vmatprep.subr.bf16.mxu0 %v5259
      %5935 = vmatpush1.bf16.msra.mxu0 %v5258
      %5936 = vmatprep.subr.bf16.mxu0 %v5279
      %5937 = vmatpush1.bf16.msra.mxu0 %v5278
      %5938 = vmatprep.subr.bf16.mxu0 %v5299
      %5939 = vmatpush1.bf16.msra.mxu0 %v5298
      %5940 = vmatprep.subr.bf16.mxu0 %v5319
      %5941 = vmatpush1.bf16.msra.mxu0 %v5318
      %5942 = vmatprep.subr.bf16.mxu0 %v5339
      %5943 = vmatpush1.bf16.msra.mxu0 %v5338
      %5944 = vmatprep.subr.bf16.mxu0 %v5359
      %5945 = vmatpush1.bf16.msra.mxu0 %v5358
      %5946 = vmatprep.subr.bf16.mxu0 %v5563
      %5947 = vmatpush1.bf16.msra.mxu0 %v5560
      %5948 = vmatprep.subr.bf16.mxu0 0
      %5949 = vmatpush1.bf16.msra.mxu0 0
      %5950 = vmatprep.subr.bf16.mxu0 0
      %5951 = vmatpush1.bf16.msra.mxu0 0
      %5952 = vmatprep.subr.bf16.mxu0 0
      %5953 = vmatpush1.bf16.msra.mxu0 0
      %5954 = vmatprep.subr.bf16.mxu0 0
      %5955 = vmatpush1.bf16.msra.mxu0 0
      %5956 = vmatprep.subr.bf16.mxu0 0
      %5957 = vmatpush1.bf16.msra.mxu0 0
      %5958 = vmatprep.subr.bf16.mxu0 0
      %5959 = vmatpush1.bf16.msra.mxu0 0
      %5960 = vmatprep.subr.bf16.mxu0 0
      %5961 = vmatpush1.bf16.msra.mxu0 0
      %5962 = vmatprep.subr.bf16.mxu0 0
      %5963 = vmatpush1.bf16.msra.mxu0 0
      %5964 = vmatprep.subr.bf16.mxu0 0
      %5965 = vmatpush1.bf16.msra.mxu0 0
      %5966 = vmatprep.mubr.bf16.mxu0 0
      %5967 = vmatmul.mubr.bf16.gmra.mrb[0].mxu0 %v5502
      %v5968 = vpop.f32.mrb[0].mxu0
      %v5969 = vadd.f32 %v4818, %v5968
      %v5970 = vpop.f32.mrb[0].mxu0
      %v5971 = vadd.f32 %v4819, %v5970
      %v5972 = vpop.f32.mrb[0].mxu0
      %v5973 = vpop.f32.mrb[0].mxu0
      %5974 = vdwg.mxu0
      %v5975 = vlaneseq
      %v5976 = vand.u32 %v5975, 127
      %v5977 = vadd.s32 %v5976, 128
      %v5978 = vadd.s32 %v5976, 256
      %v5979 = vadd.s32 %v5976, 384
      %v5980 = vadd.s32 %v5976, 512
      %v5981 = vadd.s32 %v5976, 640
      %v5982 = vadd.s32 %v5976, 768
      %v5983 = vadd.s32 %v5976, 896
      %v5984 = vadd.s32 %v5976, 1024
      %v5985 = vadd.s32 %v5976, 1152
      %v5986 = vadd.s32 %v5976, 1280
      %v5987 = vadd.s32 %v5976, 1408
      %v5988 = vadd.s32 %v5976, 1536
      %v5989 = vadd.s32 %v5976, 1664
      %v5990 = vadd.s32 %v5976, 1792
      %v5991 = vadd.s32 %v5976, 1920
      %v5992 = vadd.s32 %v5976, 2048
      %v5993 = vadd.s32 %v5976, 2176
      %v5994 = vadd.s32 %v5976, 2304
      %v5995 = vadd.s32 %v5976, 2432
      %5996 = vrot.lane.b32.xlu0 %v5600, 60
      %v5997 = vpop.permute.xlu0 %5996
      %5998 = vrot.lane.b32.xlu0 %v5602, 60
      %v5999 = vpop.permute.xlu0 %5998
      %6000 = vrot.lane.b32.xlu0 %v5641, 60
      %v6001 = vpop.permute.xlu0 %6000
      %6002 = vrot.lane.b32.xlu0 %v5643, 60
      %v6003 = vpop.permute.xlu0 %6002
      %6004 = vrot.lane.b32.xlu0 %v5682, 60
      %v6005 = vpop.permute.xlu0 %6004
      %6006 = vrot.lane.b32.xlu0 %v5684, 60
      %v6007 = vpop.permute.xlu0 %6006
      %6008 = vrot.lane.b32.xlu0 %v5723, 60
      %v6009 = vpop.permute.xlu0 %6008
      %6010 = vrot.lane.b32.xlu0 %v5725, 60
      %v6011 = vpop.permute.xlu0 %6010
      %6012 = vrot.lane.b32.xlu0 %v5764, 60
      %v6013 = vpop.permute.xlu0 %6012
      %6014 = vrot.lane.b32.xlu0 %v5766, 60
      %v6015 = vpop.permute.xlu0 %6014
      %6016 = vrot.lane.b32.xlu0 %v5805, 60
      %v6017 = vpop.permute.xlu0 %6016
      %6018 = vrot.lane.b32.xlu0 %v5807, 60
      %v6019 = vpop.permute.xlu0 %6018
      %6020 = vrot.lane.b32.xlu0 %v5846, 60
      %v6021 = vpop.permute.xlu0 %6020
      %6022 = vrot.lane.b32.xlu0 %v5848, 60
      %v6023 = vpop.permute.xlu0 %6022
      %6024 = vrot.lane.b32.xlu0 %v5887, 60
      %v6025 = vpop.permute.xlu0 %6024
      %6026 = vrot.lane.b32.xlu0 %v5889, 60
      %v6027 = vpop.permute.xlu0 %6026
      %6028 = vrot.lane.b32.xlu0 %v5928, 60
      %v6029 = vpop.permute.xlu0 %6028
      %6030 = vrot.lane.b32.xlu0 %v5930, 60
      %v6031 = vpop.permute.xlu0 %6030
      %6032 = vrot.lane.b32.xlu0 %v5969, 60
      %v6033 = vpop.permute.xlu0 %6032
      %6034 = vrot.lane.b32.xlu0 %v5971, 60
      %v6035 = vpop.permute.xlu0 %6034
      %vm6036 = vcmp.lt.s32.totalorder %v5976, 60
      %v6037 = vsel %vm6036, %v6033, %v6035
      %v6038 = vsel %vm6036, %v6031, %v6033
      %v6039 = vsel %vm6036, %v6029, %v6031
      %v6040 = vsel %vm6036, %v6027, %v6029
      %v6041 = vsel %vm6036, %v6025, %v6027
      %v6042 = vsel %vm6036, %v6023, %v6025
      %v6043 = vsel %vm6036, %v6021, %v6023
      %v6044 = vsel %vm6036, %v6019, %v6021
      %v6045 = vsel %vm6036, %v6017, %v6019
      %v6046 = vsel %vm6036, %v6015, %v6017
      %v6047 = vsel %vm6036, %v6013, %v6015
      %v6048 = vsel %vm6036, %v6011, %v6013
      %v6049 = vsel %vm6036, %v6009, %v6011
      %v6050 = vsel %vm6036, %v6007, %v6009
      %v6051 = vsel %vm6036, %v6005, %v6007
      %v6052 = vsel %vm6036, %v6003, %v6005
      %v6053 = vsel %vm6036, %v6001, %v6003
      %v6054 = vsel %vm6036, %v5999, %v6001
      %v6055 = vsel %vm6036, %v5997, %v5999
      %v6056 = vsel %vm6036, %v6035, %v5997
      %vm6057 = vcmp.ge.s32.totalorder %v5976, 2236
      %vm6058 = vcmp.ge.s32.totalorder %v5977, 2236
      %vm6059 = vcmp.ge.s32.totalorder %v5978, 2236
      %vm6060 = vcmp.ge.s32.totalorder %v5979, 2236
      %vm6061 = vcmp.ge.s32.totalorder %v5980, 2236
      %vm6062 = vcmp.ge.s32.totalorder %v5981, 2236
      %vm6063 = vcmp.ge.s32.totalorder %v5982, 2236
      %vm6064 = vcmp.ge.s32.totalorder %v5983, 2236
      %vm6065 = vcmp.ge.s32.totalorder %v5984, 2236
      %vm6066 = vcmp.ge.s32.totalorder %v5985, 2236
      %vm6067 = vcmp.ge.s32.totalorder %v5986, 2236
      %vm6068 = vcmp.ge.s32.totalorder %v5987, 2236
      %vm6069 = vcmp.ge.s32.totalorder %v5988, 2236
      %vm6070 = vcmp.ge.s32.totalorder %v5989, 2236
      %vm6071 = vcmp.ge.s32.totalorder %v5990, 2236
      %vm6072 = vcmp.ge.s32.totalorder %v5991, 2236
      %vm6073 = vcmp.ge.s32.totalorder %v5992, 2236
      %vm6074 = vcmp.ge.s32.totalorder %v5993, 2236
      %vm6075 = vcmp.ge.s32.totalorder %v5994, 2236
      %vm6076 = vcmp.ge.s32.totalorder %v5995, 2236
      %v6077 = vsel %vm6057, 1, 0
      %v6078 = vsel %vm6058, 1, 0
      %v6079 = vsel %vm6059, 1, 0
      %v6080 = vsel %vm6060, 1, 0
      %v6081 = vsel %vm6061, 1, 0
      %v6082 = vsel %vm6062, 1, 0
      %v6083 = vsel %vm6063, 1, 0
      %v6084 = vsel %vm6064, 1, 0
      %v6085 = vsel %vm6065, 1, 0
      %v6086 = vsel %vm6066, 1, 0
      %v6087 = vsel %vm6067, 1, 0
      %v6088 = vsel %vm6068, 1, 0
      %v6089 = vsel %vm6069, 1, 0
      %v6090 = vsel %vm6070, 1, 0
      %v6091 = vsel %vm6071, 1, 0
      %v6092 = vsel %vm6072, 1, 0
      %v6093 = vsel %vm6073, 1, 0
      %v6094 = vsel %vm6074, 1, 0
      %v6095 = vsel %vm6075, 1, 0
      %v6096 = vsel %vm6076, 1, 0
      %vm6097 = vcmp.eq.s32.totalorder %v6077, 1
      %vm6098 = vcmp.eq.s32.totalorder %v6078, 1
      %vm6099 = vcmp.eq.s32.totalorder %v6079, 1
      %vm6100 = vcmp.eq.s32.totalorder %v6080, 1
      %vm6101 = vcmp.eq.s32.totalorder %v6081, 1
      %vm6102 = vcmp.eq.s32.totalorder %v6082, 1
      %vm6103 = vcmp.eq.s32.totalorder %v6083, 1
      %vm6104 = vcmp.eq.s32.totalorder %v6084, 1
      %vm6105 = vcmp.eq.s32.totalorder %v6085, 1
      %vm6106 = vcmp.eq.s32.totalorder %v6086, 1
      %vm6107 = vcmp.eq.s32.totalorder %v6087, 1
      %vm6108 = vcmp.eq.s32.totalorder %v6088, 1
      %vm6109 = vcmp.eq.s32.totalorder %v6089, 1
      %vm6110 = vcmp.eq.s32.totalorder %v6090, 1
      %vm6111 = vcmp.eq.s32.totalorder %v6091, 1
      %vm6112 = vcmp.eq.s32.totalorder %v6092, 1
      %vm6113 = vcmp.eq.s32.totalorder %v6093, 1
      %vm6114 = vcmp.eq.s32.totalorder %v6094, 1
      %vm6115 = vcmp.eq.s32.totalorder %v6095, 1
      %vm6116 = vcmp.eq.s32.totalorder %v6096, 1
      %v6117 = vsel %vm6097, -inf, %v6053
      %v6118 = vsel %vm6098, -inf, %v6052
      %v6119 = vsel %vm6099, -inf, %v6051
      %v6120 = vsel %vm6100, -inf, %v6050
      %v6121 = vsel %vm6101, -inf, %v6049
      %v6122 = vsel %vm6102, -inf, %v6048
      %v6123 = vsel %vm6103, -inf, %v6047
      %v6124 = vsel %vm6104, -inf, %v6046
      %v6125 = vsel %vm6105, -inf, %v6045
      %v6126 = vsel %vm6106, -inf, %v6044
      %v6127 = vsel %vm6107, -inf, %v6043
      %v6128 = vsel %vm6108, -inf, %v6042
      %v6129 = vsel %vm6109, -inf, %v6041
      %v6130 = vsel %vm6110, -inf, %v6040
      %v6131 = vsel %vm6111, -inf, %v6039
      %v6132 = vsel %vm6112, -inf, %v6038
      %v6133 = vsel %vm6113, -inf, %v6037
      %v6134 = vsel %vm6114, -inf, %v6056
      %v6135 = vsel %vm6115, -inf, %v6055
      %v6136 = vsel %vm6116, -inf, %v6054
      %6137 = vrot.lane.b32.xlu0 %v5600, 68
      %v6138 = vpop.permute.xlu0 %6137
      %6139 = vrot.lane.b32.xlu0 %v5602, 68
      %v6140 = vpop.permute.xlu0 %6139
      %6141 = vrot.lane.b32.xlu0 %v5641, 68
      %v6142 = vpop.permute.xlu0 %6141
      %6143 = vrot.lane.b32.xlu0 %v5643, 68
      %v6144 = vpop.permute.xlu0 %6143
      %6145 = vrot.lane.b32.xlu0 %v5682, 68
      %v6146 = vpop.permute.xlu0 %6145
      %6147 = vrot.lane.b32.xlu0 %v5684, 68
      %v6148 = vpop.permute.xlu0 %6147
      %6149 = vrot.lane.b32.xlu0 %v5723, 68
      %v6150 = vpop.permute.xlu0 %6149
      %6151 = vrot.lane.b32.xlu0 %v5725, 68
      %v6152 = vpop.permute.xlu0 %6151
      %6153 = vrot.lane.b32.xlu0 %v5764, 68
      %v6154 = vpop.permute.xlu0 %6153
      %6155 = vrot.lane.b32.xlu0 %v5766, 68
      %v6156 = vpop.permute.xlu0 %6155
      %6157 = vrot.lane.b32.xlu0 %v5805, 68
      %v6158 = vpop.permute.xlu0 %6157
      %6159 = vrot.lane.b32.xlu0 %v5807, 68
      %v6160 = vpop.permute.xlu0 %6159
      %6161 = vrot.lane.b32.xlu0 %v5846, 68
      %v6162 = vpop.permute.xlu0 %6161
      %6163 = vrot.lane.b32.xlu0 %v5848, 68
      %v6164 = vpop.permute.xlu0 %6163
      %6165 = vrot.lane.b32.xlu0 %v5887, 68
      %v6166 = vpop.permute.xlu0 %6165
      %6167 = vrot.lane.b32.xlu0 %v5889, 68
      %v6168 = vpop.permute.xlu0 %6167
      %6169 = vrot.lane.b32.xlu0 %v5928, 68
      %v6170 = vpop.permute.xlu0 %6169
      %6171 = vrot.lane.b32.xlu0 %v5930, 68
      %v6172 = vpop.permute.xlu0 %6171
      %6173 = vrot.lane.b32.xlu0 %v5969, 68
      %v6174 = vpop.permute.xlu0 %6173
      %6175 = vrot.lane.b32.xlu0 %v5971, 68
      %v6176 = vpop.permute.xlu0 %6175
      %vm6177 = vcmp.lt.s32.totalorder %v5976, 68
      %v6178 = vsel %vm6177, %v6174, %v6176
      %v6179 = vsel %vm6177, %v6172, %v6174
      %v6180 = vsel %vm6177, %v6170, %v6172
      %v6181 = vsel %vm6177, %v6168, %v6170
      %v6182 = vsel %vm6177, %v6166, %v6168
      %v6183 = vsel %vm6177, %v6164, %v6166
      %v6184 = vsel %vm6177, %v6162, %v6164
      %v6185 = vsel %vm6177, %v6160, %v6162
      %v6186 = vsel %vm6177, %v6158, %v6160
      %v6187 = vsel %vm6177, %v6156, %v6158
      %v6188 = vsel %vm6177, %v6154, %v6156
      %v6189 = vsel %vm6177, %v6152, %v6154
      %v6190 = vsel %vm6177, %v6150, %v6152
      %v6191 = vsel %vm6177, %v6148, %v6150
      %v6192 = vsel %vm6177, %v6146, %v6148
      %v6193 = vsel %vm6177, %v6144, %v6146
      %v6194 = vsel %vm6177, %v6142, %v6144
      %v6195 = vsel %vm6177, %v6140, %v6142
      %v6196 = vsel %vm6177, %v6138, %v6140
      %v6197 = vsel %vm6177, %v6176, %v6138
      %vm6198 = vcmp.lt.s32.totalorder %v5976, 324
      %vm6199 = vcmp.lt.s32.totalorder %v5977, 324
      %vm6200 = vcmp.lt.s32.totalorder %v5978, 324
      %vm6201 = vcmp.lt.s32.totalorder %v5979, 324
      %vm6202 = vcmp.lt.s32.totalorder %v5980, 324
      %vm6203 = vcmp.lt.s32.totalorder %v5981, 324
      %vm6204 = vcmp.lt.s32.totalorder %v5982, 324
      %vm6205 = vcmp.lt.s32.totalorder %v5983, 324
      %vm6206 = vcmp.lt.s32.totalorder %v5984, 324
      %vm6207 = vcmp.lt.s32.totalorder %v5985, 324
      %vm6208 = vcmp.lt.s32.totalorder %v5986, 324
      %vm6209 = vcmp.lt.s32.totalorder %v5987, 324
      %vm6210 = vcmp.lt.s32.totalorder %v5988, 324
      %vm6211 = vcmp.lt.s32.totalorder %v5989, 324
      %vm6212 = vcmp.lt.s32.totalorder %v5990, 324
      %vm6213 = vcmp.lt.s32.totalorder %v5991, 324
      %vm6214 = vcmp.lt.s32.totalorder %v5992, 324
      %vm6215 = vcmp.lt.s32.totalorder %v5993, 324
      %vm6216 = vcmp.lt.s32.totalorder %v5994, 324
      %vm6217 = vcmp.lt.s32.totalorder %v5995, 324
      %v6218 = vsel %vm6198, 1, 0
      %v6219 = vsel %vm6199, 1, 0
      %v6220 = vsel %vm6200, 1, 0
      %v6221 = vsel %vm6201, 1, 0
      %v6222 = vsel %vm6202, 1, 0
      %v6223 = vsel %vm6203, 1, 0
      %v6224 = vsel %vm6204, 1, 0
      %v6225 = vsel %vm6205, 1, 0
      %v6226 = vsel %vm6206, 1, 0
      %v6227 = vsel %vm6207, 1, 0
      %v6228 = vsel %vm6208, 1, 0
      %v6229 = vsel %vm6209, 1, 0
      %v6230 = vsel %vm6210, 1, 0
      %v6231 = vsel %vm6211, 1, 0
      %v6232 = vsel %vm6212, 1, 0
      %v6233 = vsel %vm6213, 1, 0
      %v6234 = vsel %vm6214, 1, 0
      %v6235 = vsel %vm6215, 1, 0
      %v6236 = vsel %vm6216, 1, 0
      %v6237 = vsel %vm6217, 1, 0
      %vm6238 = vcmp.eq.s32.totalorder %v6218, 1
      %vm6239 = vcmp.eq.s32.totalorder %v6219, 1
      %vm6240 = vcmp.eq.s32.totalorder %v6220, 1
      %vm6241 = vcmp.eq.s32.totalorder %v6221, 1
      %vm6242 = vcmp.eq.s32.totalorder %v6222, 1
      %vm6243 = vcmp.eq.s32.totalorder %v6223, 1
      %vm6244 = vcmp.eq.s32.totalorder %v6224, 1
      %vm6245 = vcmp.eq.s32.totalorder %v6225, 1
      %vm6246 = vcmp.eq.s32.totalorder %v6226, 1
      %vm6247 = vcmp.eq.s32.totalorder %v6227, 1
      %vm6248 = vcmp.eq.s32.totalorder %v6228, 1
      %vm6249 = vcmp.eq.s32.totalorder %v6229, 1
      %vm6250 = vcmp.eq.s32.totalorder %v6230, 1
      %vm6251 = vcmp.eq.s32.totalorder %v6231, 1
      %vm6252 = vcmp.eq.s32.totalorder %v6232, 1
      %vm6253 = vcmp.eq.s32.totalorder %v6233, 1
      %vm6254 = vcmp.eq.s32.totalorder %v6234, 1
      %vm6255 = vcmp.eq.s32.totalorder %v6235, 1
      %vm6256 = vcmp.eq.s32.totalorder %v6236, 1
      %vm6257 = vcmp.eq.s32.totalorder %v6237, 1
      %v6258 = vsel %vm6238, -inf, %v6179
      %v6259 = vsel %vm6239, -inf, %v6178
      %v6260 = vsel %vm6240, -inf, %v6197
      %v6261 = vsel %vm6241, -inf, %v6196
      %v6262 = vsel %vm6242, -inf, %v6195
      %v6263 = vsel %vm6243, -inf, %v6194
      %v6264 = vsel %vm6244, -inf, %v6193
      %v6265 = vsel %vm6245, -inf, %v6192
      %v6266 = vsel %vm6246, -inf, %v6191
      %v6267 = vsel %vm6247, -inf, %v6190
      %v6268 = vsel %vm6248, -inf, %v6189
      %v6269 = vsel %vm6249, -inf, %v6188
      %v6270 = vsel %vm6250, -inf, %v6187
      %v6271 = vsel %vm6251, -inf, %v6186
      %v6272 = vsel %vm6252, -inf, %v6185
      %v6273 = vsel %vm6253, -inf, %v6184
      %v6274 = vsel %vm6254, -inf, %v6183
      %v6275 = vsel %vm6255, -inf, %v6182
      %v6276 = vsel %vm6256, -inf, %v6181
      %v6277 = vsel %vm6257, -inf, %v6180
      %v6278 = vmax.f32 %v6117, %v6258
      %v6279 = vmax.f32 %v6118, %v6259
      %v6280 = vmax.f32 %v6119, %v6260
      %v6281 = vmax.f32 %v6120, %v6261
      %v6282 = vmax.f32 %v6121, %v6262
      %v6283 = vmax.f32 %v6122, %v6263
      %v6284 = vmax.f32 %v6123, %v6264
      %v6285 = vmax.f32 %v6124, %v6265
      %v6286 = vmax.f32 %v6125, %v6266
      %v6287 = vmax.f32 %v6126, %v6267
      %v6288 = vmax.f32 %v6127, %v6268
      %v6289 = vmax.f32 %v6128, %v6269
      %v6290 = vmax.f32 %v6129, %v6270
      %v6291 = vmax.f32 %v6130, %v6271
      %v6292 = vmax.f32 %v6131, %v6272
      %v6293 = vmax.f32 %v6132, %v6273
      %v6294 = vmax.f32 %v6133, %v6274
      %v6295 = vmax.f32 %v6134, %v6275
      %v6296 = vmax.f32 %v6135, %v6276
      %v6297 = vmax.f32 %v6136, %v6277
      %v6298 = vmax.f32 %v5600, %v6278
      %v6299 = vmax.f32 %v5602, %v6279
      %v6300 = vmax.f32 %v5641, %v6280
      %v6301 = vmax.f32 %v5643, %v6281
      %v6302 = vmax.f32 %v5682, %v6282
      %v6303 = vmax.f32 %v5684, %v6283
      %v6304 = vmax.f32 %v5723, %v6284
      %v6305 = vmax.f32 %v5725, %v6285
      %v6306 = vmax.f32 %v5764, %v6286
      %v6307 = vmax.f32 %v5766, %v6287
      %v6308 = vmax.f32 %v5805, %v6288
      %v6309 = vmax.f32 %v5807, %v6289
      %v6310 = vmax.f32 %v5846, %v6290
      %v6311 = vmax.f32 %v5848, %v6291
      %v6312 = vmax.f32 %v5887, %v6292
      %v6313 = vmax.f32 %v5889, %v6293
      %v6314 = vmax.f32 %v5928, %v6294
      %v6315 = vmax.f32 %v5930, %v6295
      %v6316 = vmax.f32 %v5969, %v6296
      %v6317 = vmax.f32 %v5971, %v6297
      %6318 = vrot.lane.b32.xlu0 %v6298, 110
      %v6319 = vpop.permute.xlu0 %6318
      %6320 = vrot.lane.b32.xlu0 %v6299, 110
      %v6321 = vpop.permute.xlu0 %6320
      %6322 = vrot.lane.b32.xlu0 %v6300, 110
      %v6323 = vpop.permute.xlu0 %6322
      %6324 = vrot.lane.b32.xlu0 %v6301, 110
      %v6325 = vpop.permute.xlu0 %6324
      %6326 = vrot.lane.b32.xlu0 %v6302, 110
      %v6327 = vpop.permute.xlu0 %6326
      %6328 = vrot.lane.b32.xlu0 %v6303, 110
      %v6329 = vpop.permute.xlu0 %6328
      %6330 = vrot.lane.b32.xlu0 %v6304, 110
      %v6331 = vpop.permute.xlu0 %6330
      %6332 = vrot.lane.b32.xlu0 %v6305, 110
      %v6333 = vpop.permute.xlu0 %6332
      %6334 = vrot.lane.b32.xlu0 %v6306, 110
      %v6335 = vpop.permute.xlu0 %6334
      %6336 = vrot.lane.b32.xlu0 %v6307, 110
      %v6337 = vpop.permute.xlu0 %6336
      %6338 = vrot.lane.b32.xlu0 %v6308, 110
      %v6339 = vpop.permute.xlu0 %6338
      %6340 = vrot.lane.b32.xlu0 %v6309, 110
      %v6341 = vpop.permute.xlu0 %6340
      %6342 = vrot.lane.b32.xlu0 %v6310, 110
      %v6343 = vpop.permute.xlu0 %6342
      %6344 = vrot.lane.b32.xlu0 %v6311, 110
      %v6345 = vpop.permute.xlu0 %6344
      %6346 = vrot.lane.b32.xlu0 %v6312, 110
      %v6347 = vpop.permute.xlu0 %6346
      %6348 = vrot.lane.b32.xlu0 %v6313, 110
      %v6349 = vpop.permute.xlu0 %6348
      %6350 = vrot.lane.b32.xlu0 %v6314, 110
      %v6351 = vpop.permute.xlu0 %6350
      %6352 = vrot.lane.b32.xlu0 %v6315, 110
      %v6353 = vpop.permute.xlu0 %6352
      %6354 = vrot.lane.b32.xlu0 %v6316, 110
      %v6355 = vpop.permute.xlu0 %6354
      %6356 = vrot.lane.b32.xlu0 %v6317, 110
      %v6357 = vpop.permute.xlu0 %6356
      %vm6358 = vcmp.lt.s32.totalorder %v5976, 110
      %v6359 = vsel %vm6358, %v6355, %v6357
      %v6360 = vsel %vm6358, %v6353, %v6355
      %v6361 = vsel %vm6358, %v6351, %v6353
      %v6362 = vsel %vm6358, %v6349, %v6351
      %v6363 = vsel %vm6358, %v6347, %v6349
      %v6364 = vsel %vm6358, %v6345, %v6347
      %v6365 = vsel %vm6358, %v6343, %v6345
      %v6366 = vsel %vm6358, %v6341, %v6343
      %v6367 = vsel %vm6358, %v6339, %v6341
      %v6368 = vsel %vm6358, %v6337, %v6339
      %v6369 = vsel %vm6358, %v6335, %v6337
      %v6370 = vsel %vm6358, %v6333, %v6335
      %v6371 = vsel %vm6358, %v6331, %v6333
      %v6372 = vsel %vm6358, %v6329, %v6331
      %v6373 = vsel %vm6358, %v6327, %v6329
      %v6374 = vsel %vm6358, %v6325, %v6327
      %v6375 = vsel %vm6358, %v6323, %v6325
      %v6376 = vsel %vm6358, %v6321, %v6323
      %v6377 = vsel %vm6358, %v6319, %v6321
      %v6378 = vsel %vm6358, %v6357, %v6319
      %vm6379 = vcmp.ge.s32.totalorder %v5976, 2542
      %vm6380 = vcmp.ge.s32.totalorder %v5977, 2542
      %vm6381 = vcmp.ge.s32.totalorder %v5978, 2542
      %vm6382 = vcmp.ge.s32.totalorder %v5979, 2542
      %vm6383 = vcmp.ge.s32.totalorder %v5980, 2542
      %vm6384 = vcmp.ge.s32.totalorder %v5981, 2542
      %vm6385 = vcmp.ge.s32.totalorder %v5982, 2542
      %vm6386 = vcmp.ge.s32.totalorder %v5983, 2542
      %vm6387 = vcmp.ge.s32.totalorder %v5984, 2542
      %vm6388 = vcmp.ge.s32.totalorder %v5985, 2542
      %vm6389 = vcmp.ge.s32.totalorder %v5986, 2542
      %vm6390 = vcmp.ge.s32.totalorder %v5987, 2542
      %vm6391 = vcmp.ge.s32.totalorder %v5988, 2542
      %vm6392 = vcmp.ge.s32.totalorder %v5989, 2542
      %vm6393 = vcmp.ge.s32.totalorder %v5990, 2542
      %vm6394 = vcmp.ge.s32.totalorder %v5991, 2542
      %vm6395 = vcmp.ge.s32.totalorder %v5992, 2542
      %vm6396 = vcmp.ge.s32.totalorder %v5993, 2542
      %vm6397 = vcmp.ge.s32.totalorder %v5994, 2542
      %vm6398 = vcmp.ge.s32.totalorder %v5995, 2542
      %v6399 = vsel %vm6379, 1, 0
      %v6400 = vsel %vm6380, 1, 0
      %v6401 = vsel %vm6381, 1, 0
      %v6402 = vsel %vm6382, 1, 0
      %v6403 = vsel %vm6383, 1, 0
      %v6404 = vsel %vm6384, 1, 0
      %v6405 = vsel %vm6385, 1, 0
      %v6406 = vsel %vm6386, 1, 0
      %v6407 = vsel %vm6387, 1, 0
      %v6408 = vsel %vm6388, 1, 0
      %v6409 = vsel %vm6389, 1, 0
      %v6410 = vsel %vm6390, 1, 0
      %v6411 = vsel %vm6391, 1, 0
      %v6412 = vsel %vm6392, 1, 0
      %v6413 = vsel %vm6393, 1, 0
      %v6414 = vsel %vm6394, 1, 0
      %v6415 = vsel %vm6395, 1, 0
      %v6416 = vsel %vm6396, 1, 0
      %v6417 = vsel %vm6397, 1, 0
      %v6418 = vsel %vm6398, 1, 0
      %vm6419 = vcmp.eq.s32.totalorder %v6399, 1
      %vm6420 = vcmp.eq.s32.totalorder %v6400, 1
      %vm6421 = vcmp.eq.s32.totalorder %v6401, 1
      %vm6422 = vcmp.eq.s32.totalorder %v6402, 1
      %vm6423 = vcmp.eq.s32.totalorder %v6403, 1
      %vm6424 = vcmp.eq.s32.totalorder %v6404, 1
      %vm6425 = vcmp.eq.s32.totalorder %v6405, 1
      %vm6426 = vcmp.eq.s32.totalorder %v6406, 1
      %vm6427 = vcmp.eq.s32.totalorder %v6407, 1
      %vm6428 = vcmp.eq.s32.totalorder %v6408, 1
      %vm6429 = vcmp.eq.s32.totalorder %v6409, 1
      %vm6430 = vcmp.eq.s32.totalorder %v6410, 1
      %vm6431 = vcmp.eq.s32.totalorder %v6411, 1
      %vm6432 = vcmp.eq.s32.totalorder %v6412, 1
      %vm6433 = vcmp.eq.s32.totalorder %v6413, 1
      %vm6434 = vcmp.eq.s32.totalorder %v6414, 1
      %vm6435 = vcmp.eq.s32.totalorder %v6415, 1
      %vm6436 = vcmp.eq.s32.totalorder %v6416, 1
      %vm6437 = vcmp.eq.s32.totalorder %v6417, 1
      %vm6438 = vcmp.eq.s32.totalorder %v6418, 1
      %v6439 = vsel %vm6419, -inf, %v6377
      %v6440 = vsel %vm6420, -inf, %v6376
      %v6441 = vsel %vm6421, -inf, %v6375
      %v6442 = vsel %vm6422, -inf, %v6374
      %v6443 = vsel %vm6423, -inf, %v6373
      %v6444 = vsel %vm6424, -inf, %v6372
      %v6445 = vsel %vm6425, -inf, %v6371
      %v6446 = vsel %vm6426, -inf, %v6370
      %v6447 = vsel %vm6427, -inf, %v6369
      %v6448 = vsel %vm6428, -inf, %v6368
      %v6449 = vsel %vm6429, -inf, %v6367
      %v6450 = vsel %vm6430, -inf, %v6366
      %v6451 = vsel %vm6431, -inf, %v6365
      %v6452 = vsel %vm6432, -inf, %v6364
      %v6453 = vsel %vm6433, -inf, %v6363
      %v6454 = vsel %vm6434, -inf, %v6362
      %v6455 = vsel %vm6435, -inf, %v6361
      %v6456 = vsel %vm6436, -inf, %v6360
      %v6457 = vsel %vm6437, -inf, %v6359
      %v6458 = vsel %vm6438, -inf, %v6378
      %6459 = vrot.lane.b32.xlu0 %v6298, 18
      %v6460 = vpop.permute.xlu0 %6459
      %6461 = vrot.lane.b32.xlu0 %v6299, 18
      %v6462 = vpop.permute.xlu0 %6461
      %6463 = vrot.lane.b32.xlu0 %v6300, 18
      %v6464 = vpop.permute.xlu0 %6463
      %6465 = vrot.lane.b32.xlu0 %v6301, 18
      %v6466 = vpop.permute.xlu0 %6465
      %6467 = vrot.lane.b32.xlu0 %v6302, 18
      %v6468 = vpop.permute.xlu0 %6467
      %6469 = vrot.lane.b32.xlu0 %v6303, 18
      %v6470 = vpop.permute.xlu0 %6469
      %6471 = vrot.lane.b32.xlu0 %v6304, 18
      %v6472 = vpop.permute.xlu0 %6471
      %6473 = vrot.lane.b32.xlu0 %v6305, 18
      %v6474 = vpop.permute.xlu0 %6473
      %6475 = vrot.lane.b32.xlu0 %v6306, 18
      %v6476 = vpop.permute.xlu0 %6475
      %6477 = vrot.lane.b32.xlu0 %v6307, 18
      %v6478 = vpop.permute.xlu0 %6477
      %6479 = vrot.lane.b32.xlu0 %v6308, 18
      %v6480 = vpop.permute.xlu0 %6479
      %6481 = vrot.lane.b32.xlu0 %v6309, 18
      %v6482 = vpop.permute.xlu0 %6481
      %6483 = vrot.lane.b32.xlu0 %v6310, 18
      %v6484 = vpop.permute.xlu0 %6483
      %6485 = vrot.lane.b32.xlu0 %v6311, 18
      %v6486 = vpop.permute.xlu0 %6485
      %6487 = vrot.lane.b32.xlu0 %v6312, 18
      %v6488 = vpop.permute.xlu0 %6487
      %6489 = vrot.lane.b32.xlu0 %v6313, 18
      %v6490 = vpop.permute.xlu0 %6489
      %6491 = vrot.lane.b32.xlu0 %v6314, 18
      %v6492 = vpop.permute.xlu0 %6491
      %6493 = vrot.lane.b32.xlu0 %v6315, 18
      %v6494 = vpop.permute.xlu0 %6493
      %6495 = vrot.lane.b32.xlu0 %v6316, 18
      %v6496 = vpop.permute.xlu0 %6495
      %6497 = vrot.lane.b32.xlu0 %v6317, 18
      %v6498 = vpop.permute.xlu0 %6497
      %vm6499 = vcmp.lt.s32.totalorder %v5976, 18
      %v6500 = vsel %vm6499, %v6496, %v6498
      %v6501 = vsel %vm6499, %v6494, %v6496
      %v6502 = vsel %vm6499, %v6492, %v6494
      %v6503 = vsel %vm6499, %v6490, %v6492
      %v6504 = vsel %vm6499, %v6488, %v6490
      %v6505 = vsel %vm6499, %v6486, %v6488
      %v6506 = vsel %vm6499, %v6484, %v6486
      %v6507 = vsel %vm6499, %v6482, %v6484
      %v6508 = vsel %vm6499, %v6480, %v6482
      %v6509 = vsel %vm6499, %v6478, %v6480
      %v6510 = vsel %vm6499, %v6476, %v6478
      %v6511 = vsel %vm6499, %v6474, %v6476
      %v6512 = vsel %vm6499, %v6472, %v6474
      %v6513 = vsel %vm6499, %v6470, %v6472
      %v6514 = vsel %vm6499, %v6468, %v6470
      %v6515 = vsel %vm6499, %v6466, %v6468
      %v6516 = vsel %vm6499, %v6464, %v6466
      %v6517 = vsel %vm6499, %v6462, %v6464
      %v6518 = vsel %vm6499, %v6460, %v6462
      %v6519 = vsel %vm6499, %v6498, %v6460
      %vm6520 = vcmp.lt.s32.totalorder %v5977, 18
      %vm6521 = vcmp.lt.s32.totalorder %v5978, 18
      %vm6522 = vcmp.lt.s32.totalorder %v5979, 18
      %vm6523 = vcmp.lt.s32.totalorder %v5980, 18
      %vm6524 = vcmp.lt.s32.totalorder %v5981, 18
      %vm6525 = vcmp.lt.s32.totalorder %v5982, 18
      %vm6526 = vcmp.lt.s32.totalorder %v5983, 18
      %vm6527 = vcmp.lt.s32.totalorder %v5984, 18
      %vm6528 = vcmp.lt.s32.totalorder %v5985, 18
      %vm6529 = vcmp.lt.s32.totalorder %v5986, 18
      %vm6530 = vcmp.lt.s32.totalorder %v5987, 18
      %vm6531 = vcmp.lt.s32.totalorder %v5988, 18
      %vm6532 = vcmp.lt.s32.totalorder %v5989, 18
      %vm6533 = vcmp.lt.s32.totalorder %v5990, 18
      %vm6534 = vcmp.lt.s32.totalorder %v5991, 18
      %vm6535 = vcmp.lt.s32.totalorder %v5992, 18
      %vm6536 = vcmp.lt.s32.totalorder %v5993, 18
      %vm6537 = vcmp.lt.s32.totalorder %v5994, 18
      %vm6538 = vcmp.lt.s32.totalorder %v5995, 18
      %v6539 = vsel %vm6499, 1, 0
      %v6540 = vsel %vm6520, 1, 0
      %v6541 = vsel %vm6521, 1, 0
      %v6542 = vsel %vm6522, 1, 0
      %v6543 = vsel %vm6523, 1, 0
      %v6544 = vsel %vm6524, 1, 0
      %v6545 = vsel %vm6525, 1, 0
      %v6546 = vsel %vm6526, 1, 0
      %v6547 = vsel %vm6527, 1, 0
      %v6548 = vsel %vm6528, 1, 0
      %v6549 = vsel %vm6529, 1, 0
      %v6550 = vsel %vm6530, 1, 0
      %v6551 = vsel %vm6531, 1, 0
      %v6552 = vsel %vm6532, 1, 0
      %v6553 = vsel %vm6533, 1, 0
      %v6554 = vsel %vm6534, 1, 0
      %v6555 = vsel %vm6535, 1, 0
      %v6556 = vsel %vm6536, 1, 0
      %v6557 = vsel %vm6537, 1, 0
      %v6558 = vsel %vm6538, 1, 0
      %vm6559 = vcmp.eq.s32.totalorder %v6539, 1
      %vm6560 = vcmp.eq.s32.totalorder %v6540, 1
      %vm6561 = vcmp.eq.s32.totalorder %v6541, 1
      %vm6562 = vcmp.eq.s32.totalorder %v6542, 1
      %vm6563 = vcmp.eq.s32.totalorder %v6543, 1
      %vm6564 = vcmp.eq.s32.totalorder %v6544, 1
      %vm6565 = vcmp.eq.s32.totalorder %v6545, 1
      %vm6566 = vcmp.eq.s32.totalorder %v6546, 1
      %vm6567 = vcmp.eq.s32.totalorder %v6547, 1
      %vm6568 = vcmp.eq.s32.totalorder %v6548, 1
      %vm6569 = vcmp.eq.s32.totalorder %v6549, 1
      %vm6570 = vcmp.eq.s32.totalorder %v6550, 1
      %vm6571 = vcmp.eq.s32.totalorder %v6551, 1
      %vm6572 = vcmp.eq.s32.totalorder %v6552, 1
      %vm6573 = vcmp.eq.s32.totalorder %v6553, 1
      %vm6574 = vcmp.eq.s32.totalorder %v6554, 1
      %vm6575 = vcmp.eq.s32.totalorder %v6555, 1
      %vm6576 = vcmp.eq.s32.totalorder %v6556, 1
      %vm6577 = vcmp.eq.s32.totalorder %v6557, 1
      %vm6578 = vcmp.eq.s32.totalorder %v6558, 1
      %v6579 = vsel %vm6559, -inf, %v6519
      %v6580 = vsel %vm6560, -inf, %v6518
      %v6581 = vsel %vm6561, -inf, %v6517
      %v6582 = vsel %vm6562, -inf, %v6516
      %v6583 = vsel %vm6563, -inf, %v6515
      %v6584 = vsel %vm6564, -inf, %v6514
      %v6585 = vsel %vm6565, -inf, %v6513
      %v6586 = vsel %vm6566, -inf, %v6512
      %v6587 = vsel %vm6567, -inf, %v6511
      %v6588 = vsel %vm6568, -inf, %v6510
      %v6589 = vsel %vm6569, -inf, %v6509
      %v6590 = vsel %vm6570, -inf, %v6508
      %v6591 = vsel %vm6571, -inf, %v6507
      %v6592 = vsel %vm6572, -inf, %v6506
      %v6593 = vsel %vm6573, -inf, %v6505
      %v6594 = vsel %vm6574, -inf, %v6504
      %v6595 = vsel %vm6575, -inf, %v6503
      %v6596 = vsel %vm6576, -inf, %v6502
      %v6597 = vsel %vm6577, -inf, %v6501
      %v6598 = vsel %vm6578, -inf, %v6500
      %v6599 = vmax.f32 %v6439, %v6579
      %v6600 = vmax.f32 %v6440, %v6580
      %v6601 = vmax.f32 %v6441, %v6581
      %v6602 = vmax.f32 %v6442, %v6582
      %v6603 = vmax.f32 %v6443, %v6583
      %v6604 = vmax.f32 %v6444, %v6584
      %v6605 = vmax.f32 %v6445, %v6585
      %v6606 = vmax.f32 %v6446, %v6586
      %v6607 = vmax.f32 %v6447, %v6587
      %v6608 = vmax.f32 %v6448, %v6588
      %v6609 = vmax.f32 %v6449, %v6589
      %v6610 = vmax.f32 %v6450, %v6590
      %v6611 = vmax.f32 %v6451, %v6591
      %v6612 = vmax.f32 %v6452, %v6592
      %v6613 = vmax.f32 %v6453, %v6593
      %v6614 = vmax.f32 %v6454, %v6594
      %v6615 = vmax.f32 %v6455, %v6595
      %v6616 = vmax.f32 %v6456, %v6596
      %v6617 = vmax.f32 %v6457, %v6597
      %v6618 = vmax.f32 %v6458, %v6598
      %v6619 = vmax.f32 %v6298, %v6599
      %v6620 = vmax.f32 %v6299, %v6600
      %v6621 = vmax.f32 %v6300, %v6601
      %v6622 = vmax.f32 %v6301, %v6602
      %v6623 = vmax.f32 %v6302, %v6603
      %v6624 = vmax.f32 %v6303, %v6604
      %v6625 = vmax.f32 %v6304, %v6605
      %v6626 = vmax.f32 %v6305, %v6606
      %v6627 = vmax.f32 %v6306, %v6607
      %v6628 = vmax.f32 %v6307, %v6608
      %v6629 = vmax.f32 %v6308, %v6609
      %v6630 = vmax.f32 %v6309, %v6610
      %v6631 = vmax.f32 %v6310, %v6611
      %v6632 = vmax.f32 %v6311, %v6612
      %v6633 = vmax.f32 %v6312, %v6613
      %v6634 = vmax.f32 %v6313, %v6614
      %v6635 = vmax.f32 %v6314, %v6615
      %v6636 = vmax.f32 %v6315, %v6616
      %v6637 = vmax.f32 %v6316, %v6617
      %v6638 = vmax.f32 %v6317, %v6618
      %6639 = vrot.lane.b32.xlu0 %v6619, 127
      %v6640 = vpop.permute.xlu0 %6639
      %6641 = vrot.lane.b32.xlu0 %v6620, 127
      %v6642 = vpop.permute.xlu0 %6641
      %6643 = vrot.lane.b32.xlu0 %v6621, 127
      %v6644 = vpop.permute.xlu0 %6643
      %6645 = vrot.lane.b32.xlu0 %v6622, 127
      %v6646 = vpop.permute.xlu0 %6645
      %6647 = vrot.lane.b32.xlu0 %v6623, 127
      %v6648 = vpop.permute.xlu0 %6647
      %6649 = vrot.lane.b32.xlu0 %v6624, 127
      %v6650 = vpop.permute.xlu0 %6649
      %6651 = vrot.lane.b32.xlu0 %v6625, 127
      %v6652 = vpop.permute.xlu0 %6651
      %6653 = vrot.lane.b32.xlu0 %v6626, 127
      %v6654 = vpop.permute.xlu0 %6653
      %6655 = vrot.lane.b32.xlu0 %v6627, 127
      %v6656 = vpop.permute.xlu0 %6655
      %6657 = vrot.lane.b32.xlu0 %v6628, 127
      %v6658 = vpop.permute.xlu0 %6657
      %6659 = vrot.lane.b32.xlu0 %v6629, 127
      %v6660 = vpop.permute.xlu0 %6659
      %6661 = vrot.lane.b32.xlu0 %v6630, 127
      %v6662 = vpop.permute.xlu0 %6661
      %6663 = vrot.lane.b32.xlu0 %v6631, 127
      %v6664 = vpop.permute.xlu0 %6663
      %6665 = vrot.lane.b32.xlu0 %v6632, 127
      %v6666 = vpop.permute.xlu0 %6665
      %6667 = vrot.lane.b32.xlu0 %v6633, 127
      %v6668 = vpop.permute.xlu0 %6667
      %6669 = vrot.lane.b32.xlu0 %v6634, 127
      %v6670 = vpop.permute.xlu0 %6669
      %6671 = vrot.lane.b32.xlu0 %v6635, 127
      %v6672 = vpop.permute.xlu0 %6671
      %6673 = vrot.lane.b32.xlu0 %v6636, 127
      %v6674 = vpop.permute.xlu0 %6673
      %6675 = vrot.lane.b32.xlu0 %v6637, 127
      %v6676 = vpop.permute.xlu0 %6675
      %6677 = vrot.lane.b32.xlu0 %v6638, 127
      %v6678 = vpop.permute.xlu0 %6677
      %vm6679 = vcmp.lt.s32.totalorder %v5976, 127
      %v6680 = vsel %vm6679, %v6676, %v6678
      %v6681 = vsel %vm6679, %v6674, %v6676
      %v6682 = vsel %vm6679, %v6672, %v6674
      %v6683 = vsel %vm6679, %v6670, %v6672
      %v6684 = vsel %vm6679, %v6668, %v6670
      %v6685 = vsel %vm6679, %v6666, %v6668
      %v6686 = vsel %vm6679, %v6664, %v6666
      %v6687 = vsel %vm6679, %v6662, %v6664
      %v6688 = vsel %vm6679, %v6660, %v6662
      %v6689 = vsel %vm6679, %v6658, %v6660
      %v6690 = vsel %vm6679, %v6656, %v6658
      %v6691 = vsel %vm6679, %v6654, %v6656
      %v6692 = vsel %vm6679, %v6652, %v6654
      %v6693 = vsel %vm6679, %v6650, %v6652
      %v6694 = vsel %vm6679, %v6648, %v6650
      %v6695 = vsel %vm6679, %v6646, %v6648
      %v6696 = vsel %vm6679, %v6644, %v6646
      %v6697 = vsel %vm6679, %v6642, %v6644
      %v6698 = vsel %vm6679, %v6640, %v6642
      %v6699 = vsel %vm6679, %v6678, %v6640
      %vm6700 = vcmp.ge.s32.totalorder %v5976, 2559
      %vm6701 = vcmp.ge.s32.totalorder %v5977, 2559
      %vm6702 = vcmp.ge.s32.totalorder %v5978, 2559
      %vm6703 = vcmp.ge.s32.totalorder %v5979, 2559
      %vm6704 = vcmp.ge.s32.totalorder %v5980, 2559
      %vm6705 = vcmp.ge.s32.totalorder %v5981, 2559
      %vm6706 = vcmp.ge.s32.totalorder %v5982, 2559
      %vm6707 = vcmp.ge.s32.totalorder %v5983, 2559
      %vm6708 = vcmp.ge.s32.totalorder %v5984, 2559
      %vm6709 = vcmp.ge.s32.totalorder %v5985, 2559
      %vm6710 = vcmp.ge.s32.totalorder %v5986, 2559
      %vm6711 = vcmp.ge.s32.totalorder %v5987, 2559
      %vm6712 = vcmp.ge.s32.totalorder %v5988, 2559
      %vm6713 = vcmp.ge.s32.totalorder %v5989, 2559
      %vm6714 = vcmp.ge.s32.totalorder %v5990, 2559
      %vm6715 = vcmp.ge.s32.totalorder %v5991, 2559
      %vm6716 = vcmp.ge.s32.totalorder %v5992, 2559
      %vm6717 = vcmp.ge.s32.totalorder %v5993, 2559
      %vm6718 = vcmp.ge.s32.totalorder %v5994, 2559
      %vm6719 = vcmp.ge.s32.totalorder %v5995, 2559
      %v6720 = vsel %vm6700, 1, 0
      %v6721 = vsel %vm6701, 1, 0
      %v6722 = vsel %vm6702, 1, 0
      %v6723 = vsel %vm6703, 1, 0
      %v6724 = vsel %vm6704, 1, 0
      %v6725 = vsel %vm6705, 1, 0
      %v6726 = vsel %vm6706, 1, 0
      %v6727 = vsel %vm6707, 1, 0
      %v6728 = vsel %vm6708, 1, 0
      %v6729 = vsel %vm6709, 1, 0
      %v6730 = vsel %vm6710, 1, 0
      %v6731 = vsel %vm6711, 1, 0
      %v6732 = vsel %vm6712, 1, 0
      %v6733 = vsel %vm6713, 1, 0
      %v6734 = vsel %vm6714, 1, 0
      %v6735 = vsel %vm6715, 1, 0
      %v6736 = vsel %vm6716, 1, 0
      %v6737 = vsel %vm6717, 1, 0
      %v6738 = vsel %vm6718, 1, 0
      %v6739 = vsel %vm6719, 1, 0
      %vm6740 = vcmp.eq.s32.totalorder %v6720, 1
      %vm6741 = vcmp.eq.s32.totalorder %v6721, 1
      %vm6742 = vcmp.eq.s32.totalorder %v6722, 1
      %vm6743 = vcmp.eq.s32.totalorder %v6723, 1
      %vm6744 = vcmp.eq.s32.totalorder %v6724, 1
      %vm6745 = vcmp.eq.s32.totalorder %v6725, 1
      %vm6746 = vcmp.eq.s32.totalorder %v6726, 1
      %vm6747 = vcmp.eq.s32.totalorder %v6727, 1
      %vm6748 = vcmp.eq.s32.totalorder %v6728, 1
      %vm6749 = vcmp.eq.s32.totalorder %v6729, 1
      %vm6750 = vcmp.eq.s32.totalorder %v6730, 1
      %vm6751 = vcmp.eq.s32.totalorder %v6731, 1
      %vm6752 = vcmp.eq.s32.totalorder %v6732, 1
      %vm6753 = vcmp.eq.s32.totalorder %v6733, 1
      %vm6754 = vcmp.eq.s32.totalorder %v6734, 1
      %vm6755 = vcmp.eq.s32.totalorder %v6735, 1
      %vm6756 = vcmp.eq.s32.totalorder %v6736, 1
      %vm6757 = vcmp.eq.s32.totalorder %v6737, 1
      %vm6758 = vcmp.eq.s32.totalorder %v6738, 1
      %vm6759 = vcmp.eq.s32.totalorder %v6739, 1
      %v6760 = vsel %vm6740, -inf, %v6698
      %v6761 = vsel %vm6741, -inf, %v6697
      %v6762 = vsel %vm6742, -inf, %v6696
      %v6763 = vsel %vm6743, -inf, %v6695
      %v6764 = vsel %vm6744, -inf, %v6694
      %v6765 = vsel %vm6745, -inf, %v6693
      %v6766 = vsel %vm6746, -inf, %v6692
      %v6767 = vsel %vm6747, -inf, %v6691
      %v6768 = vsel %vm6748, -inf, %v6690
      %v6769 = vsel %vm6749, -inf, %v6689
      %v6770 = vsel %vm6750, -inf, %v6688
      %v6771 = vsel %vm6751, -inf, %v6687
      %v6772 = vsel %vm6752, -inf, %v6686
      %v6773 = vsel %vm6753, -inf, %v6685
      %v6774 = vsel %vm6754, -inf, %v6684
      %v6775 = vsel %vm6755, -inf, %v6683
      %v6776 = vsel %vm6756, -inf, %v6682
      %v6777 = vsel %vm6757, -inf, %v6681
      %v6778 = vsel %vm6758, -inf, %v6680
      %v6779 = vsel %vm6759, -inf, %v6699
      %6780 = vrot.lane.b32.xlu0 %v6619, 1
      %v6781 = vpop.permute.xlu0 %6780
      %6782 = vrot.lane.b32.xlu0 %v6620, 1
      %v6783 = vpop.permute.xlu0 %6782
      %6784 = vrot.lane.b32.xlu0 %v6621, 1
      %v6785 = vpop.permute.xlu0 %6784
      %6786 = vrot.lane.b32.xlu0 %v6622, 1
      %v6787 = vpop.permute.xlu0 %6786
      %6788 = vrot.lane.b32.xlu0 %v6623, 1
      %v6789 = vpop.permute.xlu0 %6788
      %6790 = vrot.lane.b32.xlu0 %v6624, 1
      %v6791 = vpop.permute.xlu0 %6790
      %6792 = vrot.lane.b32.xlu0 %v6625, 1
      %v6793 = vpop.permute.xlu0 %6792
      %6794 = vrot.lane.b32.xlu0 %v6626, 1
      %v6795 = vpop.permute.xlu0 %6794
      %6796 = vrot.lane.b32.xlu0 %v6627, 1
      %v6797 = vpop.permute.xlu0 %6796
      %6798 = vrot.lane.b32.xlu0 %v6628, 1
      %v6799 = vpop.permute.xlu0 %6798
      %6800 = vrot.lane.b32.xlu0 %v6629, 1
      %v6801 = vpop.permute.xlu0 %6800
      %6802 = vrot.lane.b32.xlu0 %v6630, 1
      %v6803 = vpop.permute.xlu0 %6802
      %6804 = vrot.lane.b32.xlu0 %v6631, 1
      %v6805 = vpop.permute.xlu0 %6804
      %6806 = vrot.lane.b32.xlu0 %v6632, 1
      %v6807 = vpop.permute.xlu0 %6806
      %6808 = vrot.lane.b32.xlu0 %v6633, 1
      %v6809 = vpop.permute.xlu0 %6808
      %6810 = vrot.lane.b32.xlu0 %v6634, 1
      %v6811 = vpop.permute.xlu0 %6810
      %6812 = vrot.lane.b32.xlu0 %v6635, 1
      %v6813 = vpop.permute.xlu0 %6812
      %6814 = vrot.lane.b32.xlu0 %v6636, 1
      %v6815 = vpop.permute.xlu0 %6814
      %6816 = vrot.lane.b32.xlu0 %v6637, 1
      %v6817 = vpop.permute.xlu0 %6816
      %6818 = vrot.lane.b32.xlu0 %v6638, 1
      %v6819 = vpop.permute.xlu0 %6818
      %vm6820 = vcmp.lt.s32.totalorder %v5976, 1
      %v6821 = vsel %vm6820, %v6817, %v6819
      %v6822 = vsel %vm6820, %v6815, %v6817
      %v6823 = vsel %vm6820, %v6813, %v6815
      %v6824 = vsel %vm6820, %v6811, %v6813
      %v6825 = vsel %vm6820, %v6809, %v6811
      %v6826 = vsel %vm6820, %v6807, %v6809
      %v6827 = vsel %vm6820, %v6805, %v6807
      %v6828 = vsel %vm6820, %v6803, %v6805
      %v6829 = vsel %vm6820, %v6801, %v6803
      %v6830 = vsel %vm6820, %v6799, %v6801
      %v6831 = vsel %vm6820, %v6797, %v6799
      %v6832 = vsel %vm6820, %v6795, %v6797
      %v6833 = vsel %vm6820, %v6793, %v6795
      %v6834 = vsel %vm6820, %v6791, %v6793
      %v6835 = vsel %vm6820, %v6789, %v6791
      %v6836 = vsel %vm6820, %v6787, %v6789
      %v6837 = vsel %vm6820, %v6785, %v6787
      %v6838 = vsel %vm6820, %v6783, %v6785
      %v6839 = vsel %vm6820, %v6781, %v6783
      %v6840 = vsel %vm6820, %v6819, %v6781
      %vm6841 = vcmp.lt.s32.totalorder %v5977, 1
      %vm6842 = vcmp.lt.s32.totalorder %v5978, 1
      %vm6843 = vcmp.lt.s32.totalorder %v5979, 1
      %vm6844 = vcmp.lt.s32.totalorder %v5980, 1
      %vm6845 = vcmp.lt.s32.totalorder %v5981, 1
      %vm6846 = vcmp.lt.s32.totalorder %v5982, 1
      %vm6847 = vcmp.lt.s32.totalorder %v5983, 1
      %vm6848 = vcmp.lt.s32.totalorder %v5984, 1
      %vm6849 = vcmp.lt.s32.totalorder %v5985, 1
      %vm6850 = vcmp.lt.s32.totalorder %v5986, 1
      %vm6851 = vcmp.lt.s32.totalorder %v5987, 1
      %vm6852 = vcmp.lt.s32.totalorder %v5988, 1
      %vm6853 = vcmp.lt.s32.totalorder %v5989, 1
      %vm6854 = vcmp.lt.s32.totalorder %v5990, 1
      %vm6855 = vcmp.lt.s32.totalorder %v5991, 1
      %vm6856 = vcmp.lt.s32.totalorder %v5992, 1
      %vm6857 = vcmp.lt.s32.totalorder %v5993, 1
      %vm6858 = vcmp.lt.s32.totalorder %v5994, 1
      %vm6859 = vcmp.lt.s32.totalorder %v5995, 1
      %v6860 = vsel %vm6820, 1, 0
      %v6861 = vsel %vm6841, 1, 0
      %v6862 = vsel %vm6842, 1, 0
      %v6863 = vsel %vm6843, 1, 0
      %v6864 = vsel %vm6844, 1, 0
      %v6865 = vsel %vm6845, 1, 0
      %v6866 = vsel %vm6846, 1, 0
      %v6867 = vsel %vm6847, 1, 0
      %v6868 = vsel %vm6848, 1, 0
      %v6869 = vsel %vm6849, 1, 0
      %v6870 = vsel %vm6850, 1, 0
      %v6871 = vsel %vm6851, 1, 0
      %v6872 = vsel %vm6852, 1, 0
      %v6873 = vsel %vm6853, 1, 0
      %v6874 = vsel %vm6854, 1, 0
      %v6875 = vsel %vm6855, 1, 0
      %v6876 = vsel %vm6856, 1, 0
      %v6877 = vsel %vm6857, 1, 0
      %v6878 = vsel %vm6858, 1, 0
      %v6879 = vsel %vm6859, 1, 0
      %vm6880 = vcmp.eq.s32.totalorder %v6860, 1
      %vm6881 = vcmp.eq.s32.totalorder %v6861, 1
      %vm6882 = vcmp.eq.s32.totalorder %v6862, 1
      %vm6883 = vcmp.eq.s32.totalorder %v6863, 1
      %vm6884 = vcmp.eq.s32.totalorder %v6864, 1
      %vm6885 = vcmp.eq.s32.totalorder %v6865, 1
      %vm6886 = vcmp.eq.s32.totalorder %v6866, 1
      %vm6887 = vcmp.eq.s32.totalorder %v6867, 1
      %vm6888 = vcmp.eq.s32.totalorder %v6868, 1
      %vm6889 = vcmp.eq.s32.totalorder %v6869, 1
      %vm6890 = vcmp.eq.s32.totalorder %v6870, 1
      %vm6891 = vcmp.eq.s32.totalorder %v6871, 1
      %vm6892 = vcmp.eq.s32.totalorder %v6872, 1
      %vm6893 = vcmp.eq.s32.totalorder %v6873, 1
      %vm6894 = vcmp.eq.s32.totalorder %v6874, 1
      %vm6895 = vcmp.eq.s32.totalorder %v6875, 1
      %vm6896 = vcmp.eq.s32.totalorder %v6876, 1
      %vm6897 = vcmp.eq.s32.totalorder %v6877, 1
      %vm6898 = vcmp.eq.s32.totalorder %v6878, 1
      %vm6899 = vcmp.eq.s32.totalorder %v6879, 1
      %v6900 = vsel %vm6880, -inf, %v6840
      %v6901 = vsel %vm6881, -inf, %v6839
      %v6902 = vsel %vm6882, -inf, %v6838
      %v6903 = vsel %vm6883, -inf, %v6837
      %v6904 = vsel %vm6884, -inf, %v6836
      %v6905 = vsel %vm6885, -inf, %v6835
      %v6906 = vsel %vm6886, -inf, %v6834
      %v6907 = vsel %vm6887, -inf, %v6833
      %v6908 = vsel %vm6888, -inf, %v6832
      %v6909 = vsel %vm6889, -inf, %v6831
      %v6910 = vsel %vm6890, -inf, %v6830
      %v6911 = vsel %vm6891, -inf, %v6829
      %v6912 = vsel %vm6892, -inf, %v6828
      %v6913 = vsel %vm6893, -inf, %v6827
      %v6914 = vsel %vm6894, -inf, %v6826
      %v6915 = vsel %vm6895, -inf, %v6825
      %v6916 = vsel %vm6896, -inf, %v6824
      %v6917 = vsel %vm6897, -inf, %v6823
      %v6918 = vsel %vm6898, -inf, %v6822
      %v6919 = vsel %vm6899, -inf, %v6821
      %v6920 = vmax.f32 %v6760, %v6900
      %v6921 = vmax.f32 %v6761, %v6901
      %v6922 = vmax.f32 %v6762, %v6902
      %v6923 = vmax.f32 %v6763, %v6903
      %v6924 = vmax.f32 %v6764, %v6904
      %v6925 = vmax.f32 %v6765, %v6905
      %v6926 = vmax.f32 %v6766, %v6906
      %v6927 = vmax.f32 %v6767, %v6907
      %v6928 = vmax.f32 %v6768, %v6908
      %v6929 = vmax.f32 %v6769, %v6909
      %v6930 = vmax.f32 %v6770, %v6910
      %v6931 = vmax.f32 %v6771, %v6911
      %v6932 = vmax.f32 %v6772, %v6912
      %v6933 = vmax.f32 %v6773, %v6913
      %v6934 = vmax.f32 %v6774, %v6914
      %v6935 = vmax.f32 %v6775, %v6915
      %v6936 = vmax.f32 %v6776, %v6916
      %v6937 = vmax.f32 %v6777, %v6917
      %v6938 = vmax.f32 %v6778, %v6918
      %v6939 = vmax.f32 %v6779, %v6919
      %v6940 = vmax.f32 %v6619, %v6920
      %v6941 = vmax.f32 %v6620, %v6921
      %v6942 = vmax.f32 %v6621, %v6922
      %v6943 = vmax.f32 %v6622, %v6923
      %v6944 = vmax.f32 %v6623, %v6924
      %v6945 = vmax.f32 %v6624, %v6925
      %v6946 = vmax.f32 %v6625, %v6926
      %v6947 = vmax.f32 %v6626, %v6927
      %v6948 = vmax.f32 %v6627, %v6928
      %v6949 = vmax.f32 %v6628, %v6929
      %v6950 = vmax.f32 %v6629, %v6930
      %v6951 = vmax.f32 %v6630, %v6931
      %v6952 = vmax.f32 %v6631, %v6932
      %v6953 = vmax.f32 %v6632, %v6933
      %v6954 = vmax.f32 %v6633, %v6934
      %v6955 = vmax.f32 %v6634, %v6935
      %v6956 = vmax.f32 %v6635, %v6936
      %v6957 = vmax.f32 %v6636, %v6937
      %v6958 = vmax.f32 %v6637, %v6938
      %v6959 = vmax.f32 %v6638, %v6939
      %6960 = vst [vmem:[%s170] sm:$0xff] %v6940
      %6961 = vst [vmem:[%s170 + $0x8] sm:$0xff] %v6941
      %6962 = vst [vmem:[%s170 + $0x10] sm:$0xff] %v6942
      %6963 = vst [vmem:[%s170 + $0x18] sm:$0xff] %v6943
      %6964 = vst [vmem:[%s170 + $0x20] sm:$0xff] %v6944
      %6965 = vst [vmem:[%s170 + $0x28] sm:$0xff] %v6945
      %6966 = vst [vmem:[%s170 + $0x30] sm:$0xff] %v6946
      %6967 = vst [vmem:[%s170 + $0x38] sm:$0xff] %v6947
      %6968 = vst [vmem:[%s170 + $0x40] sm:$0xff] %v6948
      %6969 = vst [vmem:[%s170 + $0x48] sm:$0xff] %v6949
      %6970 = vst [vmem:[%s170 + $0x50] sm:$0xff] %v6950
      %6971 = vst [vmem:[%s170 + $0x58] sm:$0xff] %v6951
      %6972 = vst [vmem:[%s170 + $0x60] sm:$0xff] %v6952
      %6973 = vst [vmem:[%s170 + $0x68] sm:$0xff] %v6953
      %6974 = vst [vmem:[%s170 + $0x70] sm:$0xff] %v6954
      %6975 = vst [vmem:[%s170 + $0x78] sm:$0xff] %v6955
      %6976 = vst [vmem:[%s170 + $0x80] sm:$0xff] %v6956
      %6977 = vst [vmem:[%s170 + $0x88] sm:$0xff] %v6957
      %6978 = vst [vmem:[%s170 + $0x90] sm:$0xff] %v6958
      %6979 = vst [vmem:[%s170 + $0x98] sm:$0xff] %v6959
      %p6980 = scmp.lt.s32.totalorder %s14, 1
      %s6981 = scalar_select %p6980, %s14, 1
      %s6982 = smul.addr %s6981, 20
      %s6983 = smul.addr %s6982, 8
      %s6984 = scalar_lea.vmem %s3, %s6983
      // Predicated region
      $region33: #{conv3d_maxpool.1} parent=31 // pred_check
        %p6985 = pneg %p100
      $region34: #{conv3d_maxpool.1} parent=31 // pred_check_branch
        %6987 = sbr.rel (%p6985) target = $region36
      $region35: #{conv3d_maxpool.1} parent=31 // pred_region
        _
      $region36: #{conv3d_maxpool.1} parent=31 // pred_fallthru
        _
    $region32: #{conv3d_maxpool.1} parent=5 // pred_fallthru
      _
    %p6988 = scmp.le.s32.totalorder 2, %s9
    // Predicated region
    $region37: #{conv3d_maxpool.1} parent=5 // pred_check
      %p6989 = pneg %p6988
    $region38: #{conv3d_maxpool.1} parent=5 // pred_check_branch
      %6991 = sbr.rel (%p6989) target = $region40
    $region39: #{conv3d_maxpool.1} parent=5 // pred_region
      %s6992 = ssub.s32 %s9, 2
      // Predicated region
      $region41: #{conv3d_maxpool.1} parent=39 // pred_check
        %p6993 = pneg %p106
      $region42: #{conv3d_maxpool.1} parent=39 // pred_check_branch
        %6995 = sbr.rel (%p6993) target = $region44
      $region43: #{conv3d_maxpool.1} parent=39 // pred_region
        %p6996 = scmp.lt.s32.totalorder %s15, 1
        %s6997 = scalar_select %p6996, %s15, 1
        %s6998 = smul.addr %s6997, 20
        %s6999 = smul.addr %s6998, 8
        %s7000 = scalar_lea.vmem %s3, %s6999
      $region44: #{conv3d_maxpool.1} parent=39 // pred_fallthru
        _
    $region40: #{conv3d_maxpool.1} parent=5 // pred_fallthru
      _
  $region6: #{conv3d_maxpool.1} parent=0 // loop_footer
    %s13 = sadd.s32 1, %s9
  $region7: #{conv3d_maxpool.1} parent=0 // loop_footer_branch
    %8 = sbr.rel target = $region3
  $region8: #{conv3d_maxpool.1} parent=0 // loop_exit
    _

</llo_original>
